<compile_context>
chip_gen: v6e
topology: v6e:2x2x1
jax: 0.10.0
libtpu: 0.0.40
codegen_flags: <defaults>
</compile_context>

<pallas_src>
import functools

import jax
import jax.numpy as jnp
from jax.experimental import pallas as pl
from jax.experimental.pallas import tpu as pltpu

N_QUBITS = 6          # module global `n_qubits`
N_LAYERS = 22         # module global `n_layers` (repeated layers); weights have N_LAYERS+1
TILE_N = 128          # samples per grid step (lane width)

# Wire -> bit position of the basis-state index (PennyLane: wire 0 is the MSB).
# Kernel state layout: [8 (slab = bits 5..3 = wires 0..2),
#                       8 (sublane = bits 2..0 = wires 3..5), TILE_N (lane = sample)].
_GROUP_BIT = {0: 2, 1: 1, 2: 0}     # wire -> bit of the slab index
_SUB_BIT = {3: 2, 4: 1, 5: 0}       # wire -> bit of the sublane index
_GROUP_STRIDE = {0: 4, 1: 2, 2: 1}  # XOR stride, in slabs
_SUB_STRIDE = {3: 4, 4: 2, 5: 1}    # XOR stride, in sublanes


def _sub_idx(tn):
    return jax.lax.broadcasted_iota(jnp.int32, (1, 8, tn), 1)


def _sub_mask(w, tn):
    return ((_sub_idx(tn) >> _SUB_BIT[w]) & 1) == 1


def _sub_sign(w, tn):
    return (2 * ((_sub_idx(tn) >> _SUB_BIT[w]) & 1) - 1).astype(jnp.float32)


def _sub_partner(a, w, tn):
    """a[.., s, :] -> a[.., s XOR stride_w, :] via intra-vreg sublane rolls (XLU)."""
    st = _SUB_STRIDE[w]
    if st == 4:                          # XOR 4 == rotate by 4 within 8 sublanes
        return pltpu.roll(a, 4, axis=1)
    hi = pltpu.roll(a, st, axis=1)       # a[s - st]   (correct where bit == 1)
    lo = pltpu.roll(a, 8 - st, axis=1)   # a[s + st]   (correct where bit == 0)
    return jnp.where(_sub_mask(w, tn), hi, lo)


def _su2_on_wire(vr, vi, w, car, cai, cbr, cbi, tn):
    """Apply U = [[a, -conj(b)], [b, conj(a)]] (a = car + i*cai, b = cbr + i*cbi)."""
    if w <= 2:
        # slab-aligned: pure VPU 2x2 mix on static slices, no data movement op
        st = _GROUP_STRIDE[w]
        rs, im = [], []
        for base in range(0, 8, 2 * st):
            a0r, a0i = vr[base:base + st], vi[base:base + st]
            a1r, a1i = vr[base + st:base + 2 * st], vi[base + st:base + 2 * st]
            rs.append(car * a0r - cai * a0i - cbr * a1r - cbi * a1i)
            im.append(car * a0i + cai * a0r - cbr * a1i + cbi * a1r)
            rs.append(cbr * a0r - cbi * a0i + car * a1r + cai * a1i)
            im.append(cbr * a0i + cbi * a0r + car * a1i - cai * a1r)
        return jnp.concatenate(rs, axis=0), jnp.concatenate(im, axis=0)
    # sublane wires: partner via rolls, bit-dependent signs folded through msign
    pr = _sub_partner(vr, w, tn)
    pi = _sub_partner(vi, w, tn)
    ms = _sub_sign(w, tn)
    out_r = car * vr - cbi * pi + ms * (cai * vi + cbr * pr)
    out_i = car * vi + cbi * pr + ms * (cbr * pi - cai * vr)
    return out_r, out_i


def _rx_on_wire(vr, vi, w, c, s, tn):
    """Apply RX (c = cos(theta/2), s = sin(theta/2)); coefficients are bit-independent."""
    if w <= 2:
        st = _GROUP_STRIDE[w]
        rs, im = [], []
        for base in range(0, 8, 2 * st):
            a0r, a0i = vr[base:base + st], vi[base:base + st]
            a1r, a1i = vr[base + st:base + 2 * st], vi[base + st:base + 2 * st]
            rs.append(c * a0r + s * a1i)
            im.append(c * a0i - s * a1r)
            rs.append(c * a1r + s * a0i)
            im.append(c * a1i - s * a0r)
        return jnp.concatenate(rs, axis=0), jnp.concatenate(im, axis=0)
    pr = _sub_partner(vr, w, tn)
    pi = _sub_partner(vi, w, tn)
    return c * vr + s * pi, c * vi - s * pr


def _crx_on_wire(vr, vi, cw, tw, c, s, tn):
    """CRX: control cw (acts when |1>), RX(theta) on target tw."""
    mr, mi = _rx_on_wire(vr, vi, tw, c, s, tn)
    if cw <= 2:
        # control bit is a slab bit: select statically by reassembling slabs (no mask)
        st = _GROUP_STRIDE[cw]
        rs, im = [], []
        for base in range(0, 8, 2 * st):
            rs += [vr[base:base + st], mr[base + st:base + 2 * st]]
            im += [vi[base:base + st], mi[base + st:base + 2 * st]]
        return jnp.concatenate(rs, axis=0), jnp.concatenate(im, axis=0)
    mask = _sub_mask(cw, tn)
    return jnp.where(mask, mr, vr), jnp.where(mask, mi, vi)


def _qgan_kernel(w_ref, in_ref, out_ref, cph_ref, sph_ref, *, n_rep_layers):
    nq = N_QUBITS
    tn = in_ref.shape[1]
    f32 = jnp.float32

    # ---- iec gate RY(x1)·RX(x0) fused into one SU(2); 4 coefficient rows, once ----
    x0h = (in_ref[0:1, :] * 0.5).reshape(1, 1, tn)
    x1h = (in_ref[1:2, :] * 0.5).reshape(1, 1, tn)
    c0, s0 = jnp.cos(x0h), jnp.sin(x0h)
    c1, s1 = jnp.cos(x1h), jnp.sin(x1h)
    iar = jnp.broadcast_to(c1 * c0, (1, 8, tn))       # pre-broadcast along sublanes
    iai = jnp.broadcast_to(s1 * s0, (1, 8, tn))
    ibr = jnp.broadcast_to(s1 * c0, (1, 8, tn))
    ibi = jnp.broadcast_to(-(c1 * s0), (1, 8, tn))

    # ---- nec block: the six RZ(p_q) fused into one diagonal phase e^{i*phi} ----
    ph = [(in_ref[2 + q:3 + q, :] * 0.5).reshape(1, 1, tn) for q in range(nq)]
    phi_g_slabs = []
    for g in range(8):                                # slab-bit contribution (wires 0-2)
        acc = None
        for w in (0, 1, 2):
            term = ph[w] if (g >> _GROUP_BIT[w]) & 1 else -ph[w]
            acc = term if acc is None else acc + term
        phi_g_slabs.append(acc)
    phi_g = jnp.concatenate(phi_g_slabs, axis=0)      # (8, 1, tn)
    phi_s = jnp.zeros((1, 8, tn), f32)                # sublane-bit contribution (wires 3-5)
    for w in (3, 4, 5):
        phi_s = phi_s + _sub_sign(w, tn) * ph[w]
    phi = phi_g + phi_s                               # (8, 8, tn)
    cph_ref[...] = jnp.cos(phi)                       # stash in VMEM scratch,
    sph_ref[...] = jnp.sin(phi)                       # reloaded once per layer

    # ---- initial state |0...0> ----
    row0 = (_sub_idx(tn) == 0).astype(f32)            # (1, 8, tn)
    vr0 = jnp.concatenate([row0, jnp.zeros((7, 8, tn), f32)], axis=0)
    vi0 = jnp.zeros((8, 8, tn), f32)

    def vqc(vr, vi, layer):
        # single-qubit block: RZ(w1)·RX(w0) per wire (fused entries from SMEM)
        for q in range(nq):
            base = (layer * nq + q) * 6
            vr, vi = _su2_on_wire(vr, vi, q, w_ref[base], w_ref[base + 1],
                                  w_ref[base + 2], w_ref[base + 3], tn)
        # entangler: CRX(w2, wires=[nq-1-q, (nq-q)%nq]) in q order
        for q in range(nq):
            base = (layer * nq + q) * 6
            vr, vi = _crx_on_wire(vr, vi, nq - 1 - q, (nq - q) % nq,
                                  w_ref[base + 4], w_ref[base + 5], tn)
        return vr, vi

    def layer_body(layer, carry):
        vr, vi = carry
        cph = cph_ref[...]
        sph = sph_ref[...]
        nr = vr * cph - vi * sph                       # nec: one complex multiply
        ni = vi * cph + vr * sph
        vr, vi = vqc(nr, ni, layer)
        for q in range(nq):                            # iec: fused RY(x1)·RX(x0) per wire
            vr, vi = _su2_on_wire(vr, vi, q, iar, iai, ibr, ibi, tn)
        return vr, vi

    vr, vi = jax.lax.fori_loop(0, n_rep_layers, layer_body, (vr0, vi0))
    vr, vi = vqc(vr, vi, n_rep_layers)                 # final vqc(weights[-1])

    # <Z_0>: wire 0 is slab bit 2 -> +1 for slabs 0-3, -1 for slabs 4-7
    prob = vr * vr + vi * vi
    acc = jnp.sum(prob[0:4], axis=0) - jnp.sum(prob[4:8], axis=0)   # (8, tn)
    z = jnp.sum(acc, axis=0, keepdims=True)                         # (1, tn)
    out_ref[...] = (z + 1.0) * 0.5


def generator_forward(p, x, weights):
    """p: [B, NQ] f32, x: [B, IS, IS, 2] f32, weights: [n_layers+1, NQ, 3] f32.
    Returns [B, IS*IS] f32  ==  (qlayer(cat(x, p_tiled)) + 1) / 2
    (the torch docstring claims [B, IS, IS, 2] but the code produces [B, IS*IS])."""
    B, IS = x.shape[0], x.shape[1]
    nq = p.shape[1]
    assert nq == N_QUBITS
    n_rep = weights.shape[0] - 1
    N = B * IS * IS

    # glue: replicate noise per pixel, flatten coords, transpose to [2+NQ, N]
    x_flat = x.reshape(N, 2).astype(jnp.float32)
    p_flat = jnp.repeat(p.astype(jnp.float32), IS * IS, axis=0)          # [N, NQ]
    inputs_t = jnp.concatenate([x_flat, p_flat], axis=1).T               # [8, N]

    n_pad = ((N + TILE_N - 1) // TILE_N) * TILE_N
    if n_pad != N:
        inputs_t = jnp.pad(inputs_t, ((0, 0), (0, n_pad - N)))

    # host-side weight prep: fuse RX(w0)·RZ(w1) into one SU(2) per (layer, qubit):
    #   alpha = c1*c0 - i*s1*c0 , beta = s1*s0 - i*c1*s0   (c/s of half-angles)
    # plus cos/sin of the CRX half-angle.  SMEM layout: flat [(L*NQ)*6].
    wh = weights.astype(jnp.float32) * 0.5
    c = jnp.cos(wh)
    s = jnp.sin(wh)
    c0, c1, c2 = c[..., 0], c[..., 1], c[..., 2]
    s0, s1, s2 = s[..., 0], s[..., 1], s[..., 2]
    wflat = jnp.stack([c1 * c0, -s1 * c0, s1 * s0, -c1 * s0, c2, s2],
                      axis=-1).reshape(-1)

    out = pl.pallas_call(
        functools.partial(_qgan_kernel, n_rep_layers=n_rep),
        out_shape=jax.ShapeDtypeStruct((1, n_pad), jnp.float32),
        grid=(n_pad // TILE_N,),
        in_specs=[
            pl.BlockSpec(memory_space=pltpu.MemorySpace.SMEM),           # fused weight scalars
            pl.BlockSpec((2 + nq, TILE_N), lambda i: (0, i)),            # rows [x0,x1,p0..p5]
        ],
        out_specs=pl.BlockSpec((1, TILE_N), lambda i: (0, i)),
        scratch_shapes=[pltpu.VMEM((8, 8, TILE_N), jnp.float32),         # cos(phi)
                        pltpu.VMEM((8, 8, TILE_N), jnp.float32)],        # sin(phi)
        compiler_params=pltpu.CompilerParams(dimension_semantics=("parallel",)),
    )(wflat, inputs_t)

    return out[0, :N].reshape(B, IS * IS)


if __name__ == "__main__":
    key = jax.random.PRNGKey(0)
    kp, kx, kw = jax.random.split(key, 3)

    B, IS = 2, 16
    p = jax.random.normal(kp, (B, N_QUBITS), dtype=jnp.float32)                       # noise [B, NQ]
    x = jax.random.uniform(kx, (B, IS, IS, 2), dtype=jnp.float32, minval=-1.0, maxval=1.0)
    # deterministic stand-in for TorchLayer's trainable weights: [n_layers+1, NQ, 3]
    weights = jax.random.uniform(kw, (N_LAYERS + 1, N_QUBITS, 3), dtype=jnp.float32,
                                 minval=0.0, maxval=2.0 * jnp.pi)

    fwd = jax.jit(generator_forward)
    out = jax.block_until_ready(fwd(p, x, weights))

    assert out.shape == (B, IS * IS), out.shape
    assert bool(jnp.all(jnp.isfinite(out)))
    # (z + 1) / 2 of a Pauli-Z expectation of a normalized state must stay in [0, 1]
    assert float(out.min()) > -5e-3 and float(out.max()) < 1.0 + 5e-3
    print("KERNEL_OK")
</pallas_src>

<mosaic_0001>
module attributes {stable_mosaic.version = 11 : i64} {
  func.func @_qgan_kernel(%arg0: i32, %arg1: memref<828xf32, #tpu.memory_space<smem>>, %arg2: memref<8x128xf32, #tpu.memory_space<vmem>>, %arg3: memref<1x128xf32, #tpu.memory_space<vmem>>, %arg4: memref<8x8x128xf32, #tpu.memory_space<vmem>>, %arg5: memref<8x8x128xf32, #tpu.memory_space<vmem>>) attributes {dimension_semantics = [#tpu.dimension_semantics<parallel>], iteration_bounds = array<i64: 4>, scalar_prefetch = 0 : i64, scratch_operands = 2 : i64, tpu.core_type = #tpu.core_type<tc>, window_params = [{transform_indices = @transform_0, window_bounds = array<i64: 828>}, {transform_indices = @transform_1, window_bounds = array<i64: 8, 128>}, {transform_indices = @transform_2, window_bounds = array<i64: 1, 128>}]} {
    %c0 = arith.constant 0 : index
    %c0_0 = arith.constant 0 : index
    %0 = vector.load %arg2[%c0, %c0_0] : memref<8x128xf32, #tpu.memory_space<vmem>>, vector<1x128xf32>
    %cst = arith.constant 5.000000e-01 : f32
    %1 = vector.broadcast %cst : f32 to vector<1x128xf32>
    %2 = arith.mulf %0, %1 : vector<1x128xf32>
    %3 = vector.shape_cast %2 : vector<1x128xf32> to vector<1x1x128xf32>
    %c1 = arith.constant 1 : index
    %c0_1 = arith.constant 0 : index
    %4 = vector.load %arg2[%c1, %c0_1] : memref<8x128xf32, #tpu.memory_space<vmem>>, vector<1x128xf32>
    %cst_2 = arith.constant 5.000000e-01 : f32
    %5 = vector.broadcast %cst_2 : f32 to vector<1x128xf32>
    %6 = arith.mulf %4, %5 : vector<1x128xf32>
    %7 = vector.shape_cast %6 : vector<1x128xf32> to vector<1x1x128xf32>
    %8 = math.cos %3 : vector<1x1x128xf32>
    %9 = math.sin %3 : vector<1x1x128xf32>
    %10 = math.cos %7 : vector<1x1x128xf32>
    %11 = math.sin %7 : vector<1x1x128xf32>
    %12 = arith.mulf %10, %8 : vector<1x1x128xf32>
    %13 = vector.shape_cast %12 : vector<1x1x128xf32> to vector<1x1x128xf32>
    %14 = vector.broadcast %13 : vector<1x1x128xf32> to vector<1x8x128xf32>
    %15 = arith.mulf %11, %9 : vector<1x1x128xf32>
    %16 = vector.shape_cast %15 : vector<1x1x128xf32> to vector<1x1x128xf32>
    %17 = vector.broadcast %16 : vector<1x1x128xf32> to vector<1x8x128xf32>
    %18 = arith.mulf %11, %8 : vector<1x1x128xf32>
    %19 = vector.shape_cast %18 : vector<1x1x128xf32> to vector<1x1x128xf32>
    %20 = vector.broadcast %19 : vector<1x1x128xf32> to vector<1x8x128xf32>
    %21 = arith.mulf %10, %9 : vector<1x1x128xf32>
    %cst_3 = arith.constant 0.000000e+00 : f32
    %22 = vector.broadcast %cst_3 : f32 to vector<1x1x128xf32>
    %23 = arith.subf %22, %21 : vector<1x1x128xf32>
    %24 = vector.shape_cast %23 : vector<1x1x128xf32> to vector<1x1x128xf32>
    %25 = vector.broadcast %24 : vector<1x1x128xf32> to vector<1x8x128xf32>
    %c2 = arith.constant 2 : index
    %c0_4 = arith.constant 0 : index
    %26 = vector.load %arg2[%c2, %c0_4] : memref<8x128xf32, #tpu.memory_space<vmem>>, vector<1x128xf32>
    %cst_5 = arith.constant 5.000000e-01 : f32
    %27 = vector.broadcast %cst_5 : f32 to vector<1x128xf32>
    %28 = arith.mulf %26, %27 : vector<1x128xf32>
    %29 = vector.shape_cast %28 : vector<1x128xf32> to vector<1x1x128xf32>
    %c3 = arith.constant 3 : index
    %c0_6 = arith.constant 0 : index
    %30 = vector.load %arg2[%c3, %c0_6] : memref<8x128xf32, #tpu.memory_space<vmem>>, vector<1x128xf32>
    %cst_7 = arith.constant 5.000000e-01 : f32
    %31 = vector.broadcast %cst_7 : f32 to vector<1x128xf32>
    %32 = arith.mulf %30, %31 : vector<1x128xf32>
    %33 = vector.shape_cast %32 : vector<1x128xf32> to vector<1x1x128xf32>
    %c4 = arith.constant 4 : index
    %c0_8 = arith.constant 0 : index
    %34 = vector.load %arg2[%c4, %c0_8] : memref<8x128xf32, #tpu.memory_space<vmem>>, vector<1x128xf32>
    %cst_9 = arith.constant 5.000000e-01 : f32
    %35 = vector.broadcast %cst_9 : f32 to vector<1x128xf32>
    %36 = arith.mulf %34, %35 : vector<1x128xf32>
    %37 = vector.shape_cast %36 : vector<1x128xf32> to vector<1x1x128xf32>
    %c5 = arith.constant 5 : index
    %c0_10 = arith.constant 0 : index
    %38 = vector.load %arg2[%c5, %c0_10] : memref<8x128xf32, #tpu.memory_space<vmem>>, vector<1x128xf32>
    %cst_11 = arith.constant 5.000000e-01 : f32
    %39 = vector.broadcast %cst_11 : f32 to vector<1x128xf32>
    %40 = arith.mulf %38, %39 : vector<1x128xf32>
    %41 = vector.shape_cast %40 : vector<1x128xf32> to vector<1x1x128xf32>
    %c6 = arith.constant 6 : index
    %c0_12 = arith.constant 0 : index
    %42 = vector.load %arg2[%c6, %c0_12] : memref<8x128xf32, #tpu.memory_space<vmem>>, vector<1x128xf32>
    %cst_13 = arith.constant 5.000000e-01 : f32
    %43 = vector.broadcast %cst_13 : f32 to vector<1x128xf32>
    %44 = arith.mulf %42, %43 : vector<1x128xf32>
    %45 = vector.shape_cast %44 : vector<1x128xf32> to vector<1x1x128xf32>
    %c7 = arith.constant 7 : index
    %c0_14 = arith.constant 0 : index
    %46 = vector.load %arg2[%c7, %c0_14] : memref<8x128xf32, #tpu.memory_space<vmem>>, vector<1x128xf32>
    %cst_15 = arith.constant 5.000000e-01 : f32
    %47 = vector.broadcast %cst_15 : f32 to vector<1x128xf32>
    %48 = arith.mulf %46, %47 : vector<1x128xf32>
    %49 = vector.shape_cast %48 : vector<1x128xf32> to vector<1x1x128xf32>
    %cst_16 = arith.constant 0.000000e+00 : f32
    %50 = vector.broadcast %cst_16 : f32 to vector<1x1x128xf32>
    %51 = arith.subf %50, %29 : vector<1x1x128xf32>
    %cst_17 = arith.constant 0.000000e+00 : f32
    %52 = vector.broadcast %cst_17 : f32 to vector<1x1x128xf32>
    %53 = arith.subf %52, %33 : vector<1x1x128xf32>
    %54 = arith.addf %51, %53 : vector<1x1x128xf32>
    %cst_18 = arith.constant 0.000000e+00 : f32
    %55 = vector.broadcast %cst_18 : f32 to vector<1x1x128xf32>
    %56 = arith.subf %55, %37 : vector<1x1x128xf32>
    %57 = arith.addf %54, %56 : vector<1x1x128xf32>
    %cst_19 = arith.constant 0.000000e+00 : f32
    %58 = vector.broadcast %cst_19 : f32 to vector<1x1x128xf32>
    %59 = arith.subf %58, %29 : vector<1x1x128xf32>
    %cst_20 = arith.constant 0.000000e+00 : f32
    %60 = vector.broadcast %cst_20 : f32 to vector<1x1x128xf32>
    %61 = arith.subf %60, %33 : vector<1x1x128xf32>
    %62 = arith.addf %59, %61 : vector<1x1x128xf32>
    %63 = arith.addf %62, %37 : vector<1x1x128xf32>
    %cst_21 = arith.constant 0.000000e+00 : f32
    %64 = vector.broadcast %cst_21 : f32 to vector<1x1x128xf32>
    %65 = arith.subf %64, %29 : vector<1x1x128xf32>
    %66 = arith.addf %65, %33 : vector<1x1x128xf32>
    %cst_22 = arith.constant 0.000000e+00 : f32
    %67 = vector.broadcast %cst_22 : f32 to vector<1x1x128xf32>
    %68 = arith.subf %67, %37 : vector<1x1x128xf32>
    %69 = arith.addf %66, %68 : vector<1x1x128xf32>
    %cst_23 = arith.constant 0.000000e+00 : f32
    %70 = vector.broadcast %cst_23 : f32 to vector<1x1x128xf32>
    %71 = arith.subf %70, %29 : vector<1x1x128xf32>
    %72 = arith.addf %71, %33 : vector<1x1x128xf32>
    %73 = arith.addf %72, %37 : vector<1x1x128xf32>
    %cst_24 = arith.constant 0.000000e+00 : f32
    %74 = vector.broadcast %cst_24 : f32 to vector<1x1x128xf32>
    %75 = arith.subf %74, %33 : vector<1x1x128xf32>
    %76 = arith.addf %29, %75 : vector<1x1x128xf32>
    %cst_25 = arith.constant 0.000000e+00 : f32
    %77 = vector.broadcast %cst_25 : f32 to vector<1x1x128xf32>
    %78 = arith.subf %77, %37 : vector<1x1x128xf32>
    %79 = arith.addf %76, %78 : vector<1x1x128xf32>
    %cst_26 = arith.constant 0.000000e+00 : f32
    %80 = vector.broadcast %cst_26 : f32 to vector<1x1x128xf32>
    %81 = arith.subf %80, %33 : vector<1x1x128xf32>
    %82 = arith.addf %29, %81 : vector<1x1x128xf32>
    %83 = arith.addf %82, %37 : vector<1x1x128xf32>
    %84 = arith.addf %29, %33 : vector<1x1x128xf32>
    %cst_27 = arith.constant 0.000000e+00 : f32
    %85 = vector.broadcast %cst_27 : f32 to vector<1x1x128xf32>
    %86 = arith.subf %85, %37 : vector<1x1x128xf32>
    %87 = arith.addf %84, %86 : vector<1x1x128xf32>
    %88 = arith.addf %29, %33 : vector<1x1x128xf32>
    %89 = arith.addf %88, %37 : vector<1x1x128xf32>
    %90 = tpu.concatenate %57, %63, %69, %73, %79, %83, %87, %89 in 0 : vector<1x1x128xf32>, vector<1x1x128xf32>, vector<1x1x128xf32>, vector<1x1x128xf32>, vector<1x1x128xf32>, vector<1x1x128xf32>, vector<1x1x128xf32>, vector<1x1x128xf32> -> vector<8x1x128xf32>
    %cst_28 = arith.constant 0.000000e+00 : f32
    %91 = vector.broadcast %cst_28 : f32 to vector<1x8x128xf32>
    %92 = tpu.iota {dimensions = array<i32: 1>} : vector<1x8x128xi32>
    %c2_i32 = arith.constant 2 : i32
    %93 = vector.broadcast %c2_i32 : i32 to vector<1x8x128xi32>
    %94 = arith.shrsi %92, %93 : vector<1x8x128xi32>
    %c1_i32 = arith.constant 1 : i32
    %95 = vector.broadcast %c1_i32 : i32 to vector<1x8x128xi32>
    %96 = arith.andi %94, %95 : vector<1x8x128xi32>
    %c2_i32_29 = arith.constant 2 : i32
    %97 = vector.broadcast %c2_i32_29 : i32 to vector<1x8x128xi32>
    %98 = arith.muli %97, %96 : vector<1x8x128xi32>
    %c1_i32_30 = arith.constant 1 : i32
    %99 = vector.broadcast %c1_i32_30 : i32 to vector<1x8x128xi32>
    %100 = arith.subi %98, %99 : vector<1x8x128xi32>
    %101 = arith.sitofp %100 : vector<1x8x128xi32> to vector<1x8x128xf32>
    %102 = vector.broadcast %41 : vector<1x1x128xf32> to vector<1x8x128xf32>
    %103 = arith.mulf %101, %102 : vector<1x8x128xf32>
    %104 = arith.addf %91, %103 : vector<1x8x128xf32>
    %105 = tpu.iota {dimensions = array<i32: 1>} : vector<1x8x128xi32>
    %c1_i32_31 = arith.constant 1 : i32
    %106 = vector.broadcast %c1_i32_31 : i32 to vector<1x8x128xi32>
    %107 = arith.shrsi %105, %106 : vector<1x8x128xi32>
    %c1_i32_32 = arith.constant 1 : i32
    %108 = vector.broadcast %c1_i32_32 : i32 to vector<1x8x128xi32>
    %109 = arith.andi %107, %108 : vector<1x8x128xi32>
    %c2_i32_33 = arith.constant 2 : i32
    %110 = vector.broadcast %c2_i32_33 : i32 to vector<1x8x128xi32>
    %111 = arith.muli %110, %109 : vector<1x8x128xi32>
    %c1_i32_34 = arith.constant 1 : i32
    %112 = vector.broadcast %c1_i32_34 : i32 to vector<1x8x128xi32>
    %113 = arith.subi %111, %112 : vector<1x8x128xi32>
    %114 = arith.sitofp %113 : vector<1x8x128xi32> to vector<1x8x128xf32>
    %115 = vector.broadcast %45 : vector<1x1x128xf32> to vector<1x8x128xf32>
    %116 = arith.mulf %114, %115 : vector<1x8x128xf32>
    %117 = arith.addf %104, %116 : vector<1x8x128xf32>
    %118 = tpu.iota {dimensions = array<i32: 1>} : vector<1x8x128xi32>
    %c0_i32 = arith.constant 0 : i32
    %119 = vector.broadcast %c0_i32 : i32 to vector<1x8x128xi32>
    %120 = arith.shrsi %118, %119 : vector<1x8x128xi32>
    %c1_i32_35 = arith.constant 1 : i32
    %121 = vector.broadcast %c1_i32_35 : i32 to vector<1x8x128xi32>
    %122 = arith.andi %120, %121 : vector<1x8x128xi32>
    %c2_i32_36 = arith.constant 2 : i32
    %123 = vector.broadcast %c2_i32_36 : i32 to vector<1x8x128xi32>
    %124 = arith.muli %123, %122 : vector<1x8x128xi32>
    %c1_i32_37 = arith.constant 1 : i32
    %125 = vector.broadcast %c1_i32_37 : i32 to vector<1x8x128xi32>
    %126 = arith.subi %124, %125 : vector<1x8x128xi32>
    %127 = arith.sitofp %126 : vector<1x8x128xi32> to vector<1x8x128xf32>
    %128 = vector.broadcast %49 : vector<1x1x128xf32> to vector<1x8x128xf32>
    %129 = arith.mulf %127, %128 : vector<1x8x128xf32>
    %130 = arith.addf %117, %129 : vector<1x8x128xf32>
    %131 = vector.broadcast %90 : vector<8x1x128xf32> to vector<8x8x128xf32>
    %132 = vector.broadcast %130 : vector<1x8x128xf32> to vector<8x8x128xf32>
    %133 = arith.addf %131, %132 : vector<8x8x128xf32>
    %134 = math.cos %133 : vector<8x8x128xf32>
    %c0_38 = arith.constant 0 : index
    %c0_39 = arith.constant 0 : index
    %c0_40 = arith.constant 0 : index
    %135 = vector.load %arg4[%c0_38, %c0_39, %c0_40] : memref<8x8x128xf32, #tpu.memory_space<vmem>>, vector<8x8x128xf32>
    tpu.vector_store %arg4[%c0_38, %c0_39, %c0_40], %134 {strides = array<i32>} : memref<8x8x128xf32, #tpu.memory_space<vmem>>, vector<8x8x128xf32>,
    %136 = math.sin %133 : vector<8x8x128xf32>
    %c0_41 = arith.constant 0 : index
    %c0_42 = arith.constant 0 : index
    %c0_43 = arith.constant 0 : index
    %137 = vector.load %arg5[%c0_41, %c0_42, %c0_43] : memref<8x8x128xf32, #tpu.memory_space<vmem>>, vector<8x8x128xf32>
    tpu.vector_store %arg5[%c0_41, %c0_42, %c0_43], %136 {strides = array<i32>} : memref<8x8x128xf32, #tpu.memory_space<vmem>>, vector<8x8x128xf32>,
    %138 = tpu.iota {dimensions = array<i32: 1>} : vector<1x8x128xi32>
    %c0_i32_44 = arith.constant 0 : i32
    %139 = vector.broadcast %c0_i32_44 : i32 to vector<1x8x128xi32>
    %140 = arith.cmpi eq, %138, %139 : vector<1x8x128xi32>
    %141 = arith.extui %140 : vector<1x8x128xi1> to vector<1x8x128xi32>
    %142 = arith.sitofp %141 : vector<1x8x128xi32> to vector<1x8x128xf32>
    %cst_45 = arith.constant 0.000000e+00 : f32
    %143 = vector.broadcast %cst_45 : f32 to vector<7x8x128xf32>
    %144 = tpu.concatenate %142, %143 in 0 : vector<1x8x128xf32>, vector<7x8x128xf32> -> vector<8x8x128xf32>
    %cst_46 = arith.constant 0.000000e+00 : f32
    %145 = vector.broadcast %cst_46 : f32 to vector<8x8x128xf32>
    %c0_i32_47 = arith.constant 0 : i32
    %c22_i32 = arith.constant 22 : i32
    %146 = arith.addi %c0_i32_47, %c22_i32 : i32
    %c1_i32_48 = arith.constant 1 : i32
    %147:2 = scf.for %arg6 = %c0_i32_47 to %146 step %c1_i32_48 iter_args(%arg7 = %144, %arg8 = %145) -> (vector<8x8x128xf32>, vector<8x8x128xf32>)  : i32 {
      %c0_119 = arith.constant 0 : index
      %c0_120 = arith.constant 0 : index
      %c0_121 = arith.constant 0 : index
      %1026 = vector.load %arg4[%c0_119, %c0_120, %c0_121] : memref<8x8x128xf32, #tpu.memory_space<vmem>>, vector<8x8x128xf32>
      %c0_122 = arith.constant 0 : index
      %c0_123 = arith.constant 0 : index
      %c0_124 = arith.constant 0 : index
      %1027 = vector.load %arg5[%c0_122, %c0_123, %c0_124] : memref<8x8x128xf32, #tpu.memory_space<vmem>>, vector<8x8x128xf32>
      %1028 = arith.mulf %arg7, %1026 : vector<8x8x128xf32>
      %1029 = arith.mulf %arg8, %1027 : vector<8x8x128xf32>
      %1030 = arith.subf %1028, %1029 : vector<8x8x128xf32>
      %1031 = arith.mulf %arg8, %1026 : vector<8x8x128xf32>
      %1032 = arith.mulf %arg7, %1027 : vector<8x8x128xf32>
      %1033 = arith.addf %1031, %1032 : vector<8x8x128xf32>
      %c6_i32_125 = arith.constant 6 : i32
      %1034 = arith.muli %arg6, %c6_i32_125 : i32
      %c0_i32_126 = arith.constant 0 : i32
      %1035 = arith.addi %1034, %c0_i32_126 : i32
      %c6_i32_127 = arith.constant 6 : i32
      %1036 = arith.muli %1035, %c6_i32_127 : i32
      %1037 = arith.index_cast %1036 : i32 to index
      %1038 = memref.load %arg1[%1037] : memref<828xf32, #tpu.memory_space<smem>>
      %c1_i32_128 = arith.constant 1 : i32
      %1039 = arith.addi %1036, %c1_i32_128 : i32
      %1040 = arith.index_cast %1039 : i32 to index
      %1041 = memref.load %arg1[%1040] : memref<828xf32, #tpu.memory_space<smem>>
      %c2_i32_129 = arith.constant 2 : i32
      %1042 = arith.addi %1036, %c2_i32_129 : i32
      %1043 = arith.index_cast %1042 : i32 to index
      %1044 = memref.load %arg1[%1043] : memref<828xf32, #tpu.memory_space<smem>>
      %c3_i32 = arith.constant 3 : i32
      %1045 = arith.addi %1036, %c3_i32 : i32
      %1046 = arith.index_cast %1045 : i32 to index
      %1047 = memref.load %arg1[%1046] : memref<828xf32, #tpu.memory_space<smem>>
      %1048 = vector.extract_strided_slice %1030 {offsets = [0, 0, 0], sizes = [4, 8, 128], strides = [1, 1, 1]} : vector<8x8x128xf32> to vector<4x8x128xf32>
      %1049 = vector.extract_strided_slice %1033 {offsets = [0, 0, 0], sizes = [4, 8, 128], strides = [1, 1, 1]} : vector<8x8x128xf32> to vector<4x8x128xf32>
      %1050 = vector.extract_strided_slice %1030 {offsets = [4, 0, 0], sizes = [4, 8, 128], strides = [1, 1, 1]} : vector<8x8x128xf32> to vector<4x8x128xf32>
      %1051 = vector.extract_strided_slice %1033 {offsets = [4, 0, 0], sizes = [4, 8, 128], strides = [1, 1, 1]} : vector<8x8x128xf32> to vector<4x8x128xf32>
      %1052 = vector.broadcast %1038 : f32 to vector<4x8x128xf32>
      %1053 = arith.mulf %1052, %1048 : vector<4x8x128xf32>
      %1054 = vector.broadcast %1041 : f32 to vector<4x8x128xf32>
      %1055 = arith.mulf %1054, %1049 : vector<4x8x128xf32>
      %1056 = arith.subf %1053, %1055 : vector<4x8x128xf32>
      %1057 = vector.broadcast %1044 : f32 to vector<4x8x128xf32>
      %1058 = arith.mulf %1057, %1050 : vector<4x8x128xf32>
      %1059 = arith.subf %1056, %1058 : vector<4x8x128xf32>
      %1060 = vector.broadcast %1047 : f32 to vector<4x8x128xf32>
      %1061 = arith.mulf %1060, %1051 : vector<4x8x128xf32>
      %1062 = arith.subf %1059, %1061 : vector<4x8x128xf32>
      %1063 = vector.broadcast %1038 : f32 to vector<4x8x128xf32>
      %1064 = arith.mulf %1063, %1049 : vector<4x8x128xf32>
      %1065 = vector.broadcast %1041 : f32 to vector<4x8x128xf32>
      %1066 = arith.mulf %1065, %1048 : vector<4x8x128xf32>
      %1067 = arith.addf %1064, %1066 : vector<4x8x128xf32>
      %1068 = vector.broadcast %1044 : f32 to vector<4x8x128xf32>
      %1069 = arith.mulf %1068, %1051 : vector<4x8x128xf32>
      %1070 = arith.subf %1067, %1069 : vector<4x8x128xf32>
      %1071 = vector.broadcast %1047 : f32 to vector<4x8x128xf32>
      %1072 = arith.mulf %1071, %1050 : vector<4x8x128xf32>
      %1073 = arith.addf %1070, %1072 : vector<4x8x128xf32>
      %1074 = vector.broadcast %1044 : f32 to vector<4x8x128xf32>
      %1075 = arith.mulf %1074, %1048 : vector<4x8x128xf32>
      %1076 = vector.broadcast %1047 : f32 to vector<4x8x128xf32>
      %1077 = arith.mulf %1076, %1049 : vector<4x8x128xf32>
      %1078 = arith.subf %1075, %1077 : vector<4x8x128xf32>
      %1079 = vector.broadcast %1038 : f32 to vector<4x8x128xf32>
      %1080 = arith.mulf %1079, %1050 : vector<4x8x128xf32>
      %1081 = arith.addf %1078, %1080 : vector<4x8x128xf32>
      %1082 = vector.broadcast %1041 : f32 to vector<4x8x128xf32>
      %1083 = arith.mulf %1082, %1051 : vector<4x8x128xf32>
      %1084 = arith.addf %1081, %1083 : vector<4x8x128xf32>
      %1085 = vector.broadcast %1044 : f32 to vector<4x8x128xf32>
      %1086 = arith.mulf %1085, %1049 : vector<4x8x128xf32>
      %1087 = vector.broadcast %1047 : f32 to vector<4x8x128xf32>
      %1088 = arith.mulf %1087, %1048 : vector<4x8x128xf32>
      %1089 = arith.addf %1086, %1088 : vector<4x8x128xf32>
      %1090 = vector.broadcast %1038 : f32 to vector<4x8x128xf32>
      %1091 = arith.mulf %1090, %1051 : vector<4x8x128xf32>
      %1092 = arith.addf %1089, %1091 : vector<4x8x128xf32>
      %1093 = vector.broadcast %1041 : f32 to vector<4x8x128xf32>
      %1094 = arith.mulf %1093, %1050 : vector<4x8x128xf32>
      %1095 = arith.subf %1092, %1094 : vector<4x8x128xf32>
      %1096 = tpu.concatenate %1062, %1084 in 0 : vector<4x8x128xf32>, vector<4x8x128xf32> -> vector<8x8x128xf32>
      %1097 = tpu.concatenate %1073, %1095 in 0 : vector<4x8x128xf32>, vector<4x8x128xf32> -> vector<8x8x128xf32>
      %c6_i32_130 = arith.constant 6 : i32
      %1098 = arith.muli %arg6, %c6_i32_130 : i32
      %c1_i32_131 = arith.constant 1 : i32
      %1099 = arith.addi %1098, %c1_i32_131 : i32
      %c6_i32_132 = arith.constant 6 : i32
      %1100 = arith.muli %1099, %c6_i32_132 : i32
      %1101 = arith.index_cast %1100 : i32 to index
      %1102 = memref.load %arg1[%1101] : memref<828xf32, #tpu.memory_space<smem>>
      %c1_i32_133 = arith.constant 1 : i32
      %1103 = arith.addi %1100, %c1_i32_133 : i32
      %1104 = arith.index_cast %1103 : i32 to index
      %1105 = memref.load %arg1[%1104] : memref<828xf32, #tpu.memory_space<smem>>
      %c2_i32_134 = arith.constant 2 : i32
      %1106 = arith.addi %1100, %c2_i32_134 : i32
      %1107 = arith.index_cast %1106 : i32 to index
      %1108 = memref.load %arg1[%1107] : memref<828xf32, #tpu.memory_space<smem>>
      %c3_i32_135 = arith.constant 3 : i32
      %1109 = arith.addi %1100, %c3_i32_135 : i32
      %1110 = arith.index_cast %1109 : i32 to index
      %1111 = memref.load %arg1[%1110] : memref<828xf32, #tpu.memory_space<smem>>
      %1112 = vector.extract_strided_slice %1096 {offsets = [0, 0, 0], sizes = [2, 8, 128], strides = [1, 1, 1]} : vector<8x8x128xf32> to vector<2x8x128xf32>
      %1113 = vector.extract_strided_slice %1097 {offsets = [0, 0, 0], sizes = [2, 8, 128], strides = [1, 1, 1]} : vector<8x8x128xf32> to vector<2x8x128xf32>
      %1114 = vector.extract_strided_slice %1096 {offsets = [2, 0, 0], sizes = [2, 8, 128], strides = [1, 1, 1]} : vector<8x8x128xf32> to vector<2x8x128xf32>
      %1115 = vector.extract_strided_slice %1097 {offsets = [2, 0, 0], sizes = [2, 8, 128], strides = [1, 1, 1]} : vector<8x8x128xf32> to vector<2x8x128xf32>
      %1116 = vector.broadcast %1102 : f32 to vector<2x8x128xf32>
      %1117 = arith.mulf %1116, %1112 : vector<2x8x128xf32>
      %1118 = vector.broadcast %1105 : f32 to vector<2x8x128xf32>
      %1119 = arith.mulf %1118, %1113 : vector<2x8x128xf32>
      %1120 = arith.subf %1117, %1119 : vector<2x8x128xf32>
      %1121 = vector.broadcast %1108 : f32 to vector<2x8x128xf32>
      %1122 = arith.mulf %1121, %1114 : vector<2x8x128xf32>
      %1123 = arith.subf %1120, %1122 : vector<2x8x128xf32>
      %1124 = vector.broadcast %1111 : f32 to vector<2x8x128xf32>
      %1125 = arith.mulf %1124, %1115 : vector<2x8x128xf32>
      %1126 = arith.subf %1123, %1125 : vector<2x8x128xf32>
      %1127 = vector.broadcast %1102 : f32 to vector<2x8x128xf32>
      %1128 = arith.mulf %1127, %1113 : vector<2x8x128xf32>
      %1129 = vector.broadcast %1105 : f32 to vector<2x8x128xf32>
      %1130 = arith.mulf %1129, %1112 : vector<2x8x128xf32>
      %1131 = arith.addf %1128, %1130 : vector<2x8x128xf32>
      %1132 = vector.broadcast %1108 : f32 to vector<2x8x128xf32>
      %1133 = arith.mulf %1132, %1115 : vector<2x8x128xf32>
      %1134 = arith.subf %1131, %1133 : vector<2x8x128xf32>
      %1135 = vector.broadcast %1111 : f32 to vector<2x8x128xf32>
      %1136 = arith.mulf %1135, %1114 : vector<2x8x128xf32>
      %1137 = arith.addf %1134, %1136 : vector<2x8x128xf32>
      %1138 = vector.broadcast %1108 : f32 to vector<2x8x128xf32>
      %1139 = arith.mulf %1138, %1112 : vector<2x8x128xf32>
      %1140 = vector.broadcast %1111 : f32 to vector<2x8x128xf32>
      %1141 = arith.mulf %1140, %1113 : vector<2x8x128xf32>
      %1142 = arith.subf %1139, %1141 : vector<2x8x128xf32>
      %1143 = vector.broadcast %1102 : f32 to vector<2x8x128xf32>
      %1144 = arith.mulf %1143, %1114 : vector<2x8x128xf32>
      %1145 = arith.addf %1142, %1144 : vector<2x8x128xf32>
      %1146 = vector.broadcast %1105 : f32 to vector<2x8x128xf32>
      %1147 = arith.mulf %1146, %1115 : vector<2x8x128xf32>
      %1148 = arith.addf %1145, %1147 : vector<2x8x128xf32>
      %1149 = vector.broadcast %1108 : f32 to vector<2x8x128xf32>
      %1150 = arith.mulf %1149, %1113 : vector<2x8x128xf32>
      %1151 = vector.broadcast %1111 : f32 to vector<2x8x128xf32>
      %1152 = arith.mulf %1151, %1112 : vector<2x8x128xf32>
      %1153 = arith.addf %1150, %1152 : vector<2x8x128xf32>
      %1154 = vector.broadcast %1102 : f32 to vector<2x8x128xf32>
      %1155 = arith.mulf %1154, %1115 : vector<2x8x128xf32>
      %1156 = arith.addf %1153, %1155 : vector<2x8x128xf32>
      %1157 = vector.broadcast %1105 : f32 to vector<2x8x128xf32>
      %1158 = arith.mulf %1157, %1114 : vector<2x8x128xf32>
      %1159 = arith.subf %1156, %1158 : vector<2x8x128xf32>
      %1160 = vector.extract_strided_slice %1096 {offsets = [4, 0, 0], sizes = [2, 8, 128], strides = [1, 1, 1]} : vector<8x8x128xf32> to vector<2x8x128xf32>
      %1161 = vector.extract_strided_slice %1097 {offsets = [4, 0, 0], sizes = [2, 8, 128], strides = [1, 1, 1]} : vector<8x8x128xf32> to vector<2x8x128xf32>
      %1162 = vector.extract_strided_slice %1096 {offsets = [6, 0, 0], sizes = [2, 8, 128], strides = [1, 1, 1]} : vector<8x8x128xf32> to vector<2x8x128xf32>
      %1163 = vector.extract_strided_slice %1097 {offsets = [6, 0, 0], sizes = [2, 8, 128], strides = [1, 1, 1]} : vector<8x8x128xf32> to vector<2x8x128xf32>
      %1164 = vector.broadcast %1102 : f32 to vector<2x8x128xf32>
      %1165 = arith.mulf %1164, %1160 : vector<2x8x128xf32>
      %1166 = vector.broadcast %1105 : f32 to vector<2x8x128xf32>
      %1167 = arith.mulf %1166, %1161 : vector<2x8x128xf32>
      %1168 = arith.subf %1165, %1167 : vector<2x8x128xf32>
      %1169 = vector.broadcast %1108 : f32 to vector<2x8x128xf32>
      %1170 = arith.mulf %1169, %1162 : vector<2x8x128xf32>
      %1171 = arith.subf %1168, %1170 : vector<2x8x128xf32>
      %1172 = vector.broadcast %1111 : f32 to vector<2x8x128xf32>
      %1173 = arith.mulf %1172, %1163 : vector<2x8x128xf32>
      %1174 = arith.subf %1171, %1173 : vector<2x8x128xf32>
      %1175 = vector.broadcast %1102 : f32 to vector<2x8x128xf32>
      %1176 = arith.mulf %1175, %1161 : vector<2x8x128xf32>
      %1177 = vector.broadcast %1105 : f32 to vector<2x8x128xf32>
      %1178 = arith.mulf %1177, %1160 : vector<2x8x128xf32>
      %1179 = arith.addf %1176, %1178 : vector<2x8x128xf32>
      %1180 = vector.broadcast %1108 : f32 to vector<2x8x128xf32>
      %1181 = arith.mulf %1180, %1163 : vector<2x8x128xf32>
      %1182 = arith.subf %1179, %1181 : vector<2x8x128xf32>
      %1183 = vector.broadcast %1111 : f32 to vector<2x8x128xf32>
      %1184 = arith.mulf %1183, %1162 : vector<2x8x128xf32>
      %1185 = arith.addf %1182, %1184 : vector<2x8x128xf32>
      %1186 = vector.broadcast %1108 : f32 to vector<2x8x128xf32>
      %1187 = arith.mulf %1186, %1160 : vector<2x8x128xf32>
      %1188 = vector.broadcast %1111 : f32 to vector<2x8x128xf32>
      %1189 = arith.mulf %1188, %1161 : vector<2x8x128xf32>
      %1190 = arith.subf %1187, %1189 : vector<2x8x128xf32>
      %1191 = vector.broadcast %1102 : f32 to vector<2x8x128xf32>
      %1192 = arith.mulf %1191, %1162 : vector<2x8x128xf32>
      %1193 = arith.addf %1190, %1192 : vector<2x8x128xf32>
      %1194 = vector.broadcast %1105 : f32 to vector<2x8x128xf32>
      %1195 = arith.mulf %1194, %1163 : vector<2x8x128xf32>
      %1196 = arith.addf %1193, %1195 : vector<2x8x128xf32>
      %1197 = vector.broadcast %1108 : f32 to vector<2x8x128xf32>
      %1198 = arith.mulf %1197, %1161 : vector<2x8x128xf32>
      %1199 = vector.broadcast %1111 : f32 to vector<2x8x128xf32>
      %1200 = arith.mulf %1199, %1160 : vector<2x8x128xf32>
      %1201 = arith.addf %1198, %1200 : vector<2x8x128xf32>
      %1202 = vector.broadcast %1102 : f32 to vector<2x8x128xf32>
      %1203 = arith.mulf %1202, %1163 : vector<2x8x128xf32>
      %1204 = arith.addf %1201, %1203 : vector<2x8x128xf32>
      %1205 = vector.broadcast %1105 : f32 to vector<2x8x128xf32>
      %1206 = arith.mulf %1205, %1162 : vector<2x8x128xf32>
      %1207 = arith.subf %1204, %1206 : vector<2x8x128xf32>
      %1208 = tpu.concatenate %1126, %1148, %1174, %1196 in 0 : vector<2x8x128xf32>, vector<2x8x128xf32>, vector<2x8x128xf32>, vector<2x8x128xf32> -> vector<8x8x128xf32>
      %1209 = tpu.concatenate %1137, %1159, %1185, %1207 in 0 : vector<2x8x128xf32>, vector<2x8x128xf32>, vector<2x8x128xf32>, vector<2x8x128xf32> -> vector<8x8x128xf32>
      %c6_i32_136 = arith.constant 6 : i32
      %1210 = arith.muli %arg6, %c6_i32_136 : i32
      %c2_i32_137 = arith.constant 2 : i32
      %1211 = arith.addi %1210, %c2_i32_137 : i32
      %c6_i32_138 = arith.constant 6 : i32
      %1212 = arith.muli %1211, %c6_i32_138 : i32
      %1213 = arith.index_cast %1212 : i32 to index
      %1214 = memref.load %arg1[%1213] : memref<828xf32, #tpu.memory_space<smem>>
      %c1_i32_139 = arith.constant 1 : i32
      %1215 = arith.addi %1212, %c1_i32_139 : i32
      %1216 = arith.index_cast %1215 : i32 to index
      %1217 = memref.load %arg1[%1216] : memref<828xf32, #tpu.memory_space<smem>>
      %c2_i32_140 = arith.constant 2 : i32
      %1218 = arith.addi %1212, %c2_i32_140 : i32
      %1219 = arith.index_cast %1218 : i32 to index
      %1220 = memref.load %arg1[%1219] : memref<828xf32, #tpu.memory_space<smem>>
      %c3_i32_141 = arith.constant 3 : i32
      %1221 = arith.addi %1212, %c3_i32_141 : i32
      %1222 = arith.index_cast %1221 : i32 to index
      %1223 = memref.load %arg1[%1222] : memref<828xf32, #tpu.memory_space<smem>>
      %1224 = vector.extract_strided_slice %1208 {offsets = [0, 0, 0], sizes = [1, 8, 128], strides = [1, 1, 1]} : vector<8x8x128xf32> to vector<1x8x128xf32>
      %1225 = vector.extract_strided_slice %1209 {offsets = [0, 0, 0], sizes = [1, 8, 128], strides = [1, 1, 1]} : vector<8x8x128xf32> to vector<1x8x128xf32>
      %1226 = vector.extract_strided_slice %1208 {offsets = [1, 0, 0], sizes = [1, 8, 128], strides = [1, 1, 1]} : vector<8x8x128xf32> to vector<1x8x128xf32>
      %1227 = vector.extract_strided_slice %1209 {offsets = [1, 0, 0], sizes = [1, 8, 128], strides = [1, 1, 1]} : vector<8x8x128xf32> to vector<1x8x128xf32>
      %1228 = vector.broadcast %1214 : f32 to vector<1x8x128xf32>
      %1229 = arith.mulf %1228, %1224 : vector<1x8x128xf32>
      %1230 = vector.broadcast %1217 : f32 to vector<1x8x128xf32>
      %1231 = arith.mulf %1230, %1225 : vector<1x8x128xf32>
      %1232 = arith.subf %1229, %1231 : vector<1x8x128xf32>
      %1233 = vector.broadcast %1220 : f32 to vector<1x8x128xf32>
      %1234 = arith.mulf %1233, %1226 : vector<1x8x128xf32>
      %1235 = arith.subf %1232, %1234 : vector<1x8x128xf32>
      %1236 = vector.broadcast %1223 : f32 to vector<1x8x128xf32>
      %1237 = arith.mulf %1236, %1227 : vector<1x8x128xf32>
      %1238 = arith.subf %1235, %1237 : vector<1x8x128xf32>
      %1239 = vector.broadcast %1214 : f32 to vector<1x8x128xf32>
      %1240 = arith.mulf %1239, %1225 : vector<1x8x128xf32>
      %1241 = vector.broadcast %1217 : f32 to vector<1x8x128xf32>
      %1242 = arith.mulf %1241, %1224 : vector<1x8x128xf32>
      %1243 = arith.addf %1240, %1242 : vector<1x8x128xf32>
      %1244 = vector.broadcast %1220 : f32 to vector<1x8x128xf32>
      %1245 = arith.mulf %1244, %1227 : vector<1x8x128xf32>
      %1246 = arith.subf %1243, %1245 : vector<1x8x128xf32>
      %1247 = vector.broadcast %1223 : f32 to vector<1x8x128xf32>
      %1248 = arith.mulf %1247, %1226 : vector<1x8x128xf32>
      %1249 = arith.addf %1246, %1248 : vector<1x8x128xf32>
      %1250 = vector.broadcast %1220 : f32 to vector<1x8x128xf32>
      %1251 = arith.mulf %1250, %1224 : vector<1x8x128xf32>
      %1252 = vector.broadcast %1223 : f32 to vector<1x8x128xf32>
      %1253 = arith.mulf %1252, %1225 : vector<1x8x128xf32>
      %1254 = arith.subf %1251, %1253 : vector<1x8x128xf32>
      %1255 = vector.broadcast %1214 : f32 to vector<1x8x128xf32>
      %1256 = arith.mulf %1255, %1226 : vector<1x8x128xf32>
      %1257 = arith.addf %1254, %1256 : vector<1x8x128xf32>
      %1258 = vector.broadcast %1217 : f32 to vector<1x8x128xf32>
      %1259 = arith.mulf %1258, %1227 : vector<1x8x128xf32>
      %1260 = arith.addf %1257, %1259 : vector<1x8x128xf32>
      %1261 = vector.broadcast %1220 : f32 to vector<1x8x128xf32>
      %1262 = arith.mulf %1261, %1225 : vector<1x8x128xf32>
      %1263 = vector.broadcast %1223 : f32 to vector<1x8x128xf32>
      %1264 = arith.mulf %1263, %1224 : vector<1x8x128xf32>
      %1265 = arith.addf %1262, %1264 : vector<1x8x128xf32>
      %1266 = vector.broadcast %1214 : f32 to vector<1x8x128xf32>
      %1267 = arith.mulf %1266, %1227 : vector<1x8x128xf32>
      %1268 = arith.addf %1265, %1267 : vector<1x8x128xf32>
      %1269 = vector.broadcast %1217 : f32 to vector<1x8x128xf32>
      %1270 = arith.mulf %1269, %1226 : vector<1x8x128xf32>
      %1271 = arith.subf %1268, %1270 : vector<1x8x128xf32>
      %1272 = vector.extract_strided_slice %1208 {offsets = [2, 0, 0], sizes = [1, 8, 128], strides = [1, 1, 1]} : vector<8x8x128xf32> to vector<1x8x128xf32>
      %1273 = vector.extract_strided_slice %1209 {offsets = [2, 0, 0], sizes = [1, 8, 128], strides = [1, 1, 1]} : vector<8x8x128xf32> to vector<1x8x128xf32>
      %1274 = vector.extract_strided_slice %1208 {offsets = [3, 0, 0], sizes = [1, 8, 128], strides = [1, 1, 1]} : vector<8x8x128xf32> to vector<1x8x128xf32>
      %1275 = vector.extract_strided_slice %1209 {offsets = [3, 0, 0], sizes = [1, 8, 128], strides = [1, 1, 1]} : vector<8x8x128xf32> to vector<1x8x128xf32>
      %1276 = vector.broadcast %1214 : f32 to vector<1x8x128xf32>
      %1277 = arith.mulf %1276, %1272 : vector<1x8x128xf32>
      %1278 = vector.broadcast %1217 : f32 to vector<1x8x128xf32>
      %1279 = arith.mulf %1278, %1273 : vector<1x8x128xf32>
      %1280 = arith.subf %1277, %1279 : vector<1x8x128xf32>
      %1281 = vector.broadcast %1220 : f32 to vector<1x8x128xf32>
      %1282 = arith.mulf %1281, %1274 : vector<1x8x128xf32>
      %1283 = arith.subf %1280, %1282 : vector<1x8x128xf32>
      %1284 = vector.broadcast %1223 : f32 to vector<1x8x128xf32>
      %1285 = arith.mulf %1284, %1275 : vector<1x8x128xf32>
      %1286 = arith.subf %1283, %1285 : vector<1x8x128xf32>
      %1287 = vector.broadcast %1214 : f32 to vector<1x8x128xf32>
      %1288 = arith.mulf %1287, %1273 : vector<1x8x128xf32>
      %1289 = vector.broadcast %1217 : f32 to vector<1x8x128xf32>
      %1290 = arith.mulf %1289, %1272 : vector<1x8x128xf32>
      %1291 = arith.addf %1288, %1290 : vector<1x8x128xf32>
      %1292 = vector.broadcast %1220 : f32 to vector<1x8x128xf32>
      %1293 = arith.mulf %1292, %1275 : vector<1x8x128xf32>
      %1294 = arith.subf %1291, %1293 : vector<1x8x128xf32>
      %1295 = vector.broadcast %1223 : f32 to vector<1x8x128xf32>
      %1296 = arith.mulf %1295, %1274 : vector<1x8x128xf32>
      %1297 = arith.addf %1294, %1296 : vector<1x8x128xf32>
      %1298 = vector.broadcast %1220 : f32 to vector<1x8x128xf32>
      %1299 = arith.mulf %1298, %1272 : vector<1x8x128xf32>
      %1300 = vector.broadcast %1223 : f32 to vector<1x8x128xf32>
      %1301 = arith.mulf %1300, %1273 : vector<1x8x128xf32>
      %1302 = arith.subf %1299, %1301 : vector<1x8x128xf32>
      %1303 = vector.broadcast %1214 : f32 to vector<1x8x128xf32>
      %1304 = arith.mulf %1303, %1274 : vector<1x8x128xf32>
      %1305 = arith.addf %1302, %1304 : vector<1x8x128xf32>
      %1306 = vector.broadcast %1217 : f32 to vector<1x8x128xf32>
      %1307 = arith.mulf %1306, %1275 : vector<1x8x128xf32>
      %1308 = arith.addf %1305, %1307 : vector<1x8x128xf32>
      %1309 = vector.broadcast %1220 : f32 to vector<1x8x128xf32>
      %1310 = arith.mulf %1309, %1273 : vector<1x8x128xf32>
      %1311 = vector.broadcast %1223 : f32 to vector<1x8x128xf32>
      %1312 = arith.mulf %1311, %1272 : vector<1x8x128xf32>
      %1313 = arith.addf %1310, %1312 : vector<1x8x128xf32>
      %1314 = vector.broadcast %1214 : f32 to vector<1x8x128xf32>
      %1315 = arith.mulf %1314, %1275 : vector<1x8x128xf32>
      %1316 = arith.addf %1313, %1315 : vector<1x8x128xf32>
      %1317 = vector.broadcast %1217 : f32 to vector<1x8x128xf32>
      %1318 = arith.mulf %1317, %1274 : vector<1x8x128xf32>
      %1319 = arith.subf %1316, %1318 : vector<1x8x128xf32>
      %1320 = vector.extract_strided_slice %1208 {offsets = [4, 0, 0], sizes = [1, 8, 128], strides = [1, 1, 1]} : vector<8x8x128xf32> to vector<1x8x128xf32>
      %1321 = vector.extract_strided_slice %1209 {offsets = [4, 0, 0], sizes = [1, 8, 128], strides = [1, 1, 1]} : vector<8x8x128xf32> to vector<1x8x128xf32>
      %1322 = vector.extract_strided_slice %1208 {offsets = [5, 0, 0], sizes = [1, 8, 128], strides = [1, 1, 1]} : vector<8x8x128xf32> to vector<1x8x128xf32>
      %1323 = vector.extract_strided_slice %1209 {offsets = [5, 0, 0], sizes = [1, 8, 128], strides = [1, 1, 1]} : vector<8x8x128xf32> to vector<1x8x128xf32>
      %1324 = vector.broadcast %1214 : f32 to vector<1x8x128xf32>
      %1325 = arith.mulf %1324, %1320 : vector<1x8x128xf32>
      %1326 = vector.broadcast %1217 : f32 to vector<1x8x128xf32>
      %1327 = arith.mulf %1326, %1321 : vector<1x8x128xf32>
      %1328 = arith.subf %1325, %1327 : vector<1x8x128xf32>
      %1329 = vector.broadcast %1220 : f32 to vector<1x8x128xf32>
      %1330 = arith.mulf %1329, %1322 : vector<1x8x128xf32>
      %1331 = arith.subf %1328, %1330 : vector<1x8x128xf32>
      %1332 = vector.broadcast %1223 : f32 to vector<1x8x128xf32>
      %1333 = arith.mulf %1332, %1323 : vector<1x8x128xf32>
      %1334 = arith.subf %1331, %1333 : vector<1x8x128xf32>
      %1335 = vector.broadcast %1214 : f32 to vector<1x8x128xf32>
      %1336 = arith.mulf %1335, %1321 : vector<1x8x128xf32>
      %1337 = vector.broadcast %1217 : f32 to vector<1x8x128xf32>
      %1338 = arith.mulf %1337, %1320 : vector<1x8x128xf32>
      %1339 = arith.addf %1336, %1338 : vector<1x8x128xf32>
      %1340 = vector.broadcast %1220 : f32 to vector<1x8x128xf32>
      %1341 = arith.mulf %1340, %1323 : vector<1x8x128xf32>
      %1342 = arith.subf %1339, %1341 : vector<1x8x128xf32>
      %1343 = vector.broadcast %1223 : f32 to vector<1x8x128xf32>
      %1344 = arith.mulf %1343, %1322 : vector<1x8x128xf32>
      %1345 = arith.addf %1342, %1344 : vector<1x8x128xf32>
      %1346 = vector.broadcast %1220 : f32 to vector<1x8x128xf32>
      %1347 = arith.mulf %1346, %1320 : vector<1x8x128xf32>
      %1348 = vector.broadcast %1223 : f32 to vector<1x8x128xf32>
      %1349 = arith.mulf %1348, %1321 : vector<1x8x128xf32>
      %1350 = arith.subf %1347, %1349 : vector<1x8x128xf32>
      %1351 = vector.broadcast %1214 : f32 to vector<1x8x128xf32>
      %1352 = arith.mulf %1351, %1322 : vector<1x8x128xf32>
      %1353 = arith.addf %1350, %1352 : vector<1x8x128xf32>
      %1354 = vector.broadcast %1217 : f32 to vector<1x8x128xf32>
      %1355 = arith.mulf %1354, %1323 : vector<1x8x128xf32>
      %1356 = arith.addf %1353, %1355 : vector<1x8x128xf32>
      %1357 = vector.broadcast %1220 : f32 to vector<1x8x128xf32>
      %1358 = arith.mulf %1357, %1321 : vector<1x8x128xf32>
      %1359 = vector.broadcast %1223 : f32 to vector<1x8x128xf32>
      %1360 = arith.mulf %1359, %1320 : vector<1x8x128xf32>
      %1361 = arith.addf %1358, %1360 : vector<1x8x128xf32>
      %1362 = vector.broadcast %1214 : f32 to vector<1x8x128xf32>
      %1363 = arith.mulf %1362, %1323 : vector<1x8x128xf32>
      %1364 = arith.addf %1361, %1363 : vector<1x8x128xf32>
      %1365 = vector.broadcast %1217 : f32 to vector<1x8x128xf32>
      %1366 = arith.mulf %1365, %1322 : vector<1x8x128xf32>
      %1367 = arith.subf %1364, %1366 : vector<1x8x128xf32>
      %1368 = vector.extract_strided_slice %1208 {offsets = [6, 0, 0], sizes = [1, 8, 128], strides = [1, 1, 1]} : vector<8x8x128xf32> to vector<1x8x128xf32>
      %1369 = vector.extract_strided_slice %1209 {offsets = [6, 0, 0], sizes = [1, 8, 128], strides = [1, 1, 1]} : vector<8x8x128xf32> to vector<1x8x128xf32>
      %1370 = vector.extract_strided_slice %1208 {offsets = [7, 0, 0], sizes = [1, 8, 128], strides = [1, 1, 1]} : vector<8x8x128xf32> to vector<1x8x128xf32>
      %1371 = vector.extract_strided_slice %1209 {offsets = [7, 0, 0], sizes = [1, 8, 128], strides = [1, 1, 1]} : vector<8x8x128xf32> to vector<1x8x128xf32>
      %1372 = vector.broadcast %1214 : f32 to vector<1x8x128xf32>
      %1373 = arith.mulf %1372, %1368 : vector<1x8x128xf32>
      %1374 = vector.broadcast %1217 : f32 to vector<1x8x128xf32>
      %1375 = arith.mulf %1374, %1369 : vector<1x8x128xf32>
      %1376 = arith.subf %1373, %1375 : vector<1x8x128xf32>
      %1377 = vector.broadcast %1220 : f32 to vector<1x8x128xf32>
      %1378 = arith.mulf %1377, %1370 : vector<1x8x128xf32>
      %1379 = arith.subf %1376, %1378 : vector<1x8x128xf32>
      %1380 = vector.broadcast %1223 : f32 to vector<1x8x128xf32>
      %1381 = arith.mulf %1380, %1371 : vector<1x8x128xf32>
      %1382 = arith.subf %1379, %1381 : vector<1x8x128xf32>
      %1383 = vector.broadcast %1214 : f32 to vector<1x8x128xf32>
      %1384 = arith.mulf %1383, %1369 : vector<1x8x128xf32>
      %1385 = vector.broadcast %1217 : f32 to vector<1x8x128xf32>
      %1386 = arith.mulf %1385, %1368 : vector<1x8x128xf32>
      %1387 = arith.addf %1384, %1386 : vector<1x8x128xf32>
      %1388 = vector.broadcast %1220 : f32 to vector<1x8x128xf32>
      %1389 = arith.mulf %1388, %1371 : vector<1x8x128xf32>
      %1390 = arith.subf %1387, %1389 : vector<1x8x128xf32>
      %1391 = vector.broadcast %1223 : f32 to vector<1x8x128xf32>
      %1392 = arith.mulf %1391, %1370 : vector<1x8x128xf32>
      %1393 = arith.addf %1390, %1392 : vector<1x8x128xf32>
      %1394 = vector.broadcast %1220 : f32 to vector<1x8x128xf32>
      %1395 = arith.mulf %1394, %1368 : vector<1x8x128xf32>
      %1396 = vector.broadcast %1223 : f32 to vector<1x8x128xf32>
      %1397 = arith.mulf %1396, %1369 : vector<1x8x128xf32>
      %1398 = arith.subf %1395, %1397 : vector<1x8x128xf32>
      %1399 = vector.broadcast %1214 : f32 to vector<1x8x128xf32>
      %1400 = arith.mulf %1399, %1370 : vector<1x8x128xf32>
      %1401 = arith.addf %1398, %1400 : vector<1x8x128xf32>
      %1402 = vector.broadcast %1217 : f32 to vector<1x8x128xf32>
      %1403 = arith.mulf %1402, %1371 : vector<1x8x128xf32>
      %1404 = arith.addf %1401, %1403 : vector<1x8x128xf32>
      %1405 = vector.broadcast %1220 : f32 to vector<1x8x128xf32>
      %1406 = arith.mulf %1405, %1369 : vector<1x8x128xf32>
      %1407 = vector.broadcast %1223 : f32 to vector<1x8x128xf32>
      %1408 = arith.mulf %1407, %1368 : vector<1x8x128xf32>
      %1409 = arith.addf %1406, %1408 : vector<1x8x128xf32>
      %1410 = vector.broadcast %1214 : f32 to vector<1x8x128xf32>
      %1411 = arith.mulf %1410, %1371 : vector<1x8x128xf32>
      %1412 = arith.addf %1409, %1411 : vector<1x8x128xf32>
      %1413 = vector.broadcast %1217 : f32 to vector<1x8x128xf32>
      %1414 = arith.mulf %1413, %1370 : vector<1x8x128xf32>
      %1415 = arith.subf %1412, %1414 : vector<1x8x128xf32>
      %1416 = tpu.concatenate %1238, %1260, %1286, %1308, %1334, %1356, %1382, %1404 in 0 : vector<1x8x128xf32>, vector<1x8x128xf32>, vector<1x8x128xf32>, vector<1x8x128xf32>, vector<1x8x128xf32>, vector<1x8x128xf32>, vector<1x8x128xf32>, vector<1x8x128xf32> -> vector<8x8x128xf32>
      %1417 = tpu.concatenate %1249, %1271, %1297, %1319, %1345, %1367, %1393, %1415 in 0 : vector<1x8x128xf32>, vector<1x8x128xf32>, vector<1x8x128xf32>, vector<1x8x128xf32>, vector<1x8x128xf32>, vector<1x8x128xf32>, vector<1x8x128xf32>, vector<1x8x128xf32> -> vector<8x8x128xf32>
      %c6_i32_142 = arith.constant 6 : i32
      %1418 = arith.muli %arg6, %c6_i32_142 : i32
      %c3_i32_143 = arith.constant 3 : i32
      %1419 = arith.addi %1418, %c3_i32_143 : i32
      %c6_i32_144 = arith.constant 6 : i32
      %1420 = arith.muli %1419, %c6_i32_144 : i32
      %1421 = arith.index_cast %1420 : i32 to index
      %1422 = memref.load %arg1[%1421] : memref<828xf32, #tpu.memory_space<smem>>
      %c1_i32_145 = arith.constant 1 : i32
      %1423 = arith.addi %1420, %c1_i32_145 : i32
      %1424 = arith.index_cast %1423 : i32 to index
      %1425 = memref.load %arg1[%1424] : memref<828xf32, #tpu.memory_space<smem>>
      %c2_i32_146 = arith.constant 2 : i32
      %1426 = arith.addi %1420, %c2_i32_146 : i32
      %1427 = arith.index_cast %1426 : i32 to index
      %1428 = memref.load %arg1[%1427] : memref<828xf32, #tpu.memory_space<smem>>
      %c3_i32_147 = arith.constant 3 : i32
      %1429 = arith.addi %1420, %c3_i32_147 : i32
      %1430 = arith.index_cast %1429 : i32 to index
      %1431 = memref.load %arg1[%1430] : memref<828xf32, #tpu.memory_space<smem>>
      %c4_i32_148 = arith.constant 4 : i32
      %1432 = tpu.dynamic_rotate %1416 by %c4_i32_148 dim 1 : vector<8x8x128xf32>, i32 -> vector<8x8x128xf32>
      %c4_i32_149 = arith.constant 4 : i32
      %1433 = tpu.dynamic_rotate %1417 by %c4_i32_149 dim 1 : vector<8x8x128xf32>, i32 -> vector<8x8x128xf32>
      %1434 = tpu.iota {dimensions = array<i32: 1>} : vector<1x8x128xi32>
      %c2_i32_150 = arith.constant 2 : i32
      %1435 = vector.broadcast %c2_i32_150 : i32 to vector<1x8x128xi32>
      %1436 = arith.shrsi %1434, %1435 : vector<1x8x128xi32>
      %c1_i32_151 = arith.constant 1 : i32
      %1437 = vector.broadcast %c1_i32_151 : i32 to vector<1x8x128xi32>
      %1438 = arith.andi %1436, %1437 : vector<1x8x128xi32>
      %c2_i32_152 = arith.constant 2 : i32
      %1439 = vector.broadcast %c2_i32_152 : i32 to vector<1x8x128xi32>
      %1440 = arith.muli %1439, %1438 : vector<1x8x128xi32>
      %c1_i32_153 = arith.constant 1 : i32
      %1441 = vector.broadcast %c1_i32_153 : i32 to vector<1x8x128xi32>
      %1442 = arith.subi %1440, %1441 : vector<1x8x128xi32>
      %1443 = arith.sitofp %1442 : vector<1x8x128xi32> to vector<1x8x128xf32>
      %1444 = vector.broadcast %1422 : f32 to vector<8x8x128xf32>
      %1445 = arith.mulf %1444, %1416 : vector<8x8x128xf32>
      %1446 = vector.broadcast %1431 : f32 to vector<8x8x128xf32>
      %1447 = arith.mulf %1446, %1433 : vector<8x8x128xf32>
      %1448 = arith.subf %1445, %1447 : vector<8x8x128xf32>
      %1449 = vector.broadcast %1425 : f32 to vector<8x8x128xf32>
      %1450 = arith.mulf %1449, %1417 : vector<8x8x128xf32>
      %1451 = vector.broadcast %1428 : f32 to vector<8x8x128xf32>
      %1452 = arith.mulf %1451, %1432 : vector<8x8x128xf32>
      %1453 = arith.addf %1450, %1452 : vector<8x8x128xf32>
      %1454 = vector.broadcast %1443 : vector<1x8x128xf32> to vector<8x8x128xf32>
      %1455 = arith.mulf %1454, %1453 : vector<8x8x128xf32>
      %1456 = arith.addf %1448, %1455 : vector<8x8x128xf32>
      %1457 = vector.broadcast %1422 : f32 to vector<8x8x128xf32>
      %1458 = arith.mulf %1457, %1417 : vector<8x8x128xf32>
      %1459 = vector.broadcast %1431 : f32 to vector<8x8x128xf32>
      %1460 = arith.mulf %1459, %1432 : vector<8x8x128xf32>
      %1461 = arith.addf %1458, %1460 : vector<8x8x128xf32>
      %1462 = vector.broadcast %1428 : f32 to vector<8x8x128xf32>
      %1463 = arith.mulf %1462, %1433 : vector<8x8x128xf32>
      %1464 = vector.broadcast %1425 : f32 to vector<8x8x128xf32>
      %1465 = arith.mulf %1464, %1416 : vector<8x8x128xf32>
      %1466 = arith.subf %1463, %1465 : vector<8x8x128xf32>
      %1467 = vector.broadcast %1443 : vector<1x8x128xf32> to vector<8x8x128xf32>
      %1468 = arith.mulf %1467, %1466 : vector<8x8x128xf32>
      %1469 = arith.addf %1461, %1468 : vector<8x8x128xf32>
      %c6_i32_154 = arith.constant 6 : i32
      %1470 = arith.muli %arg6, %c6_i32_154 : i32
      %c4_i32_155 = arith.constant 4 : i32
      %1471 = arith.addi %1470, %c4_i32_155 : i32
      %c6_i32_156 = arith.constant 6 : i32
      %1472 = arith.muli %1471, %c6_i32_156 : i32
      %1473 = arith.index_cast %1472 : i32 to index
      %1474 = memref.load %arg1[%1473] : memref<828xf32, #tpu.memory_space<smem>>
      %c1_i32_157 = arith.constant 1 : i32
      %1475 = arith.addi %1472, %c1_i32_157 : i32
      %1476 = arith.index_cast %1475 : i32 to index
      %1477 = memref.load %arg1[%1476] : memref<828xf32, #tpu.memory_space<smem>>
      %c2_i32_158 = arith.constant 2 : i32
      %1478 = arith.addi %1472, %c2_i32_158 : i32
      %1479 = arith.index_cast %1478 : i32 to index
      %1480 = memref.load %arg1[%1479] : memref<828xf32, #tpu.memory_space<smem>>
      %c3_i32_159 = arith.constant 3 : i32
      %1481 = arith.addi %1472, %c3_i32_159 : i32
      %1482 = arith.index_cast %1481 : i32 to index
      %1483 = memref.load %arg1[%1482] : memref<828xf32, #tpu.memory_space<smem>>
      %c2_i32_160 = arith.constant 2 : i32
      %1484 = tpu.dynamic_rotate %1456 by %c2_i32_160 dim 1 : vector<8x8x128xf32>, i32 -> vector<8x8x128xf32>
      %c6_i32_161 = arith.constant 6 : i32
      %1485 = tpu.dynamic_rotate %1456 by %c6_i32_161 dim 1 : vector<8x8x128xf32>, i32 -> vector<8x8x128xf32>
      %1486 = tpu.iota {dimensions = array<i32: 1>} : vector<1x8x128xi32>
      %c1_i32_162 = arith.constant 1 : i32
      %1487 = vector.broadcast %c1_i32_162 : i32 to vector<1x8x128xi32>
      %1488 = arith.shrsi %1486, %1487 : vector<1x8x128xi32>
      %c1_i32_163 = arith.constant 1 : i32
      %1489 = vector.broadcast %c1_i32_163 : i32 to vector<1x8x128xi32>
      %1490 = arith.andi %1488, %1489 : vector<1x8x128xi32>
      %c1_i32_164 = arith.constant 1 : i32
      %1491 = vector.broadcast %c1_i32_164 : i32 to vector<1x8x128xi32>
      %1492 = arith.cmpi eq, %1490, %1491 : vector<1x8x128xi32>
      %1493 = vector.shape_cast %1492 : vector<1x8x128xi1> to vector<1x8x128xi1>
      %1494 = vector.broadcast %1493 : vector<1x8x128xi1> to vector<8x8x128xi1>
      %1495 = arith.select %1494, %1484, %1485 : vector<8x8x128xi1>, vector<8x8x128xf32>
      %c2_i32_165 = arith.constant 2 : i32
      %1496 = tpu.dynamic_rotate %1469 by %c2_i32_165 dim 1 : vector<8x8x128xf32>, i32 -> vector<8x8x128xf32>
      %c6_i32_166 = arith.constant 6 : i32
      %1497 = tpu.dynamic_rotate %1469 by %c6_i32_166 dim 1 : vector<8x8x128xf32>, i32 -> vector<8x8x128xf32>
      %1498 = tpu.iota {dimensions = array<i32: 1>} : vector<1x8x128xi32>
      %c1_i32_167 = arith.constant 1 : i32
      %1499 = vector.broadcast %c1_i32_167 : i32 to vector<1x8x128xi32>
      %1500 = arith.shrsi %1498, %1499 : vector<1x8x128xi32>
      %c1_i32_168 = arith.constant 1 : i32
      %1501 = vector.broadcast %c1_i32_168 : i32 to vector<1x8x128xi32>
      %1502 = arith.andi %1500, %1501 : vector<1x8x128xi32>
      %c1_i32_169 = arith.constant 1 : i32
      %1503 = vector.broadcast %c1_i32_169 : i32 to vector<1x8x128xi32>
      %1504 = arith.cmpi eq, %1502, %1503 : vector<1x8x128xi32>
      %1505 = vector.shape_cast %1504 : vector<1x8x128xi1> to vector<1x8x128xi1>
      %1506 = vector.broadcast %1505 : vector<1x8x128xi1> to vector<8x8x128xi1>
      %1507 = arith.select %1506, %1496, %1497 : vector<8x8x128xi1>, vector<8x8x128xf32>
      %1508 = tpu.iota {dimensions = array<i32: 1>} : vector<1x8x128xi32>
      %c1_i32_170 = arith.constant 1 : i32
      %1509 = vector.broadcast %c1_i32_170 : i32 to vector<1x8x128xi32>
      %1510 = arith.shrsi %1508, %1509 : vector<1x8x128xi32>
      %c1_i32_171 = arith.constant 1 : i32
      %1511 = vector.broadcast %c1_i32_171 : i32 to vector<1x8x128xi32>
      %1512 = arith.andi %1510, %1511 : vector<1x8x128xi32>
      %c2_i32_172 = arith.constant 2 : i32
      %1513 = vector.broadcast %c2_i32_172 : i32 to vector<1x8x128xi32>
      %1514 = arith.muli %1513, %1512 : vector<1x8x128xi32>
      %c1_i32_173 = arith.constant 1 : i32
      %1515 = vector.broadcast %c1_i32_173 : i32 to vector<1x8x128xi32>
      %1516 = arith.subi %1514, %1515 : vector<1x8x128xi32>
      %1517 = arith.sitofp %1516 : vector<1x8x128xi32> to vector<1x8x128xf32>
      %1518 = vector.broadcast %1474 : f32 to vector<8x8x128xf32>
      %1519 = arith.mulf %1518, %1456 : vector<8x8x128xf32>
      %1520 = vector.broadcast %1483 : f32 to vector<8x8x128xf32>
      %1521 = arith.mulf %1520, %1507 : vector<8x8x128xf32>
      %1522 = arith.subf %1519, %1521 : vector<8x8x128xf32>
      %1523 = vector.broadcast %1477 : f32 to vector<8x8x128xf32>
      %1524 = arith.mulf %1523, %1469 : vector<8x8x128xf32>
      %1525 = vector.broadcast %1480 : f32 to vector<8x8x128xf32>
      %1526 = arith.mulf %1525, %1495 : vector<8x8x128xf32>
      %1527 = arith.addf %1524, %1526 : vector<8x8x128xf32>
      %1528 = vector.broadcast %1517 : vector<1x8x128xf32> to vector<8x8x128xf32>
      %1529 = arith.mulf %1528, %1527 : vector<8x8x128xf32>
      %1530 = arith.addf %1522, %1529 : vector<8x8x128xf32>
      %1531 = vector.broadcast %1474 : f32 to vector<8x8x128xf32>
      %1532 = arith.mulf %1531, %1469 : vector<8x8x128xf32>
      %1533 = vector.broadcast %1483 : f32 to vector<8x8x128xf32>
      %1534 = arith.mulf %1533, %1495 : vector<8x8x128xf32>
      %1535 = arith.addf %1532, %1534 : vector<8x8x128xf32>
      %1536 = vector.broadcast %1480 : f32 to vector<8x8x128xf32>
      %1537 = arith.mulf %1536, %1507 : vector<8x8x128xf32>
      %1538 = vector.broadcast %1477 : f32 to vector<8x8x128xf32>
      %1539 = arith.mulf %1538, %1456 : vector<8x8x128xf32>
      %1540 = arith.subf %1537, %1539 : vector<8x8x128xf32>
      %1541 = vector.broadcast %1517 : vector<1x8x128xf32> to vector<8x8x128xf32>
      %1542 = arith.mulf %1541, %1540 : vector<8x8x128xf32>
      %1543 = arith.addf %1535, %1542 : vector<8x8x128xf32>
      %c6_i32_174 = arith.constant 6 : i32
      %1544 = arith.muli %arg6, %c6_i32_174 : i32
      %c5_i32 = arith.constant 5 : i32
      %1545 = arith.addi %1544, %c5_i32 : i32
      %c6_i32_175 = arith.constant 6 : i32
      %1546 = arith.muli %1545, %c6_i32_175 : i32
      %1547 = arith.index_cast %1546 : i32 to index
      %1548 = memref.load %arg1[%1547] : memref<828xf32, #tpu.memory_space<smem>>
      %c1_i32_176 = arith.constant 1 : i32
      %1549 = arith.addi %1546, %c1_i32_176 : i32
      %1550 = arith.index_cast %1549 : i32 to index
      %1551 = memref.load %arg1[%1550] : memref<828xf32, #tpu.memory_space<smem>>
      %c2_i32_177 = arith.constant 2 : i32
      %1552 = arith.addi %1546, %c2_i32_177 : i32
      %1553 = arith.index_cast %1552 : i32 to index
      %1554 = memref.load %arg1[%1553] : memref<828xf32, #tpu.memory_space<smem>>
      %c3_i32_178 = arith.constant 3 : i32
      %1555 = arith.addi %1546, %c3_i32_178 : i32
      %1556 = arith.index_cast %1555 : i32 to index
      %1557 = memref.load %arg1[%1556] : memref<828xf32, #tpu.memory_space<smem>>
      %c1_i32_179 = arith.constant 1 : i32
      %1558 = tpu.dynamic_rotate %1530 by %c1_i32_179 dim 1 : vector<8x8x128xf32>, i32 -> vector<8x8x128xf32>
      %c7_i32_180 = arith.constant 7 : i32
      %1559 = tpu.dynamic_rotate %1530 by %c7_i32_180 dim 1 : vector<8x8x128xf32>, i32 -> vector<8x8x128xf32>
      %1560 = tpu.iota {dimensions = array<i32: 1>} : vector<1x8x128xi32>
      %c0_i32_181 = arith.constant 0 : i32
      %1561 = vector.broadcast %c0_i32_181 : i32 to vector<1x8x128xi32>
      %1562 = arith.shrsi %1560, %1561 : vector<1x8x128xi32>
      %c1_i32_182 = arith.constant 1 : i32
      %1563 = vector.broadcast %c1_i32_182 : i32 to vector<1x8x128xi32>
      %1564 = arith.andi %1562, %1563 : vector<1x8x128xi32>
      %c1_i32_183 = arith.constant 1 : i32
      %1565 = vector.broadcast %c1_i32_183 : i32 to vector<1x8x128xi32>
      %1566 = arith.cmpi eq, %1564, %1565 : vector<1x8x128xi32>
      %1567 = vector.shape_cast %1566 : vector<1x8x128xi1> to vector<1x8x128xi1>
      %1568 = vector.broadcast %1567 : vector<1x8x128xi1> to vector<8x8x128xi1>
      %1569 = arith.select %1568, %1558, %1559 : vector<8x8x128xi1>, vector<8x8x128xf32>
      %c1_i32_184 = arith.constant 1 : i32
      %1570 = tpu.dynamic_rotate %1543 by %c1_i32_184 dim 1 : vector<8x8x128xf32>, i32 -> vector<8x8x128xf32>
      %c7_i32_185 = arith.constant 7 : i32
      %1571 = tpu.dynamic_rotate %1543 by %c7_i32_185 dim 1 : vector<8x8x128xf32>, i32 -> vector<8x8x128xf32>
      %1572 = tpu.iota {dimensions = array<i32: 1>} : vector<1x8x128xi32>
      %c0_i32_186 = arith.constant 0 : i32
      %1573 = vector.broadcast %c0_i32_186 : i32 to vector<1x8x128xi32>
      %1574 = arith.shrsi %1572, %1573 : vector<1x8x128xi32>
      %c1_i32_187 = arith.constant 1 : i32
      %1575 = vector.broadcast %c1_i32_187 : i32 to vector<1x8x128xi32>
      %1576 = arith.andi %1574, %1575 : vector<1x8x128xi32>
      %c1_i32_188 = arith.constant 1 : i32
      %1577 = vector.broadcast %c1_i32_188 : i32 to vector<1x8x128xi32>
      %1578 = arith.cmpi eq, %1576, %1577 : vector<1x8x128xi32>
      %1579 = vector.shape_cast %1578 : vector<1x8x128xi1> to vector<1x8x128xi1>
      %1580 = vector.broadcast %1579 : vector<1x8x128xi1> to vector<8x8x128xi1>
      %1581 = arith.select %1580, %1570, %1571 : vector<8x8x128xi1>, vector<8x8x128xf32>
      %1582 = tpu.iota {dimensions = array<i32: 1>} : vector<1x8x128xi32>
      %c0_i32_189 = arith.constant 0 : i32
      %1583 = vector.broadcast %c0_i32_189 : i32 to vector<1x8x128xi32>
      %1584 = arith.shrsi %1582, %1583 : vector<1x8x128xi32>
      %c1_i32_190 = arith.constant 1 : i32
      %1585 = vector.broadcast %c1_i32_190 : i32 to vector<1x8x128xi32>
      %1586 = arith.andi %1584, %1585 : vector<1x8x128xi32>
      %c2_i32_191 = arith.constant 2 : i32
      %1587 = vector.broadcast %c2_i32_191 : i32 to vector<1x8x128xi32>
      %1588 = arith.muli %1587, %1586 : vector<1x8x128xi32>
      %c1_i32_192 = arith.constant 1 : i32
      %1589 = vector.broadcast %c1_i32_192 : i32 to vector<1x8x128xi32>
      %1590 = arith.subi %1588, %1589 : vector<1x8x128xi32>
      %1591 = arith.sitofp %1590 : vector<1x8x128xi32> to vector<1x8x128xf32>
      %1592 = vector.broadcast %1548 : f32 to vector<8x8x128xf32>
      %1593 = arith.mulf %1592, %1530 : vector<8x8x128xf32>
      %1594 = vector.broadcast %1557 : f32 to vector<8x8x128xf32>
      %1595 = arith.mulf %1594, %1581 : vector<8x8x128xf32>
      %1596 = arith.subf %1593, %1595 : vector<8x8x128xf32>
      %1597 = vector.broadcast %1551 : f32 to vector<8x8x128xf32>
      %1598 = arith.mulf %1597, %1543 : vector<8x8x128xf32>
      %1599 = vector.broadcast %1554 : f32 to vector<8x8x128xf32>
      %1600 = arith.mulf %1599, %1569 : vector<8x8x128xf32>
      %1601 = arith.addf %1598, %1600 : vector<8x8x128xf32>
      %1602 = vector.broadcast %1591 : vector<1x8x128xf32> to vector<8x8x128xf32>
      %1603 = arith.mulf %1602, %1601 : vector<8x8x128xf32>
      %1604 = arith.addf %1596, %1603 : vector<8x8x128xf32>
      %1605 = vector.broadcast %1548 : f32 to vector<8x8x128xf32>
      %1606 = arith.mulf %1605, %1543 : vector<8x8x128xf32>
      %1607 = vector.broadcast %1557 : f32 to vector<8x8x128xf32>
      %1608 = arith.mulf %1607, %1569 : vector<8x8x128xf32>
      %1609 = arith.addf %1606, %1608 : vector<8x8x128xf32>
      %1610 = vector.broadcast %1554 : f32 to vector<8x8x128xf32>
      %1611 = arith.mulf %1610, %1581 : vector<8x8x128xf32>
      %1612 = vector.broadcast %1551 : f32 to vector<8x8x128xf32>
      %1613 = arith.mulf %1612, %1530 : vector<8x8x128xf32>
      %1614 = arith.subf %1611, %1613 : vector<8x8x128xf32>
      %1615 = vector.broadcast %1591 : vector<1x8x128xf32> to vector<8x8x128xf32>
      %1616 = arith.mulf %1615, %1614 : vector<8x8x128xf32>
      %1617 = arith.addf %1609, %1616 : vector<8x8x128xf32>
      %c6_i32_193 = arith.constant 6 : i32
      %1618 = arith.muli %arg6, %c6_i32_193 : i32
      %c0_i32_194 = arith.constant 0 : i32
      %1619 = arith.addi %1618, %c0_i32_194 : i32
      %c6_i32_195 = arith.constant 6 : i32
      %1620 = arith.muli %1619, %c6_i32_195 : i32
      %c4_i32_196 = arith.constant 4 : i32
      %1621 = arith.addi %1620, %c4_i32_196 : i32
      %1622 = arith.index_cast %1621 : i32 to index
      %1623 = memref.load %arg1[%1622] : memref<828xf32, #tpu.memory_space<smem>>
      %c5_i32_197 = arith.constant 5 : i32
      %1624 = arith.addi %1620, %c5_i32_197 : i32
      %1625 = arith.index_cast %1624 : i32 to index
      %1626 = memref.load %arg1[%1625] : memref<828xf32, #tpu.memory_space<smem>>
      %1627 = vector.extract_strided_slice %1604 {offsets = [0, 0, 0], sizes = [4, 8, 128], strides = [1, 1, 1]} : vector<8x8x128xf32> to vector<4x8x128xf32>
      %1628 = vector.extract_strided_slice %1617 {offsets = [0, 0, 0], sizes = [4, 8, 128], strides = [1, 1, 1]} : vector<8x8x128xf32> to vector<4x8x128xf32>
      %1629 = vector.extract_strided_slice %1604 {offsets = [4, 0, 0], sizes = [4, 8, 128], strides = [1, 1, 1]} : vector<8x8x128xf32> to vector<4x8x128xf32>
      %1630 = vector.extract_strided_slice %1617 {offsets = [4, 0, 0], sizes = [4, 8, 128], strides = [1, 1, 1]} : vector<8x8x128xf32> to vector<4x8x128xf32>
      %1631 = vector.broadcast %1623 : f32 to vector<4x8x128xf32>
      %1632 = arith.mulf %1631, %1627 : vector<4x8x128xf32>
      %1633 = vector.broadcast %1626 : f32 to vector<4x8x128xf32>
      %1634 = arith.mulf %1633, %1630 : vector<4x8x128xf32>
      %1635 = arith.addf %1632, %1634 : vector<4x8x128xf32>
      %1636 = vector.broadcast %1623 : f32 to vector<4x8x128xf32>
      %1637 = arith.mulf %1636, %1628 : vector<4x8x128xf32>
      %1638 = vector.broadcast %1626 : f32 to vector<4x8x128xf32>
      %1639 = arith.mulf %1638, %1629 : vector<4x8x128xf32>
      %1640 = arith.subf %1637, %1639 : vector<4x8x128xf32>
      %1641 = vector.broadcast %1623 : f32 to vector<4x8x128xf32>
      %1642 = arith.mulf %1641, %1629 : vector<4x8x128xf32>
      %1643 = vector.broadcast %1626 : f32 to vector<4x8x128xf32>
      %1644 = arith.mulf %1643, %1628 : vector<4x8x128xf32>
      %1645 = arith.addf %1642, %1644 : vector<4x8x128xf32>
      %1646 = vector.broadcast %1623 : f32 to vector<4x8x128xf32>
      %1647 = arith.mulf %1646, %1630 : vector<4x8x128xf32>
      %1648 = vector.broadcast %1626 : f32 to vector<4x8x128xf32>
      %1649 = arith.mulf %1648, %1627 : vector<4x8x128xf32>
      %1650 = arith.subf %1647, %1649 : vector<4x8x128xf32>
      %1651 = tpu.concatenate %1635, %1645 in 0 : vector<4x8x128xf32>, vector<4x8x128xf32> -> vector<8x8x128xf32>
      %1652 = tpu.concatenate %1640, %1650 in 0 : vector<4x8x128xf32>, vector<4x8x128xf32> -> vector<8x8x128xf32>
      %1653 = tpu.iota {dimensions = array<i32: 1>} : vector<1x8x128xi32>
      %c0_i32_198 = arith.constant 0 : i32
      %1654 = vector.broadcast %c0_i32_198 : i32 to vector<1x8x128xi32>
      %1655 = arith.shrsi %1653, %1654 : vector<1x8x128xi32>
      %c1_i32_199 = arith.constant 1 : i32
      %1656 = vector.broadcast %c1_i32_199 : i32 to vector<1x8x128xi32>
      %1657 = arith.andi %1655, %1656 : vector<1x8x128xi32>
      %c1_i32_200 = arith.constant 1 : i32
      %1658 = vector.broadcast %c1_i32_200 : i32 to vector<1x8x128xi32>
      %1659 = arith.cmpi eq, %1657, %1658 : vector<1x8x128xi32>
      %1660 = vector.shape_cast %1659 : vector<1x8x128xi1> to vector<1x8x128xi1>
      %1661 = vector.broadcast %1660 : vector<1x8x128xi1> to vector<8x8x128xi1>
      %1662 = arith.select %1661, %1651, %1604 : vector<8x8x128xi1>, vector<8x8x128xf32>
      %1663 = vector.shape_cast %1659 : vector<1x8x128xi1> to vector<1x8x128xi1>
      %1664 = vector.broadcast %1663 : vector<1x8x128xi1> to vector<8x8x128xi1>
      %1665 = arith.select %1664, %1652, %1617 : vector<8x8x128xi1>, vector<8x8x128xf32>
      %c6_i32_201 = arith.constant 6 : i32
      %1666 = arith.muli %arg6, %c6_i32_201 : i32
      %c1_i32_202 = arith.constant 1 : i32
      %1667 = arith.addi %1666, %c1_i32_202 : i32
      %c6_i32_203 = arith.constant 6 : i32
      %1668 = arith.muli %1667, %c6_i32_203 : i32
      %c4_i32_204 = arith.constant 4 : i32
      %1669 = arith.addi %1668, %c4_i32_204 : i32
      %1670 = arith.index_cast %1669 : i32 to index
      %1671 = memref.load %arg1[%1670] : memref<828xf32, #tpu.memory_space<smem>>
      %c5_i32_205 = arith.constant 5 : i32
      %1672 = arith.addi %1668, %c5_i32_205 : i32
      %1673 = arith.index_cast %1672 : i32 to index
      %1674 = memref.load %arg1[%1673] : memref<828xf32, #tpu.memory_space<smem>>
      %c1_i32_206 = arith.constant 1 : i32
      %1675 = tpu.dynamic_rotate %1662 by %c1_i32_206 dim 1 : vector<8x8x128xf32>, i32 -> vector<8x8x128xf32>
      %c7_i32_207 = arith.constant 7 : i32
      %1676 = tpu.dynamic_rotate %1662 by %c7_i32_207 dim 1 : vector<8x8x128xf32>, i32 -> vector<8x8x128xf32>
      %1677 = tpu.iota {dimensions = array<i32: 1>} : vector<1x8x128xi32>
      %c0_i32_208 = arith.constant 0 : i32
      %1678 = vector.broadcast %c0_i32_208 : i32 to vector<1x8x128xi32>
      %1679 = arith.shrsi %1677, %1678 : vector<1x8x128xi32>
      %c1_i32_209 = arith.constant 1 : i32
      %1680 = vector.broadcast %c1_i32_209 : i32 to vector<1x8x128xi32>
      %1681 = arith.andi %1679, %1680 : vector<1x8x128xi32>
      %c1_i32_210 = arith.constant 1 : i32
      %1682 = vector.broadcast %c1_i32_210 : i32 to vector<1x8x128xi32>
      %1683 = arith.cmpi eq, %1681, %1682 : vector<1x8x128xi32>
      %1684 = vector.shape_cast %1683 : vector<1x8x128xi1> to vector<1x8x128xi1>
      %1685 = vector.broadcast %1684 : vector<1x8x128xi1> to vector<8x8x128xi1>
      %1686 = arith.select %1685, %1675, %1676 : vector<8x8x128xi1>, vector<8x8x128xf32>
      %c1_i32_211 = arith.constant 1 : i32
      %1687 = tpu.dynamic_rotate %1665 by %c1_i32_211 dim 1 : vector<8x8x128xf32>, i32 -> vector<8x8x128xf32>
      %c7_i32_212 = arith.constant 7 : i32
      %1688 = tpu.dynamic_rotate %1665 by %c7_i32_212 dim 1 : vector<8x8x128xf32>, i32 -> vector<8x8x128xf32>
      %1689 = tpu.iota {dimensions = array<i32: 1>} : vector<1x8x128xi32>
      %c0_i32_213 = arith.constant 0 : i32
      %1690 = vector.broadcast %c0_i32_213 : i32 to vector<1x8x128xi32>
      %1691 = arith.shrsi %1689, %1690 : vector<1x8x128xi32>
      %c1_i32_214 = arith.constant 1 : i32
      %1692 = vector.broadcast %c1_i32_214 : i32 to vector<1x8x128xi32>
      %1693 = arith.andi %1691, %1692 : vector<1x8x128xi32>
      %c1_i32_215 = arith.constant 1 : i32
      %1694 = vector.broadcast %c1_i32_215 : i32 to vector<1x8x128xi32>
      %1695 = arith.cmpi eq, %1693, %1694 : vector<1x8x128xi32>
      %1696 = vector.shape_cast %1695 : vector<1x8x128xi1> to vector<1x8x128xi1>
      %1697 = vector.broadcast %1696 : vector<1x8x128xi1> to vector<8x8x128xi1>
      %1698 = arith.select %1697, %1687, %1688 : vector<8x8x128xi1>, vector<8x8x128xf32>
      %1699 = vector.broadcast %1671 : f32 to vector<8x8x128xf32>
      %1700 = arith.mulf %1699, %1662 : vector<8x8x128xf32>
      %1701 = vector.broadcast %1674 : f32 to vector<8x8x128xf32>
      %1702 = arith.mulf %1701, %1698 : vector<8x8x128xf32>
      %1703 = arith.addf %1700, %1702 : vector<8x8x128xf32>
      %1704 = vector.broadcast %1671 : f32 to vector<8x8x128xf32>
      %1705 = arith.mulf %1704, %1665 : vector<8x8x128xf32>
      %1706 = vector.broadcast %1674 : f32 to vector<8x8x128xf32>
      %1707 = arith.mulf %1706, %1686 : vector<8x8x128xf32>
      %1708 = arith.subf %1705, %1707 : vector<8x8x128xf32>
      %1709 = tpu.iota {dimensions = array<i32: 1>} : vector<1x8x128xi32>
      %c1_i32_216 = arith.constant 1 : i32
      %1710 = vector.broadcast %c1_i32_216 : i32 to vector<1x8x128xi32>
      %1711 = arith.shrsi %1709, %1710 : vector<1x8x128xi32>
      %c1_i32_217 = arith.constant 1 : i32
      %1712 = vector.broadcast %c1_i32_217 : i32 to vector<1x8x128xi32>
      %1713 = arith.andi %1711, %1712 : vector<1x8x128xi32>
      %c1_i32_218 = arith.constant 1 : i32
      %1714 = vector.broadcast %c1_i32_218 : i32 to vector<1x8x128xi32>
      %1715 = arith.cmpi eq, %1713, %1714 : vector<1x8x128xi32>
      %1716 = vector.shape_cast %1715 : vector<1x8x128xi1> to vector<1x8x128xi1>
      %1717 = vector.broadcast %1716 : vector<1x8x128xi1> to vector<8x8x128xi1>
      %1718 = arith.select %1717, %1703, %1662 : vector<8x8x128xi1>, vector<8x8x128xf32>
      %1719 = vector.shape_cast %1715 : vector<1x8x128xi1> to vector<1x8x128xi1>
      %1720 = vector.broadcast %1719 : vector<1x8x128xi1> to vector<8x8x128xi1>
      %1721 = arith.select %1720, %1708, %1665 : vector<8x8x128xi1>, vector<8x8x128xf32>
      %c6_i32_219 = arith.constant 6 : i32
      %1722 = arith.muli %arg6, %c6_i32_219 : i32
      %c2_i32_220 = arith.constant 2 : i32
      %1723 = arith.addi %1722, %c2_i32_220 : i32
      %c6_i32_221 = arith.constant 6 : i32
      %1724 = arith.muli %1723, %c6_i32_221 : i32
      %c4_i32_222 = arith.constant 4 : i32
      %1725 = arith.addi %1724, %c4_i32_222 : i32
      %1726 = arith.index_cast %1725 : i32 to index
      %1727 = memref.load %arg1[%1726] : memref<828xf32, #tpu.memory_space<smem>>
      %c5_i32_223 = arith.constant 5 : i32
      %1728 = arith.addi %1724, %c5_i32_223 : i32
      %1729 = arith.index_cast %1728 : i32 to index
      %1730 = memref.load %arg1[%1729] : memref<828xf32, #tpu.memory_space<smem>>
      %c2_i32_224 = arith.constant 2 : i32
      %1731 = tpu.dynamic_rotate %1718 by %c2_i32_224 dim 1 : vector<8x8x128xf32>, i32 -> vector<8x8x128xf32>
      %c6_i32_225 = arith.constant 6 : i32
      %1732 = tpu.dynamic_rotate %1718 by %c6_i32_225 dim 1 : vector<8x8x128xf32>, i32 -> vector<8x8x128xf32>
      %1733 = tpu.iota {dimensions = array<i32: 1>} : vector<1x8x128xi32>
      %c1_i32_226 = arith.constant 1 : i32
      %1734 = vector.broadcast %c1_i32_226 : i32 to vector<1x8x128xi32>
      %1735 = arith.shrsi %1733, %1734 : vector<1x8x128xi32>
      %c1_i32_227 = arith.constant 1 : i32
      %1736 = vector.broadcast %c1_i32_227 : i32 to vector<1x8x128xi32>
      %1737 = arith.andi %1735, %1736 : vector<1x8x128xi32>
      %c1_i32_228 = arith.constant 1 : i32
      %1738 = vector.broadcast %c1_i32_228 : i32 to vector<1x8x128xi32>
      %1739 = arith.cmpi eq, %1737, %1738 : vector<1x8x128xi32>
      %1740 = vector.shape_cast %1739 : vector<1x8x128xi1> to vector<1x8x128xi1>
      %1741 = vector.broadcast %1740 : vector<1x8x128xi1> to vector<8x8x128xi1>
      %1742 = arith.select %1741, %1731, %1732 : vector<8x8x128xi1>, vector<8x8x128xf32>
      %c2_i32_229 = arith.constant 2 : i32
      %1743 = tpu.dynamic_rotate %1721 by %c2_i32_229 dim 1 : vector<8x8x128xf32>, i32 -> vector<8x8x128xf32>
      %c6_i32_230 = arith.constant 6 : i32
      %1744 = tpu.dynamic_rotate %1721 by %c6_i32_230 dim 1 : vector<8x8x128xf32>, i32 -> vector<8x8x128xf32>
      %1745 = tpu.iota {dimensions = array<i32: 1>} : vector<1x8x128xi32>
      %c1_i32_231 = arith.constant 1 : i32
      %1746 = vector.broadcast %c1_i32_231 : i32 to vector<1x8x128xi32>
      %1747 = arith.shrsi %1745, %1746 : vector<1x8x128xi32>
      %c1_i32_232 = arith.constant 1 : i32
      %1748 = vector.broadcast %c1_i32_232 : i32 to vector<1x8x128xi32>
      %1749 = arith.andi %1747, %1748 : vector<1x8x128xi32>
      %c1_i32_233 = arith.constant 1 : i32
      %1750 = vector.broadcast %c1_i32_233 : i32 to vector<1x8x128xi32>
      %1751 = arith.cmpi eq, %1749, %1750 : vector<1x8x128xi32>
      %1752 = vector.shape_cast %1751 : vector<1x8x128xi1> to vector<1x8x128xi1>
      %1753 = vector.broadcast %1752 : vector<1x8x128xi1> to vector<8x8x128xi1>
      %1754 = arith.select %1753, %1743, %1744 : vector<8x8x128xi1>, vector<8x8x128xf32>
      %1755 = vector.broadcast %1727 : f32 to vector<8x8x128xf32>
      %1756 = arith.mulf %1755, %1718 : vector<8x8x128xf32>
      %1757 = vector.broadcast %1730 : f32 to vector<8x8x128xf32>
      %1758 = arith.mulf %1757, %1754 : vector<8x8x128xf32>
      %1759 = arith.addf %1756, %1758 : vector<8x8x128xf32>
      %1760 = vector.broadcast %1727 : f32 to vector<8x8x128xf32>
      %1761 = arith.mulf %1760, %1721 : vector<8x8x128xf32>
      %1762 = vector.broadcast %1730 : f32 to vector<8x8x128xf32>
      %1763 = arith.mulf %1762, %1742 : vector<8x8x128xf32>
      %1764 = arith.subf %1761, %1763 : vector<8x8x128xf32>
      %1765 = tpu.iota {dimensions = array<i32: 1>} : vector<1x8x128xi32>
      %c2_i32_234 = arith.constant 2 : i32
      %1766 = vector.broadcast %c2_i32_234 : i32 to vector<1x8x128xi32>
      %1767 = arith.shrsi %1765, %1766 : vector<1x8x128xi32>
      %c1_i32_235 = arith.constant 1 : i32
      %1768 = vector.broadcast %c1_i32_235 : i32 to vector<1x8x128xi32>
      %1769 = arith.andi %1767, %1768 : vector<1x8x128xi32>
      %c1_i32_236 = arith.constant 1 : i32
      %1770 = vector.broadcast %c1_i32_236 : i32 to vector<1x8x128xi32>
      %1771 = arith.cmpi eq, %1769, %1770 : vector<1x8x128xi32>
      %1772 = vector.shape_cast %1771 : vector<1x8x128xi1> to vector<1x8x128xi1>
      %1773 = vector.broadcast %1772 : vector<1x8x128xi1> to vector<8x8x128xi1>
      %1774 = arith.select %1773, %1759, %1718 : vector<8x8x128xi1>, vector<8x8x128xf32>
      %1775 = vector.shape_cast %1771 : vector<1x8x128xi1> to vector<1x8x128xi1>
      %1776 = vector.broadcast %1775 : vector<1x8x128xi1> to vector<8x8x128xi1>
      %1777 = arith.select %1776, %1764, %1721 : vector<8x8x128xi1>, vector<8x8x128xf32>
      %c6_i32_237 = arith.constant 6 : i32
      %1778 = arith.muli %arg6, %c6_i32_237 : i32
      %c3_i32_238 = arith.constant 3 : i32
      %1779 = arith.addi %1778, %c3_i32_238 : i32
      %c6_i32_239 = arith.constant 6 : i32
      %1780 = arith.muli %1779, %c6_i32_239 : i32
      %c4_i32_240 = arith.constant 4 : i32
      %1781 = arith.addi %1780, %c4_i32_240 : i32
      %1782 = arith.index_cast %1781 : i32 to index
      %1783 = memref.load %arg1[%1782] : memref<828xf32, #tpu.memory_space<smem>>
      %c5_i32_241 = arith.constant 5 : i32
      %1784 = arith.addi %1780, %c5_i32_241 : i32
      %1785 = arith.index_cast %1784 : i32 to index
      %1786 = memref.load %arg1[%1785] : memref<828xf32, #tpu.memory_space<smem>>
      %c4_i32_242 = arith.constant 4 : i32
      %1787 = tpu.dynamic_rotate %1774 by %c4_i32_242 dim 1 : vector<8x8x128xf32>, i32 -> vector<8x8x128xf32>
      %c4_i32_243 = arith.constant 4 : i32
      %1788 = tpu.dynamic_rotate %1777 by %c4_i32_243 dim 1 : vector<8x8x128xf32>, i32 -> vector<8x8x128xf32>
      %1789 = vector.broadcast %1783 : f32 to vector<8x8x128xf32>
      %1790 = arith.mulf %1789, %1774 : vector<8x8x128xf32>
      %1791 = vector.broadcast %1786 : f32 to vector<8x8x128xf32>
      %1792 = arith.mulf %1791, %1788 : vector<8x8x128xf32>
      %1793 = arith.addf %1790, %1792 : vector<8x8x128xf32>
      %1794 = vector.broadcast %1783 : f32 to vector<8x8x128xf32>
      %1795 = arith.mulf %1794, %1777 : vector<8x8x128xf32>
      %1796 = vector.broadcast %1786 : f32 to vector<8x8x128xf32>
      %1797 = arith.mulf %1796, %1787 : vector<8x8x128xf32>
      %1798 = arith.subf %1795, %1797 : vector<8x8x128xf32>
      %1799 = vector.extract_strided_slice %1774 {offsets = [0, 0, 0], sizes = [1, 8, 128], strides = [1, 1, 1]} : vector<8x8x128xf32> to vector<1x8x128xf32>
      %1800 = vector.extract_strided_slice %1793 {offsets = [1, 0, 0], sizes = [1, 8, 128], strides = [1, 1, 1]} : vector<8x8x128xf32> to vector<1x8x128xf32>
      %1801 = vector.extract_strided_slice %1777 {offsets = [0, 0, 0], sizes = [1, 8, 128], strides = [1, 1, 1]} : vector<8x8x128xf32> to vector<1x8x128xf32>
      %1802 = vector.extract_strided_slice %1798 {offsets = [1, 0, 0], sizes = [1, 8, 128], strides = [1, 1, 1]} : vector<8x8x128xf32> to vector<1x8x128xf32>
      %1803 = vector.extract_strided_slice %1774 {offsets = [2, 0, 0], sizes = [1, 8, 128], strides = [1, 1, 1]} : vector<8x8x128xf32> to vector<1x8x128xf32>
      %1804 = vector.extract_strided_slice %1793 {offsets = [3, 0, 0], sizes = [1, 8, 128], strides = [1, 1, 1]} : vector<8x8x128xf32> to vector<1x8x128xf32>
      %1805 = vector.extract_strided_slice %1777 {offsets = [2, 0, 0], sizes = [1, 8, 128], strides = [1, 1, 1]} : vector<8x8x128xf32> to vector<1x8x128xf32>
      %1806 = vector.extract_strided_slice %1798 {offsets = [3, 0, 0], sizes = [1, 8, 128], strides = [1, 1, 1]} : vector<8x8x128xf32> to vector<1x8x128xf32>
      %1807 = vector.extract_strided_slice %1774 {offsets = [4, 0, 0], sizes = [1, 8, 128], strides = [1, 1, 1]} : vector<8x8x128xf32> to vector<1x8x128xf32>
      %1808 = vector.extract_strided_slice %1793 {offsets = [5, 0, 0], sizes = [1, 8, 128], strides = [1, 1, 1]} : vector<8x8x128xf32> to vector<1x8x128xf32>
      %1809 = vector.extract_strided_slice %1777 {offsets = [4, 0, 0], sizes = [1, 8, 128], strides = [1, 1, 1]} : vector<8x8x128xf32> to vector<1x8x128xf32>
      %1810 = vector.extract_strided_slice %1798 {offsets = [5, 0, 0], sizes = [1, 8, 128], strides = [1, 1, 1]} : vector<8x8x128xf32> to vector<1x8x128xf32>
      %1811 = vector.extract_strided_slice %1774 {offsets = [6, 0, 0], sizes = [1, 8, 128], strides = [1, 1, 1]} : vector<8x8x128xf32> to vector<1x8x128xf32>
      %1812 = vector.extract_strided_slice %1793 {offsets = [7, 0, 0], sizes = [1, 8, 128], strides = [1, 1, 1]} : vector<8x8x128xf32> to vector<1x8x128xf32>
      %1813 = vector.extract_strided_slice %1777 {offsets = [6, 0, 0], sizes = [1, 8, 128], strides = [1, 1, 1]} : vector<8x8x128xf32> to vector<1x8x128xf32>
      %1814 = vector.extract_strided_slice %1798 {offsets = [7, 0, 0], sizes = [1, 8, 128], strides = [1, 1, 1]} : vector<8x8x128xf32> to vector<1x8x128xf32>
      %1815 = tpu.concatenate %1799, %1800, %1803, %1804, %1807, %1808, %1811, %1812 in 0 : vector<1x8x128xf32>, vector<1x8x128xf32>, vector<1x8x128xf32>, vector<1x8x128xf32>, vector<1x8x128xf32>, vector<1x8x128xf32>, vector<1x8x128xf32>, vector<1x8x128xf32> -> vector<8x8x128xf32>
      %1816 = tpu.concatenate %1801, %1802, %1805, %1806, %1809, %1810, %1813, %1814 in 0 : vector<1x8x128xf32>, vector<1x8x128xf32>, vector<1x8x128xf32>, vector<1x8x128xf32>, vector<1x8x128xf32>, vector<1x8x128xf32>, vector<1x8x128xf32>, vector<1x8x128xf32> -> vector<8x8x128xf32>
      %c6_i32_244 = arith.constant 6 : i32
      %1817 = arith.muli %arg6, %c6_i32_244 : i32
      %c4_i32_245 = arith.constant 4 : i32
      %1818 = arith.addi %1817, %c4_i32_245 : i32
      %c6_i32_246 = arith.constant 6 : i32
      %1819 = arith.muli %1818, %c6_i32_246 : i32
      %c4_i32_247 = arith.constant 4 : i32
      %1820 = arith.addi %1819, %c4_i32_247 : i32
      %1821 = arith.index_cast %1820 : i32 to index
      %1822 = memref.load %arg1[%1821] : memref<828xf32, #tpu.memory_space<smem>>
      %c5_i32_248 = arith.constant 5 : i32
      %1823 = arith.addi %1819, %c5_i32_248 : i32
      %1824 = arith.index_cast %1823 : i32 to index
      %1825 = memref.load %arg1[%1824] : memref<828xf32, #tpu.memory_space<smem>>
      %1826 = vector.extract_strided_slice %1815 {offsets = [0, 0, 0], sizes = [1, 8, 128], strides = [1, 1, 1]} : vector<8x8x128xf32> to vector<1x8x128xf32>
      %1827 = vector.extract_strided_slice %1816 {offsets = [0, 0, 0], sizes = [1, 8, 128], strides = [1, 1, 1]} : vector<8x8x128xf32> to vector<1x8x128xf32>
      %1828 = vector.extract_strided_slice %1815 {offsets = [1, 0, 0], sizes = [1, 8, 128], strides = [1, 1, 1]} : vector<8x8x128xf32> to vector<1x8x128xf32>
      %1829 = vector.extract_strided_slice %1816 {offsets = [1, 0, 0], sizes = [1, 8, 128], strides = [1, 1, 1]} : vector<8x8x128xf32> to vector<1x8x128xf32>
      %1830 = vector.broadcast %1822 : f32 to vector<1x8x128xf32>
      %1831 = arith.mulf %1830, %1826 : vector<1x8x128xf32>
      %1832 = vector.broadcast %1825 : f32 to vector<1x8x128xf32>
      %1833 = arith.mulf %1832, %1829 : vector<1x8x128xf32>
      %1834 = arith.addf %1831, %1833 : vector<1x8x128xf32>
      %1835 = vector.broadcast %1822 : f32 to vector<1x8x128xf32>
      %1836 = arith.mulf %1835, %1827 : vector<1x8x128xf32>
      %1837 = vector.broadcast %1825 : f32 to vector<1x8x128xf32>
      %1838 = arith.mulf %1837, %1828 : vector<1x8x128xf32>
      %1839 = arith.subf %1836, %1838 : vector<1x8x128xf32>
      %1840 = vector.broadcast %1822 : f32 to vector<1x8x128xf32>
      %1841 = arith.mulf %1840, %1828 : vector<1x8x128xf32>
      %1842 = vector.broadcast %1825 : f32 to vector<1x8x128xf32>
      %1843 = arith.mulf %1842, %1827 : vector<1x8x128xf32>
      %1844 = arith.addf %1841, %1843 : vector<1x8x128xf32>
      %1845 = vector.broadcast %1822 : f32 to vector<1x8x128xf32>
      %1846 = arith.mulf %1845, %1829 : vector<1x8x128xf32>
      %1847 = vector.broadcast %1825 : f32 to vector<1x8x128xf32>
      %1848 = arith.mulf %1847, %1826 : vector<1x8x128xf32>
      %1849 = arith.subf %1846, %1848 : vector<1x8x128xf32>
      %1850 = vector.extract_strided_slice %1815 {offsets = [2, 0, 0], sizes = [1, 8, 128], strides = [1, 1, 1]} : vector<8x8x128xf32> to vector<1x8x128xf32>
      %1851 = vector.extract_strided_slice %1816 {offsets = [2, 0, 0], sizes = [1, 8, 128], strides = [1, 1, 1]} : vector<8x8x128xf32> to vector<1x8x128xf32>
      %1852 = vector.extract_strided_slice %1815 {offsets = [3, 0, 0], sizes = [1, 8, 128], strides = [1, 1, 1]} : vector<8x8x128xf32> to vector<1x8x128xf32>
      %1853 = vector.extract_strided_slice %1816 {offsets = [3, 0, 0], sizes = [1, 8, 128], strides = [1, 1, 1]} : vector<8x8x128xf32> to vector<1x8x128xf32>
      %1854 = vector.broadcast %1822 : f32 to vector<1x8x128xf32>
      %1855 = arith.mulf %1854, %1850 : vector<1x8x128xf32>
      %1856 = vector.broadcast %1825 : f32 to vector<1x8x128xf32>
      %1857 = arith.mulf %1856, %1853 : vector<1x8x128xf32>
      %1858 = arith.addf %1855, %1857 : vector<1x8x128xf32>
      %1859 = vector.broadcast %1822 : f32 to vector<1x8x128xf32>
      %1860 = arith.mulf %1859, %1851 : vector<1x8x128xf32>
      %1861 = vector.broadcast %1825 : f32 to vector<1x8x128xf32>
      %1862 = arith.mulf %1861, %1852 : vector<1x8x128xf32>
      %1863 = arith.subf %1860, %1862 : vector<1x8x128xf32>
      %1864 = vector.broadcast %1822 : f32 to vector<1x8x128xf32>
      %1865 = arith.mulf %1864, %1852 : vector<1x8x128xf32>
      %1866 = vector.broadcast %1825 : f32 to vector<1x8x128xf32>
      %1867 = arith.mulf %1866, %1851 : vector<1x8x128xf32>
      %1868 = arith.addf %1865, %1867 : vector<1x8x128xf32>
      %1869 = vector.broadcast %1822 : f32 to vector<1x8x128xf32>
      %1870 = arith.mulf %1869, %1853 : vector<1x8x128xf32>
      %1871 = vector.broadcast %1825 : f32 to vector<1x8x128xf32>
      %1872 = arith.mulf %1871, %1850 : vector<1x8x128xf32>
      %1873 = arith.subf %1870, %1872 : vector<1x8x128xf32>
      %1874 = vector.extract_strided_slice %1815 {offsets = [4, 0, 0], sizes = [1, 8, 128], strides = [1, 1, 1]} : vector<8x8x128xf32> to vector<1x8x128xf32>
      %1875 = vector.extract_strided_slice %1816 {offsets = [4, 0, 0], sizes = [1, 8, 128], strides = [1, 1, 1]} : vector<8x8x128xf32> to vector<1x8x128xf32>
      %1876 = vector.extract_strided_slice %1815 {offsets = [5, 0, 0], sizes = [1, 8, 128], strides = [1, 1, 1]} : vector<8x8x128xf32> to vector<1x8x128xf32>
      %1877 = vector.extract_strided_slice %1816 {offsets = [5, 0, 0], sizes = [1, 8, 128], strides = [1, 1, 1]} : vector<8x8x128xf32> to vector<1x8x128xf32>
      %1878 = vector.broadcast %1822 : f32 to vector<1x8x128xf32>
      %1879 = arith.mulf %1878, %1874 : vector<1x8x128xf32>
      %1880 = vector.broadcast %1825 : f32 to vector<1x8x128xf32>
      %1881 = arith.mulf %1880, %1877 : vector<1x8x128xf32>
      %1882 = arith.addf %1879, %1881 : vector<1x8x128xf32>
      %1883 = vector.broadcast %1822 : f32 to vector<1x8x128xf32>
      %1884 = arith.mulf %1883, %1875 : vector<1x8x128xf32>
      %1885 = vector.broadcast %1825 : f32 to vector<1x8x128xf32>
      %1886 = arith.mulf %1885, %1876 : vector<1x8x128xf32>
      %1887 = arith.subf %1884, %1886 : vector<1x8x128xf32>
      %1888 = vector.broadcast %1822 : f32 to vector<1x8x128xf32>
      %1889 = arith.mulf %1888, %1876 : vector<1x8x128xf32>
      %1890 = vector.broadcast %1825 : f32 to vector<1x8x128xf32>
      %1891 = arith.mulf %1890, %1875 : vector<1x8x128xf32>
      %1892 = arith.addf %1889, %1891 : vector<1x8x128xf32>
      %1893 = vector.broadcast %1822 : f32 to vector<1x8x128xf32>
      %1894 = arith.mulf %1893, %1877 : vector<1x8x128xf32>
      %1895 = vector.broadcast %1825 : f32 to vector<1x8x128xf32>
      %1896 = arith.mulf %1895, %1874 : vector<1x8x128xf32>
      %1897 = arith.subf %1894, %1896 : vector<1x8x128xf32>
      %1898 = vector.extract_strided_slice %1815 {offsets = [6, 0, 0], sizes = [1, 8, 128], strides = [1, 1, 1]} : vector<8x8x128xf32> to vector<1x8x128xf32>
      %1899 = vector.extract_strided_slice %1816 {offsets = [6, 0, 0], sizes = [1, 8, 128], strides = [1, 1, 1]} : vector<8x8x128xf32> to vector<1x8x128xf32>
      %1900 = vector.extract_strided_slice %1815 {offsets = [7, 0, 0], sizes = [1, 8, 128], strides = [1, 1, 1]} : vector<8x8x128xf32> to vector<1x8x128xf32>
      %1901 = vector.extract_strided_slice %1816 {offsets = [7, 0, 0], sizes = [1, 8, 128], strides = [1, 1, 1]} : vector<8x8x128xf32> to vector<1x8x128xf32>
      %1902 = vector.broadcast %1822 : f32 to vector<1x8x128xf32>
      %1903 = arith.mulf %1902, %1898 : vector<1x8x128xf32>
      %1904 = vector.broadcast %1825 : f32 to vector<1x8x128xf32>
      %1905 = arith.mulf %1904, %1901 : vector<1x8x128xf32>
      %1906 = arith.addf %1903, %1905 : vector<1x8x128xf32>
      %1907 = vector.broadcast %1822 : f32 to vector<1x8x128xf32>
      %1908 = arith.mulf %1907, %1899 : vector<1x8x128xf32>
      %1909 = vector.broadcast %1825 : f32 to vector<1x8x128xf32>
      %1910 = arith.mulf %1909, %1900 : vector<1x8x128xf32>
      %1911 = arith.subf %1908, %1910 : vector<1x8x128xf32>
      %1912 = vector.broadcast %1822 : f32 to vector<1x8x128xf32>
      %1913 = arith.mulf %1912, %1900 : vector<1x8x128xf32>
      %1914 = vector.broadcast %1825 : f32 to vector<1x8x128xf32>
      %1915 = arith.mulf %1914, %1899 : vector<1x8x128xf32>
      %1916 = arith.addf %1913, %1915 : vector<1x8x128xf32>
      %1917 = vector.broadcast %1822 : f32 to vector<1x8x128xf32>
      %1918 = arith.mulf %1917, %1901 : vector<1x8x128xf32>
      %1919 = vector.broadcast %1825 : f32 to vector<1x8x128xf32>
      %1920 = arith.mulf %1919, %1898 : vector<1x8x128xf32>
      %1921 = arith.subf %1918, %1920 : vector<1x8x128xf32>
      %1922 = tpu.concatenate %1834, %1844, %1858, %1868, %1882, %1892, %1906, %1916 in 0 : vector<1x8x128xf32>, vector<1x8x128xf32>, vector<1x8x128xf32>, vector<1x8x128xf32>, vector<1x8x128xf32>, vector<1x8x128xf32>, vector<1x8x128xf32>, vector<1x8x128xf32> -> vector<8x8x128xf32>
      %1923 = tpu.concatenate %1839, %1849, %1863, %1873, %1887, %1897, %1911, %1921 in 0 : vector<1x8x128xf32>, vector<1x8x128xf32>, vector<1x8x128xf32>, vector<1x8x128xf32>, vector<1x8x128xf32>, vector<1x8x128xf32>, vector<1x8x128xf32>, vector<1x8x128xf32> -> vector<8x8x128xf32>
      %1924 = vector.extract_strided_slice %1815 {offsets = [0, 0, 0], sizes = [2, 8, 128], strides = [1, 1, 1]} : vector<8x8x128xf32> to vector<2x8x128xf32>
      %1925 = vector.extract_strided_slice %1922 {offsets = [2, 0, 0], sizes = [2, 8, 128], strides = [1, 1, 1]} : vector<8x8x128xf32> to vector<2x8x128xf32>
      %1926 = vector.extract_strided_slice %1816 {offsets = [0, 0, 0], sizes = [2, 8, 128], strides = [1, 1, 1]} : vector<8x8x128xf32> to vector<2x8x128xf32>
      %1927 = vector.extract_strided_slice %1923 {offsets = [2, 0, 0], sizes = [2, 8, 128], strides = [1, 1, 1]} : vector<8x8x128xf32> to vector<2x8x128xf32>
      %1928 = vector.extract_strided_slice %1815 {offsets = [4, 0, 0], sizes = [2, 8, 128], strides = [1, 1, 1]} : vector<8x8x128xf32> to vector<2x8x128xf32>
      %1929 = vector.extract_strided_slice %1922 {offsets = [6, 0, 0], sizes = [2, 8, 128], strides = [1, 1, 1]} : vector<8x8x128xf32> to vector<2x8x128xf32>
      %1930 = vector.extract_strided_slice %1816 {offsets = [4, 0, 0], sizes = [2, 8, 128], strides = [1, 1, 1]} : vector<8x8x128xf32> to vector<2x8x128xf32>
      %1931 = vector.extract_strided_slice %1923 {offsets = [6, 0, 0], sizes = [2, 8, 128], strides = [1, 1, 1]} : vector<8x8x128xf32> to vector<2x8x128xf32>
      %1932 = tpu.concatenate %1924, %1925, %1928, %1929 in 0 : vector<2x8x128xf32>, vector<2x8x128xf32>, vector<2x8x128xf32>, vector<2x8x128xf32> -> vector<8x8x128xf32>
      %1933 = tpu.concatenate %1926, %1927, %1930, %1931 in 0 : vector<2x8x128xf32>, vector<2x8x128xf32>, vector<2x8x128xf32>, vector<2x8x128xf32> -> vector<8x8x128xf32>
      %c6_i32_249 = arith.constant 6 : i32
      %1934 = arith.muli %arg6, %c6_i32_249 : i32
      %c5_i32_250 = arith.constant 5 : i32
      %1935 = arith.addi %1934, %c5_i32_250 : i32
      %c6_i32_251 = arith.constant 6 : i32
      %1936 = arith.muli %1935, %c6_i32_251 : i32
      %c4_i32_252 = arith.constant 4 : i32
      %1937 = arith.addi %1936, %c4_i32_252 : i32
      %1938 = arith.index_cast %1937 : i32 to index
      %1939 = memref.load %arg1[%1938] : memref<828xf32, #tpu.memory_space<smem>>
      %c5_i32_253 = arith.constant 5 : i32
      %1940 = arith.addi %1936, %c5_i32_253 : i32
      %1941 = arith.index_cast %1940 : i32 to index
      %1942 = memref.load %arg1[%1941] : memref<828xf32, #tpu.memory_space<smem>>
      %1943 = vector.extract_strided_slice %1932 {offsets = [0, 0, 0], sizes = [2, 8, 128], strides = [1, 1, 1]} : vector<8x8x128xf32> to vector<2x8x128xf32>
      %1944 = vector.extract_strided_slice %1933 {offsets = [0, 0, 0], sizes = [2, 8, 128], strides = [1, 1, 1]} : vector<8x8x128xf32> to vector<2x8x128xf32>
      %1945 = vector.extract_strided_slice %1932 {offsets = [2, 0, 0], sizes = [2, 8, 128], strides = [1, 1, 1]} : vector<8x8x128xf32> to vector<2x8x128xf32>
      %1946 = vector.extract_strided_slice %1933 {offsets = [2, 0, 0], sizes = [2, 8, 128], strides = [1, 1, 1]} : vector<8x8x128xf32> to vector<2x8x128xf32>
      %1947 = vector.broadcast %1939 : f32 to vector<2x8x128xf32>
      %1948 = arith.mulf %1947, %1943 : vector<2x8x128xf32>
      %1949 = vector.broadcast %1942 : f32 to vector<2x8x128xf32>
      %1950 = arith.mulf %1949, %1946 : vector<2x8x128xf32>
      %1951 = arith.addf %1948, %1950 : vector<2x8x128xf32>
      %1952 = vector.broadcast %1939 : f32 to vector<2x8x128xf32>
      %1953 = arith.mulf %1952, %1944 : vector<2x8x128xf32>
      %1954 = vector.broadcast %1942 : f32 to vector<2x8x128xf32>
      %1955 = arith.mulf %1954, %1945 : vector<2x8x128xf32>
      %1956 = arith.subf %1953, %1955 : vector<2x8x128xf32>
      %1957 = vector.broadcast %1939 : f32 to vector<2x8x128xf32>
      %1958 = arith.mulf %1957, %1945 : vector<2x8x128xf32>
      %1959 = vector.broadcast %1942 : f32 to vector<2x8x128xf32>
      %1960 = arith.mulf %1959, %1944 : vector<2x8x128xf32>
      %1961 = arith.addf %1958, %1960 : vector<2x8x128xf32>
      %1962 = vector.broadcast %1939 : f32 to vector<2x8x128xf32>
      %1963 = arith.mulf %1962, %1946 : vector<2x8x128xf32>
      %1964 = vector.broadcast %1942 : f32 to vector<2x8x128xf32>
      %1965 = arith.mulf %1964, %1943 : vector<2x8x128xf32>
      %1966 = arith.subf %1963, %1965 : vector<2x8x128xf32>
      %1967 = vector.extract_strided_slice %1932 {offsets = [4, 0, 0], sizes = [2, 8, 128], strides = [1, 1, 1]} : vector<8x8x128xf32> to vector<2x8x128xf32>
      %1968 = vector.extract_strided_slice %1933 {offsets = [4, 0, 0], sizes = [2, 8, 128], strides = [1, 1, 1]} : vector<8x8x128xf32> to vector<2x8x128xf32>
      %1969 = vector.extract_strided_slice %1932 {offsets = [6, 0, 0], sizes = [2, 8, 128], strides = [1, 1, 1]} : vector<8x8x128xf32> to vector<2x8x128xf32>
      %1970 = vector.extract_strided_slice %1933 {offsets = [6, 0, 0], sizes = [2, 8, 128], strides = [1, 1, 1]} : vector<8x8x128xf32> to vector<2x8x128xf32>
      %1971 = vector.broadcast %1939 : f32 to vector<2x8x128xf32>
      %1972 = arith.mulf %1971, %1967 : vector<2x8x128xf32>
      %1973 = vector.broadcast %1942 : f32 to vector<2x8x128xf32>
      %1974 = arith.mulf %1973, %1970 : vector<2x8x128xf32>
      %1975 = arith.addf %1972, %1974 : vector<2x8x128xf32>
      %1976 = vector.broadcast %1939 : f32 to vector<2x8x128xf32>
      %1977 = arith.mulf %1976, %1968 : vector<2x8x128xf32>
      %1978 = vector.broadcast %1942 : f32 to vector<2x8x128xf32>
      %1979 = arith.mulf %1978, %1969 : vector<2x8x128xf32>
      %1980 = arith.subf %1977, %1979 : vector<2x8x128xf32>
      %1981 = vector.broadcast %1939 : f32 to vector<2x8x128xf32>
      %1982 = arith.mulf %1981, %1969 : vector<2x8x128xf32>
      %1983 = vector.broadcast %1942 : f32 to vector<2x8x128xf32>
      %1984 = arith.mulf %1983, %1968 : vector<2x8x128xf32>
      %1985 = arith.addf %1982, %1984 : vector<2x8x128xf32>
      %1986 = vector.broadcast %1939 : f32 to vector<2x8x128xf32>
      %1987 = arith.mulf %1986, %1970 : vector<2x8x128xf32>
      %1988 = vector.broadcast %1942 : f32 to vector<2x8x128xf32>
      %1989 = arith.mulf %1988, %1967 : vector<2x8x128xf32>
      %1990 = arith.subf %1987, %1989 : vector<2x8x128xf32>
      %1991 = tpu.concatenate %1951, %1961, %1975, %1985 in 0 : vector<2x8x128xf32>, vector<2x8x128xf32>, vector<2x8x128xf32>, vector<2x8x128xf32> -> vector<8x8x128xf32>
      %1992 = tpu.concatenate %1956, %1966, %1980, %1990 in 0 : vector<2x8x128xf32>, vector<2x8x128xf32>, vector<2x8x128xf32>, vector<2x8x128xf32> -> vector<8x8x128xf32>
      %1993 = vector.extract_strided_slice %1932 {offsets = [0, 0, 0], sizes = [4, 8, 128], strides = [1, 1, 1]} : vector<8x8x128xf32> to vector<4x8x128xf32>
      %1994 = vector.extract_strided_slice %1991 {offsets = [4, 0, 0], sizes = [4, 8, 128], strides = [1, 1, 1]} : vector<8x8x128xf32> to vector<4x8x128xf32>
      %1995 = vector.extract_strided_slice %1933 {offsets = [0, 0, 0], sizes = [4, 8, 128], strides = [1, 1, 1]} : vector<8x8x128xf32> to vector<4x8x128xf32>
      %1996 = vector.extract_strided_slice %1992 {offsets = [4, 0, 0], sizes = [4, 8, 128], strides = [1, 1, 1]} : vector<8x8x128xf32> to vector<4x8x128xf32>
      %1997 = tpu.concatenate %1993, %1994 in 0 : vector<4x8x128xf32>, vector<4x8x128xf32> -> vector<8x8x128xf32>
      %1998 = tpu.concatenate %1995, %1996 in 0 : vector<4x8x128xf32>, vector<4x8x128xf32> -> vector<8x8x128xf32>
      %1999 = vector.extract_strided_slice %1997 {offsets = [0, 0, 0], sizes = [4, 8, 128], strides = [1, 1, 1]} : vector<8x8x128xf32> to vector<4x8x128xf32>
      %2000 = vector.extract_strided_slice %1998 {offsets = [0, 0, 0], sizes = [4, 8, 128], strides = [1, 1, 1]} : vector<8x8x128xf32> to vector<4x8x128xf32>
      %2001 = vector.extract_strided_slice %1997 {offsets = [4, 0, 0], sizes = [4, 8, 128], strides = [1, 1, 1]} : vector<8x8x128xf32> to vector<4x8x128xf32>
      %2002 = vector.extract_strided_slice %1998 {offsets = [4, 0, 0], sizes = [4, 8, 128], strides = [1, 1, 1]} : vector<8x8x128xf32> to vector<4x8x128xf32>
      %2003 = vector.broadcast %14 : vector<1x8x128xf32> to vector<4x8x128xf32>
      %2004 = arith.mulf %2003, %1999 : vector<4x8x128xf32>
      %2005 = vector.broadcast %17 : vector<1x8x128xf32> to vector<4x8x128xf32>
      %2006 = arith.mulf %2005, %2000 : vector<4x8x128xf32>
      %2007 = arith.subf %2004, %2006 : vector<4x8x128xf32>
      %2008 = vector.broadcast %20 : vector<1x8x128xf32> to vector<4x8x128xf32>
      %2009 = arith.mulf %2008, %2001 : vector<4x8x128xf32>
      %2010 = arith.subf %2007, %2009 : vector<4x8x128xf32>
      %2011 = vector.broadcast %25 : vector<1x8x128xf32> to vector<4x8x128xf32>
      %2012 = arith.mulf %2011, %2002 : vector<4x8x128xf32>
      %2013 = arith.subf %2010, %2012 : vector<4x8x128xf32>
      %2014 = vector.broadcast %14 : vector<1x8x128xf32> to vector<4x8x128xf32>
      %2015 = arith.mulf %2014, %2000 : vector<4x8x128xf32>
      %2016 = vector.broadcast %17 : vector<1x8x128xf32> to vector<4x8x128xf32>
      %2017 = arith.mulf %2016, %1999 : vector<4x8x128xf32>
      %2018 = arith.addf %2015, %2017 : vector<4x8x128xf32>
      %2019 = vector.broadcast %20 : vector<1x8x128xf32> to vector<4x8x128xf32>
      %2020 = arith.mulf %2019, %2002 : vector<4x8x128xf32>
      %2021 = arith.subf %2018, %2020 : vector<4x8x128xf32>
      %2022 = vector.broadcast %25 : vector<1x8x128xf32> to vector<4x8x128xf32>
      %2023 = arith.mulf %2022, %2001 : vector<4x8x128xf32>
      %2024 = arith.addf %2021, %2023 : vector<4x8x128xf32>
      %2025 = vector.broadcast %20 : vector<1x8x128xf32> to vector<4x8x128xf32>
      %2026 = arith.mulf %2025, %1999 : vector<4x8x128xf32>
      %2027 = vector.broadcast %25 : vector<1x8x128xf32> to vector<4x8x128xf32>
      %2028 = arith.mulf %2027, %2000 : vector<4x8x128xf32>
      %2029 = arith.subf %2026, %2028 : vector<4x8x128xf32>
      %2030 = vector.broadcast %14 : vector<1x8x128xf32> to vector<4x8x128xf32>
      %2031 = arith.mulf %2030, %2001 : vector<4x8x128xf32>
      %2032 = arith.addf %2029, %2031 : vector<4x8x128xf32>
      %2033 = vector.broadcast %17 : vector<1x8x128xf32> to vector<4x8x128xf32>
      %2034 = arith.mulf %2033, %2002 : vector<4x8x128xf32>
      %2035 = arith.addf %2032, %2034 : vector<4x8x128xf32>
      %2036 = vector.broadcast %20 : vector<1x8x128xf32> to vector<4x8x128xf32>
      %2037 = arith.mulf %2036, %2000 : vector<4x8x128xf32>
      %2038 = vector.broadcast %25 : vector<1x8x128xf32> to vector<4x8x128xf32>
      %2039 = arith.mulf %2038, %1999 : vector<4x8x128xf32>
      %2040 = arith.addf %2037, %2039 : vector<4x8x128xf32>
      %2041 = vector.broadcast %14 : vector<1x8x128xf32> to vector<4x8x128xf32>
      %2042 = arith.mulf %2041, %2002 : vector<4x8x128xf32>
      %2043 = arith.addf %2040, %2042 : vector<4x8x128xf32>
      %2044 = vector.broadcast %17 : vector<1x8x128xf32> to vector<4x8x128xf32>
      %2045 = arith.mulf %2044, %2001 : vector<4x8x128xf32>
      %2046 = arith.subf %2043, %2045 : vector<4x8x128xf32>
      %2047 = tpu.concatenate %2013, %2035 in 0 : vector<4x8x128xf32>, vector<4x8x128xf32> -> vector<8x8x128xf32>
      %2048 = tpu.concatenate %2024, %2046 in 0 : vector<4x8x128xf32>, vector<4x8x128xf32> -> vector<8x8x128xf32>
      %2049 = vector.extract_strided_slice %2047 {offsets = [0, 0, 0], sizes = [2, 8, 128], strides = [1, 1, 1]} : vector<8x8x128xf32> to vector<2x8x128xf32>
      %2050 = vector.extract_strided_slice %2048 {offsets = [0, 0, 0], sizes = [2, 8, 128], strides = [1, 1, 1]} : vector<8x8x128xf32> to vector<2x8x128xf32>
      %2051 = vector.extract_strided_slice %2047 {offsets = [2, 0, 0], sizes = [2, 8, 128], strides = [1, 1, 1]} : vector<8x8x128xf32> to vector<2x8x128xf32>
      %2052 = vector.extract_strided_slice %2048 {offsets = [2, 0, 0], sizes = [2, 8, 128], strides = [1, 1, 1]} : vector<8x8x128xf32> to vector<2x8x128xf32>
      %2053 = vector.broadcast %14 : vector<1x8x128xf32> to vector<2x8x128xf32>
      %2054 = arith.mulf %2053, %2049 : vector<2x8x128xf32>
      %2055 = vector.broadcast %17 : vector<1x8x128xf32> to vector<2x8x128xf32>
      %2056 = arith.mulf %2055, %2050 : vector<2x8x128xf32>
      %2057 = arith.subf %2054, %2056 : vector<2x8x128xf32>
      %2058 = vector.broadcast %20 : vector<1x8x128xf32> to vector<2x8x128xf32>
      %2059 = arith.mulf %2058, %2051 : vector<2x8x128xf32>
      %2060 = arith.subf %2057, %2059 : vector<2x8x128xf32>
      %2061 = vector.broadcast %25 : vector<1x8x128xf32> to vector<2x8x128xf32>
      %2062 = arith.mulf %2061, %2052 : vector<2x8x128xf32>
      %2063 = arith.subf %2060, %2062 : vector<2x8x128xf32>
      %2064 = vector.broadcast %14 : vector<1x8x128xf32> to vector<2x8x128xf32>
      %2065 = arith.mulf %2064, %2050 : vector<2x8x128xf32>
      %2066 = vector.broadcast %17 : vector<1x8x128xf32> to vector<2x8x128xf32>
      %2067 = arith.mulf %2066, %2049 : vector<2x8x128xf32>
      %2068 = arith.addf %2065, %2067 : vector<2x8x128xf32>
      %2069 = vector.broadcast %20 : vector<1x8x128xf32> to vector<2x8x128xf32>
      %2070 = arith.mulf %2069, %2052 : vector<2x8x128xf32>
      %2071 = arith.subf %2068, %2070 : vector<2x8x128xf32>
      %2072 = vector.broadcast %25 : vector<1x8x128xf32> to vector<2x8x128xf32>
      %2073 = arith.mulf %2072, %2051 : vector<2x8x128xf32>
      %2074 = arith.addf %2071, %2073 : vector<2x8x128xf32>
      %2075 = vector.broadcast %20 : vector<1x8x128xf32> to vector<2x8x128xf32>
      %2076 = arith.mulf %2075, %2049 : vector<2x8x128xf32>
      %2077 = vector.broadcast %25 : vector<1x8x128xf32> to vector<2x8x128xf32>
      %2078 = arith.mulf %2077, %2050 : vector<2x8x128xf32>
      %2079 = arith.subf %2076, %2078 : vector<2x8x128xf32>
      %2080 = vector.broadcast %14 : vector<1x8x128xf32> to vector<2x8x128xf32>
      %2081 = arith.mulf %2080, %2051 : vector<2x8x128xf32>
      %2082 = arith.addf %2079, %2081 : vector<2x8x128xf32>
      %2083 = vector.broadcast %17 : vector<1x8x128xf32> to vector<2x8x128xf32>
      %2084 = arith.mulf %2083, %2052 : vector<2x8x128xf32>
      %2085 = arith.addf %2082, %2084 : vector<2x8x128xf32>
      %2086 = vector.broadcast %20 : vector<1x8x128xf32> to vector<2x8x128xf32>
      %2087 = arith.mulf %2086, %2050 : vector<2x8x128xf32>
      %2088 = vector.broadcast %25 : vector<1x8x128xf32> to vector<2x8x128xf32>
      %2089 = arith.mulf %2088, %2049 : vector<2x8x128xf32>
      %2090 = arith.addf %2087, %2089 : vector<2x8x128xf32>
      %2091 = vector.broadcast %14 : vector<1x8x128xf32> to vector<2x8x128xf32>
      %2092 = arith.mulf %2091, %2052 : vector<2x8x128xf32>
      %2093 = arith.addf %2090, %2092 : vector<2x8x128xf32>
      %2094 = vector.broadcast %17 : vector<1x8x128xf32> to vector<2x8x128xf32>
      %2095 = arith.mulf %2094, %2051 : vector<2x8x128xf32>
      %2096 = arith.subf %2093, %2095 : vector<2x8x128xf32>
      %2097 = vector.extract_strided_slice %2047 {offsets = [4, 0, 0], sizes = [2, 8, 128], strides = [1, 1, 1]} : vector<8x8x128xf32> to vector<2x8x128xf32>
      %2098 = vector.extract_strided_slice %2048 {offsets = [4, 0, 0], sizes = [2, 8, 128], strides = [1, 1, 1]} : vector<8x8x128xf32> to vector<2x8x128xf32>
      %2099 = vector.extract_strided_slice %2047 {offsets = [6, 0, 0], sizes = [2, 8, 128], strides = [1, 1, 1]} : vector<8x8x128xf32> to vector<2x8x128xf32>
      %2100 = vector.extract_strided_slice %2048 {offsets = [6, 0, 0], sizes = [2, 8, 128], strides = [1, 1, 1]} : vector<8x8x128xf32> to vector<2x8x128xf32>
      %2101 = vector.broadcast %14 : vector<1x8x128xf32> to vector<2x8x128xf32>
      %2102 = arith.mulf %2101, %2097 : vector<2x8x128xf32>
      %2103 = vector.broadcast %17 : vector<1x8x128xf32> to vector<2x8x128xf32>
      %2104 = arith.mulf %2103, %2098 : vector<2x8x128xf32>
      %2105 = arith.subf %2102, %2104 : vector<2x8x128xf32>
      %2106 = vector.broadcast %20 : vector<1x8x128xf32> to vector<2x8x128xf32>
      %2107 = arith.mulf %2106, %2099 : vector<2x8x128xf32>
      %2108 = arith.subf %2105, %2107 : vector<2x8x128xf32>
      %2109 = vector.broadcast %25 : vector<1x8x128xf32> to vector<2x8x128xf32>
      %2110 = arith.mulf %2109, %2100 : vector<2x8x128xf32>
      %2111 = arith.subf %2108, %2110 : vector<2x8x128xf32>
      %2112 = vector.broadcast %14 : vector<1x8x128xf32> to vector<2x8x128xf32>
      %2113 = arith.mulf %2112, %2098 : vector<2x8x128xf32>
      %2114 = vector.broadcast %17 : vector<1x8x128xf32> to vector<2x8x128xf32>
      %2115 = arith.mulf %2114, %2097 : vector<2x8x128xf32>
      %2116 = arith.addf %2113, %2115 : vector<2x8x128xf32>
      %2117 = vector.broadcast %20 : vector<1x8x128xf32> to vector<2x8x128xf32>
      %2118 = arith.mulf %2117, %2100 : vector<2x8x128xf32>
      %2119 = arith.subf %2116, %2118 : vector<2x8x128xf32>
      %2120 = vector.broadcast %25 : vector<1x8x128xf32> to vector<2x8x128xf32>
      %2121 = arith.mulf %2120, %2099 : vector<2x8x128xf32>
      %2122 = arith.addf %2119, %2121 : vector<2x8x128xf32>
      %2123 = vector.broadcast %20 : vector<1x8x128xf32> to vector<2x8x128xf32>
      %2124 = arith.mulf %2123, %2097 : vector<2x8x128xf32>
      %2125 = vector.broadcast %25 : vector<1x8x128xf32> to vector<2x8x128xf32>
      %2126 = arith.mulf %2125, %2098 : vector<2x8x128xf32>
      %2127 = arith.subf %2124, %2126 : vector<2x8x128xf32>
      %2128 = vector.broadcast %14 : vector<1x8x128xf32> to vector<2x8x128xf32>
      %2129 = arith.mulf %2128, %2099 : vector<2x8x128xf32>
      %2130 = arith.addf %2127, %2129 : vector<2x8x128xf32>
      %2131 = vector.broadcast %17 : vector<1x8x128xf32> to vector<2x8x128xf32>
      %2132 = arith.mulf %2131, %2100 : vector<2x8x128xf32>
      %2133 = arith.addf %2130, %2132 : vector<2x8x128xf32>
      %2134 = vector.broadcast %20 : vector<1x8x128xf32> to vector<2x8x128xf32>
      %2135 = arith.mulf %2134, %2098 : vector<2x8x128xf32>
      %2136 = vector.broadcast %25 : vector<1x8x128xf32> to vector<2x8x128xf32>
      %2137 = arith.mulf %2136, %2097 : vector<2x8x128xf32>
      %2138 = arith.addf %2135, %2137 : vector<2x8x128xf32>
      %2139 = vector.broadcast %14 : vector<1x8x128xf32> to vector<2x8x128xf32>
      %2140 = arith.mulf %2139, %2100 : vector<2x8x128xf32>
      %2141 = arith.addf %2138, %2140 : vector<2x8x128xf32>
      %2142 = vector.broadcast %17 : vector<1x8x128xf32> to vector<2x8x128xf32>
      %2143 = arith.mulf %2142, %2099 : vector<2x8x128xf32>
      %2144 = arith.subf %2141, %2143 : vector<2x8x128xf32>
      %2145 = tpu.concatenate %2063, %2085, %2111, %2133 in 0 : vector<2x8x128xf32>, vector<2x8x128xf32>, vector<2x8x128xf32>, vector<2x8x128xf32> -> vector<8x8x128xf32>
      %2146 = tpu.concatenate %2074, %2096, %2122, %2144 in 0 : vector<2x8x128xf32>, vector<2x8x128xf32>, vector<2x8x128xf32>, vector<2x8x128xf32> -> vector<8x8x128xf32>
      %2147 = vector.extract_strided_slice %2145 {offsets = [0, 0, 0], sizes = [1, 8, 128], strides = [1, 1, 1]} : vector<8x8x128xf32> to vector<1x8x128xf32>
      %2148 = vector.extract_strided_slice %2146 {offsets = [0, 0, 0], sizes = [1, 8, 128], strides = [1, 1, 1]} : vector<8x8x128xf32> to vector<1x8x128xf32>
      %2149 = vector.extract_strided_slice %2145 {offsets = [1, 0, 0], sizes = [1, 8, 128], strides = [1, 1, 1]} : vector<8x8x128xf32> to vector<1x8x128xf32>
      %2150 = vector.extract_strided_slice %2146 {offsets = [1, 0, 0], sizes = [1, 8, 128], strides = [1, 1, 1]} : vector<8x8x128xf32> to vector<1x8x128xf32>
      %2151 = arith.mulf %14, %2147 : vector<1x8x128xf32>
      %2152 = arith.mulf %17, %2148 : vector<1x8x128xf32>
      %2153 = arith.subf %2151, %2152 : vector<1x8x128xf32>
      %2154 = arith.mulf %20, %2149 : vector<1x8x128xf32>
      %2155 = arith.subf %2153, %2154 : vector<1x8x128xf32>
      %2156 = arith.mulf %25, %2150 : vector<1x8x128xf32>
      %2157 = arith.subf %2155, %2156 : vector<1x8x128xf32>
      %2158 = arith.mulf %14, %2148 : vector<1x8x128xf32>
      %2159 = arith.mulf %17, %2147 : vector<1x8x128xf32>
      %2160 = arith.addf %2158, %2159 : vector<1x8x128xf32>
      %2161 = arith.mulf %20, %2150 : vector<1x8x128xf32>
      %2162 = arith.subf %2160, %2161 : vector<1x8x128xf32>
      %2163 = arith.mulf %25, %2149 : vector<1x8x128xf32>
      %2164 = arith.addf %2162, %2163 : vector<1x8x128xf32>
      %2165 = arith.mulf %20, %2147 : vector<1x8x128xf32>
      %2166 = arith.mulf %25, %2148 : vector<1x8x128xf32>
      %2167 = arith.subf %2165, %2166 : vector<1x8x128xf32>
      %2168 = arith.mulf %14, %2149 : vector<1x8x128xf32>
      %2169 = arith.addf %2167, %2168 : vector<1x8x128xf32>
      %2170 = arith.mulf %17, %2150 : vector<1x8x128xf32>
      %2171 = arith.addf %2169, %2170 : vector<1x8x128xf32>
      %2172 = arith.mulf %20, %2148 : vector<1x8x128xf32>
      %2173 = arith.mulf %25, %2147 : vector<1x8x128xf32>
      %2174 = arith.addf %2172, %2173 : vector<1x8x128xf32>
      %2175 = arith.mulf %14, %2150 : vector<1x8x128xf32>
      %2176 = arith.addf %2174, %2175 : vector<1x8x128xf32>
      %2177 = arith.mulf %17, %2149 : vector<1x8x128xf32>
      %2178 = arith.subf %2176, %2177 : vector<1x8x128xf32>
      %2179 = vector.extract_strided_slice %2145 {offsets = [2, 0, 0], sizes = [1, 8, 128], strides = [1, 1, 1]} : vector<8x8x128xf32> to vector<1x8x128xf32>
      %2180 = vector.extract_strided_slice %2146 {offsets = [2, 0, 0], sizes = [1, 8, 128], strides = [1, 1, 1]} : vector<8x8x128xf32> to vector<1x8x128xf32>
      %2181 = vector.extract_strided_slice %2145 {offsets = [3, 0, 0], sizes = [1, 8, 128], strides = [1, 1, 1]} : vector<8x8x128xf32> to vector<1x8x128xf32>
      %2182 = vector.extract_strided_slice %2146 {offsets = [3, 0, 0], sizes = [1, 8, 128], strides = [1, 1, 1]} : vector<8x8x128xf32> to vector<1x8x128xf32>
      %2183 = arith.mulf %14, %2179 : vector<1x8x128xf32>
      %2184 = arith.mulf %17, %2180 : vector<1x8x128xf32>
      %2185 = arith.subf %2183, %2184 : vector<1x8x128xf32>
      %2186 = arith.mulf %20, %2181 : vector<1x8x128xf32>
      %2187 = arith.subf %2185, %2186 : vector<1x8x128xf32>
      %2188 = arith.mulf %25, %2182 : vector<1x8x128xf32>
      %2189 = arith.subf %2187, %2188 : vector<1x8x128xf32>
      %2190 = arith.mulf %14, %2180 : vector<1x8x128xf32>
      %2191 = arith.mulf %17, %2179 : vector<1x8x128xf32>
      %2192 = arith.addf %2190, %2191 : vector<1x8x128xf32>
      %2193 = arith.mulf %20, %2182 : vector<1x8x128xf32>
      %2194 = arith.subf %2192, %2193 : vector<1x8x128xf32>
      %2195 = arith.mulf %25, %2181 : vector<1x8x128xf32>
      %2196 = arith.addf %2194, %2195 : vector<1x8x128xf32>
      %2197 = arith.mulf %20, %2179 : vector<1x8x128xf32>
      %2198 = arith.mulf %25, %2180 : vector<1x8x128xf32>
      %2199 = arith.subf %2197, %2198 : vector<1x8x128xf32>
      %2200 = arith.mulf %14, %2181 : vector<1x8x128xf32>
      %2201 = arith.addf %2199, %2200 : vector<1x8x128xf32>
      %2202 = arith.mulf %17, %2182 : vector<1x8x128xf32>
      %2203 = arith.addf %2201, %2202 : vector<1x8x128xf32>
      %2204 = arith.mulf %20, %2180 : vector<1x8x128xf32>
      %2205 = arith.mulf %25, %2179 : vector<1x8x128xf32>
      %2206 = arith.addf %2204, %2205 : vector<1x8x128xf32>
      %2207 = arith.mulf %14, %2182 : vector<1x8x128xf32>
      %2208 = arith.addf %2206, %2207 : vector<1x8x128xf32>
      %2209 = arith.mulf %17, %2181 : vector<1x8x128xf32>
      %2210 = arith.subf %2208, %2209 : vector<1x8x128xf32>
      %2211 = vector.extract_strided_slice %2145 {offsets = [4, 0, 0], sizes = [1, 8, 128], strides = [1, 1, 1]} : vector<8x8x128xf32> to vector<1x8x128xf32>
      %2212 = vector.extract_strided_slice %2146 {offsets = [4, 0, 0], sizes = [1, 8, 128], strides = [1, 1, 1]} : vector<8x8x128xf32> to vector<1x8x128xf32>
      %2213 = vector.extract_strided_slice %2145 {offsets = [5, 0, 0], sizes = [1, 8, 128], strides = [1, 1, 1]} : vector<8x8x128xf32> to vector<1x8x128xf32>
      %2214 = vector.extract_strided_slice %2146 {offsets = [5, 0, 0], sizes = [1, 8, 128], strides = [1, 1, 1]} : vector<8x8x128xf32> to vector<1x8x128xf32>
      %2215 = arith.mulf %14, %2211 : vector<1x8x128xf32>
      %2216 = arith.mulf %17, %2212 : vector<1x8x128xf32>
      %2217 = arith.subf %2215, %2216 : vector<1x8x128xf32>
      %2218 = arith.mulf %20, %2213 : vector<1x8x128xf32>
      %2219 = arith.subf %2217, %2218 : vector<1x8x128xf32>
      %2220 = arith.mulf %25, %2214 : vector<1x8x128xf32>
      %2221 = arith.subf %2219, %2220 : vector<1x8x128xf32>
      %2222 = arith.mulf %14, %2212 : vector<1x8x128xf32>
      %2223 = arith.mulf %17, %2211 : vector<1x8x128xf32>
      %2224 = arith.addf %2222, %2223 : vector<1x8x128xf32>
      %2225 = arith.mulf %20, %2214 : vector<1x8x128xf32>
      %2226 = arith.subf %2224, %2225 : vector<1x8x128xf32>
      %2227 = arith.mulf %25, %2213 : vector<1x8x128xf32>
      %2228 = arith.addf %2226, %2227 : vector<1x8x128xf32>
      %2229 = arith.mulf %20, %2211 : vector<1x8x128xf32>
      %2230 = arith.mulf %25, %2212 : vector<1x8x128xf32>
      %2231 = arith.subf %2229, %2230 : vector<1x8x128xf32>
      %2232 = arith.mulf %14, %2213 : vector<1x8x128xf32>
      %2233 = arith.addf %2231, %2232 : vector<1x8x128xf32>
      %2234 = arith.mulf %17, %2214 : vector<1x8x128xf32>
      %2235 = arith.addf %2233, %2234 : vector<1x8x128xf32>
      %2236 = arith.mulf %20, %2212 : vector<1x8x128xf32>
      %2237 = arith.mulf %25, %2211 : vector<1x8x128xf32>
      %2238 = arith.addf %2236, %2237 : vector<1x8x128xf32>
      %2239 = arith.mulf %14, %2214 : vector<1x8x128xf32>
      %2240 = arith.addf %2238, %2239 : vector<1x8x128xf32>
      %2241 = arith.mulf %17, %2213 : vector<1x8x128xf32>
      %2242 = arith.subf %2240, %2241 : vector<1x8x128xf32>
      %2243 = vector.extract_strided_slice %2145 {offsets = [6, 0, 0], sizes = [1, 8, 128], strides = [1, 1, 1]} : vector<8x8x128xf32> to vector<1x8x128xf32>
      %2244 = vector.extract_strided_slice %2146 {offsets = [6, 0, 0], sizes = [1, 8, 128], strides = [1, 1, 1]} : vector<8x8x128xf32> to vector<1x8x128xf32>
      %2245 = vector.extract_strided_slice %2145 {offsets = [7, 0, 0], sizes = [1, 8, 128], strides = [1, 1, 1]} : vector<8x8x128xf32> to vector<1x8x128xf32>
      %2246 = vector.extract_strided_slice %2146 {offsets = [7, 0, 0], sizes = [1, 8, 128], strides = [1, 1, 1]} : vector<8x8x128xf32> to vector<1x8x128xf32>
      %2247 = arith.mulf %14, %2243 : vector<1x8x128xf32>
      %2248 = arith.mulf %17, %2244 : vector<1x8x128xf32>
      %2249 = arith.subf %2247, %2248 : vector<1x8x128xf32>
      %2250 = arith.mulf %20, %2245 : vector<1x8x128xf32>
      %2251 = arith.subf %2249, %2250 : vector<1x8x128xf32>
      %2252 = arith.mulf %25, %2246 : vector<1x8x128xf32>
      %2253 = arith.subf %2251, %2252 : vector<1x8x128xf32>
      %2254 = arith.mulf %14, %2244 : vector<1x8x128xf32>
      %2255 = arith.mulf %17, %2243 : vector<1x8x128xf32>
      %2256 = arith.addf %2254, %2255 : vector<1x8x128xf32>
      %2257 = arith.mulf %20, %2246 : vector<1x8x128xf32>
      %2258 = arith.subf %2256, %2257 : vector<1x8x128xf32>
      %2259 = arith.mulf %25, %2245 : vector<1x8x128xf32>
      %2260 = arith.addf %2258, %2259 : vector<1x8x128xf32>
      %2261 = arith.mulf %20, %2243 : vector<1x8x128xf32>
      %2262 = arith.mulf %25, %2244 : vector<1x8x128xf32>
      %2263 = arith.subf %2261, %2262 : vector<1x8x128xf32>
      %2264 = arith.mulf %14, %2245 : vector<1x8x128xf32>
      %2265 = arith.addf %2263, %2264 : vector<1x8x128xf32>
      %2266 = arith.mulf %17, %2246 : vector<1x8x128xf32>
      %2267 = arith.addf %2265, %2266 : vector<1x8x128xf32>
      %2268 = arith.mulf %20, %2244 : vector<1x8x128xf32>
      %2269 = arith.mulf %25, %2243 : vector<1x8x128xf32>
      %2270 = arith.addf %2268, %2269 : vector<1x8x128xf32>
      %2271 = arith.mulf %14, %2246 : vector<1x8x128xf32>
      %2272 = arith.addf %2270, %2271 : vector<1x8x128xf32>
      %2273 = arith.mulf %17, %2245 : vector<1x8x128xf32>
      %2274 = arith.subf %2272, %2273 : vector<1x8x128xf32>
      %2275 = tpu.concatenate %2157, %2171, %2189, %2203, %2221, %2235, %2253, %2267 in 0 : vector<1x8x128xf32>, vector<1x8x128xf32>, vector<1x8x128xf32>, vector<1x8x128xf32>, vector<1x8x128xf32>, vector<1x8x128xf32>, vector<1x8x128xf32>, vector<1x8x128xf32> -> vector<8x8x128xf32>
      %2276 = tpu.concatenate %2164, %2178, %2196, %2210, %2228, %2242, %2260, %2274 in 0 : vector<1x8x128xf32>, vector<1x8x128xf32>, vector<1x8x128xf32>, vector<1x8x128xf32>, vector<1x8x128xf32>, vector<1x8x128xf32>, vector<1x8x128xf32>, vector<1x8x128xf32> -> vector<8x8x128xf32>
      %c4_i32_254 = arith.constant 4 : i32
      %2277 = tpu.dynamic_rotate %2275 by %c4_i32_254 dim 1 : vector<8x8x128xf32>, i32 -> vector<8x8x128xf32>
      %c4_i32_255 = arith.constant 4 : i32
      %2278 = tpu.dynamic_rotate %2276 by %c4_i32_255 dim 1 : vector<8x8x128xf32>, i32 -> vector<8x8x128xf32>
      %2279 = tpu.iota {dimensions = array<i32: 1>} : vector<1x8x128xi32>
      %c2_i32_256 = arith.constant 2 : i32
      %2280 = vector.broadcast %c2_i32_256 : i32 to vector<1x8x128xi32>
      %2281 = arith.shrsi %2279, %2280 : vector<1x8x128xi32>
      %c1_i32_257 = arith.constant 1 : i32
      %2282 = vector.broadcast %c1_i32_257 : i32 to vector<1x8x128xi32>
      %2283 = arith.andi %2281, %2282 : vector<1x8x128xi32>
      %c2_i32_258 = arith.constant 2 : i32
      %2284 = vector.broadcast %c2_i32_258 : i32 to vector<1x8x128xi32>
      %2285 = arith.muli %2284, %2283 : vector<1x8x128xi32>
      %c1_i32_259 = arith.constant 1 : i32
      %2286 = vector.broadcast %c1_i32_259 : i32 to vector<1x8x128xi32>
      %2287 = arith.subi %2285, %2286 : vector<1x8x128xi32>
      %2288 = arith.sitofp %2287 : vector<1x8x128xi32> to vector<1x8x128xf32>
      %2289 = vector.broadcast %14 : vector<1x8x128xf32> to vector<8x8x128xf32>
      %2290 = arith.mulf %2289, %2275 : vector<8x8x128xf32>
      %2291 = vector.broadcast %25 : vector<1x8x128xf32> to vector<8x8x128xf32>
      %2292 = arith.mulf %2291, %2278 : vector<8x8x128xf32>
      %2293 = arith.subf %2290, %2292 : vector<8x8x128xf32>
      %2294 = vector.broadcast %17 : vector<1x8x128xf32> to vector<8x8x128xf32>
      %2295 = arith.mulf %2294, %2276 : vector<8x8x128xf32>
      %2296 = vector.broadcast %20 : vector<1x8x128xf32> to vector<8x8x128xf32>
      %2297 = arith.mulf %2296, %2277 : vector<8x8x128xf32>
      %2298 = arith.addf %2295, %2297 : vector<8x8x128xf32>
      %2299 = vector.broadcast %2288 : vector<1x8x128xf32> to vector<8x8x128xf32>
      %2300 = arith.mulf %2299, %2298 : vector<8x8x128xf32>
      %2301 = arith.addf %2293, %2300 : vector<8x8x128xf32>
      %2302 = vector.broadcast %14 : vector<1x8x128xf32> to vector<8x8x128xf32>
      %2303 = arith.mulf %2302, %2276 : vector<8x8x128xf32>
      %2304 = vector.broadcast %25 : vector<1x8x128xf32> to vector<8x8x128xf32>
      %2305 = arith.mulf %2304, %2277 : vector<8x8x128xf32>
      %2306 = arith.addf %2303, %2305 : vector<8x8x128xf32>
      %2307 = vector.broadcast %20 : vector<1x8x128xf32> to vector<8x8x128xf32>
      %2308 = arith.mulf %2307, %2278 : vector<8x8x128xf32>
      %2309 = vector.broadcast %17 : vector<1x8x128xf32> to vector<8x8x128xf32>
      %2310 = arith.mulf %2309, %2275 : vector<8x8x128xf32>
      %2311 = arith.subf %2308, %2310 : vector<8x8x128xf32>
      %2312 = vector.broadcast %2288 : vector<1x8x128xf32> to vector<8x8x128xf32>
      %2313 = arith.mulf %2312, %2311 : vector<8x8x128xf32>
      %2314 = arith.addf %2306, %2313 : vector<8x8x128xf32>
      %c2_i32_260 = arith.constant 2 : i32
      %2315 = tpu.dynamic_rotate %2301 by %c2_i32_260 dim 1 : vector<8x8x128xf32>, i32 -> vector<8x8x128xf32>
      %c6_i32_261 = arith.constant 6 : i32
      %2316 = tpu.dynamic_rotate %2301 by %c6_i32_261 dim 1 : vector<8x8x128xf32>, i32 -> vector<8x8x128xf32>
      %2317 = tpu.iota {dimensions = array<i32: 1>} : vector<1x8x128xi32>
      %c1_i32_262 = arith.constant 1 : i32
      %2318 = vector.broadcast %c1_i32_262 : i32 to vector<1x8x128xi32>
      %2319 = arith.shrsi %2317, %2318 : vector<1x8x128xi32>
      %c1_i32_263 = arith.constant 1 : i32
      %2320 = vector.broadcast %c1_i32_263 : i32 to vector<1x8x128xi32>
      %2321 = arith.andi %2319, %2320 : vector<1x8x128xi32>
      %c1_i32_264 = arith.constant 1 : i32
      %2322 = vector.broadcast %c1_i32_264 : i32 to vector<1x8x128xi32>
      %2323 = arith.cmpi eq, %2321, %2322 : vector<1x8x128xi32>
      %2324 = vector.shape_cast %2323 : vector<1x8x128xi1> to vector<1x8x128xi1>
      %2325 = vector.broadcast %2324 : vector<1x8x128xi1> to vector<8x8x128xi1>
      %2326 = arith.select %2325, %2315, %2316 : vector<8x8x128xi1>, vector<8x8x128xf32>
      %c2_i32_265 = arith.constant 2 : i32
      %2327 = tpu.dynamic_rotate %2314 by %c2_i32_265 dim 1 : vector<8x8x128xf32>, i32 -> vector<8x8x128xf32>
      %c6_i32_266 = arith.constant 6 : i32
      %2328 = tpu.dynamic_rotate %2314 by %c6_i32_266 dim 1 : vector<8x8x128xf32>, i32 -> vector<8x8x128xf32>
      %2329 = tpu.iota {dimensions = array<i32: 1>} : vector<1x8x128xi32>
      %c1_i32_267 = arith.constant 1 : i32
      %2330 = vector.broadcast %c1_i32_267 : i32 to vector<1x8x128xi32>
      %2331 = arith.shrsi %2329, %2330 : vector<1x8x128xi32>
      %c1_i32_268 = arith.constant 1 : i32
      %2332 = vector.broadcast %c1_i32_268 : i32 to vector<1x8x128xi32>
      %2333 = arith.andi %2331, %2332 : vector<1x8x128xi32>
      %c1_i32_269 = arith.constant 1 : i32
      %2334 = vector.broadcast %c1_i32_269 : i32 to vector<1x8x128xi32>
      %2335 = arith.cmpi eq, %2333, %2334 : vector<1x8x128xi32>
      %2336 = vector.shape_cast %2335 : vector<1x8x128xi1> to vector<1x8x128xi1>
      %2337 = vector.broadcast %2336 : vector<1x8x128xi1> to vector<8x8x128xi1>
      %2338 = arith.select %2337, %2327, %2328 : vector<8x8x128xi1>, vector<8x8x128xf32>
      %2339 = tpu.iota {dimensions = array<i32: 1>} : vector<1x8x128xi32>
      %c1_i32_270 = arith.constant 1 : i32
      %2340 = vector.broadcast %c1_i32_270 : i32 to vector<1x8x128xi32>
      %2341 = arith.shrsi %2339, %2340 : vector<1x8x128xi32>
      %c1_i32_271 = arith.constant 1 : i32
      %2342 = vector.broadcast %c1_i32_271 : i32 to vector<1x8x128xi32>
      %2343 = arith.andi %2341, %2342 : vector<1x8x128xi32>
      %c2_i32_272 = arith.constant 2 : i32
      %2344 = vector.broadcast %c2_i32_272 : i32 to vector<1x8x128xi32>
      %2345 = arith.muli %2344, %2343 : vector<1x8x128xi32>
      %c1_i32_273 = arith.constant 1 : i32
      %2346 = vector.broadcast %c1_i32_273 : i32 to vector<1x8x128xi32>
      %2347 = arith.subi %2345, %2346 : vector<1x8x128xi32>
      %2348 = arith.sitofp %2347 : vector<1x8x128xi32> to vector<1x8x128xf32>
      %2349 = vector.broadcast %14 : vector<1x8x128xf32> to vector<8x8x128xf32>
      %2350 = arith.mulf %2349, %2301 : vector<8x8x128xf32>
      %2351 = vector.broadcast %25 : vector<1x8x128xf32> to vector<8x8x128xf32>
      %2352 = arith.mulf %2351, %2338 : vector<8x8x128xf32>
      %2353 = arith.subf %2350, %2352 : vector<8x8x128xf32>
      %2354 = vector.broadcast %17 : vector<1x8x128xf32> to vector<8x8x128xf32>
      %2355 = arith.mulf %2354, %2314 : vector<8x8x128xf32>
      %2356 = vector.broadcast %20 : vector<1x8x128xf32> to vector<8x8x128xf32>
      %2357 = arith.mulf %2356, %2326 : vector<8x8x128xf32>
      %2358 = arith.addf %2355, %2357 : vector<8x8x128xf32>
      %2359 = vector.broadcast %2348 : vector<1x8x128xf32> to vector<8x8x128xf32>
      %2360 = arith.mulf %2359, %2358 : vector<8x8x128xf32>
      %2361 = arith.addf %2353, %2360 : vector<8x8x128xf32>
      %2362 = vector.broadcast %14 : vector<1x8x128xf32> to vector<8x8x128xf32>
      %2363 = arith.mulf %2362, %2314 : vector<8x8x128xf32>
      %2364 = vector.broadcast %25 : vector<1x8x128xf32> to vector<8x8x128xf32>
      %2365 = arith.mulf %2364, %2326 : vector<8x8x128xf32>
      %2366 = arith.addf %2363, %2365 : vector<8x8x128xf32>
      %2367 = vector.broadcast %20 : vector<1x8x128xf32> to vector<8x8x128xf32>
      %2368 = arith.mulf %2367, %2338 : vector<8x8x128xf32>
      %2369 = vector.broadcast %17 : vector<1x8x128xf32> to vector<8x8x128xf32>
      %2370 = arith.mulf %2369, %2301 : vector<8x8x128xf32>
      %2371 = arith.subf %2368, %2370 : vector<8x8x128xf32>
      %2372 = vector.broadcast %2348 : vector<1x8x128xf32> to vector<8x8x128xf32>
      %2373 = arith.mulf %2372, %2371 : vector<8x8x128xf32>
      %2374 = arith.addf %2366, %2373 : vector<8x8x128xf32>
      %c1_i32_274 = arith.constant 1 : i32
      %2375 = tpu.dynamic_rotate %2361 by %c1_i32_274 dim 1 : vector<8x8x128xf32>, i32 -> vector<8x8x128xf32>
      %c7_i32_275 = arith.constant 7 : i32
      %2376 = tpu.dynamic_rotate %2361 by %c7_i32_275 dim 1 : vector<8x8x128xf32>, i32 -> vector<8x8x128xf32>
      %2377 = tpu.iota {dimensions = array<i32: 1>} : vector<1x8x128xi32>
      %c0_i32_276 = arith.constant 0 : i32
      %2378 = vector.broadcast %c0_i32_276 : i32 to vector<1x8x128xi32>
      %2379 = arith.shrsi %2377, %2378 : vector<1x8x128xi32>
      %c1_i32_277 = arith.constant 1 : i32
      %2380 = vector.broadcast %c1_i32_277 : i32 to vector<1x8x128xi32>
      %2381 = arith.andi %2379, %2380 : vector<1x8x128xi32>
      %c1_i32_278 = arith.constant 1 : i32
      %2382 = vector.broadcast %c1_i32_278 : i32 to vector<1x8x128xi32>
      %2383 = arith.cmpi eq, %2381, %2382 : vector<1x8x128xi32>
      %2384 = vector.shape_cast %2383 : vector<1x8x128xi1> to vector<1x8x128xi1>
      %2385 = vector.broadcast %2384 : vector<1x8x128xi1> to vector<8x8x128xi1>
      %2386 = arith.select %2385, %2375, %2376 : vector<8x8x128xi1>, vector<8x8x128xf32>
      %c1_i32_279 = arith.constant 1 : i32
      %2387 = tpu.dynamic_rotate %2374 by %c1_i32_279 dim 1 : vector<8x8x128xf32>, i32 -> vector<8x8x128xf32>
      %c7_i32_280 = arith.constant 7 : i32
      %2388 = tpu.dynamic_rotate %2374 by %c7_i32_280 dim 1 : vector<8x8x128xf32>, i32 -> vector<8x8x128xf32>
      %2389 = tpu.iota {dimensions = array<i32: 1>} : vector<1x8x128xi32>
      %c0_i32_281 = arith.constant 0 : i32
      %2390 = vector.broadcast %c0_i32_281 : i32 to vector<1x8x128xi32>
      %2391 = arith.shrsi %2389, %2390 : vector<1x8x128xi32>
      %c1_i32_282 = arith.constant 1 : i32
      %2392 = vector.broadcast %c1_i32_282 : i32 to vector<1x8x128xi32>
      %2393 = arith.andi %2391, %2392 : vector<1x8x128xi32>
      %c1_i32_283 = arith.constant 1 : i32
      %2394 = vector.broadcast %c1_i32_283 : i32 to vector<1x8x128xi32>
      %2395 = arith.cmpi eq, %2393, %2394 : vector<1x8x128xi32>
      %2396 = vector.shape_cast %2395 : vector<1x8x128xi1> to vector<1x8x128xi1>
      %2397 = vector.broadcast %2396 : vector<1x8x128xi1> to vector<8x8x128xi1>
      %2398 = arith.select %2397, %2387, %2388 : vector<8x8x128xi1>, vector<8x8x128xf32>
      %2399 = tpu.iota {dimensions = array<i32: 1>} : vector<1x8x128xi32>
      %c0_i32_284 = arith.constant 0 : i32
      %2400 = vector.broadcast %c0_i32_284 : i32 to vector<1x8x128xi32>
      %2401 = arith.shrsi %2399, %2400 : vector<1x8x128xi32>
      %c1_i32_285 = arith.constant 1 : i32
      %2402 = vector.broadcast %c1_i32_285 : i32 to vector<1x8x128xi32>
      %2403 = arith.andi %2401, %2402 : vector<1x8x128xi32>
      %c2_i32_286 = arith.constant 2 : i32
      %2404 = vector.broadcast %c2_i32_286 : i32 to vector<1x8x128xi32>
      %2405 = arith.muli %2404, %2403 : vector<1x8x128xi32>
      %c1_i32_287 = arith.constant 1 : i32
      %2406 = vector.broadcast %c1_i32_287 : i32 to vector<1x8x128xi32>
      %2407 = arith.subi %2405, %2406 : vector<1x8x128xi32>
      %2408 = arith.sitofp %2407 : vector<1x8x128xi32> to vector<1x8x128xf32>
      %2409 = vector.broadcast %14 : vector<1x8x128xf32> to vector<8x8x128xf32>
      %2410 = arith.mulf %2409, %2361 : vector<8x8x128xf32>
      %2411 = vector.broadcast %25 : vector<1x8x128xf32> to vector<8x8x128xf32>
      %2412 = arith.mulf %2411, %2398 : vector<8x8x128xf32>
      %2413 = arith.subf %2410, %2412 : vector<8x8x128xf32>
      %2414 = vector.broadcast %17 : vector<1x8x128xf32> to vector<8x8x128xf32>
      %2415 = arith.mulf %2414, %2374 : vector<8x8x128xf32>
      %2416 = vector.broadcast %20 : vector<1x8x128xf32> to vector<8x8x128xf32>
      %2417 = arith.mulf %2416, %2386 : vector<8x8x128xf32>
      %2418 = arith.addf %2415, %2417 : vector<8x8x128xf32>
      %2419 = vector.broadcast %2408 : vector<1x8x128xf32> to vector<8x8x128xf32>
      %2420 = arith.mulf %2419, %2418 : vector<8x8x128xf32>
      %2421 = arith.addf %2413, %2420 : vector<8x8x128xf32>
      %2422 = vector.broadcast %14 : vector<1x8x128xf32> to vector<8x8x128xf32>
      %2423 = arith.mulf %2422, %2374 : vector<8x8x128xf32>
      %2424 = vector.broadcast %25 : vector<1x8x128xf32> to vector<8x8x128xf32>
      %2425 = arith.mulf %2424, %2386 : vector<8x8x128xf32>
      %2426 = arith.addf %2423, %2425 : vector<8x8x128xf32>
      %2427 = vector.broadcast %20 : vector<1x8x128xf32> to vector<8x8x128xf32>
      %2428 = arith.mulf %2427, %2398 : vector<8x8x128xf32>
      %2429 = vector.broadcast %17 : vector<1x8x128xf32> to vector<8x8x128xf32>
      %2430 = arith.mulf %2429, %2361 : vector<8x8x128xf32>
      %2431 = arith.subf %2428, %2430 : vector<8x8x128xf32>
      %2432 = vector.broadcast %2408 : vector<1x8x128xf32> to vector<8x8x128xf32>
      %2433 = arith.mulf %2432, %2431 : vector<8x8x128xf32>
      %2434 = arith.addf %2426, %2433 : vector<8x8x128xf32>
      scf.yield %2421, %2434 : vector<8x8x128xf32>, vector<8x8x128xf32>
    }
    %c22_i32_49 = arith.constant 22 : i32
    %c792 = arith.constant 792 : index
    %148 = memref.load %arg1[%c792] : memref<828xf32, #tpu.memory_space<smem>>
    %c793 = arith.constant 793 : index
    %149 = memref.load %arg1[%c793] : memref<828xf32, #tpu.memory_space<smem>>
    %c794 = arith.constant 794 : index
    %150 = memref.load %arg1[%c794] : memref<828xf32, #tpu.memory_space<smem>>
    %c795 = arith.constant 795 : index
    %151 = memref.load %arg1[%c795] : memref<828xf32, #tpu.memory_space<smem>>
    %152 = vector.extract_strided_slice %147#0 {offsets = [0, 0, 0], sizes = [4, 8, 128], strides = [1, 1, 1]} : vector<8x8x128xf32> to vector<4x8x128xf32>
    %153 = vector.extract_strided_slice %147#1 {offsets = [0, 0, 0], sizes = [4, 8, 128], strides = [1, 1, 1]} : vector<8x8x128xf32> to vector<4x8x128xf32>
    %154 = vector.extract_strided_slice %147#0 {offsets = [4, 0, 0], sizes = [4, 8, 128], strides = [1, 1, 1]} : vector<8x8x128xf32> to vector<4x8x128xf32>
    %155 = vector.extract_strided_slice %147#1 {offsets = [4, 0, 0], sizes = [4, 8, 128], strides = [1, 1, 1]} : vector<8x8x128xf32> to vector<4x8x128xf32>
    %156 = vector.broadcast %148 : f32 to vector<4x8x128xf32>
    %157 = arith.mulf %156, %152 : vector<4x8x128xf32>
    %158 = vector.broadcast %149 : f32 to vector<4x8x128xf32>
    %159 = arith.mulf %158, %153 : vector<4x8x128xf32>
    %160 = arith.subf %157, %159 : vector<4x8x128xf32>
    %161 = vector.broadcast %150 : f32 to vector<4x8x128xf32>
    %162 = arith.mulf %161, %154 : vector<4x8x128xf32>
    %163 = arith.subf %160, %162 : vector<4x8x128xf32>
    %164 = vector.broadcast %151 : f32 to vector<4x8x128xf32>
    %165 = arith.mulf %164, %155 : vector<4x8x128xf32>
    %166 = arith.subf %163, %165 : vector<4x8x128xf32>
    %167 = vector.broadcast %148 : f32 to vector<4x8x128xf32>
    %168 = arith.mulf %167, %153 : vector<4x8x128xf32>
    %169 = vector.broadcast %149 : f32 to vector<4x8x128xf32>
    %170 = arith.mulf %169, %152 : vector<4x8x128xf32>
    %171 = arith.addf %168, %170 : vector<4x8x128xf32>
    %172 = vector.broadcast %150 : f32 to vector<4x8x128xf32>
    %173 = arith.mulf %172, %155 : vector<4x8x128xf32>
    %174 = arith.subf %171, %173 : vector<4x8x128xf32>
    %175 = vector.broadcast %151 : f32 to vector<4x8x128xf32>
    %176 = arith.mulf %175, %154 : vector<4x8x128xf32>
    %177 = arith.addf %174, %176 : vector<4x8x128xf32>
    %178 = vector.broadcast %150 : f32 to vector<4x8x128xf32>
    %179 = arith.mulf %178, %152 : vector<4x8x128xf32>
    %180 = vector.broadcast %151 : f32 to vector<4x8x128xf32>
    %181 = arith.mulf %180, %153 : vector<4x8x128xf32>
    %182 = arith.subf %179, %181 : vector<4x8x128xf32>
    %183 = vector.broadcast %148 : f32 to vector<4x8x128xf32>
    %184 = arith.mulf %183, %154 : vector<4x8x128xf32>
    %185 = arith.addf %182, %184 : vector<4x8x128xf32>
    %186 = vector.broadcast %149 : f32 to vector<4x8x128xf32>
    %187 = arith.mulf %186, %155 : vector<4x8x128xf32>
    %188 = arith.addf %185, %187 : vector<4x8x128xf32>
    %189 = vector.broadcast %150 : f32 to vector<4x8x128xf32>
    %190 = arith.mulf %189, %153 : vector<4x8x128xf32>
    %191 = vector.broadcast %151 : f32 to vector<4x8x128xf32>
    %192 = arith.mulf %191, %152 : vector<4x8x128xf32>
    %193 = arith.addf %190, %192 : vector<4x8x128xf32>
    %194 = vector.broadcast %148 : f32 to vector<4x8x128xf32>
    %195 = arith.mulf %194, %155 : vector<4x8x128xf32>
    %196 = arith.addf %193, %195 : vector<4x8x128xf32>
    %197 = vector.broadcast %149 : f32 to vector<4x8x128xf32>
    %198 = arith.mulf %197, %154 : vector<4x8x128xf32>
    %199 = arith.subf %196, %198 : vector<4x8x128xf32>
    %200 = tpu.concatenate %166, %188 in 0 : vector<4x8x128xf32>, vector<4x8x128xf32> -> vector<8x8x128xf32>
    %201 = tpu.concatenate %177, %199 in 0 : vector<4x8x128xf32>, vector<4x8x128xf32> -> vector<8x8x128xf32>
    %c798 = arith.constant 798 : index
    %202 = memref.load %arg1[%c798] : memref<828xf32, #tpu.memory_space<smem>>
    %c799 = arith.constant 799 : index
    %203 = memref.load %arg1[%c799] : memref<828xf32, #tpu.memory_space<smem>>
    %c800 = arith.constant 800 : index
    %204 = memref.load %arg1[%c800] : memref<828xf32, #tpu.memory_space<smem>>
    %c801 = arith.constant 801 : index
    %205 = memref.load %arg1[%c801] : memref<828xf32, #tpu.memory_space<smem>>
    %206 = vector.extract_strided_slice %200 {offsets = [0, 0, 0], sizes = [2, 8, 128], strides = [1, 1, 1]} : vector<8x8x128xf32> to vector<2x8x128xf32>
    %207 = vector.extract_strided_slice %201 {offsets = [0, 0, 0], sizes = [2, 8, 128], strides = [1, 1, 1]} : vector<8x8x128xf32> to vector<2x8x128xf32>
    %208 = vector.extract_strided_slice %200 {offsets = [2, 0, 0], sizes = [2, 8, 128], strides = [1, 1, 1]} : vector<8x8x128xf32> to vector<2x8x128xf32>
    %209 = vector.extract_strided_slice %201 {offsets = [2, 0, 0], sizes = [2, 8, 128], strides = [1, 1, 1]} : vector<8x8x128xf32> to vector<2x8x128xf32>
    %210 = vector.broadcast %202 : f32 to vector<2x8x128xf32>
    %211 = arith.mulf %210, %206 : vector<2x8x128xf32>
    %212 = vector.broadcast %203 : f32 to vector<2x8x128xf32>
    %213 = arith.mulf %212, %207 : vector<2x8x128xf32>
    %214 = arith.subf %211, %213 : vector<2x8x128xf32>
    %215 = vector.broadcast %204 : f32 to vector<2x8x128xf32>
    %216 = arith.mulf %215, %208 : vector<2x8x128xf32>
    %217 = arith.subf %214, %216 : vector<2x8x128xf32>
    %218 = vector.broadcast %205 : f32 to vector<2x8x128xf32>
    %219 = arith.mulf %218, %209 : vector<2x8x128xf32>
    %220 = arith.subf %217, %219 : vector<2x8x128xf32>
    %221 = vector.broadcast %202 : f32 to vector<2x8x128xf32>
    %222 = arith.mulf %221, %207 : vector<2x8x128xf32>
    %223 = vector.broadcast %203 : f32 to vector<2x8x128xf32>
    %224 = arith.mulf %223, %206 : vector<2x8x128xf32>
    %225 = arith.addf %222, %224 : vector<2x8x128xf32>
    %226 = vector.broadcast %204 : f32 to vector<2x8x128xf32>
    %227 = arith.mulf %226, %209 : vector<2x8x128xf32>
    %228 = arith.subf %225, %227 : vector<2x8x128xf32>
    %229 = vector.broadcast %205 : f32 to vector<2x8x128xf32>
    %230 = arith.mulf %229, %208 : vector<2x8x128xf32>
    %231 = arith.addf %228, %230 : vector<2x8x128xf32>
    %232 = vector.broadcast %204 : f32 to vector<2x8x128xf32>
    %233 = arith.mulf %232, %206 : vector<2x8x128xf32>
    %234 = vector.broadcast %205 : f32 to vector<2x8x128xf32>
    %235 = arith.mulf %234, %207 : vector<2x8x128xf32>
    %236 = arith.subf %233, %235 : vector<2x8x128xf32>
    %237 = vector.broadcast %202 : f32 to vector<2x8x128xf32>
    %238 = arith.mulf %237, %208 : vector<2x8x128xf32>
    %239 = arith.addf %236, %238 : vector<2x8x128xf32>
    %240 = vector.broadcast %203 : f32 to vector<2x8x128xf32>
    %241 = arith.mulf %240, %209 : vector<2x8x128xf32>
    %242 = arith.addf %239, %241 : vector<2x8x128xf32>
    %243 = vector.broadcast %204 : f32 to vector<2x8x128xf32>
    %244 = arith.mulf %243, %207 : vector<2x8x128xf32>
    %245 = vector.broadcast %205 : f32 to vector<2x8x128xf32>
    %246 = arith.mulf %245, %206 : vector<2x8x128xf32>
    %247 = arith.addf %244, %246 : vector<2x8x128xf32>
    %248 = vector.broadcast %202 : f32 to vector<2x8x128xf32>
    %249 = arith.mulf %248, %209 : vector<2x8x128xf32>
    %250 = arith.addf %247, %249 : vector<2x8x128xf32>
    %251 = vector.broadcast %203 : f32 to vector<2x8x128xf32>
    %252 = arith.mulf %251, %208 : vector<2x8x128xf32>
    %253 = arith.subf %250, %252 : vector<2x8x128xf32>
    %254 = vector.extract_strided_slice %200 {offsets = [4, 0, 0], sizes = [2, 8, 128], strides = [1, 1, 1]} : vector<8x8x128xf32> to vector<2x8x128xf32>
    %255 = vector.extract_strided_slice %201 {offsets = [4, 0, 0], sizes = [2, 8, 128], strides = [1, 1, 1]} : vector<8x8x128xf32> to vector<2x8x128xf32>
    %256 = vector.extract_strided_slice %200 {offsets = [6, 0, 0], sizes = [2, 8, 128], strides = [1, 1, 1]} : vector<8x8x128xf32> to vector<2x8x128xf32>
    %257 = vector.extract_strided_slice %201 {offsets = [6, 0, 0], sizes = [2, 8, 128], strides = [1, 1, 1]} : vector<8x8x128xf32> to vector<2x8x128xf32>
    %258 = vector.broadcast %202 : f32 to vector<2x8x128xf32>
    %259 = arith.mulf %258, %254 : vector<2x8x128xf32>
    %260 = vector.broadcast %203 : f32 to vector<2x8x128xf32>
    %261 = arith.mulf %260, %255 : vector<2x8x128xf32>
    %262 = arith.subf %259, %261 : vector<2x8x128xf32>
    %263 = vector.broadcast %204 : f32 to vector<2x8x128xf32>
    %264 = arith.mulf %263, %256 : vector<2x8x128xf32>
    %265 = arith.subf %262, %264 : vector<2x8x128xf32>
    %266 = vector.broadcast %205 : f32 to vector<2x8x128xf32>
    %267 = arith.mulf %266, %257 : vector<2x8x128xf32>
    %268 = arith.subf %265, %267 : vector<2x8x128xf32>
    %269 = vector.broadcast %202 : f32 to vector<2x8x128xf32>
    %270 = arith.mulf %269, %255 : vector<2x8x128xf32>
    %271 = vector.broadcast %203 : f32 to vector<2x8x128xf32>
    %272 = arith.mulf %271, %254 : vector<2x8x128xf32>
    %273 = arith.addf %270, %272 : vector<2x8x128xf32>
    %274 = vector.broadcast %204 : f32 to vector<2x8x128xf32>
    %275 = arith.mulf %274, %257 : vector<2x8x128xf32>
    %276 = arith.subf %273, %275 : vector<2x8x128xf32>
    %277 = vector.broadcast %205 : f32 to vector<2x8x128xf32>
    %278 = arith.mulf %277, %256 : vector<2x8x128xf32>
    %279 = arith.addf %276, %278 : vector<2x8x128xf32>
    %280 = vector.broadcast %204 : f32 to vector<2x8x128xf32>
    %281 = arith.mulf %280, %254 : vector<2x8x128xf32>
    %282 = vector.broadcast %205 : f32 to vector<2x8x128xf32>
    %283 = arith.mulf %282, %255 : vector<2x8x128xf32>
    %284 = arith.subf %281, %283 : vector<2x8x128xf32>
    %285 = vector.broadcast %202 : f32 to vector<2x8x128xf32>
    %286 = arith.mulf %285, %256 : vector<2x8x128xf32>
    %287 = arith.addf %284, %286 : vector<2x8x128xf32>
    %288 = vector.broadcast %203 : f32 to vector<2x8x128xf32>
    %289 = arith.mulf %288, %257 : vector<2x8x128xf32>
    %290 = arith.addf %287, %289 : vector<2x8x128xf32>
    %291 = vector.broadcast %204 : f32 to vector<2x8x128xf32>
    %292 = arith.mulf %291, %255 : vector<2x8x128xf32>
    %293 = vector.broadcast %205 : f32 to vector<2x8x128xf32>
    %294 = arith.mulf %293, %254 : vector<2x8x128xf32>
    %295 = arith.addf %292, %294 : vector<2x8x128xf32>
    %296 = vector.broadcast %202 : f32 to vector<2x8x128xf32>
    %297 = arith.mulf %296, %257 : vector<2x8x128xf32>
    %298 = arith.addf %295, %297 : vector<2x8x128xf32>
    %299 = vector.broadcast %203 : f32 to vector<2x8x128xf32>
    %300 = arith.mulf %299, %256 : vector<2x8x128xf32>
    %301 = arith.subf %298, %300 : vector<2x8x128xf32>
    %302 = tpu.concatenate %220, %242, %268, %290 in 0 : vector<2x8x128xf32>, vector<2x8x128xf32>, vector<2x8x128xf32>, vector<2x8x128xf32> -> vector<8x8x128xf32>
    %303 = tpu.concatenate %231, %253, %279, %301 in 0 : vector<2x8x128xf32>, vector<2x8x128xf32>, vector<2x8x128xf32>, vector<2x8x128xf32> -> vector<8x8x128xf32>
    %c804 = arith.constant 804 : index
    %304 = memref.load %arg1[%c804] : memref<828xf32, #tpu.memory_space<smem>>
    %c805 = arith.constant 805 : index
    %305 = memref.load %arg1[%c805] : memref<828xf32, #tpu.memory_space<smem>>
    %c806 = arith.constant 806 : index
    %306 = memref.load %arg1[%c806] : memref<828xf32, #tpu.memory_space<smem>>
    %c807 = arith.constant 807 : index
    %307 = memref.load %arg1[%c807] : memref<828xf32, #tpu.memory_space<smem>>
    %308 = vector.extract_strided_slice %302 {offsets = [0, 0, 0], sizes = [1, 8, 128], strides = [1, 1, 1]} : vector<8x8x128xf32> to vector<1x8x128xf32>
    %309 = vector.extract_strided_slice %303 {offsets = [0, 0, 0], sizes = [1, 8, 128], strides = [1, 1, 1]} : vector<8x8x128xf32> to vector<1x8x128xf32>
    %310 = vector.extract_strided_slice %302 {offsets = [1, 0, 0], sizes = [1, 8, 128], strides = [1, 1, 1]} : vector<8x8x128xf32> to vector<1x8x128xf32>
    %311 = vector.extract_strided_slice %303 {offsets = [1, 0, 0], sizes = [1, 8, 128], strides = [1, 1, 1]} : vector<8x8x128xf32> to vector<1x8x128xf32>
    %312 = vector.broadcast %304 : f32 to vector<1x8x128xf32>
    %313 = arith.mulf %312, %308 : vector<1x8x128xf32>
    %314 = vector.broadcast %305 : f32 to vector<1x8x128xf32>
    %315 = arith.mulf %314, %309 : vector<1x8x128xf32>
    %316 = arith.subf %313, %315 : vector<1x8x128xf32>
    %317 = vector.broadcast %306 : f32 to vector<1x8x128xf32>
    %318 = arith.mulf %317, %310 : vector<1x8x128xf32>
    %319 = arith.subf %316, %318 : vector<1x8x128xf32>
    %320 = vector.broadcast %307 : f32 to vector<1x8x128xf32>
    %321 = arith.mulf %320, %311 : vector<1x8x128xf32>
    %322 = arith.subf %319, %321 : vector<1x8x128xf32>
    %323 = vector.broadcast %304 : f32 to vector<1x8x128xf32>
    %324 = arith.mulf %323, %309 : vector<1x8x128xf32>
    %325 = vector.broadcast %305 : f32 to vector<1x8x128xf32>
    %326 = arith.mulf %325, %308 : vector<1x8x128xf32>
    %327 = arith.addf %324, %326 : vector<1x8x128xf32>
    %328 = vector.broadcast %306 : f32 to vector<1x8x128xf32>
    %329 = arith.mulf %328, %311 : vector<1x8x128xf32>
    %330 = arith.subf %327, %329 : vector<1x8x128xf32>
    %331 = vector.broadcast %307 : f32 to vector<1x8x128xf32>
    %332 = arith.mulf %331, %310 : vector<1x8x128xf32>
    %333 = arith.addf %330, %332 : vector<1x8x128xf32>
    %334 = vector.broadcast %306 : f32 to vector<1x8x128xf32>
    %335 = arith.mulf %334, %308 : vector<1x8x128xf32>
    %336 = vector.broadcast %307 : f32 to vector<1x8x128xf32>
    %337 = arith.mulf %336, %309 : vector<1x8x128xf32>
    %338 = arith.subf %335, %337 : vector<1x8x128xf32>
    %339 = vector.broadcast %304 : f32 to vector<1x8x128xf32>
    %340 = arith.mulf %339, %310 : vector<1x8x128xf32>
    %341 = arith.addf %338, %340 : vector<1x8x128xf32>
    %342 = vector.broadcast %305 : f32 to vector<1x8x128xf32>
    %343 = arith.mulf %342, %311 : vector<1x8x128xf32>
    %344 = arith.addf %341, %343 : vector<1x8x128xf32>
    %345 = vector.broadcast %306 : f32 to vector<1x8x128xf32>
    %346 = arith.mulf %345, %309 : vector<1x8x128xf32>
    %347 = vector.broadcast %307 : f32 to vector<1x8x128xf32>
    %348 = arith.mulf %347, %308 : vector<1x8x128xf32>
    %349 = arith.addf %346, %348 : vector<1x8x128xf32>
    %350 = vector.broadcast %304 : f32 to vector<1x8x128xf32>
    %351 = arith.mulf %350, %311 : vector<1x8x128xf32>
    %352 = arith.addf %349, %351 : vector<1x8x128xf32>
    %353 = vector.broadcast %305 : f32 to vector<1x8x128xf32>
    %354 = arith.mulf %353, %310 : vector<1x8x128xf32>
    %355 = arith.subf %352, %354 : vector<1x8x128xf32>
    %356 = vector.extract_strided_slice %302 {offsets = [2, 0, 0], sizes = [1, 8, 128], strides = [1, 1, 1]} : vector<8x8x128xf32> to vector<1x8x128xf32>
    %357 = vector.extract_strided_slice %303 {offsets = [2, 0, 0], sizes = [1, 8, 128], strides = [1, 1, 1]} : vector<8x8x128xf32> to vector<1x8x128xf32>
    %358 = vector.extract_strided_slice %302 {offsets = [3, 0, 0], sizes = [1, 8, 128], strides = [1, 1, 1]} : vector<8x8x128xf32> to vector<1x8x128xf32>
    %359 = vector.extract_strided_slice %303 {offsets = [3, 0, 0], sizes = [1, 8, 128], strides = [1, 1, 1]} : vector<8x8x128xf32> to vector<1x8x128xf32>
    %360 = vector.broadcast %304 : f32 to vector<1x8x128xf32>
    %361 = arith.mulf %360, %356 : vector<1x8x128xf32>
    %362 = vector.broadcast %305 : f32 to vector<1x8x128xf32>
    %363 = arith.mulf %362, %357 : vector<1x8x128xf32>
    %364 = arith.subf %361, %363 : vector<1x8x128xf32>
    %365 = vector.broadcast %306 : f32 to vector<1x8x128xf32>
    %366 = arith.mulf %365, %358 : vector<1x8x128xf32>
    %367 = arith.subf %364, %366 : vector<1x8x128xf32>
    %368 = vector.broadcast %307 : f32 to vector<1x8x128xf32>
    %369 = arith.mulf %368, %359 : vector<1x8x128xf32>
    %370 = arith.subf %367, %369 : vector<1x8x128xf32>
    %371 = vector.broadcast %304 : f32 to vector<1x8x128xf32>
    %372 = arith.mulf %371, %357 : vector<1x8x128xf32>
    %373 = vector.broadcast %305 : f32 to vector<1x8x128xf32>
    %374 = arith.mulf %373, %356 : vector<1x8x128xf32>
    %375 = arith.addf %372, %374 : vector<1x8x128xf32>
    %376 = vector.broadcast %306 : f32 to vector<1x8x128xf32>
    %377 = arith.mulf %376, %359 : vector<1x8x128xf32>
    %378 = arith.subf %375, %377 : vector<1x8x128xf32>
    %379 = vector.broadcast %307 : f32 to vector<1x8x128xf32>
    %380 = arith.mulf %379, %358 : vector<1x8x128xf32>
    %381 = arith.addf %378, %380 : vector<1x8x128xf32>
    %382 = vector.broadcast %306 : f32 to vector<1x8x128xf32>
    %383 = arith.mulf %382, %356 : vector<1x8x128xf32>
    %384 = vector.broadcast %307 : f32 to vector<1x8x128xf32>
    %385 = arith.mulf %384, %357 : vector<1x8x128xf32>
    %386 = arith.subf %383, %385 : vector<1x8x128xf32>
    %387 = vector.broadcast %304 : f32 to vector<1x8x128xf32>
    %388 = arith.mulf %387, %358 : vector<1x8x128xf32>
    %389 = arith.addf %386, %388 : vector<1x8x128xf32>
    %390 = vector.broadcast %305 : f32 to vector<1x8x128xf32>
    %391 = arith.mulf %390, %359 : vector<1x8x128xf32>
    %392 = arith.addf %389, %391 : vector<1x8x128xf32>
    %393 = vector.broadcast %306 : f32 to vector<1x8x128xf32>
    %394 = arith.mulf %393, %357 : vector<1x8x128xf32>
    %395 = vector.broadcast %307 : f32 to vector<1x8x128xf32>
    %396 = arith.mulf %395, %356 : vector<1x8x128xf32>
    %397 = arith.addf %394, %396 : vector<1x8x128xf32>
    %398 = vector.broadcast %304 : f32 to vector<1x8x128xf32>
    %399 = arith.mulf %398, %359 : vector<1x8x128xf32>
    %400 = arith.addf %397, %399 : vector<1x8x128xf32>
    %401 = vector.broadcast %305 : f32 to vector<1x8x128xf32>
    %402 = arith.mulf %401, %358 : vector<1x8x128xf32>
    %403 = arith.subf %400, %402 : vector<1x8x128xf32>
    %404 = vector.extract_strided_slice %302 {offsets = [4, 0, 0], sizes = [1, 8, 128], strides = [1, 1, 1]} : vector<8x8x128xf32> to vector<1x8x128xf32>
    %405 = vector.extract_strided_slice %303 {offsets = [4, 0, 0], sizes = [1, 8, 128], strides = [1, 1, 1]} : vector<8x8x128xf32> to vector<1x8x128xf32>
    %406 = vector.extract_strided_slice %302 {offsets = [5, 0, 0], sizes = [1, 8, 128], strides = [1, 1, 1]} : vector<8x8x128xf32> to vector<1x8x128xf32>
    %407 = vector.extract_strided_slice %303 {offsets = [5, 0, 0], sizes = [1, 8, 128], strides = [1, 1, 1]} : vector<8x8x128xf32> to vector<1x8x128xf32>
    %408 = vector.broadcast %304 : f32 to vector<1x8x128xf32>
    %409 = arith.mulf %408, %404 : vector<1x8x128xf32>
    %410 = vector.broadcast %305 : f32 to vector<1x8x128xf32>
    %411 = arith.mulf %410, %405 : vector<1x8x128xf32>
    %412 = arith.subf %409, %411 : vector<1x8x128xf32>
    %413 = vector.broadcast %306 : f32 to vector<1x8x128xf32>
    %414 = arith.mulf %413, %406 : vector<1x8x128xf32>
    %415 = arith.subf %412, %414 : vector<1x8x128xf32>
    %416 = vector.broadcast %307 : f32 to vector<1x8x128xf32>
    %417 = arith.mulf %416, %407 : vector<1x8x128xf32>
    %418 = arith.subf %415, %417 : vector<1x8x128xf32>
    %419 = vector.broadcast %304 : f32 to vector<1x8x128xf32>
    %420 = arith.mulf %419, %405 : vector<1x8x128xf32>
    %421 = vector.broadcast %305 : f32 to vector<1x8x128xf32>
    %422 = arith.mulf %421, %404 : vector<1x8x128xf32>
    %423 = arith.addf %420, %422 : vector<1x8x128xf32>
    %424 = vector.broadcast %306 : f32 to vector<1x8x128xf32>
    %425 = arith.mulf %424, %407 : vector<1x8x128xf32>
    %426 = arith.subf %423, %425 : vector<1x8x128xf32>
    %427 = vector.broadcast %307 : f32 to vector<1x8x128xf32>
    %428 = arith.mulf %427, %406 : vector<1x8x128xf32>
    %429 = arith.addf %426, %428 : vector<1x8x128xf32>
    %430 = vector.broadcast %306 : f32 to vector<1x8x128xf32>
    %431 = arith.mulf %430, %404 : vector<1x8x128xf32>
    %432 = vector.broadcast %307 : f32 to vector<1x8x128xf32>
    %433 = arith.mulf %432, %405 : vector<1x8x128xf32>
    %434 = arith.subf %431, %433 : vector<1x8x128xf32>
    %435 = vector.broadcast %304 : f32 to vector<1x8x128xf32>
    %436 = arith.mulf %435, %406 : vector<1x8x128xf32>
    %437 = arith.addf %434, %436 : vector<1x8x128xf32>
    %438 = vector.broadcast %305 : f32 to vector<1x8x128xf32>
    %439 = arith.mulf %438, %407 : vector<1x8x128xf32>
    %440 = arith.addf %437, %439 : vector<1x8x128xf32>
    %441 = vector.broadcast %306 : f32 to vector<1x8x128xf32>
    %442 = arith.mulf %441, %405 : vector<1x8x128xf32>
    %443 = vector.broadcast %307 : f32 to vector<1x8x128xf32>
    %444 = arith.mulf %443, %404 : vector<1x8x128xf32>
    %445 = arith.addf %442, %444 : vector<1x8x128xf32>
    %446 = vector.broadcast %304 : f32 to vector<1x8x128xf32>
    %447 = arith.mulf %446, %407 : vector<1x8x128xf32>
    %448 = arith.addf %445, %447 : vector<1x8x128xf32>
    %449 = vector.broadcast %305 : f32 to vector<1x8x128xf32>
    %450 = arith.mulf %449, %406 : vector<1x8x128xf32>
    %451 = arith.subf %448, %450 : vector<1x8x128xf32>
    %452 = vector.extract_strided_slice %302 {offsets = [6, 0, 0], sizes = [1, 8, 128], strides = [1, 1, 1]} : vector<8x8x128xf32> to vector<1x8x128xf32>
    %453 = vector.extract_strided_slice %303 {offsets = [6, 0, 0], sizes = [1, 8, 128], strides = [1, 1, 1]} : vector<8x8x128xf32> to vector<1x8x128xf32>
    %454 = vector.extract_strided_slice %302 {offsets = [7, 0, 0], sizes = [1, 8, 128], strides = [1, 1, 1]} : vector<8x8x128xf32> to vector<1x8x128xf32>
    %455 = vector.extract_strided_slice %303 {offsets = [7, 0, 0], sizes = [1, 8, 128], strides = [1, 1, 1]} : vector<8x8x128xf32> to vector<1x8x128xf32>
    %456 = vector.broadcast %304 : f32 to vector<1x8x128xf32>
    %457 = arith.mulf %456, %452 : vector<1x8x128xf32>
    %458 = vector.broadcast %305 : f32 to vector<1x8x128xf32>
    %459 = arith.mulf %458, %453 : vector<1x8x128xf32>
    %460 = arith.subf %457, %459 : vector<1x8x128xf32>
    %461 = vector.broadcast %306 : f32 to vector<1x8x128xf32>
    %462 = arith.mulf %461, %454 : vector<1x8x128xf32>
    %463 = arith.subf %460, %462 : vector<1x8x128xf32>
    %464 = vector.broadcast %307 : f32 to vector<1x8x128xf32>
    %465 = arith.mulf %464, %455 : vector<1x8x128xf32>
    %466 = arith.subf %463, %465 : vector<1x8x128xf32>
    %467 = vector.broadcast %304 : f32 to vector<1x8x128xf32>
    %468 = arith.mulf %467, %453 : vector<1x8x128xf32>
    %469 = vector.broadcast %305 : f32 to vector<1x8x128xf32>
    %470 = arith.mulf %469, %452 : vector<1x8x128xf32>
    %471 = arith.addf %468, %470 : vector<1x8x128xf32>
    %472 = vector.broadcast %306 : f32 to vector<1x8x128xf32>
    %473 = arith.mulf %472, %455 : vector<1x8x128xf32>
    %474 = arith.subf %471, %473 : vector<1x8x128xf32>
    %475 = vector.broadcast %307 : f32 to vector<1x8x128xf32>
    %476 = arith.mulf %475, %454 : vector<1x8x128xf32>
    %477 = arith.addf %474, %476 : vector<1x8x128xf32>
    %478 = vector.broadcast %306 : f32 to vector<1x8x128xf32>
    %479 = arith.mulf %478, %452 : vector<1x8x128xf32>
    %480 = vector.broadcast %307 : f32 to vector<1x8x128xf32>
    %481 = arith.mulf %480, %453 : vector<1x8x128xf32>
    %482 = arith.subf %479, %481 : vector<1x8x128xf32>
    %483 = vector.broadcast %304 : f32 to vector<1x8x128xf32>
    %484 = arith.mulf %483, %454 : vector<1x8x128xf32>
    %485 = arith.addf %482, %484 : vector<1x8x128xf32>
    %486 = vector.broadcast %305 : f32 to vector<1x8x128xf32>
    %487 = arith.mulf %486, %455 : vector<1x8x128xf32>
    %488 = arith.addf %485, %487 : vector<1x8x128xf32>
    %489 = vector.broadcast %306 : f32 to vector<1x8x128xf32>
    %490 = arith.mulf %489, %453 : vector<1x8x128xf32>
    %491 = vector.broadcast %307 : f32 to vector<1x8x128xf32>
    %492 = arith.mulf %491, %452 : vector<1x8x128xf32>
    %493 = arith.addf %490, %492 : vector<1x8x128xf32>
    %494 = vector.broadcast %304 : f32 to vector<1x8x128xf32>
    %495 = arith.mulf %494, %455 : vector<1x8x128xf32>
    %496 = arith.addf %493, %495 : vector<1x8x128xf32>
    %497 = vector.broadcast %305 : f32 to vector<1x8x128xf32>
    %498 = arith.mulf %497, %454 : vector<1x8x128xf32>
    %499 = arith.subf %496, %498 : vector<1x8x128xf32>
    %500 = tpu.concatenate %322, %344, %370, %392, %418, %440, %466, %488 in 0 : vector<1x8x128xf32>, vector<1x8x128xf32>, vector<1x8x128xf32>, vector<1x8x128xf32>, vector<1x8x128xf32>, vector<1x8x128xf32>, vector<1x8x128xf32>, vector<1x8x128xf32> -> vector<8x8x128xf32>
    %501 = tpu.concatenate %333, %355, %381, %403, %429, %451, %477, %499 in 0 : vector<1x8x128xf32>, vector<1x8x128xf32>, vector<1x8x128xf32>, vector<1x8x128xf32>, vector<1x8x128xf32>, vector<1x8x128xf32>, vector<1x8x128xf32>, vector<1x8x128xf32> -> vector<8x8x128xf32>
    %c810 = arith.constant 810 : index
    %502 = memref.load %arg1[%c810] : memref<828xf32, #tpu.memory_space<smem>>
    %c811 = arith.constant 811 : index
    %503 = memref.load %arg1[%c811] : memref<828xf32, #tpu.memory_space<smem>>
    %c812 = arith.constant 812 : index
    %504 = memref.load %arg1[%c812] : memref<828xf32, #tpu.memory_space<smem>>
    %c813 = arith.constant 813 : index
    %505 = memref.load %arg1[%c813] : memref<828xf32, #tpu.memory_space<smem>>
    %c4_i32 = arith.constant 4 : i32
    %506 = tpu.dynamic_rotate %500 by %c4_i32 dim 1 : vector<8x8x128xf32>, i32 -> vector<8x8x128xf32>
    %c4_i32_50 = arith.constant 4 : i32
    %507 = tpu.dynamic_rotate %501 by %c4_i32_50 dim 1 : vector<8x8x128xf32>, i32 -> vector<8x8x128xf32>
    %508 = tpu.iota {dimensions = array<i32: 1>} : vector<1x8x128xi32>
    %c2_i32_51 = arith.constant 2 : i32
    %509 = vector.broadcast %c2_i32_51 : i32 to vector<1x8x128xi32>
    %510 = arith.shrsi %508, %509 : vector<1x8x128xi32>
    %c1_i32_52 = arith.constant 1 : i32
    %511 = vector.broadcast %c1_i32_52 : i32 to vector<1x8x128xi32>
    %512 = arith.andi %510, %511 : vector<1x8x128xi32>
    %c2_i32_53 = arith.constant 2 : i32
    %513 = vector.broadcast %c2_i32_53 : i32 to vector<1x8x128xi32>
    %514 = arith.muli %513, %512 : vector<1x8x128xi32>
    %c1_i32_54 = arith.constant 1 : i32
    %515 = vector.broadcast %c1_i32_54 : i32 to vector<1x8x128xi32>
    %516 = arith.subi %514, %515 : vector<1x8x128xi32>
    %517 = arith.sitofp %516 : vector<1x8x128xi32> to vector<1x8x128xf32>
    %518 = vector.broadcast %502 : f32 to vector<8x8x128xf32>
    %519 = arith.mulf %518, %500 : vector<8x8x128xf32>
    %520 = vector.broadcast %505 : f32 to vector<8x8x128xf32>
    %521 = arith.mulf %520, %507 : vector<8x8x128xf32>
    %522 = arith.subf %519, %521 : vector<8x8x128xf32>
    %523 = vector.broadcast %503 : f32 to vector<8x8x128xf32>
    %524 = arith.mulf %523, %501 : vector<8x8x128xf32>
    %525 = vector.broadcast %504 : f32 to vector<8x8x128xf32>
    %526 = arith.mulf %525, %506 : vector<8x8x128xf32>
    %527 = arith.addf %524, %526 : vector<8x8x128xf32>
    %528 = vector.broadcast %517 : vector<1x8x128xf32> to vector<8x8x128xf32>
    %529 = arith.mulf %528, %527 : vector<8x8x128xf32>
    %530 = arith.addf %522, %529 : vector<8x8x128xf32>
    %531 = vector.broadcast %502 : f32 to vector<8x8x128xf32>
    %532 = arith.mulf %531, %501 : vector<8x8x128xf32>
    %533 = vector.broadcast %505 : f32 to vector<8x8x128xf32>
    %534 = arith.mulf %533, %506 : vector<8x8x128xf32>
    %535 = arith.addf %532, %534 : vector<8x8x128xf32>
    %536 = vector.broadcast %504 : f32 to vector<8x8x128xf32>
    %537 = arith.mulf %536, %507 : vector<8x8x128xf32>
    %538 = vector.broadcast %503 : f32 to vector<8x8x128xf32>
    %539 = arith.mulf %538, %500 : vector<8x8x128xf32>
    %540 = arith.subf %537, %539 : vector<8x8x128xf32>
    %541 = vector.broadcast %517 : vector<1x8x128xf32> to vector<8x8x128xf32>
    %542 = arith.mulf %541, %540 : vector<8x8x128xf32>
    %543 = arith.addf %535, %542 : vector<8x8x128xf32>
    %c816 = arith.constant 816 : index
    %544 = memref.load %arg1[%c816] : memref<828xf32, #tpu.memory_space<smem>>
    %c817 = arith.constant 817 : index
    %545 = memref.load %arg1[%c817] : memref<828xf32, #tpu.memory_space<smem>>
    %c818 = arith.constant 818 : index
    %546 = memref.load %arg1[%c818] : memref<828xf32, #tpu.memory_space<smem>>
    %c819 = arith.constant 819 : index
    %547 = memref.load %arg1[%c819] : memref<828xf32, #tpu.memory_space<smem>>
    %c2_i32_55 = arith.constant 2 : i32
    %548 = tpu.dynamic_rotate %530 by %c2_i32_55 dim 1 : vector<8x8x128xf32>, i32 -> vector<8x8x128xf32>
    %c6_i32 = arith.constant 6 : i32
    %549 = tpu.dynamic_rotate %530 by %c6_i32 dim 1 : vector<8x8x128xf32>, i32 -> vector<8x8x128xf32>
    %550 = tpu.iota {dimensions = array<i32: 1>} : vector<1x8x128xi32>
    %c1_i32_56 = arith.constant 1 : i32
    %551 = vector.broadcast %c1_i32_56 : i32 to vector<1x8x128xi32>
    %552 = arith.shrsi %550, %551 : vector<1x8x128xi32>
    %c1_i32_57 = arith.constant 1 : i32
    %553 = vector.broadcast %c1_i32_57 : i32 to vector<1x8x128xi32>
    %554 = arith.andi %552, %553 : vector<1x8x128xi32>
    %c1_i32_58 = arith.constant 1 : i32
    %555 = vector.broadcast %c1_i32_58 : i32 to vector<1x8x128xi32>
    %556 = arith.cmpi eq, %554, %555 : vector<1x8x128xi32>
    %557 = vector.shape_cast %556 : vector<1x8x128xi1> to vector<1x8x128xi1>
    %558 = vector.broadcast %557 : vector<1x8x128xi1> to vector<8x8x128xi1>
    %559 = arith.select %558, %548, %549 : vector<8x8x128xi1>, vector<8x8x128xf32>
    %c2_i32_59 = arith.constant 2 : i32
    %560 = tpu.dynamic_rotate %543 by %c2_i32_59 dim 1 : vector<8x8x128xf32>, i32 -> vector<8x8x128xf32>
    %c6_i32_60 = arith.constant 6 : i32
    %561 = tpu.dynamic_rotate %543 by %c6_i32_60 dim 1 : vector<8x8x128xf32>, i32 -> vector<8x8x128xf32>
    %562 = tpu.iota {dimensions = array<i32: 1>} : vector<1x8x128xi32>
    %c1_i32_61 = arith.constant 1 : i32
    %563 = vector.broadcast %c1_i32_61 : i32 to vector<1x8x128xi32>
    %564 = arith.shrsi %562, %563 : vector<1x8x128xi32>
    %c1_i32_62 = arith.constant 1 : i32
    %565 = vector.broadcast %c1_i32_62 : i32 to vector<1x8x128xi32>
    %566 = arith.andi %564, %565 : vector<1x8x128xi32>
    %c1_i32_63 = arith.constant 1 : i32
    %567 = vector.broadcast %c1_i32_63 : i32 to vector<1x8x128xi32>
    %568 = arith.cmpi eq, %566, %567 : vector<1x8x128xi32>
    %569 = vector.shape_cast %568 : vector<1x8x128xi1> to vector<1x8x128xi1>
    %570 = vector.broadcast %569 : vector<1x8x128xi1> to vector<8x8x128xi1>
    %571 = arith.select %570, %560, %561 : vector<8x8x128xi1>, vector<8x8x128xf32>
    %572 = tpu.iota {dimensions = array<i32: 1>} : vector<1x8x128xi32>
    %c1_i32_64 = arith.constant 1 : i32
    %573 = vector.broadcast %c1_i32_64 : i32 to vector<1x8x128xi32>
    %574 = arith.shrsi %572, %573 : vector<1x8x128xi32>
    %c1_i32_65 = arith.constant 1 : i32
    %575 = vector.broadcast %c1_i32_65 : i32 to vector<1x8x128xi32>
    %576 = arith.andi %574, %575 : vector<1x8x128xi32>
    %c2_i32_66 = arith.constant 2 : i32
    %577 = vector.broadcast %c2_i32_66 : i32 to vector<1x8x128xi32>
    %578 = arith.muli %577, %576 : vector<1x8x128xi32>
    %c1_i32_67 = arith.constant 1 : i32
    %579 = vector.broadcast %c1_i32_67 : i32 to vector<1x8x128xi32>
    %580 = arith.subi %578, %579 : vector<1x8x128xi32>
    %581 = arith.sitofp %580 : vector<1x8x128xi32> to vector<1x8x128xf32>
    %582 = vector.broadcast %544 : f32 to vector<8x8x128xf32>
    %583 = arith.mulf %582, %530 : vector<8x8x128xf32>
    %584 = vector.broadcast %547 : f32 to vector<8x8x128xf32>
    %585 = arith.mulf %584, %571 : vector<8x8x128xf32>
    %586 = arith.subf %583, %585 : vector<8x8x128xf32>
    %587 = vector.broadcast %545 : f32 to vector<8x8x128xf32>
    %588 = arith.mulf %587, %543 : vector<8x8x128xf32>
    %589 = vector.broadcast %546 : f32 to vector<8x8x128xf32>
    %590 = arith.mulf %589, %559 : vector<8x8x128xf32>
    %591 = arith.addf %588, %590 : vector<8x8x128xf32>
    %592 = vector.broadcast %581 : vector<1x8x128xf32> to vector<8x8x128xf32>
    %593 = arith.mulf %592, %591 : vector<8x8x128xf32>
    %594 = arith.addf %586, %593 : vector<8x8x128xf32>
    %595 = vector.broadcast %544 : f32 to vector<8x8x128xf32>
    %596 = arith.mulf %595, %543 : vector<8x8x128xf32>
    %597 = vector.broadcast %547 : f32 to vector<8x8x128xf32>
    %598 = arith.mulf %597, %559 : vector<8x8x128xf32>
    %599 = arith.addf %596, %598 : vector<8x8x128xf32>
    %600 = vector.broadcast %546 : f32 to vector<8x8x128xf32>
    %601 = arith.mulf %600, %571 : vector<8x8x128xf32>
    %602 = vector.broadcast %545 : f32 to vector<8x8x128xf32>
    %603 = arith.mulf %602, %530 : vector<8x8x128xf32>
    %604 = arith.subf %601, %603 : vector<8x8x128xf32>
    %605 = vector.broadcast %581 : vector<1x8x128xf32> to vector<8x8x128xf32>
    %606 = arith.mulf %605, %604 : vector<8x8x128xf32>
    %607 = arith.addf %599, %606 : vector<8x8x128xf32>
    %c822 = arith.constant 822 : index
    %608 = memref.load %arg1[%c822] : memref<828xf32, #tpu.memory_space<smem>>
    %c823 = arith.constant 823 : index
    %609 = memref.load %arg1[%c823] : memref<828xf32, #tpu.memory_space<smem>>
    %c824 = arith.constant 824 : index
    %610 = memref.load %arg1[%c824] : memref<828xf32, #tpu.memory_space<smem>>
    %c825 = arith.constant 825 : index
    %611 = memref.load %arg1[%c825] : memref<828xf32, #tpu.memory_space<smem>>
    %c1_i32_68 = arith.constant 1 : i32
    %612 = tpu.dynamic_rotate %594 by %c1_i32_68 dim 1 : vector<8x8x128xf32>, i32 -> vector<8x8x128xf32>
    %c7_i32 = arith.constant 7 : i32
    %613 = tpu.dynamic_rotate %594 by %c7_i32 dim 1 : vector<8x8x128xf32>, i32 -> vector<8x8x128xf32>
    %614 = tpu.iota {dimensions = array<i32: 1>} : vector<1x8x128xi32>
    %c0_i32_69 = arith.constant 0 : i32
    %615 = vector.broadcast %c0_i32_69 : i32 to vector<1x8x128xi32>
    %616 = arith.shrsi %614, %615 : vector<1x8x128xi32>
    %c1_i32_70 = arith.constant 1 : i32
    %617 = vector.broadcast %c1_i32_70 : i32 to vector<1x8x128xi32>
    %618 = arith.andi %616, %617 : vector<1x8x128xi32>
    %c1_i32_71 = arith.constant 1 : i32
    %619 = vector.broadcast %c1_i32_71 : i32 to vector<1x8x128xi32>
    %620 = arith.cmpi eq, %618, %619 : vector<1x8x128xi32>
    %621 = vector.shape_cast %620 : vector<1x8x128xi1> to vector<1x8x128xi1>
    %622 = vector.broadcast %621 : vector<1x8x128xi1> to vector<8x8x128xi1>
    %623 = arith.select %622, %612, %613 : vector<8x8x128xi1>, vector<8x8x128xf32>
    %c1_i32_72 = arith.constant 1 : i32
    %624 = tpu.dynamic_rotate %607 by %c1_i32_72 dim 1 : vector<8x8x128xf32>, i32 -> vector<8x8x128xf32>
    %c7_i32_73 = arith.constant 7 : i32
    %625 = tpu.dynamic_rotate %607 by %c7_i32_73 dim 1 : vector<8x8x128xf32>, i32 -> vector<8x8x128xf32>
    %626 = tpu.iota {dimensions = array<i32: 1>} : vector<1x8x128xi32>
    %c0_i32_74 = arith.constant 0 : i32
    %627 = vector.broadcast %c0_i32_74 : i32 to vector<1x8x128xi32>
    %628 = arith.shrsi %626, %627 : vector<1x8x128xi32>
    %c1_i32_75 = arith.constant 1 : i32
    %629 = vector.broadcast %c1_i32_75 : i32 to vector<1x8x128xi32>
    %630 = arith.andi %628, %629 : vector<1x8x128xi32>
    %c1_i32_76 = arith.constant 1 : i32
    %631 = vector.broadcast %c1_i32_76 : i32 to vector<1x8x128xi32>
    %632 = arith.cmpi eq, %630, %631 : vector<1x8x128xi32>
    %633 = vector.shape_cast %632 : vector<1x8x128xi1> to vector<1x8x128xi1>
    %634 = vector.broadcast %633 : vector<1x8x128xi1> to vector<8x8x128xi1>
    %635 = arith.select %634, %624, %625 : vector<8x8x128xi1>, vector<8x8x128xf32>
    %636 = tpu.iota {dimensions = array<i32: 1>} : vector<1x8x128xi32>
    %c0_i32_77 = arith.constant 0 : i32
    %637 = vector.broadcast %c0_i32_77 : i32 to vector<1x8x128xi32>
    %638 = arith.shrsi %636, %637 : vector<1x8x128xi32>
    %c1_i32_78 = arith.constant 1 : i32
    %639 = vector.broadcast %c1_i32_78 : i32 to vector<1x8x128xi32>
    %640 = arith.andi %638, %639 : vector<1x8x128xi32>
    %c2_i32_79 = arith.constant 2 : i32
    %641 = vector.broadcast %c2_i32_79 : i32 to vector<1x8x128xi32>
    %642 = arith.muli %641, %640 : vector<1x8x128xi32>
    %c1_i32_80 = arith.constant 1 : i32
    %643 = vector.broadcast %c1_i32_80 : i32 to vector<1x8x128xi32>
    %644 = arith.subi %642, %643 : vector<1x8x128xi32>
    %645 = arith.sitofp %644 : vector<1x8x128xi32> to vector<1x8x128xf32>
    %646 = vector.broadcast %608 : f32 to vector<8x8x128xf32>
    %647 = arith.mulf %646, %594 : vector<8x8x128xf32>
    %648 = vector.broadcast %611 : f32 to vector<8x8x128xf32>
    %649 = arith.mulf %648, %635 : vector<8x8x128xf32>
    %650 = arith.subf %647, %649 : vector<8x8x128xf32>
    %651 = vector.broadcast %609 : f32 to vector<8x8x128xf32>
    %652 = arith.mulf %651, %607 : vector<8x8x128xf32>
    %653 = vector.broadcast %610 : f32 to vector<8x8x128xf32>
    %654 = arith.mulf %653, %623 : vector<8x8x128xf32>
    %655 = arith.addf %652, %654 : vector<8x8x128xf32>
    %656 = vector.broadcast %645 : vector<1x8x128xf32> to vector<8x8x128xf32>
    %657 = arith.mulf %656, %655 : vector<8x8x128xf32>
    %658 = arith.addf %650, %657 : vector<8x8x128xf32>
    %659 = vector.broadcast %608 : f32 to vector<8x8x128xf32>
    %660 = arith.mulf %659, %607 : vector<8x8x128xf32>
    %661 = vector.broadcast %611 : f32 to vector<8x8x128xf32>
    %662 = arith.mulf %661, %623 : vector<8x8x128xf32>
    %663 = arith.addf %660, %662 : vector<8x8x128xf32>
    %664 = vector.broadcast %610 : f32 to vector<8x8x128xf32>
    %665 = arith.mulf %664, %635 : vector<8x8x128xf32>
    %666 = vector.broadcast %609 : f32 to vector<8x8x128xf32>
    %667 = arith.mulf %666, %594 : vector<8x8x128xf32>
    %668 = arith.subf %665, %667 : vector<8x8x128xf32>
    %669 = vector.broadcast %645 : vector<1x8x128xf32> to vector<8x8x128xf32>
    %670 = arith.mulf %669, %668 : vector<8x8x128xf32>
    %671 = arith.addf %663, %670 : vector<8x8x128xf32>
    %c796 = arith.constant 796 : index
    %672 = memref.load %arg1[%c796] : memref<828xf32, #tpu.memory_space<smem>>
    %c797 = arith.constant 797 : index
    %673 = memref.load %arg1[%c797] : memref<828xf32, #tpu.memory_space<smem>>
    %674 = vector.extract_strided_slice %658 {offsets = [0, 0, 0], sizes = [4, 8, 128], strides = [1, 1, 1]} : vector<8x8x128xf32> to vector<4x8x128xf32>
    %675 = vector.extract_strided_slice %671 {offsets = [0, 0, 0], sizes = [4, 8, 128], strides = [1, 1, 1]} : vector<8x8x128xf32> to vector<4x8x128xf32>
    %676 = vector.extract_strided_slice %658 {offsets = [4, 0, 0], sizes = [4, 8, 128], strides = [1, 1, 1]} : vector<8x8x128xf32> to vector<4x8x128xf32>
    %677 = vector.extract_strided_slice %671 {offsets = [4, 0, 0], sizes = [4, 8, 128], strides = [1, 1, 1]} : vector<8x8x128xf32> to vector<4x8x128xf32>
    %678 = vector.broadcast %672 : f32 to vector<4x8x128xf32>
    %679 = arith.mulf %678, %674 : vector<4x8x128xf32>
    %680 = vector.broadcast %673 : f32 to vector<4x8x128xf32>
    %681 = arith.mulf %680, %677 : vector<4x8x128xf32>
    %682 = arith.addf %679, %681 : vector<4x8x128xf32>
    %683 = vector.broadcast %672 : f32 to vector<4x8x128xf32>
    %684 = arith.mulf %683, %675 : vector<4x8x128xf32>
    %685 = vector.broadcast %673 : f32 to vector<4x8x128xf32>
    %686 = arith.mulf %685, %676 : vector<4x8x128xf32>
    %687 = arith.subf %684, %686 : vector<4x8x128xf32>
    %688 = vector.broadcast %672 : f32 to vector<4x8x128xf32>
    %689 = arith.mulf %688, %676 : vector<4x8x128xf32>
    %690 = vector.broadcast %673 : f32 to vector<4x8x128xf32>
    %691 = arith.mulf %690, %675 : vector<4x8x128xf32>
    %692 = arith.addf %689, %691 : vector<4x8x128xf32>
    %693 = vector.broadcast %672 : f32 to vector<4x8x128xf32>
    %694 = arith.mulf %693, %677 : vector<4x8x128xf32>
    %695 = vector.broadcast %673 : f32 to vector<4x8x128xf32>
    %696 = arith.mulf %695, %674 : vector<4x8x128xf32>
    %697 = arith.subf %694, %696 : vector<4x8x128xf32>
    %698 = tpu.concatenate %682, %692 in 0 : vector<4x8x128xf32>, vector<4x8x128xf32> -> vector<8x8x128xf32>
    %699 = tpu.concatenate %687, %697 in 0 : vector<4x8x128xf32>, vector<4x8x128xf32> -> vector<8x8x128xf32>
    %700 = tpu.iota {dimensions = array<i32: 1>} : vector<1x8x128xi32>
    %c0_i32_81 = arith.constant 0 : i32
    %701 = vector.broadcast %c0_i32_81 : i32 to vector<1x8x128xi32>
    %702 = arith.shrsi %700, %701 : vector<1x8x128xi32>
    %c1_i32_82 = arith.constant 1 : i32
    %703 = vector.broadcast %c1_i32_82 : i32 to vector<1x8x128xi32>
    %704 = arith.andi %702, %703 : vector<1x8x128xi32>
    %c1_i32_83 = arith.constant 1 : i32
    %705 = vector.broadcast %c1_i32_83 : i32 to vector<1x8x128xi32>
    %706 = arith.cmpi eq, %704, %705 : vector<1x8x128xi32>
    %707 = vector.shape_cast %706 : vector<1x8x128xi1> to vector<1x8x128xi1>
    %708 = vector.broadcast %707 : vector<1x8x128xi1> to vector<8x8x128xi1>
    %709 = arith.select %708, %698, %658 : vector<8x8x128xi1>, vector<8x8x128xf32>
    %710 = vector.shape_cast %706 : vector<1x8x128xi1> to vector<1x8x128xi1>
    %711 = vector.broadcast %710 : vector<1x8x128xi1> to vector<8x8x128xi1>
    %712 = arith.select %711, %699, %671 : vector<8x8x128xi1>, vector<8x8x128xf32>
    %c802 = arith.constant 802 : index
    %713 = memref.load %arg1[%c802] : memref<828xf32, #tpu.memory_space<smem>>
    %c803 = arith.constant 803 : index
    %714 = memref.load %arg1[%c803] : memref<828xf32, #tpu.memory_space<smem>>
    %c1_i32_84 = arith.constant 1 : i32
    %715 = tpu.dynamic_rotate %709 by %c1_i32_84 dim 1 : vector<8x8x128xf32>, i32 -> vector<8x8x128xf32>
    %c7_i32_85 = arith.constant 7 : i32
    %716 = tpu.dynamic_rotate %709 by %c7_i32_85 dim 1 : vector<8x8x128xf32>, i32 -> vector<8x8x128xf32>
    %717 = tpu.iota {dimensions = array<i32: 1>} : vector<1x8x128xi32>
    %c0_i32_86 = arith.constant 0 : i32
    %718 = vector.broadcast %c0_i32_86 : i32 to vector<1x8x128xi32>
    %719 = arith.shrsi %717, %718 : vector<1x8x128xi32>
    %c1_i32_87 = arith.constant 1 : i32
    %720 = vector.broadcast %c1_i32_87 : i32 to vector<1x8x128xi32>
    %721 = arith.andi %719, %720 : vector<1x8x128xi32>
    %c1_i32_88 = arith.constant 1 : i32
    %722 = vector.broadcast %c1_i32_88 : i32 to vector<1x8x128xi32>
    %723 = arith.cmpi eq, %721, %722 : vector<1x8x128xi32>
    %724 = vector.shape_cast %723 : vector<1x8x128xi1> to vector<1x8x128xi1>
    %725 = vector.broadcast %724 : vector<1x8x128xi1> to vector<8x8x128xi1>
    %726 = arith.select %725, %715, %716 : vector<8x8x128xi1>, vector<8x8x128xf32>
    %c1_i32_89 = arith.constant 1 : i32
    %727 = tpu.dynamic_rotate %712 by %c1_i32_89 dim 1 : vector<8x8x128xf32>, i32 -> vector<8x8x128xf32>
    %c7_i32_90 = arith.constant 7 : i32
    %728 = tpu.dynamic_rotate %712 by %c7_i32_90 dim 1 : vector<8x8x128xf32>, i32 -> vector<8x8x128xf32>
    %729 = tpu.iota {dimensions = array<i32: 1>} : vector<1x8x128xi32>
    %c0_i32_91 = arith.constant 0 : i32
    %730 = vector.broadcast %c0_i32_91 : i32 to vector<1x8x128xi32>
    %731 = arith.shrsi %729, %730 : vector<1x8x128xi32>
    %c1_i32_92 = arith.constant 1 : i32
    %732 = vector.broadcast %c1_i32_92 : i32 to vector<1x8x128xi32>
    %733 = arith.andi %731, %732 : vector<1x8x128xi32>
    %c1_i32_93 = arith.constant 1 : i32
    %734 = vector.broadcast %c1_i32_93 : i32 to vector<1x8x128xi32>
    %735 = arith.cmpi eq, %733, %734 : vector<1x8x128xi32>
    %736 = vector.shape_cast %735 : vector<1x8x128xi1> to vector<1x8x128xi1>
    %737 = vector.broadcast %736 : vector<1x8x128xi1> to vector<8x8x128xi1>
    %738 = arith.select %737, %727, %728 : vector<8x8x128xi1>, vector<8x8x128xf32>
    %739 = vector.broadcast %713 : f32 to vector<8x8x128xf32>
    %740 = arith.mulf %739, %709 : vector<8x8x128xf32>
    %741 = vector.broadcast %714 : f32 to vector<8x8x128xf32>
    %742 = arith.mulf %741, %738 : vector<8x8x128xf32>
    %743 = arith.addf %740, %742 : vector<8x8x128xf32>
    %744 = vector.broadcast %713 : f32 to vector<8x8x128xf32>
    %745 = arith.mulf %744, %712 : vector<8x8x128xf32>
    %746 = vector.broadcast %714 : f32 to vector<8x8x128xf32>
    %747 = arith.mulf %746, %726 : vector<8x8x128xf32>
    %748 = arith.subf %745, %747 : vector<8x8x128xf32>
    %749 = tpu.iota {dimensions = array<i32: 1>} : vector<1x8x128xi32>
    %c1_i32_94 = arith.constant 1 : i32
    %750 = vector.broadcast %c1_i32_94 : i32 to vector<1x8x128xi32>
    %751 = arith.shrsi %749, %750 : vector<1x8x128xi32>
    %c1_i32_95 = arith.constant 1 : i32
    %752 = vector.broadcast %c1_i32_95 : i32 to vector<1x8x128xi32>
    %753 = arith.andi %751, %752 : vector<1x8x128xi32>
    %c1_i32_96 = arith.constant 1 : i32
    %754 = vector.broadcast %c1_i32_96 : i32 to vector<1x8x128xi32>
    %755 = arith.cmpi eq, %753, %754 : vector<1x8x128xi32>
    %756 = vector.shape_cast %755 : vector<1x8x128xi1> to vector<1x8x128xi1>
    %757 = vector.broadcast %756 : vector<1x8x128xi1> to vector<8x8x128xi1>
    %758 = arith.select %757, %743, %709 : vector<8x8x128xi1>, vector<8x8x128xf32>
    %759 = vector.shape_cast %755 : vector<1x8x128xi1> to vector<1x8x128xi1>
    %760 = vector.broadcast %759 : vector<1x8x128xi1> to vector<8x8x128xi1>
    %761 = arith.select %760, %748, %712 : vector<8x8x128xi1>, vector<8x8x128xf32>
    %c808 = arith.constant 808 : index
    %762 = memref.load %arg1[%c808] : memref<828xf32, #tpu.memory_space<smem>>
    %c809 = arith.constant 809 : index
    %763 = memref.load %arg1[%c809] : memref<828xf32, #tpu.memory_space<smem>>
    %c2_i32_97 = arith.constant 2 : i32
    %764 = tpu.dynamic_rotate %758 by %c2_i32_97 dim 1 : vector<8x8x128xf32>, i32 -> vector<8x8x128xf32>
    %c6_i32_98 = arith.constant 6 : i32
    %765 = tpu.dynamic_rotate %758 by %c6_i32_98 dim 1 : vector<8x8x128xf32>, i32 -> vector<8x8x128xf32>
    %766 = tpu.iota {dimensions = array<i32: 1>} : vector<1x8x128xi32>
    %c1_i32_99 = arith.constant 1 : i32
    %767 = vector.broadcast %c1_i32_99 : i32 to vector<1x8x128xi32>
    %768 = arith.shrsi %766, %767 : vector<1x8x128xi32>
    %c1_i32_100 = arith.constant 1 : i32
    %769 = vector.broadcast %c1_i32_100 : i32 to vector<1x8x128xi32>
    %770 = arith.andi %768, %769 : vector<1x8x128xi32>
    %c1_i32_101 = arith.constant 1 : i32
    %771 = vector.broadcast %c1_i32_101 : i32 to vector<1x8x128xi32>
    %772 = arith.cmpi eq, %770, %771 : vector<1x8x128xi32>
    %773 = vector.shape_cast %772 : vector<1x8x128xi1> to vector<1x8x128xi1>
    %774 = vector.broadcast %773 : vector<1x8x128xi1> to vector<8x8x128xi1>
    %775 = arith.select %774, %764, %765 : vector<8x8x128xi1>, vector<8x8x128xf32>
    %c2_i32_102 = arith.constant 2 : i32
    %776 = tpu.dynamic_rotate %761 by %c2_i32_102 dim 1 : vector<8x8x128xf32>, i32 -> vector<8x8x128xf32>
    %c6_i32_103 = arith.constant 6 : i32
    %777 = tpu.dynamic_rotate %761 by %c6_i32_103 dim 1 : vector<8x8x128xf32>, i32 -> vector<8x8x128xf32>
    %778 = tpu.iota {dimensions = array<i32: 1>} : vector<1x8x128xi32>
    %c1_i32_104 = arith.constant 1 : i32
    %779 = vector.broadcast %c1_i32_104 : i32 to vector<1x8x128xi32>
    %780 = arith.shrsi %778, %779 : vector<1x8x128xi32>
    %c1_i32_105 = arith.constant 1 : i32
    %781 = vector.broadcast %c1_i32_105 : i32 to vector<1x8x128xi32>
    %782 = arith.andi %780, %781 : vector<1x8x128xi32>
    %c1_i32_106 = arith.constant 1 : i32
    %783 = vector.broadcast %c1_i32_106 : i32 to vector<1x8x128xi32>
    %784 = arith.cmpi eq, %782, %783 : vector<1x8x128xi32>
    %785 = vector.shape_cast %784 : vector<1x8x128xi1> to vector<1x8x128xi1>
    %786 = vector.broadcast %785 : vector<1x8x128xi1> to vector<8x8x128xi1>
    %787 = arith.select %786, %776, %777 : vector<8x8x128xi1>, vector<8x8x128xf32>
    %788 = vector.broadcast %762 : f32 to vector<8x8x128xf32>
    %789 = arith.mulf %788, %758 : vector<8x8x128xf32>
    %790 = vector.broadcast %763 : f32 to vector<8x8x128xf32>
    %791 = arith.mulf %790, %787 : vector<8x8x128xf32>
    %792 = arith.addf %789, %791 : vector<8x8x128xf32>
    %793 = vector.broadcast %762 : f32 to vector<8x8x128xf32>
    %794 = arith.mulf %793, %761 : vector<8x8x128xf32>
    %795 = vector.broadcast %763 : f32 to vector<8x8x128xf32>
    %796 = arith.mulf %795, %775 : vector<8x8x128xf32>
    %797 = arith.subf %794, %796 : vector<8x8x128xf32>
    %798 = tpu.iota {dimensions = array<i32: 1>} : vector<1x8x128xi32>
    %c2_i32_107 = arith.constant 2 : i32
    %799 = vector.broadcast %c2_i32_107 : i32 to vector<1x8x128xi32>
    %800 = arith.shrsi %798, %799 : vector<1x8x128xi32>
    %c1_i32_108 = arith.constant 1 : i32
    %801 = vector.broadcast %c1_i32_108 : i32 to vector<1x8x128xi32>
    %802 = arith.andi %800, %801 : vector<1x8x128xi32>
    %c1_i32_109 = arith.constant 1 : i32
    %803 = vector.broadcast %c1_i32_109 : i32 to vector<1x8x128xi32>
    %804 = arith.cmpi eq, %802, %803 : vector<1x8x128xi32>
    %805 = vector.shape_cast %804 : vector<1x8x128xi1> to vector<1x8x128xi1>
    %806 = vector.broadcast %805 : vector<1x8x128xi1> to vector<8x8x128xi1>
    %807 = arith.select %806, %792, %758 : vector<8x8x128xi1>, vector<8x8x128xf32>
    %808 = vector.shape_cast %804 : vector<1x8x128xi1> to vector<1x8x128xi1>
    %809 = vector.broadcast %808 : vector<1x8x128xi1> to vector<8x8x128xi1>
    %810 = arith.select %809, %797, %761 : vector<8x8x128xi1>, vector<8x8x128xf32>
    %c814 = arith.constant 814 : index
    %811 = memref.load %arg1[%c814] : memref<828xf32, #tpu.memory_space<smem>>
    %c815 = arith.constant 815 : index
    %812 = memref.load %arg1[%c815] : memref<828xf32, #tpu.memory_space<smem>>
    %c4_i32_110 = arith.constant 4 : i32
    %813 = tpu.dynamic_rotate %807 by %c4_i32_110 dim 1 : vector<8x8x128xf32>, i32 -> vector<8x8x128xf32>
    %c4_i32_111 = arith.constant 4 : i32
    %814 = tpu.dynamic_rotate %810 by %c4_i32_111 dim 1 : vector<8x8x128xf32>, i32 -> vector<8x8x128xf32>
    %815 = vector.broadcast %811 : f32 to vector<8x8x128xf32>
    %816 = arith.mulf %815, %807 : vector<8x8x128xf32>
    %817 = vector.broadcast %812 : f32 to vector<8x8x128xf32>
    %818 = arith.mulf %817, %814 : vector<8x8x128xf32>
    %819 = arith.addf %816, %818 : vector<8x8x128xf32>
    %820 = vector.broadcast %811 : f32 to vector<8x8x128xf32>
    %821 = arith.mulf %820, %810 : vector<8x8x128xf32>
    %822 = vector.broadcast %812 : f32 to vector<8x8x128xf32>
    %823 = arith.mulf %822, %813 : vector<8x8x128xf32>
    %824 = arith.subf %821, %823 : vector<8x8x128xf32>
    %825 = vector.extract_strided_slice %807 {offsets = [0, 0, 0], sizes = [1, 8, 128], strides = [1, 1, 1]} : vector<8x8x128xf32> to vector<1x8x128xf32>
    %826 = vector.extract_strided_slice %819 {offsets = [1, 0, 0], sizes = [1, 8, 128], strides = [1, 1, 1]} : vector<8x8x128xf32> to vector<1x8x128xf32>
    %827 = vector.extract_strided_slice %810 {offsets = [0, 0, 0], sizes = [1, 8, 128], strides = [1, 1, 1]} : vector<8x8x128xf32> to vector<1x8x128xf32>
    %828 = vector.extract_strided_slice %824 {offsets = [1, 0, 0], sizes = [1, 8, 128], strides = [1, 1, 1]} : vector<8x8x128xf32> to vector<1x8x128xf32>
    %829 = vector.extract_strided_slice %807 {offsets = [2, 0, 0], sizes = [1, 8, 128], strides = [1, 1, 1]} : vector<8x8x128xf32> to vector<1x8x128xf32>
    %830 = vector.extract_strided_slice %819 {offsets = [3, 0, 0], sizes = [1, 8, 128], strides = [1, 1, 1]} : vector<8x8x128xf32> to vector<1x8x128xf32>
    %831 = vector.extract_strided_slice %810 {offsets = [2, 0, 0], sizes = [1, 8, 128], strides = [1, 1, 1]} : vector<8x8x128xf32> to vector<1x8x128xf32>
    %832 = vector.extract_strided_slice %824 {offsets = [3, 0, 0], sizes = [1, 8, 128], strides = [1, 1, 1]} : vector<8x8x128xf32> to vector<1x8x128xf32>
    %833 = vector.extract_strided_slice %807 {offsets = [4, 0, 0], sizes = [1, 8, 128], strides = [1, 1, 1]} : vector<8x8x128xf32> to vector<1x8x128xf32>
    %834 = vector.extract_strided_slice %819 {offsets = [5, 0, 0], sizes = [1, 8, 128], strides = [1, 1, 1]} : vector<8x8x128xf32> to vector<1x8x128xf32>
    %835 = vector.extract_strided_slice %810 {offsets = [4, 0, 0], sizes = [1, 8, 128], strides = [1, 1, 1]} : vector<8x8x128xf32> to vector<1x8x128xf32>
    %836 = vector.extract_strided_slice %824 {offsets = [5, 0, 0], sizes = [1, 8, 128], strides = [1, 1, 1]} : vector<8x8x128xf32> to vector<1x8x128xf32>
    %837 = vector.extract_strided_slice %807 {offsets = [6, 0, 0], sizes = [1, 8, 128], strides = [1, 1, 1]} : vector<8x8x128xf32> to vector<1x8x128xf32>
    %838 = vector.extract_strided_slice %819 {offsets = [7, 0, 0], sizes = [1, 8, 128], strides = [1, 1, 1]} : vector<8x8x128xf32> to vector<1x8x128xf32>
    %839 = vector.extract_strided_slice %810 {offsets = [6, 0, 0], sizes = [1, 8, 128], strides = [1, 1, 1]} : vector<8x8x128xf32> to vector<1x8x128xf32>
    %840 = vector.extract_strided_slice %824 {offsets = [7, 0, 0], sizes = [1, 8, 128], strides = [1, 1, 1]} : vector<8x8x128xf32> to vector<1x8x128xf32>
    %841 = tpu.concatenate %825, %826, %829, %830, %833, %834, %837, %838 in 0 : vector<1x8x128xf32>, vector<1x8x128xf32>, vector<1x8x128xf32>, vector<1x8x128xf32>, vector<1x8x128xf32>, vector<1x8x128xf32>, vector<1x8x128xf32>, vector<1x8x128xf32> -> vector<8x8x128xf32>
    %842 = tpu.concatenate %827, %828, %831, %832, %835, %836, %839, %840 in 0 : vector<1x8x128xf32>, vector<1x8x128xf32>, vector<1x8x128xf32>, vector<1x8x128xf32>, vector<1x8x128xf32>, vector<1x8x128xf32>, vector<1x8x128xf32>, vector<1x8x128xf32> -> vector<8x8x128xf32>
    %c820 = arith.constant 820 : index
    %843 = memref.load %arg1[%c820] : memref<828xf32, #tpu.memory_space<smem>>
    %c821 = arith.constant 821 : index
    %844 = memref.load %arg1[%c821] : memref<828xf32, #tpu.memory_space<smem>>
    %845 = vector.extract_strided_slice %841 {offsets = [0, 0, 0], sizes = [1, 8, 128], strides = [1, 1, 1]} : vector<8x8x128xf32> to vector<1x8x128xf32>
    %846 = vector.extract_strided_slice %842 {offsets = [0, 0, 0], sizes = [1, 8, 128], strides = [1, 1, 1]} : vector<8x8x128xf32> to vector<1x8x128xf32>
    %847 = vector.extract_strided_slice %841 {offsets = [1, 0, 0], sizes = [1, 8, 128], strides = [1, 1, 1]} : vector<8x8x128xf32> to vector<1x8x128xf32>
    %848 = vector.extract_strided_slice %842 {offsets = [1, 0, 0], sizes = [1, 8, 128], strides = [1, 1, 1]} : vector<8x8x128xf32> to vector<1x8x128xf32>
    %849 = vector.broadcast %843 : f32 to vector<1x8x128xf32>
    %850 = arith.mulf %849, %845 : vector<1x8x128xf32>
    %851 = vector.broadcast %844 : f32 to vector<1x8x128xf32>
    %852 = arith.mulf %851, %848 : vector<1x8x128xf32>
    %853 = arith.addf %850, %852 : vector<1x8x128xf32>
    %854 = vector.broadcast %843 : f32 to vector<1x8x128xf32>
    %855 = arith.mulf %854, %846 : vector<1x8x128xf32>
    %856 = vector.broadcast %844 : f32 to vector<1x8x128xf32>
    %857 = arith.mulf %856, %847 : vector<1x8x128xf32>
    %858 = arith.subf %855, %857 : vector<1x8x128xf32>
    %859 = vector.broadcast %843 : f32 to vector<1x8x128xf32>
    %860 = arith.mulf %859, %847 : vector<1x8x128xf32>
    %861 = vector.broadcast %844 : f32 to vector<1x8x128xf32>
    %862 = arith.mulf %861, %846 : vector<1x8x128xf32>
    %863 = arith.addf %860, %862 : vector<1x8x128xf32>
    %864 = vector.broadcast %843 : f32 to vector<1x8x128xf32>
    %865 = arith.mulf %864, %848 : vector<1x8x128xf32>
    %866 = vector.broadcast %844 : f32 to vector<1x8x128xf32>
    %867 = arith.mulf %866, %845 : vector<1x8x128xf32>
    %868 = arith.subf %865, %867 : vector<1x8x128xf32>
    %869 = vector.extract_strided_slice %841 {offsets = [2, 0, 0], sizes = [1, 8, 128], strides = [1, 1, 1]} : vector<8x8x128xf32> to vector<1x8x128xf32>
    %870 = vector.extract_strided_slice %842 {offsets = [2, 0, 0], sizes = [1, 8, 128], strides = [1, 1, 1]} : vector<8x8x128xf32> to vector<1x8x128xf32>
    %871 = vector.extract_strided_slice %841 {offsets = [3, 0, 0], sizes = [1, 8, 128], strides = [1, 1, 1]} : vector<8x8x128xf32> to vector<1x8x128xf32>
    %872 = vector.extract_strided_slice %842 {offsets = [3, 0, 0], sizes = [1, 8, 128], strides = [1, 1, 1]} : vector<8x8x128xf32> to vector<1x8x128xf32>
    %873 = vector.broadcast %843 : f32 to vector<1x8x128xf32>
    %874 = arith.mulf %873, %869 : vector<1x8x128xf32>
    %875 = vector.broadcast %844 : f32 to vector<1x8x128xf32>
    %876 = arith.mulf %875, %872 : vector<1x8x128xf32>
    %877 = arith.addf %874, %876 : vector<1x8x128xf32>
    %878 = vector.broadcast %843 : f32 to vector<1x8x128xf32>
    %879 = arith.mulf %878, %870 : vector<1x8x128xf32>
    %880 = vector.broadcast %844 : f32 to vector<1x8x128xf32>
    %881 = arith.mulf %880, %871 : vector<1x8x128xf32>
    %882 = arith.subf %879, %881 : vector<1x8x128xf32>
    %883 = vector.broadcast %843 : f32 to vector<1x8x128xf32>
    %884 = arith.mulf %883, %871 : vector<1x8x128xf32>
    %885 = vector.broadcast %844 : f32 to vector<1x8x128xf32>
    %886 = arith.mulf %885, %870 : vector<1x8x128xf32>
    %887 = arith.addf %884, %886 : vector<1x8x128xf32>
    %888 = vector.broadcast %843 : f32 to vector<1x8x128xf32>
    %889 = arith.mulf %888, %872 : vector<1x8x128xf32>
    %890 = vector.broadcast %844 : f32 to vector<1x8x128xf32>
    %891 = arith.mulf %890, %869 : vector<1x8x128xf32>
    %892 = arith.subf %889, %891 : vector<1x8x128xf32>
    %893 = vector.extract_strided_slice %841 {offsets = [4, 0, 0], sizes = [1, 8, 128], strides = [1, 1, 1]} : vector<8x8x128xf32> to vector<1x8x128xf32>
    %894 = vector.extract_strided_slice %842 {offsets = [4, 0, 0], sizes = [1, 8, 128], strides = [1, 1, 1]} : vector<8x8x128xf32> to vector<1x8x128xf32>
    %895 = vector.extract_strided_slice %841 {offsets = [5, 0, 0], sizes = [1, 8, 128], strides = [1, 1, 1]} : vector<8x8x128xf32> to vector<1x8x128xf32>
    %896 = vector.extract_strided_slice %842 {offsets = [5, 0, 0], sizes = [1, 8, 128], strides = [1, 1, 1]} : vector<8x8x128xf32> to vector<1x8x128xf32>
    %897 = vector.broadcast %843 : f32 to vector<1x8x128xf32>
    %898 = arith.mulf %897, %893 : vector<1x8x128xf32>
    %899 = vector.broadcast %844 : f32 to vector<1x8x128xf32>
    %900 = arith.mulf %899, %896 : vector<1x8x128xf32>
    %901 = arith.addf %898, %900 : vector<1x8x128xf32>
    %902 = vector.broadcast %843 : f32 to vector<1x8x128xf32>
    %903 = arith.mulf %902, %894 : vector<1x8x128xf32>
    %904 = vector.broadcast %844 : f32 to vector<1x8x128xf32>
    %905 = arith.mulf %904, %895 : vector<1x8x128xf32>
    %906 = arith.subf %903, %905 : vector<1x8x128xf32>
    %907 = vector.broadcast %843 : f32 to vector<1x8x128xf32>
    %908 = arith.mulf %907, %895 : vector<1x8x128xf32>
    %909 = vector.broadcast %844 : f32 to vector<1x8x128xf32>
    %910 = arith.mulf %909, %894 : vector<1x8x128xf32>
    %911 = arith.addf %908, %910 : vector<1x8x128xf32>
    %912 = vector.broadcast %843 : f32 to vector<1x8x128xf32>
    %913 = arith.mulf %912, %896 : vector<1x8x128xf32>
    %914 = vector.broadcast %844 : f32 to vector<1x8x128xf32>
    %915 = arith.mulf %914, %893 : vector<1x8x128xf32>
    %916 = arith.subf %913, %915 : vector<1x8x128xf32>
    %917 = vector.extract_strided_slice %841 {offsets = [6, 0, 0], sizes = [1, 8, 128], strides = [1, 1, 1]} : vector<8x8x128xf32> to vector<1x8x128xf32>
    %918 = vector.extract_strided_slice %842 {offsets = [6, 0, 0], sizes = [1, 8, 128], strides = [1, 1, 1]} : vector<8x8x128xf32> to vector<1x8x128xf32>
    %919 = vector.extract_strided_slice %841 {offsets = [7, 0, 0], sizes = [1, 8, 128], strides = [1, 1, 1]} : vector<8x8x128xf32> to vector<1x8x128xf32>
    %920 = vector.extract_strided_slice %842 {offsets = [7, 0, 0], sizes = [1, 8, 128], strides = [1, 1, 1]} : vector<8x8x128xf32> to vector<1x8x128xf32>
    %921 = vector.broadcast %843 : f32 to vector<1x8x128xf32>
    %922 = arith.mulf %921, %917 : vector<1x8x128xf32>
    %923 = vector.broadcast %844 : f32 to vector<1x8x128xf32>
    %924 = arith.mulf %923, %920 : vector<1x8x128xf32>
    %925 = arith.addf %922, %924 : vector<1x8x128xf32>
    %926 = vector.broadcast %843 : f32 to vector<1x8x128xf32>
    %927 = arith.mulf %926, %918 : vector<1x8x128xf32>
    %928 = vector.broadcast %844 : f32 to vector<1x8x128xf32>
    %929 = arith.mulf %928, %919 : vector<1x8x128xf32>
    %930 = arith.subf %927, %929 : vector<1x8x128xf32>
    %931 = vector.broadcast %843 : f32 to vector<1x8x128xf32>
    %932 = arith.mulf %931, %919 : vector<1x8x128xf32>
    %933 = vector.broadcast %844 : f32 to vector<1x8x128xf32>
    %934 = arith.mulf %933, %918 : vector<1x8x128xf32>
    %935 = arith.addf %932, %934 : vector<1x8x128xf32>
    %936 = vector.broadcast %843 : f32 to vector<1x8x128xf32>
    %937 = arith.mulf %936, %920 : vector<1x8x128xf32>
    %938 = vector.broadcast %844 : f32 to vector<1x8x128xf32>
    %939 = arith.mulf %938, %917 : vector<1x8x128xf32>
    %940 = arith.subf %937, %939 : vector<1x8x128xf32>
    %941 = tpu.concatenate %853, %863, %877, %887, %901, %911, %925, %935 in 0 : vector<1x8x128xf32>, vector<1x8x128xf32>, vector<1x8x128xf32>, vector<1x8x128xf32>, vector<1x8x128xf32>, vector<1x8x128xf32>, vector<1x8x128xf32>, vector<1x8x128xf32> -> vector<8x8x128xf32>
    %942 = tpu.concatenate %858, %868, %882, %892, %906, %916, %930, %940 in 0 : vector<1x8x128xf32>, vector<1x8x128xf32>, vector<1x8x128xf32>, vector<1x8x128xf32>, vector<1x8x128xf32>, vector<1x8x128xf32>, vector<1x8x128xf32>, vector<1x8x128xf32> -> vector<8x8x128xf32>
    %943 = vector.extract_strided_slice %841 {offsets = [0, 0, 0], sizes = [2, 8, 128], strides = [1, 1, 1]} : vector<8x8x128xf32> to vector<2x8x128xf32>
    %944 = vector.extract_strided_slice %941 {offsets = [2, 0, 0], sizes = [2, 8, 128], strides = [1, 1, 1]} : vector<8x8x128xf32> to vector<2x8x128xf32>
    %945 = vector.extract_strided_slice %842 {offsets = [0, 0, 0], sizes = [2, 8, 128], strides = [1, 1, 1]} : vector<8x8x128xf32> to vector<2x8x128xf32>
    %946 = vector.extract_strided_slice %942 {offsets = [2, 0, 0], sizes = [2, 8, 128], strides = [1, 1, 1]} : vector<8x8x128xf32> to vector<2x8x128xf32>
    %947 = vector.extract_strided_slice %841 {offsets = [4, 0, 0], sizes = [2, 8, 128], strides = [1, 1, 1]} : vector<8x8x128xf32> to vector<2x8x128xf32>
    %948 = vector.extract_strided_slice %941 {offsets = [6, 0, 0], sizes = [2, 8, 128], strides = [1, 1, 1]} : vector<8x8x128xf32> to vector<2x8x128xf32>
    %949 = vector.extract_strided_slice %842 {offsets = [4, 0, 0], sizes = [2, 8, 128], strides = [1, 1, 1]} : vector<8x8x128xf32> to vector<2x8x128xf32>
    %950 = vector.extract_strided_slice %942 {offsets = [6, 0, 0], sizes = [2, 8, 128], strides = [1, 1, 1]} : vector<8x8x128xf32> to vector<2x8x128xf32>
    %951 = tpu.concatenate %943, %944, %947, %948 in 0 : vector<2x8x128xf32>, vector<2x8x128xf32>, vector<2x8x128xf32>, vector<2x8x128xf32> -> vector<8x8x128xf32>
    %952 = tpu.concatenate %945, %946, %949, %950 in 0 : vector<2x8x128xf32>, vector<2x8x128xf32>, vector<2x8x128xf32>, vector<2x8x128xf32> -> vector<8x8x128xf32>
    %c826 = arith.constant 826 : index
    %953 = memref.load %arg1[%c826] : memref<828xf32, #tpu.memory_space<smem>>
    %c827 = arith.constant 827 : index
    %954 = memref.load %arg1[%c827] : memref<828xf32, #tpu.memory_space<smem>>
    %955 = vector.extract_strided_slice %951 {offsets = [0, 0, 0], sizes = [2, 8, 128], strides = [1, 1, 1]} : vector<8x8x128xf32> to vector<2x8x128xf32>
    %956 = vector.extract_strided_slice %952 {offsets = [0, 0, 0], sizes = [2, 8, 128], strides = [1, 1, 1]} : vector<8x8x128xf32> to vector<2x8x128xf32>
    %957 = vector.extract_strided_slice %951 {offsets = [2, 0, 0], sizes = [2, 8, 128], strides = [1, 1, 1]} : vector<8x8x128xf32> to vector<2x8x128xf32>
    %958 = vector.extract_strided_slice %952 {offsets = [2, 0, 0], sizes = [2, 8, 128], strides = [1, 1, 1]} : vector<8x8x128xf32> to vector<2x8x128xf32>
    %959 = vector.broadcast %953 : f32 to vector<2x8x128xf32>
    %960 = arith.mulf %959, %955 : vector<2x8x128xf32>
    %961 = vector.broadcast %954 : f32 to vector<2x8x128xf32>
    %962 = arith.mulf %961, %958 : vector<2x8x128xf32>
    %963 = arith.addf %960, %962 : vector<2x8x128xf32>
    %964 = vector.broadcast %953 : f32 to vector<2x8x128xf32>
    %965 = arith.mulf %964, %956 : vector<2x8x128xf32>
    %966 = vector.broadcast %954 : f32 to vector<2x8x128xf32>
    %967 = arith.mulf %966, %957 : vector<2x8x128xf32>
    %968 = arith.subf %965, %967 : vector<2x8x128xf32>
    %969 = vector.broadcast %953 : f32 to vector<2x8x128xf32>
    %970 = arith.mulf %969, %957 : vector<2x8x128xf32>
    %971 = vector.broadcast %954 : f32 to vector<2x8x128xf32>
    %972 = arith.mulf %971, %956 : vector<2x8x128xf32>
    %973 = arith.addf %970, %972 : vector<2x8x128xf32>
    %974 = vector.broadcast %953 : f32 to vector<2x8x128xf32>
    %975 = arith.mulf %974, %958 : vector<2x8x128xf32>
    %976 = vector.broadcast %954 : f32 to vector<2x8x128xf32>
    %977 = arith.mulf %976, %955 : vector<2x8x128xf32>
    %978 = arith.subf %975, %977 : vector<2x8x128xf32>
    %979 = vector.extract_strided_slice %951 {offsets = [4, 0, 0], sizes = [2, 8, 128], strides = [1, 1, 1]} : vector<8x8x128xf32> to vector<2x8x128xf32>
    %980 = vector.extract_strided_slice %952 {offsets = [4, 0, 0], sizes = [2, 8, 128], strides = [1, 1, 1]} : vector<8x8x128xf32> to vector<2x8x128xf32>
    %981 = vector.extract_strided_slice %951 {offsets = [6, 0, 0], sizes = [2, 8, 128], strides = [1, 1, 1]} : vector<8x8x128xf32> to vector<2x8x128xf32>
    %982 = vector.extract_strided_slice %952 {offsets = [6, 0, 0], sizes = [2, 8, 128], strides = [1, 1, 1]} : vector<8x8x128xf32> to vector<2x8x128xf32>
    %983 = vector.broadcast %953 : f32 to vector<2x8x128xf32>
    %984 = arith.mulf %983, %979 : vector<2x8x128xf32>
    %985 = vector.broadcast %954 : f32 to vector<2x8x128xf32>
    %986 = arith.mulf %985, %982 : vector<2x8x128xf32>
    %987 = arith.addf %984, %986 : vector<2x8x128xf32>
    %988 = vector.broadcast %953 : f32 to vector<2x8x128xf32>
    %989 = arith.mulf %988, %980 : vector<2x8x128xf32>
    %990 = vector.broadcast %954 : f32 to vector<2x8x128xf32>
    %991 = arith.mulf %990, %981 : vector<2x8x128xf32>
    %992 = arith.subf %989, %991 : vector<2x8x128xf32>
    %993 = vector.broadcast %953 : f32 to vector<2x8x128xf32>
    %994 = arith.mulf %993, %981 : vector<2x8x128xf32>
    %995 = vector.broadcast %954 : f32 to vector<2x8x128xf32>
    %996 = arith.mulf %995, %980 : vector<2x8x128xf32>
    %997 = arith.addf %994, %996 : vector<2x8x128xf32>
    %998 = vector.broadcast %953 : f32 to vector<2x8x128xf32>
    %999 = arith.mulf %998, %982 : vector<2x8x128xf32>
    %1000 = vector.broadcast %954 : f32 to vector<2x8x128xf32>
    %1001 = arith.mulf %1000, %979 : vector<2x8x128xf32>
    %1002 = arith.subf %999, %1001 : vector<2x8x128xf32>
    %1003 = tpu.concatenate %963, %973, %987, %997 in 0 : vector<2x8x128xf32>, vector<2x8x128xf32>, vector<2x8x128xf32>, vector<2x8x128xf32> -> vector<8x8x128xf32>
    %1004 = tpu.concatenate %968, %978, %992, %1002 in 0 : vector<2x8x128xf32>, vector<2x8x128xf32>, vector<2x8x128xf32>, vector<2x8x128xf32> -> vector<8x8x128xf32>
    %1005 = vector.extract_strided_slice %951 {offsets = [0, 0, 0], sizes = [4, 8, 128], strides = [1, 1, 1]} : vector<8x8x128xf32> to vector<4x8x128xf32>
    %1006 = vector.extract_strided_slice %1003 {offsets = [4, 0, 0], sizes = [4, 8, 128], strides = [1, 1, 1]} : vector<8x8x128xf32> to vector<4x8x128xf32>
    %1007 = vector.extract_strided_slice %952 {offsets = [0, 0, 0], sizes = [4, 8, 128], strides = [1, 1, 1]} : vector<8x8x128xf32> to vector<4x8x128xf32>
    %1008 = vector.extract_strided_slice %1004 {offsets = [4, 0, 0], sizes = [4, 8, 128], strides = [1, 1, 1]} : vector<8x8x128xf32> to vector<4x8x128xf32>
    %1009 = tpu.concatenate %1005, %1006 in 0 : vector<4x8x128xf32>, vector<4x8x128xf32> -> vector<8x8x128xf32>
    %1010 = tpu.concatenate %1007, %1008 in 0 : vector<4x8x128xf32>, vector<4x8x128xf32> -> vector<8x8x128xf32>
    %1011 = arith.mulf %1009, %1009 : vector<8x8x128xf32>
    %1012 = arith.mulf %1010, %1010 : vector<8x8x128xf32>
    %1013 = arith.addf %1011, %1012 : vector<8x8x128xf32>
    %1014 = vector.extract_strided_slice %1013 {offsets = [0, 0, 0], sizes = [4, 8, 128], strides = [1, 1, 1]} : vector<8x8x128xf32> to vector<4x8x128xf32>
    %cst_112 = arith.constant dense<0.000000e+00> : vector<8x128xf32>
    %1015 = vector.multi_reduction <add>, %1014, %cst_112 [0] : vector<4x8x128xf32> to vector<8x128xf32>
    %1016 = vector.extract_strided_slice %1013 {offsets = [4, 0, 0], sizes = [4, 8, 128], strides = [1, 1, 1]} : vector<8x8x128xf32> to vector<4x8x128xf32>
    %cst_113 = arith.constant dense<0.000000e+00> : vector<8x128xf32>
    %1017 = vector.multi_reduction <add>, %1016, %cst_113 [0] : vector<4x8x128xf32> to vector<8x128xf32>
    %1018 = arith.subf %1015, %1017 : vector<8x128xf32>
    %cst_114 = arith.constant dense<0.000000e+00> : vector<128xf32>
    %1019 = vector.multi_reduction <add>, %1018, %cst_114 [0] : vector<8x128xf32> to vector<128xf32>
    %1020 = vector.shape_cast %1019 : vector<128xf32> to vector<1x128xf32>
    %cst_115 = arith.constant 1.000000e+00 : f32
    %1021 = vector.broadcast %cst_115 : f32 to vector<1x128xf32>
    %1022 = arith.addf %1020, %1021 : vector<1x128xf32>
    %cst_116 = arith.constant 5.000000e-01 : f32
    %1023 = vector.broadcast %cst_116 : f32 to vector<1x128xf32>
    %1024 = arith.mulf %1022, %1023 : vector<1x128xf32>
    %c0_117 = arith.constant 0 : index
    %c0_118 = arith.constant 0 : index
    %1025 = vector.load %arg3[%c0_117, %c0_118] : memref<1x128xf32, #tpu.memory_space<vmem>>, vector<1x128xf32>
    tpu.vector_store %arg3[%c0_117, %c0_118], %1024 {strides = array<i32>} : memref<1x128xf32, #tpu.memory_space<vmem>>, vector<1x128xf32>,
    return
  }
  func.func @transform_0(%arg0: i32) -> i32 {
    %c0_i32 = arith.constant 0 : i32
    %c0_i32_0 = arith.constant 0 : i32
    return %c0_i32 : i32
  }
  func.func @transform_1(%arg0: i32) -> (i32, i32) {
    %c0_i32 = arith.constant 0 : i32
    %c0_i32_0 = arith.constant 0 : i32
    return %c0_i32, %arg0 : i32, i32
  }
  func.func @transform_2(%arg0: i32) -> (i32, i32) {
    %c0_i32 = arith.constant 0 : i32
    %c0_i32_0 = arith.constant 0 : i32
    return %c0_i32, %arg0 : i32, i32
  }
}

</mosaic_0001>

<llo_original>
// kernel: squeeze.9
$region0: #{squeeze.9}
  %s0 = inlined_call_operand.vmem [shape: f32[512], index: 0, kind: input, shape index: {}]
  %s1 = inlined_call_operand.hbm [shape: f32[2,256], index: 1, kind: output, shape index: {}]
  $region1: #{squeeze.9} parent=0
    #allocation0 [shape = 'u8[2048]{0}', space=vmem, size = 0x800, scoped, tag = 'operand span for operand 1']
    #allocation1 [shape = 's32[1]{0}', space=sflag, size = 0x4, scoped, tag = 'scoped memory for squeeze.9']
    #allocation2 [shape = 'u8[8192]{0}', space=vmem, size = 0x2000, scoped, tag = 'scoped mem for output reshape']
    #allocation3 [shape = 'u8[4096]{0}', space=vmem, size = 0x1000, scoped, tag = 'scoped mem for input reshape']
    %2 = vsyncpa [#allocation1], 0
    %s4 = sshll.u32 1, 4
    %s5 = ssub.s32 %s4, 1
    %v6 = vld [vmem:[%s0] sm:%s5]
    %7 = vst [vmem:[#allocation3] sm:%s5] %v6
    %v8 = vld [vmem:[#allocation3] sm:$0xf]
    %9 = vst [vmem:[#allocation2] ss:$8 sm:$0x3] %v8
    %s10 = scalar_lea.vmem [#allocation2], 4294967281
    %11 = vst [vmem:[%s10] ss:$8 sm:$0xc] %v8
    %s13 = sshll.u32 1, 2
    %s14 = ssub.s32 %s13, 1
    %v16 = vld [vmem:[#allocation2] sm:%s14]
    %s17 = sshll.u32 1, 2
    %s18 = ssub.s32 %s17, 1
    %19 = vst [vmem:[#allocation0] sm:%s18] %v16
    %s20 = scalar_lea.vmem [#allocation2], 8
    %v21 = vld [vmem:[%s20] sm:%s14]
    %s22 = sshll.u32 1, 2
    %s23 = ssub.s32 %s22, 1
    %s24 = scalar_lea.vmem [#allocation0], 2
    %25 = vst [vmem:[%s24] sm:%s23] %v21
    %s27 = ssub.s32 64, 64
    %28 = vsyncadd [#allocation1], %s27
    %s30 = sshll.u32 [#allocation0], 4
    %s31 = int_to_ptr.vmem [resolvable:$true] %s30
    %33 = dma.vmem_to_hbm [thread:$0]  %s31, 64, %s1, [#allocation1]
    %34 = dma.done [#allocation1], 64
    %35 = vsyncpa [#allocation1], 1

// kernel: generator_forward.1
$region0: #{generator_forward.1}
  #allocation0 [shape = 'u32[]', space=smem, size = 0x4, offset = 0x4, fixed_abs, tag = 'smem constant byte address 0x4 - core index']
  #allocation1 [shape = 'u32[144,128]{1,0:T(1,128)}', space=vmem, size = 0x12000, scoped, tag = 'internal scratch']
  #allocation2 [shape = 'f32[8,8,128]{2,1,0:T(8,128)}', space=vmem, size = 0x8000, scoped, tag = 'scratch operand']
  #allocation3 [shape = 'f32[8,8,128]{2,1,0:T(8,128)}', space=vmem, size = 0x8000, scoped, tag = 'scratch operand']
  %s0 = inlined_call_operand.vmem [shape: f32[828], index: 0, kind: input, shape index: {}]
  %s1 = inlined_call_operand.vmem [shape: f32[8,512], index: 1, kind: input, shape index: {}]
  %s2 = inlined_call_operand.vmem [shape: f32[1,512], index: 2, kind: output, shape index: {}]
  %s3 = sld [smem:[#allocation0]]
  $region52: #{generator_forward.1} parent=0
    _
  %s5 = ssub.s32 1, %s3
  %s6 = scalar_select 0, %s5, %s3
  $region1: #{generator_forward.1} parent=0
    #allocation4 [shape = 'u8[3584]{0}', space=smem, size = 0xe00, scoped, tag = 'input window, operand 0, single buffered']
    #allocation5 [shape = 's32[2]{0}', space=sflag, size = 0x8, scoped, tag = 'scoped memory for generator_forward.1']
    %7 = vsyncpa [#allocation5], 0
    loop: start=0, step=1, limit=6
    $region2: #{generator_forward.1} parent=1 // loop_pre_header
      _
    $region3: #{generator_forward.1} parent=1 // loop_header
      %s9 = sphi 0, %s13
      %p10 = scmp.ge.s32.totalorder %s9, 6
      %s17 = sphi 0, %s17
      %s19 = sphi 0, %s17
      %s20 = sphi 0, %s19
      %s34 = sphi 0, %s20
      %s40 = sphi 0, %s42
      %s43 = sphi 0, %s40
      %s44 = sphi 0, %s43
      %s60 = sphi 0, %s44
      %s66 = sphi 0, %s68
      %s69 = sphi 0, %s66
      %s70 = sphi 0, %s69
      %s86 = sphi 0, %s70
    $region4: #{generator_forward.1} parent=1 // loop_header_branch
      %12 = sbr.rel (%p10) target = $region8
    $region5: #{generator_forward.1} parent=1 // loop_body
      %s14 = ssub.s32 %s9, 1
      %s15 = ssub.s32 %s9, 2
      %s16 = sadd.s32 %s9, 1
      %s18 = sadd.s32 %s17, 1
      %p21 = scmp.eq.s32.totalorder %s9, 3
      %p22 = scmp.ne.s32.totalorder %s17, %s19
      %p23 = scmp.eq.s32.totalorder %s9, 0
      %p24 = por %p22, %p23
      %p25 = scmp.ne.s32.totalorder %s17, %s19
      %p26 = scmp.eq.s32.totalorder %s14, 3
      %p27 = por %p25, %p26
      %p28 = scmp.ne.s32.totalorder %s19, %s20
      %p29 = scmp.eq.s32.totalorder %s14, 0
      %p30 = por %p28, %p29
      %p31 = scmp.ne.s32.totalorder %s19, %s20
      %p32 = scmp.eq.s32.totalorder %s15, 3
      %p33 = por %p31, %p32
      %p35 = scmp.ne.s32.totalorder %s20, %s34
      %p36 = scmp.eq.s32.totalorder %s15, 0
      %p37 = por %p35, %p36
      %s38 = ssub.s32 %s9, %s16
      %p39 = scmp.eq.s32.totalorder %s38, 0
      %s41 = sadd.s32 %s40, 1
      %s42 = scalar_select %p39, %s40, %s41
      %p45 = pneg %p39
      %p46 = scmp.eq.s32.totalorder %s9, 3
      %p47 = por %p45, %p46
      %p48 = scmp.ne.s32.totalorder %s40, %s43
      %p49 = scmp.eq.s32.totalorder %s9, 0
      %p50 = por %p48, %p49
      %p51 = scmp.ne.s32.totalorder %s40, %s43
      %p52 = scmp.eq.s32.totalorder %s14, 3
      %p53 = por %p51, %p52
      %p54 = scmp.ne.s32.totalorder %s43, %s44
      %p55 = scmp.eq.s32.totalorder %s14, 0
      %p56 = por %p54, %p55
      %p57 = scmp.ne.s32.totalorder %s43, %s44
      %p58 = scmp.eq.s32.totalorder %s15, 3
      %p59 = por %p57, %p58
      %p61 = scmp.ne.s32.totalorder %s44, %s60
      %p62 = scmp.eq.s32.totalorder %s15, 0
      %p63 = por %p61, %p62
      %s64 = ssub.s32 %s9, %s16
      %p65 = scmp.eq.s32.totalorder %s64, 0
      %s67 = sadd.s32 %s66, 1
      %s68 = scalar_select %p65, %s66, %s67
      %p71 = pneg %p65
      %p72 = scmp.eq.s32.totalorder %s9, 3
      %p73 = por %p71, %p72
      %p74 = scmp.ne.s32.totalorder %s66, %s69
      %p75 = scmp.eq.s32.totalorder %s9, 0
      %p76 = por %p74, %p75
      %p77 = scmp.ne.s32.totalorder %s66, %s69
      %p78 = scmp.eq.s32.totalorder %s14, 3
      %p79 = por %p77, %p78
      %p80 = scmp.ne.s32.totalorder %s69, %s70
      %p81 = scmp.eq.s32.totalorder %s14, 0
      %p82 = por %p80, %p81
      %p83 = scmp.ne.s32.totalorder %s69, %s70
      %p84 = scmp.eq.s32.totalorder %s15, 3
      %p85 = por %p83, %p84
      %p87 = scmp.ne.s32.totalorder %s70, %s86
      %p88 = scmp.eq.s32.totalorder %s15, 0
      %p89 = por %p87, %p88
      %p90 = scmp.le.s32.totalorder 1, %s9
      %p91 = scmp.lt.s32.totalorder %s9, 5
      %p92 = pnand %p90, %p91
      %p93 = pneg %p92
      // Predicated region
      $region9: #{generator_forward.1} parent=5 // pred_check
        _
      $region10: #{generator_forward.1} parent=5 // pred_check_branch
        %95 = sbr.rel (%p92) target = $region12
      $region11: #{generator_forward.1} parent=5 // pred_region
        %s96 = ssub.s32 %s9, 1
        // Predicated region
        $region13: #{generator_forward.1} parent=11 // pred_check
          %p97 = pneg %p30
        $region14: #{generator_forward.1} parent=11 // pred_check_branch
          %99 = sbr.rel (%p97) target = $region16
        $region15: #{generator_forward.1} parent=11 // pred_region
          %s101 = ssub.s32 112, 112
          %102 = vsyncadd [#allocation5], %s101
          %s104 = sshll.u32 %s0, 4
          %s105 = int_to_ptr.vmem [resolvable:$true] %s104
          %107 = dma.vmem_to_smem %s105, 112, [#allocation4], [#allocation5]
        $region16: #{generator_forward.1} parent=11 // pred_fallthru
          _
      $region12: #{generator_forward.1} parent=5 // pred_fallthru
        _
      %p108 = scmp.lt.s32.totalorder %s9, 4
      // Predicated region
      $region17: #{generator_forward.1} parent=5 // pred_check
        %p109 = pneg %p108
      $region18: #{generator_forward.1} parent=5 // pred_check_branch
        %111 = sbr.rel (%p109) target = $region20
      $region19: #{generator_forward.1} parent=5 // pred_region
        // Predicated region
        $region21: #{generator_forward.1} parent=19 // pred_check
          %p112 = pneg %p50
        $region22: #{generator_forward.1} parent=19 // pred_check_branch
          %114 = sbr.rel (%p112) target = $region24
        $region23: #{generator_forward.1} parent=19 // pred_region
          %p115 = scmp.lt.s32.totalorder %s9, 3
          %s116 = scalar_select %p115, %s9, 3
          %s117 = smul.addr %s116, 8
          %s118 = scalar_lea.vmem %s1, %s117
        $region24: #{generator_forward.1} parent=19 // pred_fallthru
          _
      $region20: #{generator_forward.1} parent=5 // pred_fallthru
        _
      %p119 = scmp.le.s32.totalorder 1, %s9
      %p120 = scmp.lt.s32.totalorder %s9, 5
      %p121 = pnand %p119, %p120
      %p122 = pneg %p121
      // Predicated region
      $region25: #{generator_forward.1} parent=5 // pred_check
        _
      $region26: #{generator_forward.1} parent=5 // pred_check_branch
        %124 = sbr.rel (%p121) target = $region28
      $region27: #{generator_forward.1} parent=5 // pred_region
        %s125 = ssub.s32 %s9, 1
        // Predicated region
        $region29: #{generator_forward.1} parent=27 // pred_check
          %p126 = pneg %p30
        $region30: #{generator_forward.1} parent=27 // pred_check_branch
          %128 = sbr.rel (%p126) target = $region32
        $region31: #{generator_forward.1} parent=27 // pred_region
          %129 = dma.done [#allocation5], 112
        $region32: #{generator_forward.1} parent=27 // pred_fallthru
          _
        %130 = sfence
        %p131 = pneg %p30
        %p132 = pneg %p27
        %p133 = scmp.lt.s32.totalorder %s14, 3
        %s134 = scalar_select %p133, %s14, 3
        %s135 = smul.addr %s134, 8
        %s136 = scalar_lea.vmem %s1, %s135
        %p137 = pneg %p56
        %p138 = pneg %p53
        %p139 = pneg %p82
        %p140 = pneg %p79
        %p141 = scmp.lt.s32.totalorder %s14, 3
        %s142 = scalar_select %p141, %s14, 3
        %s143 = scalar_lea.vmem %s2, %s142
        %p144 = scmp.lt.s32.totalorder %s14, 3
        %s145 = scalar_select %p144, %s14, 3
        %s146 = smul.addr %s145, 8
        %s147 = scalar_lea.vmem %s1, %s146
        %p148 = scmp.lt.s32.totalorder %s14, 3
        %s149 = scalar_select %p148, %s14, 3
        %s150 = scalar_lea.vmem %s2, %s149
        %v151 = vld [vmem:[%s147] sm:$0x1]
        %v152 = vmul.f32 %v151, 0.5
        %v153 = vld [vmem:[%s147 + $0x1] sm:$0x1]
        %v154 = vmul.f32 %v153, 0.5
        %v155 = vand.u32 2147483647, %v152
        %vm156 = vcmp.le.f32.partialorder %v155, 0.7853982
        %vm157 = vcmp.lt.s32.totalorder %v152, 0
        %v158 = vand.u32 %v152, 2139095040
        %v159 = vshrl.u32 %v158, 23
        %v160 = vsub.s32 %v159, 127
        %v161 = vand.u32 2147483647, %v152
        %v162 = vand.u32 %v161, 8388607
        %v163 = vor.u32 %v162, 8388608
        %v164 = vsub.s32 0, %v163
        %v165 = vadd.s32 %v160, 1
        %vm166 = vcmp.gt.s32.totalorder %v165, 0
        %v167 = vsel %vm166, %v165, 0
        %v168 = vshrl.u32 %v167, 5
        %v169 = vand.u32 %v167, 31
        %v170 = vsub.s32 32, %v169
        %v171 = vshrl.u32 683565275, %v170
        %v172 = vshll.u32 683565275, %v169
        %v173 = vshrl.u32 2475754826, %v170
        %v174 = vor.u32 %v172, %v173
        %v175 = vshll.u32 2475754826, %v169
        %v176 = vshrl.u32 2131351028, %v170
        %v177 = vor.u32 %v175, %v176
        %v178 = vshll.u32 2131351028, %v169
        %v179 = vshrl.u32 2102212464, %v170
        %v180 = vor.u32 %v178, %v179
        %v181 = vshll.u32 2102212464, %v169
        %v182 = vshrl.u32 920167782, %v170
        %v183 = vor.u32 %v181, %v182
        %v184 = vshll.u32 920167782, %v169
        %v185 = vshrl.u32 1326507024, %v170
        %v186 = vor.u32 %v184, %v185
        %vm187 = vcmp.lt.s32.totalorder %v168, 1
        %vm188 = vcmp.lt.s32.totalorder %v168, 2
        %vm189 = vcmp.lt.s32.totalorder %v168, 3
        %vm190 = vcmp.lt.s32.totalorder %v168, 4
        %v191 = vsel %vm187, %v171, %v174
        %v192 = vsel %vm190, %v180, 2102212464
        %v193 = vsel %vm189, %v177, %v192
        %v194 = vsel %vm188, %v191, %v193
        %v195 = vsel %vm187, %v174, %v177
        %v196 = vsel %vm190, %v183, 920167782
        %v197 = vsel %vm189, %v180, %v196
        %v198 = vsel %vm188, %v195, %v197
        %v199 = vsel %vm187, %v177, %v180
        %v200 = vsel %vm190, %v186, 1326507024
        %v201 = vsel %vm189, %v183, %v200
        %v202 = vsel %vm188, %v199, %v201
        %v203 = vshll.u32 %v163, 8
        %v204 = vmul.u32.u64.compose %v203, %v202
        %v205 = vextract.low.u32 %v204
        %v206 = vextract.high.u32 %v204
        %v207 = vmul.u32.u64.compose %v203, %v198
        %v208 = vextract.low.u32 %v207
        %v209 = vextract.high.u32 %v207
        %v210 = vmul.u32 %v203, %v194
        %v211 = vadd.s32 %v206, %v208
        %vm212 = vc.u32 %v206, %v208
        %v213 = vadd.s32 %v209, 1
        %v214 = vsel %vm212, %v213, %v209
        %v215 = vadd.s32 %v210, %v214
        %v216 = vadd.s32 %v215, 536870912
        %v217 = vshrl.u32 %v216, 30
        %v218 = vshll.u32 %v217, 30
        %v219 = vsub.s32 %v215, %v218
        %vm220 = vcmp.lt.s32.totalorder %v219, 0
        %v221 = vsub.s32 0, %v219
        %v222 = vsel %vm220, %v221, %v219
        %v223 = vclz %v222
        %v224 = vsub.s32 %v223, 2
        %vm225 = vcmp.gt.s32.totalorder 0, %v224
        %v226 = vsel %vm225, 0, %v224
        %v227 = vsub.s32 32, %v226
        %v228 = vshll.u32 %v219, %v226
        %v229 = vshrl.u32 %v211, %v227
        %v230 = vor.u32 %v228, %v229
        %v231 = vsub.s32 4294967266, %v226
        %v232 = vadd.s32 %v231, 127
        %v233 = vshll.u32 %v232, 23
        %v234 = vor.u32 4788187, %v233
        %v235 = vand.u32 2147483647, %v234
        %v237 = vcvt.s32.f32 %v230
        %v238 = vmul.f32 %v237, %v235
        %v239 = vxor.u32 %v238, 2147483648
        %v240 = vsel %vm157, %v239, %v238
        %v241 = vsub.s32 4, %v217
        %v242 = vsel %vm157, %v241, %v217
        %v243 = vsel %vm156, %v152, %v240
        %v244 = vsel %vm156, 0, %v242
        %v245 = vcosq.f32.pop %v243
        %v246 = vsinq.f32.pop %v243
        %vm247 = vweird.f32 %v152
        %v248 = vand.u32 %v244, 3
        %vm249 = vcmp.lt.s32.totalorder %v248, 2
        %vm250 = vcmp.eq.s32.totalorder %v248, 0
        %v251 = vxor.u32 %v246, 2147483648
        %v252 = vsel %vm250, %v245, %v251
        %vm253 = vcmp.eq.s32.totalorder %v248, 2
        %v254 = vxor.u32 %v245, 2147483648
        %v255 = vsel %vm253, %v254, %v246
        %v256 = vsel %vm249, %v252, %v255
        %v257 = vsel %vm247, nan, %v256
        %v258 = vand.u32 2147483647, %v152
        %vm259 = vcmp.le.f32.partialorder %v258, 0.7853982
        %vm260 = vcmp.lt.s32.totalorder %v152, 0
        %v261 = vand.u32 %v152, 2139095040
        %v262 = vshrl.u32 %v261, 23
        %v263 = vsub.s32 %v262, 127
        %v264 = vand.u32 2147483647, %v152
        %v265 = vand.u32 %v264, 8388607
        %v266 = vor.u32 %v265, 8388608
        %v267 = vsub.s32 0, %v266
        %v268 = vadd.s32 %v263, 1
        %vm269 = vcmp.gt.s32.totalorder %v268, 0
        %v270 = vsel %vm269, %v268, 0
        %v271 = vshrl.u32 %v270, 5
        %v272 = vand.u32 %v270, 31
        %v273 = vsub.s32 32, %v272
        %v274 = vshrl.u32 683565275, %v273
        %v275 = vshll.u32 683565275, %v272
        %v276 = vshrl.u32 2475754826, %v273
        %v277 = vor.u32 %v275, %v276
        %v278 = vshll.u32 2475754826, %v272
        %v279 = vshrl.u32 2131351028, %v273
        %v280 = vor.u32 %v278, %v279
        %v281 = vshll.u32 2131351028, %v272
        %v282 = vshrl.u32 2102212464, %v273
        %v283 = vor.u32 %v281, %v282
        %v284 = vshll.u32 2102212464, %v272
        %v285 = vshrl.u32 920167782, %v273
        %v286 = vor.u32 %v284, %v285
        %v287 = vshll.u32 920167782, %v272
        %v288 = vshrl.u32 1326507024, %v273
        %v289 = vor.u32 %v287, %v288
        %vm290 = vcmp.lt.s32.totalorder %v271, 1
        %vm291 = vcmp.lt.s32.totalorder %v271, 2
        %vm292 = vcmp.lt.s32.totalorder %v271, 3
        %vm293 = vcmp.lt.s32.totalorder %v271, 4
        %v294 = vsel %vm290, %v274, %v277
        %v295 = vsel %vm293, %v283, 2102212464
        %v296 = vsel %vm292, %v280, %v295
        %v297 = vsel %vm291, %v294, %v296
        %v298 = vsel %vm290, %v277, %v280
        %v299 = vsel %vm293, %v286, 920167782
        %v300 = vsel %vm292, %v283, %v299
        %v301 = vsel %vm291, %v298, %v300
        %v302 = vsel %vm290, %v280, %v283
        %v303 = vsel %vm293, %v289, 1326507024
        %v304 = vsel %vm292, %v286, %v303
        %v305 = vsel %vm291, %v302, %v304
        %v306 = vshll.u32 %v266, 8
        %v307 = vmul.u32.u64.compose %v306, %v305
        %v308 = vextract.low.u32 %v307
        %v309 = vextract.high.u32 %v307
        %v310 = vmul.u32.u64.compose %v306, %v301
        %v311 = vextract.low.u32 %v310
        %v312 = vextract.high.u32 %v310
        %v313 = vmul.u32 %v306, %v297
        %v314 = vadd.s32 %v309, %v311
        %vm315 = vc.u32 %v309, %v311
        %v316 = vadd.s32 %v312, 1
        %v317 = vsel %vm315, %v316, %v312
        %v318 = vadd.s32 %v313, %v317
        %v319 = vadd.s32 %v318, 536870912
        %v320 = vshrl.u32 %v319, 30
        %v321 = vshll.u32 %v320, 30
        %v322 = vsub.s32 %v318, %v321
        %vm323 = vcmp.lt.s32.totalorder %v322, 0
        %v324 = vsub.s32 0, %v322
        %v325 = vsel %vm323, %v324, %v322
        %v326 = vclz %v325
        %v327 = vsub.s32 %v326, 2
        %vm328 = vcmp.gt.s32.totalorder 0, %v327
        %v329 = vsel %vm328, 0, %v327
        %v330 = vsub.s32 32, %v329
        %v331 = vshll.u32 %v322, %v329
        %v332 = vshrl.u32 %v314, %v330
        %v333 = vor.u32 %v331, %v332
        %v334 = vsub.s32 4294967266, %v329
        %v335 = vadd.s32 %v334, 127
        %v336 = vshll.u32 %v335, 23
        %v337 = vor.u32 4788187, %v336
        %v338 = vand.u32 2147483647, %v337
        %v340 = vcvt.s32.f32 %v333
        %v341 = vmul.f32 %v340, %v338
        %v342 = vxor.u32 %v341, 2147483648
        %v343 = vsel %vm260, %v342, %v341
        %v344 = vsub.s32 4, %v320
        %v345 = vsel %vm260, %v344, %v320
        %v346 = vsel %vm259, %v152, %v343
        %v347 = vsel %vm259, 0, %v345
        %v348 = vcosq.f32.pop %v346
        %v349 = vsinq.f32.pop %v346
        %vm350 = vweird.f32 %v152
        %v351 = vadd.s32 %v347, 3
        %v352 = vand.u32 %v351, 3
        %vm353 = vcmp.lt.s32.totalorder %v352, 2
        %vm354 = vcmp.eq.s32.totalorder %v352, 0
        %v355 = vxor.u32 %v349, 2147483648
        %v356 = vsel %vm354, %v348, %v355
        %vm357 = vcmp.eq.s32.totalorder %v352, 2
        %v358 = vxor.u32 %v348, 2147483648
        %v359 = vsel %vm357, %v358, %v349
        %v360 = vsel %vm353, %v356, %v359
        %v361 = vsel %vm350, nan, %v360
        %v362 = vand.u32 2147483647, %v154
        %vm363 = vcmp.le.f32.partialorder %v362, 0.7853982
        %vm364 = vcmp.lt.s32.totalorder %v154, 0
        %v365 = vand.u32 %v154, 2139095040
        %v366 = vshrl.u32 %v365, 23
        %v367 = vsub.s32 %v366, 127
        %v368 = vand.u32 2147483647, %v154
        %v369 = vand.u32 %v368, 8388607
        %v370 = vor.u32 %v369, 8388608
        %v371 = vsub.s32 0, %v370
        %v372 = vadd.s32 %v367, 1
        %vm373 = vcmp.gt.s32.totalorder %v372, 0
        %v374 = vsel %vm373, %v372, 0
        %v375 = vshrl.u32 %v374, 5
        %v376 = vand.u32 %v374, 31
        %v377 = vsub.s32 32, %v376
        %v378 = vshrl.u32 683565275, %v377
        %v379 = vshll.u32 683565275, %v376
        %v380 = vshrl.u32 2475754826, %v377
        %v381 = vor.u32 %v379, %v380
        %v382 = vshll.u32 2475754826, %v376
        %v383 = vshrl.u32 2131351028, %v377
        %v384 = vor.u32 %v382, %v383
        %v385 = vshll.u32 2131351028, %v376
        %v386 = vshrl.u32 2102212464, %v377
        %v387 = vor.u32 %v385, %v386
        %v388 = vshll.u32 2102212464, %v376
        %v389 = vshrl.u32 920167782, %v377
        %v390 = vor.u32 %v388, %v389
        %v391 = vshll.u32 920167782, %v376
        %v392 = vshrl.u32 1326507024, %v377
        %v393 = vor.u32 %v391, %v392
        %vm394 = vcmp.lt.s32.totalorder %v375, 1
        %vm395 = vcmp.lt.s32.totalorder %v375, 2
        %vm396 = vcmp.lt.s32.totalorder %v375, 3
        %vm397 = vcmp.lt.s32.totalorder %v375, 4
        %v398 = vsel %vm394, %v378, %v381
        %v399 = vsel %vm397, %v387, 2102212464
        %v400 = vsel %vm396, %v384, %v399
        %v401 = vsel %vm395, %v398, %v400
        %v402 = vsel %vm394, %v381, %v384
        %v403 = vsel %vm397, %v390, 920167782
        %v404 = vsel %vm396, %v387, %v403
        %v405 = vsel %vm395, %v402, %v404
        %v406 = vsel %vm394, %v384, %v387
        %v407 = vsel %vm397, %v393, 1326507024
        %v408 = vsel %vm396, %v390, %v407
        %v409 = vsel %vm395, %v406, %v408
        %v410 = vshll.u32 %v370, 8
        %v411 = vmul.u32.u64.compose %v410, %v409
        %v412 = vextract.low.u32 %v411
        %v413 = vextract.high.u32 %v411
        %v414 = vmul.u32.u64.compose %v410, %v405
        %v415 = vextract.low.u32 %v414
        %v416 = vextract.high.u32 %v414
        %v417 = vmul.u32 %v410, %v401
        %v418 = vadd.s32 %v413, %v415
        %vm419 = vc.u32 %v413, %v415
        %v420 = vadd.s32 %v416, 1
        %v421 = vsel %vm419, %v420, %v416
        %v422 = vadd.s32 %v417, %v421
        %v423 = vadd.s32 %v422, 536870912
        %v424 = vshrl.u32 %v423, 30
        %v425 = vshll.u32 %v424, 30
        %v426 = vsub.s32 %v422, %v425
        %vm427 = vcmp.lt.s32.totalorder %v426, 0
        %v428 = vsub.s32 0, %v426
        %v429 = vsel %vm427, %v428, %v426
        %v430 = vclz %v429
        %v431 = vsub.s32 %v430, 2
        %vm432 = vcmp.gt.s32.totalorder 0, %v431
        %v433 = vsel %vm432, 0, %v431
        %v434 = vsub.s32 32, %v433
        %v435 = vshll.u32 %v426, %v433
        %v436 = vshrl.u32 %v418, %v434
        %v437 = vor.u32 %v435, %v436
        %v438 = vsub.s32 4294967266, %v433
        %v439 = vadd.s32 %v438, 127
        %v440 = vshll.u32 %v439, 23
        %v441 = vor.u32 4788187, %v440
        %v442 = vand.u32 2147483647, %v441
        %v444 = vcvt.s32.f32 %v437
        %v445 = vmul.f32 %v444, %v442
        %v446 = vxor.u32 %v445, 2147483648
        %v447 = vsel %vm364, %v446, %v445
        %v448 = vsub.s32 4, %v424
        %v449 = vsel %vm364, %v448, %v424
        %v450 = vsel %vm363, %v154, %v447
        %v451 = vsel %vm363, 0, %v449
        %v452 = vcosq.f32.pop %v450
        %v453 = vsinq.f32.pop %v450
        %vm454 = vweird.f32 %v154
        %v455 = vand.u32 %v451, 3
        %vm456 = vcmp.lt.s32.totalorder %v455, 2
        %vm457 = vcmp.eq.s32.totalorder %v455, 0
        %v458 = vxor.u32 %v453, 2147483648
        %v459 = vsel %vm457, %v452, %v458
        %vm460 = vcmp.eq.s32.totalorder %v455, 2
        %v461 = vxor.u32 %v452, 2147483648
        %v462 = vsel %vm460, %v461, %v453
        %v463 = vsel %vm456, %v459, %v462
        %v464 = vsel %vm454, nan, %v463
        %v465 = vand.u32 2147483647, %v154
        %vm466 = vcmp.le.f32.partialorder %v465, 0.7853982
        %vm467 = vcmp.lt.s32.totalorder %v154, 0
        %v468 = vand.u32 %v154, 2139095040
        %v469 = vshrl.u32 %v468, 23
        %v470 = vsub.s32 %v469, 127
        %v471 = vand.u32 2147483647, %v154
        %v472 = vand.u32 %v471, 8388607
        %v473 = vor.u32 %v472, 8388608
        %v474 = vsub.s32 0, %v473
        %v475 = vadd.s32 %v470, 1
        %vm476 = vcmp.gt.s32.totalorder %v475, 0
        %v477 = vsel %vm476, %v475, 0
        %v478 = vshrl.u32 %v477, 5
        %v479 = vand.u32 %v477, 31
        %v480 = vsub.s32 32, %v479
        %v481 = vshrl.u32 683565275, %v480
        %v482 = vshll.u32 683565275, %v479
        %v483 = vshrl.u32 2475754826, %v480
        %v484 = vor.u32 %v482, %v483
        %v485 = vshll.u32 2475754826, %v479
        %v486 = vshrl.u32 2131351028, %v480
        %v487 = vor.u32 %v485, %v486
        %v488 = vshll.u32 2131351028, %v479
        %v489 = vshrl.u32 2102212464, %v480
        %v490 = vor.u32 %v488, %v489
        %v491 = vshll.u32 2102212464, %v479
        %v492 = vshrl.u32 920167782, %v480
        %v493 = vor.u32 %v491, %v492
        %v494 = vshll.u32 920167782, %v479
        %v495 = vshrl.u32 1326507024, %v480
        %v496 = vor.u32 %v494, %v495
        %vm497 = vcmp.lt.s32.totalorder %v478, 1
        %vm498 = vcmp.lt.s32.totalorder %v478, 2
        %vm499 = vcmp.lt.s32.totalorder %v478, 3
        %vm500 = vcmp.lt.s32.totalorder %v478, 4
        %v501 = vsel %vm497, %v481, %v484
        %v502 = vsel %vm500, %v490, 2102212464
        %v503 = vsel %vm499, %v487, %v502
        %v504 = vsel %vm498, %v501, %v503
        %v505 = vsel %vm497, %v484, %v487
        %v506 = vsel %vm500, %v493, 920167782
        %v507 = vsel %vm499, %v490, %v506
        %v508 = vsel %vm498, %v505, %v507
        %v509 = vsel %vm497, %v487, %v490
        %v510 = vsel %vm500, %v496, 1326507024
        %v511 = vsel %vm499, %v493, %v510
        %v512 = vsel %vm498, %v509, %v511
        %v513 = vshll.u32 %v473, 8
        %v514 = vmul.u32.u64.compose %v513, %v512
        %v515 = vextract.low.u32 %v514
        %v516 = vextract.high.u32 %v514
        %v517 = vmul.u32.u64.compose %v513, %v508
        %v518 = vextract.low.u32 %v517
        %v519 = vextract.high.u32 %v517
        %v520 = vmul.u32 %v513, %v504
        %v521 = vadd.s32 %v516, %v518
        %vm522 = vc.u32 %v516, %v518
        %v523 = vadd.s32 %v519, 1
        %v524 = vsel %vm522, %v523, %v519
        %v525 = vadd.s32 %v520, %v524
        %v526 = vadd.s32 %v525, 536870912
        %v527 = vshrl.u32 %v526, 30
        %v528 = vshll.u32 %v527, 30
        %v529 = vsub.s32 %v525, %v528
        %vm530 = vcmp.lt.s32.totalorder %v529, 0
        %v531 = vsub.s32 0, %v529
        %v532 = vsel %vm530, %v531, %v529
        %v533 = vclz %v532
        %v534 = vsub.s32 %v533, 2
        %vm535 = vcmp.gt.s32.totalorder 0, %v534
        %v536 = vsel %vm535, 0, %v534
        %v537 = vsub.s32 32, %v536
        %v538 = vshll.u32 %v529, %v536
        %v539 = vshrl.u32 %v521, %v537
        %v540 = vor.u32 %v538, %v539
        %v541 = vsub.s32 4294967266, %v536
        %v542 = vadd.s32 %v541, 127
        %v543 = vshll.u32 %v542, 23
        %v544 = vor.u32 4788187, %v543
        %v545 = vand.u32 2147483647, %v544
        %v547 = vcvt.s32.f32 %v540
        %v548 = vmul.f32 %v547, %v545
        %v549 = vxor.u32 %v548, 2147483648
        %v550 = vsel %vm467, %v549, %v548
        %v551 = vsub.s32 4, %v527
        %v552 = vsel %vm467, %v551, %v527
        %v553 = vsel %vm466, %v154, %v550
        %v554 = vsel %vm466, 0, %v552
        %v555 = vcosq.f32.pop %v553
        %v556 = vsinq.f32.pop %v553
        %vm557 = vweird.f32 %v154
        %v558 = vadd.s32 %v554, 3
        %v559 = vand.u32 %v558, 3
        %vm560 = vcmp.lt.s32.totalorder %v559, 2
        %vm561 = vcmp.eq.s32.totalorder %v559, 0
        %v562 = vxor.u32 %v556, 2147483648
        %v563 = vsel %vm561, %v555, %v562
        %vm564 = vcmp.eq.s32.totalorder %v559, 2
        %v565 = vxor.u32 %v555, 2147483648
        %v566 = vsel %vm564, %v565, %v556
        %v567 = vsel %vm560, %v563, %v566
        %v568 = vsel %vm557, nan, %v567
        %v569 = vmul.f32 %v464, %v257
        %v570 = vlaneseq
        %v571 = vshrl.u32 %v570, 7
        %v572 = vsub.s32 0, %v571
        %v573 = vrot.slane %v569, %v572
        %v574 = vmul.f32 %v568, %v361
        %v575 = vlaneseq
        %v576 = vshrl.u32 %v575, 7
        %v577 = vsub.s32 0, %v576
        %v578 = vrot.slane %v574, %v577
        %v579 = vmul.f32 %v568, %v257
        %v580 = vlaneseq
        %v581 = vshrl.u32 %v580, 7
        %v582 = vsub.s32 0, %v581
        %v583 = vrot.slane %v579, %v582
        %v584 = vmul.f32 %v464, %v361
        %v585 = vsub.f32 0.0, %v584
        %v586 = vlaneseq
        %v587 = vshrl.u32 %v586, 7
        %v588 = vsub.s32 0, %v587
        %v589 = vrot.slane %v585, %v588
        %v590 = vld [vmem:[%s147 + $0x2] sm:$0x1]
        %v591 = vmul.f32 %v590, 0.5
        %v592 = vld [vmem:[%s147 + $0x3] sm:$0x1]
        %v593 = vmul.f32 %v592, 0.5
        %v594 = vld [vmem:[%s147 + $0x4] sm:$0x1]
        %v595 = vmul.f32 %v594, 0.5
        %v596 = vld [vmem:[%s147 + $0x5] sm:$0x1]
        %v597 = vmul.f32 %v596, 0.5
        %v598 = vld [vmem:[%s147 + $0x6] sm:$0x1]
        %v599 = vmul.f32 %v598, 0.5
        %v600 = vld [vmem:[%s147 + $0x7] sm:$0x1]
        %v601 = vmul.f32 %v600, 0.5
        %v602 = vsub.f32 0.0, %v591
        %v603 = vsub.f32 0.0, %v593
        %v604 = vadd.f32 %v602, %v603
        %v605 = vsub.f32 0.0, %v595
        %v606 = vadd.f32 %v604, %v605
        %v607 = vadd.f32 %v604, %v595
        %v608 = vadd.f32 %v602, %v593
        %v609 = vadd.f32 %v608, %v605
        %v610 = vadd.f32 %v608, %v595
        %v611 = vadd.f32 %v591, %v603
        %v612 = vadd.f32 %v611, %v605
        %v613 = vadd.f32 %v611, %v595
        %v614 = vadd.f32 %v591, %v593
        %v615 = vadd.f32 %v614, %v605
        %v616 = vadd.f32 %v614, %v595
        %v617 = vlaneseq
        %v618 = vshrl.u32 %v617, 7
        %v619 = vshra.s32 %v618, 2
        %v620 = vand.u32 %v619, 1
        %v621 = vmul.u32 %v620, 2
        %v622 = vsub.s32 %v621, 1
        %v623 = vcvt.s32.f32 %v622
        %v624 = vlaneseq
        %v625 = vshrl.u32 %v624, 7
        %v626 = vsub.s32 0, %v625
        %v627 = vrot.slane %v597, %v626
        %v628 = vmul.f32 %v623, %v627
        %v629 = vadd.f32 %v628, 0.0
        %v630 = vshra.s32 %v618, 1
        %v631 = vand.u32 %v630, 1
        %v632 = vmul.u32 %v631, 2
        %v633 = vsub.s32 %v632, 1
        %v634 = vcvt.s32.f32 %v633
        %v635 = vlaneseq
        %v636 = vshrl.u32 %v635, 7
        %v637 = vsub.s32 0, %v636
        %v638 = vrot.slane %v599, %v637
        %v639 = vmul.f32 %v634, %v638
        %v640 = vadd.f32 %v629, %v639
        %v641 = vand.u32 %v618, 1
        %v642 = vmul.u32 %v641, 2
        %v643 = vsub.s32 %v642, 1
        %v644 = vcvt.s32.f32 %v643
        %v645 = vlaneseq
        %v646 = vshrl.u32 %v645, 7
        %v647 = vsub.s32 0, %v646
        %v648 = vrot.slane %v601, %v647
        %v649 = vmul.f32 %v644, %v648
        %v650 = vadd.f32 %v640, %v649
        %v651 = vlaneseq
        %v652 = vshrl.u32 %v651, 7
        %v653 = vsub.s32 0, %v652
        %v654 = vrot.slane %v606, %v653
        %v655 = vlaneseq
        %v656 = vshrl.u32 %v655, 7
        %v657 = vsub.s32 0, %v656
        %v658 = vrot.slane %v607, %v657
        %v659 = vlaneseq
        %v660 = vshrl.u32 %v659, 7
        %v661 = vsub.s32 0, %v660
        %v662 = vrot.slane %v609, %v661
        %v663 = vlaneseq
        %v664 = vshrl.u32 %v663, 7
        %v665 = vsub.s32 0, %v664
        %v666 = vrot.slane %v610, %v665
        %v667 = vlaneseq
        %v668 = vshrl.u32 %v667, 7
        %v669 = vsub.s32 0, %v668
        %v670 = vrot.slane %v612, %v669
        %v671 = vlaneseq
        %v672 = vshrl.u32 %v671, 7
        %v673 = vsub.s32 0, %v672
        %v674 = vrot.slane %v613, %v673
        %v675 = vlaneseq
        %v676 = vshrl.u32 %v675, 7
        %v677 = vsub.s32 0, %v676
        %v678 = vrot.slane %v615, %v677
        %v679 = vlaneseq
        %v680 = vshrl.u32 %v679, 7
        %v681 = vsub.s32 0, %v680
        %v682 = vrot.slane %v616, %v681
        %v683 = vadd.f32 %v654, %v650
        %v684 = vadd.f32 %v658, %v650
        %v685 = vadd.f32 %v662, %v650
        %v686 = vadd.f32 %v666, %v650
        %v687 = vadd.f32 %v670, %v650
        %v688 = vadd.f32 %v674, %v650
        %v689 = vadd.f32 %v678, %v650
        %v690 = vadd.f32 %v682, %v650
        %v691 = vand.u32 2147483647, %v683
        %vm692 = vcmp.le.f32.partialorder %v691, 0.7853982
        %vm693 = vcmp.lt.s32.totalorder %v683, 0
        %v694 = vand.u32 %v683, 2139095040
        %v695 = vshrl.u32 %v694, 23
        %v696 = vsub.s32 %v695, 127
        %v697 = vand.u32 2147483647, %v683
        %v698 = vand.u32 %v697, 8388607
        %v699 = vor.u32 %v698, 8388608
        %v700 = vsub.s32 0, %v699
        %v701 = vadd.s32 %v696, 1
        %vm702 = vcmp.gt.s32.totalorder %v701, 0
        %v703 = vsel %vm702, %v701, 0
        %v704 = vshrl.u32 %v703, 5
        %v705 = vand.u32 %v703, 31
        %v706 = vsub.s32 32, %v705
        %v707 = vshrl.u32 683565275, %v706
        %v708 = vshll.u32 683565275, %v705
        %v709 = vshrl.u32 2475754826, %v706
        %v710 = vor.u32 %v708, %v709
        %v711 = vshll.u32 2475754826, %v705
        %v712 = vshrl.u32 2131351028, %v706
        %v713 = vor.u32 %v711, %v712
        %v714 = vshll.u32 2131351028, %v705
        %v715 = vshrl.u32 2102212464, %v706
        %v716 = vor.u32 %v714, %v715
        %v717 = vshll.u32 2102212464, %v705
        %v718 = vshrl.u32 920167782, %v706
        %v719 = vor.u32 %v717, %v718
        %v720 = vshll.u32 920167782, %v705
        %v721 = vshrl.u32 1326507024, %v706
        %v722 = vor.u32 %v720, %v721
        %vm723 = vcmp.lt.s32.totalorder %v704, 1
        %vm724 = vcmp.lt.s32.totalorder %v704, 2
        %vm725 = vcmp.lt.s32.totalorder %v704, 3
        %vm726 = vcmp.lt.s32.totalorder %v704, 4
        %v727 = vsel %vm723, %v707, %v710
        %v728 = vsel %vm726, %v716, 2102212464
        %v729 = vsel %vm725, %v713, %v728
        %v730 = vsel %vm724, %v727, %v729
        %v731 = vsel %vm723, %v710, %v713
        %v732 = vsel %vm726, %v719, 920167782
        %v733 = vsel %vm725, %v716, %v732
        %v734 = vsel %vm724, %v731, %v733
        %v735 = vsel %vm723, %v713, %v716
        %v736 = vsel %vm726, %v722, 1326507024
        %v737 = vsel %vm725, %v719, %v736
        %v738 = vsel %vm724, %v735, %v737
        %v739 = vshll.u32 %v699, 8
        %v740 = vmul.u32.u64.compose %v739, %v738
        %v741 = vextract.low.u32 %v740
        %v742 = vextract.high.u32 %v740
        %v743 = vmul.u32.u64.compose %v739, %v734
        %v744 = vextract.low.u32 %v743
        %v745 = vextract.high.u32 %v743
        %v746 = vmul.u32 %v739, %v730
        %v747 = vadd.s32 %v742, %v744
        %vm748 = vc.u32 %v742, %v744
        %v749 = vadd.s32 %v745, 1
        %v750 = vsel %vm748, %v749, %v745
        %v751 = vadd.s32 %v746, %v750
        %v752 = vadd.s32 %v751, 536870912
        %v753 = vshrl.u32 %v752, 30
        %v754 = vshll.u32 %v753, 30
        %v755 = vsub.s32 %v751, %v754
        %vm756 = vcmp.lt.s32.totalorder %v755, 0
        %v757 = vsub.s32 0, %v755
        %v758 = vsel %vm756, %v757, %v755
        %v759 = vclz %v758
        %v760 = vsub.s32 %v759, 2
        %vm761 = vcmp.gt.s32.totalorder 0, %v760
        %v762 = vsel %vm761, 0, %v760
        %v763 = vsub.s32 32, %v762
        %v764 = vshll.u32 %v755, %v762
        %v765 = vshrl.u32 %v747, %v763
        %v766 = vor.u32 %v764, %v765
        %v767 = vsub.s32 4294967266, %v762
        %v768 = vadd.s32 %v767, 127
        %v769 = vshll.u32 %v768, 23
        %v770 = vor.u32 4788187, %v769
        %v771 = vand.u32 2147483647, %v770
        %v773 = vcvt.s32.f32 %v766
        %v774 = vmul.f32 %v773, %v771
        %v775 = vxor.u32 %v774, 2147483648
        %v776 = vsel %vm693, %v775, %v774
        %v777 = vsub.s32 4, %v753
        %v778 = vsel %vm693, %v777, %v753
        %v779 = vsel %vm692, %v683, %v776
        %v780 = vsel %vm692, 0, %v778
        %v781 = vcosq.f32.pop %v779
        %v782 = vsinq.f32.pop %v779
        %vm783 = vweird.f32 %v683
        %v784 = vand.u32 %v780, 3
        %vm785 = vcmp.lt.s32.totalorder %v784, 2
        %vm786 = vcmp.eq.s32.totalorder %v784, 0
        %v787 = vxor.u32 %v782, 2147483648
        %v788 = vsel %vm786, %v781, %v787
        %vm789 = vcmp.eq.s32.totalorder %v784, 2
        %v790 = vxor.u32 %v781, 2147483648
        %v791 = vsel %vm789, %v790, %v782
        %v792 = vsel %vm785, %v788, %v791
        %v793 = vsel %vm783, nan, %v792
        %v794 = vand.u32 2147483647, %v684
        %vm795 = vcmp.le.f32.partialorder %v794, 0.7853982
        %vm796 = vcmp.lt.s32.totalorder %v684, 0
        %v797 = vand.u32 %v684, 2139095040
        %v798 = vshrl.u32 %v797, 23
        %v799 = vsub.s32 %v798, 127
        %v800 = vand.u32 2147483647, %v684
        %v801 = vand.u32 %v800, 8388607
        %v802 = vor.u32 %v801, 8388608
        %v803 = vsub.s32 0, %v802
        %v804 = vadd.s32 %v799, 1
        %vm805 = vcmp.gt.s32.totalorder %v804, 0
        %v806 = vsel %vm805, %v804, 0
        %v807 = vshrl.u32 %v806, 5
        %v808 = vand.u32 %v806, 31
        %v809 = vsub.s32 32, %v808
        %v810 = vshrl.u32 683565275, %v809
        %v811 = vshll.u32 683565275, %v808
        %v812 = vshrl.u32 2475754826, %v809
        %v813 = vor.u32 %v811, %v812
        %v814 = vshll.u32 2475754826, %v808
        %v815 = vshrl.u32 2131351028, %v809
        %v816 = vor.u32 %v814, %v815
        %v817 = vshll.u32 2131351028, %v808
        %v818 = vshrl.u32 2102212464, %v809
        %v819 = vor.u32 %v817, %v818
        %v820 = vshll.u32 2102212464, %v808
        %v821 = vshrl.u32 920167782, %v809
        %v822 = vor.u32 %v820, %v821
        %v823 = vshll.u32 920167782, %v808
        %v824 = vshrl.u32 1326507024, %v809
        %v825 = vor.u32 %v823, %v824
        %vm826 = vcmp.lt.s32.totalorder %v807, 1
        %vm827 = vcmp.lt.s32.totalorder %v807, 2
        %vm828 = vcmp.lt.s32.totalorder %v807, 3
        %vm829 = vcmp.lt.s32.totalorder %v807, 4
        %v830 = vsel %vm826, %v810, %v813
        %v831 = vsel %vm829, %v819, 2102212464
        %v832 = vsel %vm828, %v816, %v831
        %v833 = vsel %vm827, %v830, %v832
        %v834 = vsel %vm826, %v813, %v816
        %v835 = vsel %vm829, %v822, 920167782
        %v836 = vsel %vm828, %v819, %v835
        %v837 = vsel %vm827, %v834, %v836
        %v838 = vsel %vm826, %v816, %v819
        %v839 = vsel %vm829, %v825, 1326507024
        %v840 = vsel %vm828, %v822, %v839
        %v841 = vsel %vm827, %v838, %v840
        %v842 = vshll.u32 %v802, 8
        %v843 = vmul.u32.u64.compose %v842, %v841
        %v844 = vextract.low.u32 %v843
        %v845 = vextract.high.u32 %v843
        %v846 = vmul.u32.u64.compose %v842, %v837
        %v847 = vextract.low.u32 %v846
        %v848 = vextract.high.u32 %v846
        %v849 = vmul.u32 %v842, %v833
        %v850 = vadd.s32 %v845, %v847
        %vm851 = vc.u32 %v845, %v847
        %v852 = vadd.s32 %v848, 1
        %v853 = vsel %vm851, %v852, %v848
        %v854 = vadd.s32 %v849, %v853
        %v855 = vadd.s32 %v854, 536870912
        %v856 = vshrl.u32 %v855, 30
        %v857 = vshll.u32 %v856, 30
        %v858 = vsub.s32 %v854, %v857
        %vm859 = vcmp.lt.s32.totalorder %v858, 0
        %v860 = vsub.s32 0, %v858
        %v861 = vsel %vm859, %v860, %v858
        %v862 = vclz %v861
        %v863 = vsub.s32 %v862, 2
        %vm864 = vcmp.gt.s32.totalorder 0, %v863
        %v865 = vsel %vm864, 0, %v863
        %v866 = vsub.s32 32, %v865
        %v867 = vshll.u32 %v858, %v865
        %v868 = vshrl.u32 %v850, %v866
        %v869 = vor.u32 %v867, %v868
        %v870 = vsub.s32 4294967266, %v865
        %v871 = vadd.s32 %v870, 127
        %v872 = vshll.u32 %v871, 23
        %v873 = vor.u32 4788187, %v872
        %v874 = vand.u32 2147483647, %v873
        %v876 = vcvt.s32.f32 %v869
        %v877 = vmul.f32 %v876, %v874
        %v878 = vxor.u32 %v877, 2147483648
        %v879 = vsel %vm796, %v878, %v877
        %v880 = vsub.s32 4, %v856
        %v881 = vsel %vm796, %v880, %v856
        %v882 = vsel %vm795, %v684, %v879
        %v883 = vsel %vm795, 0, %v881
        %v884 = vcosq.f32.pop %v882
        %v885 = vsinq.f32.pop %v882
        %vm886 = vweird.f32 %v684
        %v887 = vand.u32 %v883, 3
        %vm888 = vcmp.lt.s32.totalorder %v887, 2
        %vm889 = vcmp.eq.s32.totalorder %v887, 0
        %v890 = vxor.u32 %v885, 2147483648
        %v891 = vsel %vm889, %v884, %v890
        %vm892 = vcmp.eq.s32.totalorder %v887, 2
        %v893 = vxor.u32 %v884, 2147483648
        %v894 = vsel %vm892, %v893, %v885
        %v895 = vsel %vm888, %v891, %v894
        %v896 = vsel %vm886, nan, %v895
        %v897 = vand.u32 2147483647, %v685
        %vm898 = vcmp.le.f32.partialorder %v897, 0.7853982
        %vm899 = vcmp.lt.s32.totalorder %v685, 0
        %v900 = vand.u32 %v685, 2139095040
        %v901 = vshrl.u32 %v900, 23
        %v902 = vsub.s32 %v901, 127
        %v903 = vand.u32 2147483647, %v685
        %v904 = vand.u32 %v903, 8388607
        %v905 = vor.u32 %v904, 8388608
        %v906 = vsub.s32 0, %v905
        %v907 = vadd.s32 %v902, 1
        %vm908 = vcmp.gt.s32.totalorder %v907, 0
        %v909 = vsel %vm908, %v907, 0
        %v910 = vshrl.u32 %v909, 5
        %v911 = vand.u32 %v909, 31
        %v912 = vsub.s32 32, %v911
        %v913 = vshrl.u32 683565275, %v912
        %v914 = vshll.u32 683565275, %v911
        %v915 = vshrl.u32 2475754826, %v912
        %v916 = vor.u32 %v914, %v915
        %v917 = vshll.u32 2475754826, %v911
        %v918 = vshrl.u32 2131351028, %v912
        %v919 = vor.u32 %v917, %v918
        %v920 = vshll.u32 2131351028, %v911
        %v921 = vshrl.u32 2102212464, %v912
        %v922 = vor.u32 %v920, %v921
        %v923 = vshll.u32 2102212464, %v911
        %v924 = vshrl.u32 920167782, %v912
        %v925 = vor.u32 %v923, %v924
        %v926 = vshll.u32 920167782, %v911
        %v927 = vshrl.u32 1326507024, %v912
        %v928 = vor.u32 %v926, %v927
        %vm929 = vcmp.lt.s32.totalorder %v910, 1
        %vm930 = vcmp.lt.s32.totalorder %v910, 2
        %vm931 = vcmp.lt.s32.totalorder %v910, 3
        %vm932 = vcmp.lt.s32.totalorder %v910, 4
        %v933 = vsel %vm929, %v913, %v916
        %v934 = vsel %vm932, %v922, 2102212464
        %v935 = vsel %vm931, %v919, %v934
        %v936 = vsel %vm930, %v933, %v935
        %v937 = vsel %vm929, %v916, %v919
        %v938 = vsel %vm932, %v925, 920167782
        %v939 = vsel %vm931, %v922, %v938
        %v940 = vsel %vm930, %v937, %v939
        %v941 = vsel %vm929, %v919, %v922
        %v942 = vsel %vm932, %v928, 1326507024
        %v943 = vsel %vm931, %v925, %v942
        %v944 = vsel %vm930, %v941, %v943
        %v945 = vshll.u32 %v905, 8
        %v946 = vmul.u32.u64.compose %v945, %v944
        %v947 = vextract.low.u32 %v946
        %v948 = vextract.high.u32 %v946
        %v949 = vmul.u32.u64.compose %v945, %v940
        %v950 = vextract.low.u32 %v949
        %v951 = vextract.high.u32 %v949
        %v952 = vmul.u32 %v945, %v936
        %v953 = vadd.s32 %v948, %v950
        %vm954 = vc.u32 %v948, %v950
        %v955 = vadd.s32 %v951, 1
        %v956 = vsel %vm954, %v955, %v951
        %v957 = vadd.s32 %v952, %v956
        %v958 = vadd.s32 %v957, 536870912
        %v959 = vshrl.u32 %v958, 30
        %v960 = vshll.u32 %v959, 30
        %v961 = vsub.s32 %v957, %v960
        %vm962 = vcmp.lt.s32.totalorder %v961, 0
        %v963 = vsub.s32 0, %v961
        %v964 = vsel %vm962, %v963, %v961
        %v965 = vclz %v964
        %v966 = vsub.s32 %v965, 2
        %vm967 = vcmp.gt.s32.totalorder 0, %v966
        %v968 = vsel %vm967, 0, %v966
        %v969 = vsub.s32 32, %v968
        %v970 = vshll.u32 %v961, %v968
        %v971 = vshrl.u32 %v953, %v969
        %v972 = vor.u32 %v970, %v971
        %v973 = vsub.s32 4294967266, %v968
        %v974 = vadd.s32 %v973, 127
        %v975 = vshll.u32 %v974, 23
        %v976 = vor.u32 4788187, %v975
        %v977 = vand.u32 2147483647, %v976
        %v979 = vcvt.s32.f32 %v972
        %v980 = vmul.f32 %v979, %v977
        %v981 = vxor.u32 %v980, 2147483648
        %v982 = vsel %vm899, %v981, %v980
        %v983 = vsub.s32 4, %v959
        %v984 = vsel %vm899, %v983, %v959
        %v985 = vsel %vm898, %v685, %v982
        %v986 = vsel %vm898, 0, %v984
        %v987 = vcosq.f32.pop %v985
        %v988 = vsinq.f32.pop %v985
        %vm989 = vweird.f32 %v685
        %v990 = vand.u32 %v986, 3
        %vm991 = vcmp.lt.s32.totalorder %v990, 2
        %vm992 = vcmp.eq.s32.totalorder %v990, 0
        %v993 = vxor.u32 %v988, 2147483648
        %v994 = vsel %vm992, %v987, %v993
        %vm995 = vcmp.eq.s32.totalorder %v990, 2
        %v996 = vxor.u32 %v987, 2147483648
        %v997 = vsel %vm995, %v996, %v988
        %v998 = vsel %vm991, %v994, %v997
        %v999 = vsel %vm989, nan, %v998
        %v1000 = vand.u32 2147483647, %v686
        %vm1001 = vcmp.le.f32.partialorder %v1000, 0.7853982
        %vm1002 = vcmp.lt.s32.totalorder %v686, 0
        %v1003 = vand.u32 %v686, 2139095040
        %v1004 = vshrl.u32 %v1003, 23
        %v1005 = vsub.s32 %v1004, 127
        %v1006 = vand.u32 2147483647, %v686
        %v1007 = vand.u32 %v1006, 8388607
        %v1008 = vor.u32 %v1007, 8388608
        %v1009 = vsub.s32 0, %v1008
        %v1010 = vadd.s32 %v1005, 1
        %vm1011 = vcmp.gt.s32.totalorder %v1010, 0
        %v1012 = vsel %vm1011, %v1010, 0
        %v1013 = vshrl.u32 %v1012, 5
        %v1014 = vand.u32 %v1012, 31
        %v1015 = vsub.s32 32, %v1014
        %v1016 = vshrl.u32 683565275, %v1015
        %v1017 = vshll.u32 683565275, %v1014
        %v1018 = vshrl.u32 2475754826, %v1015
        %v1019 = vor.u32 %v1017, %v1018
        %v1020 = vshll.u32 2475754826, %v1014
        %v1021 = vshrl.u32 2131351028, %v1015
        %v1022 = vor.u32 %v1020, %v1021
        %v1023 = vshll.u32 2131351028, %v1014
        %v1024 = vshrl.u32 2102212464, %v1015
        %v1025 = vor.u32 %v1023, %v1024
        %v1026 = vshll.u32 2102212464, %v1014
        %v1027 = vshrl.u32 920167782, %v1015
        %v1028 = vor.u32 %v1026, %v1027
        %v1029 = vshll.u32 920167782, %v1014
        %v1030 = vshrl.u32 1326507024, %v1015
        %v1031 = vor.u32 %v1029, %v1030
        %vm1032 = vcmp.lt.s32.totalorder %v1013, 1
        %vm1033 = vcmp.lt.s32.totalorder %v1013, 2
        %vm1034 = vcmp.lt.s32.totalorder %v1013, 3
        %vm1035 = vcmp.lt.s32.totalorder %v1013, 4
        %v1036 = vsel %vm1032, %v1016, %v1019
        %v1037 = vsel %vm1035, %v1025, 2102212464
        %v1038 = vsel %vm1034, %v1022, %v1037
        %v1039 = vsel %vm1033, %v1036, %v1038
        %v1040 = vsel %vm1032, %v1019, %v1022
        %v1041 = vsel %vm1035, %v1028, 920167782
        %v1042 = vsel %vm1034, %v1025, %v1041
        %v1043 = vsel %vm1033, %v1040, %v1042
        %v1044 = vsel %vm1032, %v1022, %v1025
        %v1045 = vsel %vm1035, %v1031, 1326507024
        %v1046 = vsel %vm1034, %v1028, %v1045
        %v1047 = vsel %vm1033, %v1044, %v1046
        %v1048 = vshll.u32 %v1008, 8
        %v1049 = vmul.u32.u64.compose %v1048, %v1047
        %v1050 = vextract.low.u32 %v1049
        %v1051 = vextract.high.u32 %v1049
        %v1052 = vmul.u32.u64.compose %v1048, %v1043
        %v1053 = vextract.low.u32 %v1052
        %v1054 = vextract.high.u32 %v1052
        %v1055 = vmul.u32 %v1048, %v1039
        %v1056 = vadd.s32 %v1051, %v1053
        %vm1057 = vc.u32 %v1051, %v1053
        %v1058 = vadd.s32 %v1054, 1
        %v1059 = vsel %vm1057, %v1058, %v1054
        %v1060 = vadd.s32 %v1055, %v1059
        %v1061 = vadd.s32 %v1060, 536870912
        %v1062 = vshrl.u32 %v1061, 30
        %v1063 = vshll.u32 %v1062, 30
        %v1064 = vsub.s32 %v1060, %v1063
        %vm1065 = vcmp.lt.s32.totalorder %v1064, 0
        %v1066 = vsub.s32 0, %v1064
        %v1067 = vsel %vm1065, %v1066, %v1064
        %v1068 = vclz %v1067
        %v1069 = vsub.s32 %v1068, 2
        %vm1070 = vcmp.gt.s32.totalorder 0, %v1069
        %v1071 = vsel %vm1070, 0, %v1069
        %v1072 = vsub.s32 32, %v1071
        %v1073 = vshll.u32 %v1064, %v1071
        %v1074 = vshrl.u32 %v1056, %v1072
        %v1075 = vor.u32 %v1073, %v1074
        %v1076 = vsub.s32 4294967266, %v1071
        %v1077 = vadd.s32 %v1076, 127
        %v1078 = vshll.u32 %v1077, 23
        %v1079 = vor.u32 4788187, %v1078
        %v1080 = vand.u32 2147483647, %v1079
        %v1082 = vcvt.s32.f32 %v1075
        %v1083 = vmul.f32 %v1082, %v1080
        %v1084 = vxor.u32 %v1083, 2147483648
        %v1085 = vsel %vm1002, %v1084, %v1083
        %v1086 = vsub.s32 4, %v1062
        %v1087 = vsel %vm1002, %v1086, %v1062
        %v1088 = vsel %vm1001, %v686, %v1085
        %v1089 = vsel %vm1001, 0, %v1087
        %v1090 = vcosq.f32.pop %v1088
        %v1091 = vsinq.f32.pop %v1088
        %vm1092 = vweird.f32 %v686
        %v1093 = vand.u32 %v1089, 3
        %vm1094 = vcmp.lt.s32.totalorder %v1093, 2
        %vm1095 = vcmp.eq.s32.totalorder %v1093, 0
        %v1096 = vxor.u32 %v1091, 2147483648
        %v1097 = vsel %vm1095, %v1090, %v1096
        %vm1098 = vcmp.eq.s32.totalorder %v1093, 2
        %v1099 = vxor.u32 %v1090, 2147483648
        %v1100 = vsel %vm1098, %v1099, %v1091
        %v1101 = vsel %vm1094, %v1097, %v1100
        %v1102 = vsel %vm1092, nan, %v1101
        %v1103 = vand.u32 2147483647, %v687
        %vm1104 = vcmp.le.f32.partialorder %v1103, 0.7853982
        %vm1105 = vcmp.lt.s32.totalorder %v687, 0
        %v1106 = vand.u32 %v687, 2139095040
        %v1107 = vshrl.u32 %v1106, 23
        %v1108 = vsub.s32 %v1107, 127
        %v1109 = vand.u32 2147483647, %v687
        %v1110 = vand.u32 %v1109, 8388607
        %v1111 = vor.u32 %v1110, 8388608
        %v1112 = vsub.s32 0, %v1111
        %v1113 = vadd.s32 %v1108, 1
        %vm1114 = vcmp.gt.s32.totalorder %v1113, 0
        %v1115 = vsel %vm1114, %v1113, 0
        %v1116 = vshrl.u32 %v1115, 5
        %v1117 = vand.u32 %v1115, 31
        %v1118 = vsub.s32 32, %v1117
        %v1119 = vshrl.u32 683565275, %v1118
        %v1120 = vshll.u32 683565275, %v1117
        %v1121 = vshrl.u32 2475754826, %v1118
        %v1122 = vor.u32 %v1120, %v1121
        %v1123 = vshll.u32 2475754826, %v1117
        %v1124 = vshrl.u32 2131351028, %v1118
        %v1125 = vor.u32 %v1123, %v1124
        %v1126 = vshll.u32 2131351028, %v1117
        %v1127 = vshrl.u32 2102212464, %v1118
        %v1128 = vor.u32 %v1126, %v1127
        %v1129 = vshll.u32 2102212464, %v1117
        %v1130 = vshrl.u32 920167782, %v1118
        %v1131 = vor.u32 %v1129, %v1130
        %v1132 = vshll.u32 920167782, %v1117
        %v1133 = vshrl.u32 1326507024, %v1118
        %v1134 = vor.u32 %v1132, %v1133
        %vm1135 = vcmp.lt.s32.totalorder %v1116, 1
        %vm1136 = vcmp.lt.s32.totalorder %v1116, 2
        %vm1137 = vcmp.lt.s32.totalorder %v1116, 3
        %vm1138 = vcmp.lt.s32.totalorder %v1116, 4
        %v1139 = vsel %vm1135, %v1119, %v1122
        %v1140 = vsel %vm1138, %v1128, 2102212464
        %v1141 = vsel %vm1137, %v1125, %v1140
        %v1142 = vsel %vm1136, %v1139, %v1141
        %v1143 = vsel %vm1135, %v1122, %v1125
        %v1144 = vsel %vm1138, %v1131, 920167782
        %v1145 = vsel %vm1137, %v1128, %v1144
        %v1146 = vsel %vm1136, %v1143, %v1145
        %v1147 = vsel %vm1135, %v1125, %v1128
        %v1148 = vsel %vm1138, %v1134, 1326507024
        %v1149 = vsel %vm1137, %v1131, %v1148
        %v1150 = vsel %vm1136, %v1147, %v1149
        %v1151 = vshll.u32 %v1111, 8
        %v1152 = vmul.u32.u64.compose %v1151, %v1150
        %v1153 = vextract.low.u32 %v1152
        %v1154 = vextract.high.u32 %v1152
        %v1155 = vmul.u32.u64.compose %v1151, %v1146
        %v1156 = vextract.low.u32 %v1155
        %v1157 = vextract.high.u32 %v1155
        %v1158 = vmul.u32 %v1151, %v1142
        %v1159 = vadd.s32 %v1154, %v1156
        %vm1160 = vc.u32 %v1154, %v1156
        %v1161 = vadd.s32 %v1157, 1
        %v1162 = vsel %vm1160, %v1161, %v1157
        %v1163 = vadd.s32 %v1158, %v1162
        %v1164 = vadd.s32 %v1163, 536870912
        %v1165 = vshrl.u32 %v1164, 30
        %v1166 = vshll.u32 %v1165, 30
        %v1167 = vsub.s32 %v1163, %v1166
        %vm1168 = vcmp.lt.s32.totalorder %v1167, 0
        %v1169 = vsub.s32 0, %v1167
        %v1170 = vsel %vm1168, %v1169, %v1167
        %v1171 = vclz %v1170
        %v1172 = vsub.s32 %v1171, 2
        %vm1173 = vcmp.gt.s32.totalorder 0, %v1172
        %v1174 = vsel %vm1173, 0, %v1172
        %v1175 = vsub.s32 32, %v1174
        %v1176 = vshll.u32 %v1167, %v1174
        %v1177 = vshrl.u32 %v1159, %v1175
        %v1178 = vor.u32 %v1176, %v1177
        %v1179 = vsub.s32 4294967266, %v1174
        %v1180 = vadd.s32 %v1179, 127
        %v1181 = vshll.u32 %v1180, 23
        %v1182 = vor.u32 4788187, %v1181
        %v1183 = vand.u32 2147483647, %v1182
        %v1185 = vcvt.s32.f32 %v1178
        %v1186 = vmul.f32 %v1185, %v1183
        %v1187 = vxor.u32 %v1186, 2147483648
        %v1188 = vsel %vm1105, %v1187, %v1186
        %v1189 = vsub.s32 4, %v1165
        %v1190 = vsel %vm1105, %v1189, %v1165
        %v1191 = vsel %vm1104, %v687, %v1188
        %v1192 = vsel %vm1104, 0, %v1190
        %v1193 = vcosq.f32.pop %v1191
        %v1194 = vsinq.f32.pop %v1191
        %vm1195 = vweird.f32 %v687
        %v1196 = vand.u32 %v1192, 3
        %vm1197 = vcmp.lt.s32.totalorder %v1196, 2
        %vm1198 = vcmp.eq.s32.totalorder %v1196, 0
        %v1199 = vxor.u32 %v1194, 2147483648
        %v1200 = vsel %vm1198, %v1193, %v1199
        %vm1201 = vcmp.eq.s32.totalorder %v1196, 2
        %v1202 = vxor.u32 %v1193, 2147483648
        %v1203 = vsel %vm1201, %v1202, %v1194
        %v1204 = vsel %vm1197, %v1200, %v1203
        %v1205 = vsel %vm1195, nan, %v1204
        %v1206 = vand.u32 2147483647, %v688
        %vm1207 = vcmp.le.f32.partialorder %v1206, 0.7853982
        %vm1208 = vcmp.lt.s32.totalorder %v688, 0
        %v1209 = vand.u32 %v688, 2139095040
        %v1210 = vshrl.u32 %v1209, 23
        %v1211 = vsub.s32 %v1210, 127
        %v1212 = vand.u32 2147483647, %v688
        %v1213 = vand.u32 %v1212, 8388607
        %v1214 = vor.u32 %v1213, 8388608
        %v1215 = vsub.s32 0, %v1214
        %v1216 = vadd.s32 %v1211, 1
        %vm1217 = vcmp.gt.s32.totalorder %v1216, 0
        %v1218 = vsel %vm1217, %v1216, 0
        %v1219 = vshrl.u32 %v1218, 5
        %v1220 = vand.u32 %v1218, 31
        %v1221 = vsub.s32 32, %v1220
        %v1222 = vshrl.u32 683565275, %v1221
        %v1223 = vshll.u32 683565275, %v1220
        %v1224 = vshrl.u32 2475754826, %v1221
        %v1225 = vor.u32 %v1223, %v1224
        %v1226 = vshll.u32 2475754826, %v1220
        %v1227 = vshrl.u32 2131351028, %v1221
        %v1228 = vor.u32 %v1226, %v1227
        %v1229 = vshll.u32 2131351028, %v1220
        %v1230 = vshrl.u32 2102212464, %v1221
        %v1231 = vor.u32 %v1229, %v1230
        %v1232 = vshll.u32 2102212464, %v1220
        %v1233 = vshrl.u32 920167782, %v1221
        %v1234 = vor.u32 %v1232, %v1233
        %v1235 = vshll.u32 920167782, %v1220
        %v1236 = vshrl.u32 1326507024, %v1221
        %v1237 = vor.u32 %v1235, %v1236
        %vm1238 = vcmp.lt.s32.totalorder %v1219, 1
        %vm1239 = vcmp.lt.s32.totalorder %v1219, 2
        %vm1240 = vcmp.lt.s32.totalorder %v1219, 3
        %vm1241 = vcmp.lt.s32.totalorder %v1219, 4
        %v1242 = vsel %vm1238, %v1222, %v1225
        %v1243 = vsel %vm1241, %v1231, 2102212464
        %v1244 = vsel %vm1240, %v1228, %v1243
        %v1245 = vsel %vm1239, %v1242, %v1244
        %v1246 = vsel %vm1238, %v1225, %v1228
        %v1247 = vsel %vm1241, %v1234, 920167782
        %v1248 = vsel %vm1240, %v1231, %v1247
        %v1249 = vsel %vm1239, %v1246, %v1248
        %v1250 = vsel %vm1238, %v1228, %v1231
        %v1251 = vsel %vm1241, %v1237, 1326507024
        %v1252 = vsel %vm1240, %v1234, %v1251
        %v1253 = vsel %vm1239, %v1250, %v1252
        %v1254 = vshll.u32 %v1214, 8
        %v1255 = vmul.u32.u64.compose %v1254, %v1253
        %v1256 = vextract.low.u32 %v1255
        %v1257 = vextract.high.u32 %v1255
        %v1258 = vmul.u32.u64.compose %v1254, %v1249
        %v1259 = vextract.low.u32 %v1258
        %v1260 = vextract.high.u32 %v1258
        %v1261 = vmul.u32 %v1254, %v1245
        %v1262 = vadd.s32 %v1257, %v1259
        %vm1263 = vc.u32 %v1257, %v1259
        %v1264 = vadd.s32 %v1260, 1
        %v1265 = vsel %vm1263, %v1264, %v1260
        %v1266 = vadd.s32 %v1261, %v1265
        %v1267 = vadd.s32 %v1266, 536870912
        %v1268 = vshrl.u32 %v1267, 30
        %v1269 = vshll.u32 %v1268, 30
        %v1270 = vsub.s32 %v1266, %v1269
        %vm1271 = vcmp.lt.s32.totalorder %v1270, 0
        %v1272 = vsub.s32 0, %v1270
        %v1273 = vsel %vm1271, %v1272, %v1270
        %v1274 = vclz %v1273
        %v1275 = vsub.s32 %v1274, 2
        %vm1276 = vcmp.gt.s32.totalorder 0, %v1275
        %v1277 = vsel %vm1276, 0, %v1275
        %v1278 = vsub.s32 32, %v1277
        %v1279 = vshll.u32 %v1270, %v1277
        %v1280 = vshrl.u32 %v1262, %v1278
        %v1281 = vor.u32 %v1279, %v1280
        %v1282 = vsub.s32 4294967266, %v1277
        %v1283 = vadd.s32 %v1282, 127
        %v1284 = vshll.u32 %v1283, 23
        %v1285 = vor.u32 4788187, %v1284
        %v1286 = vand.u32 2147483647, %v1285
        %v1288 = vcvt.s32.f32 %v1281
        %v1289 = vmul.f32 %v1288, %v1286
        %v1290 = vxor.u32 %v1289, 2147483648
        %v1291 = vsel %vm1208, %v1290, %v1289
        %v1292 = vsub.s32 4, %v1268
        %v1293 = vsel %vm1208, %v1292, %v1268
        %v1294 = vsel %vm1207, %v688, %v1291
        %v1295 = vsel %vm1207, 0, %v1293
        %v1296 = vcosq.f32.pop %v1294
        %v1297 = vsinq.f32.pop %v1294
        %vm1298 = vweird.f32 %v688
        %v1299 = vand.u32 %v1295, 3
        %vm1300 = vcmp.lt.s32.totalorder %v1299, 2
        %vm1301 = vcmp.eq.s32.totalorder %v1299, 0
        %v1302 = vxor.u32 %v1297, 2147483648
        %v1303 = vsel %vm1301, %v1296, %v1302
        %vm1304 = vcmp.eq.s32.totalorder %v1299, 2
        %v1305 = vxor.u32 %v1296, 2147483648
        %v1306 = vsel %vm1304, %v1305, %v1297
        %v1307 = vsel %vm1300, %v1303, %v1306
        %v1308 = vsel %vm1298, nan, %v1307
        %v1309 = vand.u32 2147483647, %v689
        %vm1310 = vcmp.le.f32.partialorder %v1309, 0.7853982
        %vm1311 = vcmp.lt.s32.totalorder %v689, 0
        %v1312 = vand.u32 %v689, 2139095040
        %v1313 = vshrl.u32 %v1312, 23
        %v1314 = vsub.s32 %v1313, 127
        %v1315 = vand.u32 2147483647, %v689
        %v1316 = vand.u32 %v1315, 8388607
        %v1317 = vor.u32 %v1316, 8388608
        %v1318 = vsub.s32 0, %v1317
        %v1319 = vadd.s32 %v1314, 1
        %vm1320 = vcmp.gt.s32.totalorder %v1319, 0
        %v1321 = vsel %vm1320, %v1319, 0
        %v1322 = vshrl.u32 %v1321, 5
        %v1323 = vand.u32 %v1321, 31
        %v1324 = vsub.s32 32, %v1323
        %v1325 = vshrl.u32 683565275, %v1324
        %v1326 = vshll.u32 683565275, %v1323
        %v1327 = vshrl.u32 2475754826, %v1324
        %v1328 = vor.u32 %v1326, %v1327
        %v1329 = vshll.u32 2475754826, %v1323
        %v1330 = vshrl.u32 2131351028, %v1324
        %v1331 = vor.u32 %v1329, %v1330
        %v1332 = vshll.u32 2131351028, %v1323
        %v1333 = vshrl.u32 2102212464, %v1324
        %v1334 = vor.u32 %v1332, %v1333
        %v1335 = vshll.u32 2102212464, %v1323
        %v1336 = vshrl.u32 920167782, %v1324
        %v1337 = vor.u32 %v1335, %v1336
        %v1338 = vshll.u32 920167782, %v1323
        %v1339 = vshrl.u32 1326507024, %v1324
        %v1340 = vor.u32 %v1338, %v1339
        %vm1341 = vcmp.lt.s32.totalorder %v1322, 1
        %vm1342 = vcmp.lt.s32.totalorder %v1322, 2
        %vm1343 = vcmp.lt.s32.totalorder %v1322, 3
        %vm1344 = vcmp.lt.s32.totalorder %v1322, 4
        %v1345 = vsel %vm1341, %v1325, %v1328
        %v1346 = vsel %vm1344, %v1334, 2102212464
        %v1347 = vsel %vm1343, %v1331, %v1346
        %v1348 = vsel %vm1342, %v1345, %v1347
        %v1349 = vsel %vm1341, %v1328, %v1331
        %v1350 = vsel %vm1344, %v1337, 920167782
        %v1351 = vsel %vm1343, %v1334, %v1350
        %v1352 = vsel %vm1342, %v1349, %v1351
        %v1353 = vsel %vm1341, %v1331, %v1334
        %v1354 = vsel %vm1344, %v1340, 1326507024
        %v1355 = vsel %vm1343, %v1337, %v1354
        %v1356 = vsel %vm1342, %v1353, %v1355
        %v1357 = vshll.u32 %v1317, 8
        %v1358 = vmul.u32.u64.compose %v1357, %v1356
        %v1359 = vextract.low.u32 %v1358
        %v1360 = vextract.high.u32 %v1358
        %v1361 = vmul.u32.u64.compose %v1357, %v1352
        %v1362 = vextract.low.u32 %v1361
        %v1363 = vextract.high.u32 %v1361
        %v1364 = vmul.u32 %v1357, %v1348
        %v1365 = vadd.s32 %v1360, %v1362
        %vm1366 = vc.u32 %v1360, %v1362
        %v1367 = vadd.s32 %v1363, 1
        %v1368 = vsel %vm1366, %v1367, %v1363
        %v1369 = vadd.s32 %v1364, %v1368
        %v1370 = vadd.s32 %v1369, 536870912
        %v1371 = vshrl.u32 %v1370, 30
        %v1372 = vshll.u32 %v1371, 30
        %v1373 = vsub.s32 %v1369, %v1372
        %vm1374 = vcmp.lt.s32.totalorder %v1373, 0
        %v1375 = vsub.s32 0, %v1373
        %v1376 = vsel %vm1374, %v1375, %v1373
        %v1377 = vclz %v1376
        %v1378 = vsub.s32 %v1377, 2
        %vm1379 = vcmp.gt.s32.totalorder 0, %v1378
        %v1380 = vsel %vm1379, 0, %v1378
        %v1381 = vsub.s32 32, %v1380
        %v1382 = vshll.u32 %v1373, %v1380
        %v1383 = vshrl.u32 %v1365, %v1381
        %v1384 = vor.u32 %v1382, %v1383
        %v1385 = vsub.s32 4294967266, %v1380
        %v1386 = vadd.s32 %v1385, 127
        %v1387 = vshll.u32 %v1386, 23
        %v1388 = vor.u32 4788187, %v1387
        %v1389 = vand.u32 2147483647, %v1388
        %v1391 = vcvt.s32.f32 %v1384
        %v1392 = vmul.f32 %v1391, %v1389
        %v1393 = vxor.u32 %v1392, 2147483648
        %v1394 = vsel %vm1311, %v1393, %v1392
        %v1395 = vsub.s32 4, %v1371
        %v1396 = vsel %vm1311, %v1395, %v1371
        %v1397 = vsel %vm1310, %v689, %v1394
        %v1398 = vsel %vm1310, 0, %v1396
        %v1399 = vcosq.f32.pop %v1397
        %v1400 = vsinq.f32.pop %v1397
        %vm1401 = vweird.f32 %v689
        %v1402 = vand.u32 %v1398, 3
        %vm1403 = vcmp.lt.s32.totalorder %v1402, 2
        %vm1404 = vcmp.eq.s32.totalorder %v1402, 0
        %v1405 = vxor.u32 %v1400, 2147483648
        %v1406 = vsel %vm1404, %v1399, %v1405
        %vm1407 = vcmp.eq.s32.totalorder %v1402, 2
        %v1408 = vxor.u32 %v1399, 2147483648
        %v1409 = vsel %vm1407, %v1408, %v1400
        %v1410 = vsel %vm1403, %v1406, %v1409
        %v1411 = vsel %vm1401, nan, %v1410
        %v1412 = vand.u32 2147483647, %v690
        %vm1413 = vcmp.le.f32.partialorder %v1412, 0.7853982
        %vm1414 = vcmp.lt.s32.totalorder %v690, 0
        %v1415 = vand.u32 %v690, 2139095040
        %v1416 = vshrl.u32 %v1415, 23
        %v1417 = vsub.s32 %v1416, 127
        %v1418 = vand.u32 2147483647, %v690
        %v1419 = vand.u32 %v1418, 8388607
        %v1420 = vor.u32 %v1419, 8388608
        %v1421 = vsub.s32 0, %v1420
        %v1422 = vadd.s32 %v1417, 1
        %vm1423 = vcmp.gt.s32.totalorder %v1422, 0
        %v1424 = vsel %vm1423, %v1422, 0
        %v1425 = vshrl.u32 %v1424, 5
        %v1426 = vand.u32 %v1424, 31
        %v1427 = vsub.s32 32, %v1426
        %v1428 = vshrl.u32 683565275, %v1427
        %v1429 = vshll.u32 683565275, %v1426
        %v1430 = vshrl.u32 2475754826, %v1427
        %v1431 = vor.u32 %v1429, %v1430
        %v1432 = vshll.u32 2475754826, %v1426
        %v1433 = vshrl.u32 2131351028, %v1427
        %v1434 = vor.u32 %v1432, %v1433
        %v1435 = vshll.u32 2131351028, %v1426
        %v1436 = vshrl.u32 2102212464, %v1427
        %v1437 = vor.u32 %v1435, %v1436
        %v1438 = vshll.u32 2102212464, %v1426
        %v1439 = vshrl.u32 920167782, %v1427
        %v1440 = vor.u32 %v1438, %v1439
        %v1441 = vshll.u32 920167782, %v1426
        %v1442 = vshrl.u32 1326507024, %v1427
        %v1443 = vor.u32 %v1441, %v1442
        %vm1444 = vcmp.lt.s32.totalorder %v1425, 1
        %vm1445 = vcmp.lt.s32.totalorder %v1425, 2
        %vm1446 = vcmp.lt.s32.totalorder %v1425, 3
        %vm1447 = vcmp.lt.s32.totalorder %v1425, 4
        %v1448 = vsel %vm1444, %v1428, %v1431
        %v1449 = vsel %vm1447, %v1437, 2102212464
        %v1450 = vsel %vm1446, %v1434, %v1449
        %v1451 = vsel %vm1445, %v1448, %v1450
        %v1452 = vsel %vm1444, %v1431, %v1434
        %v1453 = vsel %vm1447, %v1440, 920167782
        %v1454 = vsel %vm1446, %v1437, %v1453
        %v1455 = vsel %vm1445, %v1452, %v1454
        %v1456 = vsel %vm1444, %v1434, %v1437
        %v1457 = vsel %vm1447, %v1443, 1326507024
        %v1458 = vsel %vm1446, %v1440, %v1457
        %v1459 = vsel %vm1445, %v1456, %v1458
        %v1460 = vshll.u32 %v1420, 8
        %v1461 = vmul.u32.u64.compose %v1460, %v1459
        %v1462 = vextract.low.u32 %v1461
        %v1463 = vextract.high.u32 %v1461
        %v1464 = vmul.u32.u64.compose %v1460, %v1455
        %v1465 = vextract.low.u32 %v1464
        %v1466 = vextract.high.u32 %v1464
        %v1467 = vmul.u32 %v1460, %v1451
        %v1468 = vadd.s32 %v1463, %v1465
        %vm1469 = vc.u32 %v1463, %v1465
        %v1470 = vadd.s32 %v1466, 1
        %v1471 = vsel %vm1469, %v1470, %v1466
        %v1472 = vadd.s32 %v1467, %v1471
        %v1473 = vadd.s32 %v1472, 536870912
        %v1474 = vshrl.u32 %v1473, 30
        %v1475 = vshll.u32 %v1474, 30
        %v1476 = vsub.s32 %v1472, %v1475
        %vm1477 = vcmp.lt.s32.totalorder %v1476, 0
        %v1478 = vsub.s32 0, %v1476
        %v1479 = vsel %vm1477, %v1478, %v1476
        %v1480 = vclz %v1479
        %v1481 = vsub.s32 %v1480, 2
        %vm1482 = vcmp.gt.s32.totalorder 0, %v1481
        %v1483 = vsel %vm1482, 0, %v1481
        %v1484 = vsub.s32 32, %v1483
        %v1485 = vshll.u32 %v1476, %v1483
        %v1486 = vshrl.u32 %v1468, %v1484
        %v1487 = vor.u32 %v1485, %v1486
        %v1488 = vsub.s32 4294967266, %v1483
        %v1489 = vadd.s32 %v1488, 127
        %v1490 = vshll.u32 %v1489, 23
        %v1491 = vor.u32 4788187, %v1490
        %v1492 = vand.u32 2147483647, %v1491
        %v1494 = vcvt.s32.f32 %v1487
        %v1495 = vmul.f32 %v1494, %v1492
        %v1496 = vxor.u32 %v1495, 2147483648
        %v1497 = vsel %vm1414, %v1496, %v1495
        %v1498 = vsub.s32 4, %v1474
        %v1499 = vsel %vm1414, %v1498, %v1474
        %v1500 = vsel %vm1413, %v690, %v1497
        %v1501 = vsel %vm1413, 0, %v1499
        %v1502 = vcosq.f32.pop %v1500
        %v1503 = vsinq.f32.pop %v1500
        %vm1504 = vweird.f32 %v690
        %v1505 = vand.u32 %v1501, 3
        %vm1506 = vcmp.lt.s32.totalorder %v1505, 2
        %vm1507 = vcmp.eq.s32.totalorder %v1505, 0
        %v1508 = vxor.u32 %v1503, 2147483648
        %v1509 = vsel %vm1507, %v1502, %v1508
        %vm1510 = vcmp.eq.s32.totalorder %v1505, 2
        %v1511 = vxor.u32 %v1502, 2147483648
        %v1512 = vsel %vm1510, %v1511, %v1503
        %v1513 = vsel %vm1506, %v1509, %v1512
        %v1514 = vsel %vm1504, nan, %v1513
        %1515 = vst [vmem:[#allocation2] sm:$0xff] %v793
        %1516 = vst [vmem:[#allocation2 + $0x8] sm:$0xff] %v896
        %1517 = vst [vmem:[#allocation2 + $0x10] sm:$0xff] %v999
        %1518 = vst [vmem:[#allocation2 + $0x18] sm:$0xff] %v1102
        %1519 = vst [vmem:[#allocation2 + $0x20] sm:$0xff] %v1205
        %1520 = vst [vmem:[#allocation2 + $0x28] sm:$0xff] %v1308
        %1521 = vst [vmem:[#allocation2 + $0x30] sm:$0xff] %v1411
        %1522 = vst [vmem:[#allocation2 + $0x38] sm:$0xff] %v1514
        %v1523 = vand.u32 2147483647, %v683
        %vm1524 = vcmp.le.f32.partialorder %v1523, 0.7853982
        %vm1525 = vcmp.lt.s32.totalorder %v683, 0
        %v1526 = vand.u32 %v683, 2139095040
        %v1527 = vshrl.u32 %v1526, 23
        %v1528 = vsub.s32 %v1527, 127
        %v1529 = vand.u32 2147483647, %v683
        %v1530 = vand.u32 %v1529, 8388607
        %v1531 = vor.u32 %v1530, 8388608
        %v1532 = vsub.s32 0, %v1531
        %v1533 = vadd.s32 %v1528, 1
        %vm1534 = vcmp.gt.s32.totalorder %v1533, 0
        %v1535 = vsel %vm1534, %v1533, 0
        %v1536 = vshrl.u32 %v1535, 5
        %v1537 = vand.u32 %v1535, 31
        %v1538 = vsub.s32 32, %v1537
        %v1539 = vshrl.u32 683565275, %v1538
        %v1540 = vshll.u32 683565275, %v1537
        %v1541 = vshrl.u32 2475754826, %v1538
        %v1542 = vor.u32 %v1540, %v1541
        %v1543 = vshll.u32 2475754826, %v1537
        %v1544 = vshrl.u32 2131351028, %v1538
        %v1545 = vor.u32 %v1543, %v1544
        %v1546 = vshll.u32 2131351028, %v1537
        %v1547 = vshrl.u32 2102212464, %v1538
        %v1548 = vor.u32 %v1546, %v1547
        %v1549 = vshll.u32 2102212464, %v1537
        %v1550 = vshrl.u32 920167782, %v1538
        %v1551 = vor.u32 %v1549, %v1550
        %v1552 = vshll.u32 920167782, %v1537
        %v1553 = vshrl.u32 1326507024, %v1538
        %v1554 = vor.u32 %v1552, %v1553
        %vm1555 = vcmp.lt.s32.totalorder %v1536, 1
        %vm1556 = vcmp.lt.s32.totalorder %v1536, 2
        %vm1557 = vcmp.lt.s32.totalorder %v1536, 3
        %vm1558 = vcmp.lt.s32.totalorder %v1536, 4
        %v1559 = vsel %vm1555, %v1539, %v1542
        %v1560 = vsel %vm1558, %v1548, 2102212464
        %v1561 = vsel %vm1557, %v1545, %v1560
        %v1562 = vsel %vm1556, %v1559, %v1561
        %v1563 = vsel %vm1555, %v1542, %v1545
        %v1564 = vsel %vm1558, %v1551, 920167782
        %v1565 = vsel %vm1557, %v1548, %v1564
        %v1566 = vsel %vm1556, %v1563, %v1565
        %v1567 = vsel %vm1555, %v1545, %v1548
        %v1568 = vsel %vm1558, %v1554, 1326507024
        %v1569 = vsel %vm1557, %v1551, %v1568
        %v1570 = vsel %vm1556, %v1567, %v1569
        %v1571 = vshll.u32 %v1531, 8
        %v1572 = vmul.u32.u64.compose %v1571, %v1570
        %v1573 = vextract.low.u32 %v1572
        %v1574 = vextract.high.u32 %v1572
        %v1575 = vmul.u32.u64.compose %v1571, %v1566
        %v1576 = vextract.low.u32 %v1575
        %v1577 = vextract.high.u32 %v1575
        %v1578 = vmul.u32 %v1571, %v1562
        %v1579 = vadd.s32 %v1574, %v1576
        %vm1580 = vc.u32 %v1574, %v1576
        %v1581 = vadd.s32 %v1577, 1
        %v1582 = vsel %vm1580, %v1581, %v1577
        %v1583 = vadd.s32 %v1578, %v1582
        %v1584 = vadd.s32 %v1583, 536870912
        %v1585 = vshrl.u32 %v1584, 30
        %v1586 = vshll.u32 %v1585, 30
        %v1587 = vsub.s32 %v1583, %v1586
        %vm1588 = vcmp.lt.s32.totalorder %v1587, 0
        %v1589 = vsub.s32 0, %v1587
        %v1590 = vsel %vm1588, %v1589, %v1587
        %v1591 = vclz %v1590
        %v1592 = vsub.s32 %v1591, 2
        %vm1593 = vcmp.gt.s32.totalorder 0, %v1592
        %v1594 = vsel %vm1593, 0, %v1592
        %v1595 = vsub.s32 32, %v1594
        %v1596 = vshll.u32 %v1587, %v1594
        %v1597 = vshrl.u32 %v1579, %v1595
        %v1598 = vor.u32 %v1596, %v1597
        %v1599 = vsub.s32 4294967266, %v1594
        %v1600 = vadd.s32 %v1599, 127
        %v1601 = vshll.u32 %v1600, 23
        %v1602 = vor.u32 4788187, %v1601
        %v1603 = vand.u32 2147483647, %v1602
        %v1605 = vcvt.s32.f32 %v1598
        %v1606 = vmul.f32 %v1605, %v1603
        %v1607 = vxor.u32 %v1606, 2147483648
        %v1608 = vsel %vm1525, %v1607, %v1606
        %v1609 = vsub.s32 4, %v1585
        %v1610 = vsel %vm1525, %v1609, %v1585
        %v1611 = vsel %vm1524, %v683, %v1608
        %v1612 = vsel %vm1524, 0, %v1610
        %v1613 = vcosq.f32.pop %v1611
        %v1614 = vsinq.f32.pop %v1611
        %vm1615 = vweird.f32 %v683
        %v1616 = vadd.s32 %v1612, 3
        %v1617 = vand.u32 %v1616, 3
        %vm1618 = vcmp.lt.s32.totalorder %v1617, 2
        %vm1619 = vcmp.eq.s32.totalorder %v1617, 0
        %v1620 = vxor.u32 %v1614, 2147483648
        %v1621 = vsel %vm1619, %v1613, %v1620
        %vm1622 = vcmp.eq.s32.totalorder %v1617, 2
        %v1623 = vxor.u32 %v1613, 2147483648
        %v1624 = vsel %vm1622, %v1623, %v1614
        %v1625 = vsel %vm1618, %v1621, %v1624
        %v1626 = vsel %vm1615, nan, %v1625
        %v1627 = vand.u32 2147483647, %v684
        %vm1628 = vcmp.le.f32.partialorder %v1627, 0.7853982
        %vm1629 = vcmp.lt.s32.totalorder %v684, 0
        %v1630 = vand.u32 %v684, 2139095040
        %v1631 = vshrl.u32 %v1630, 23
        %v1632 = vsub.s32 %v1631, 127
        %v1633 = vand.u32 2147483647, %v684
        %v1634 = vand.u32 %v1633, 8388607
        %v1635 = vor.u32 %v1634, 8388608
        %v1636 = vsub.s32 0, %v1635
        %v1637 = vadd.s32 %v1632, 1
        %vm1638 = vcmp.gt.s32.totalorder %v1637, 0
        %v1639 = vsel %vm1638, %v1637, 0
        %v1640 = vshrl.u32 %v1639, 5
        %v1641 = vand.u32 %v1639, 31
        %v1642 = vsub.s32 32, %v1641
        %v1643 = vshrl.u32 683565275, %v1642
        %v1644 = vshll.u32 683565275, %v1641
        %v1645 = vshrl.u32 2475754826, %v1642
        %v1646 = vor.u32 %v1644, %v1645
        %v1647 = vshll.u32 2475754826, %v1641
        %v1648 = vshrl.u32 2131351028, %v1642
        %v1649 = vor.u32 %v1647, %v1648
        %v1650 = vshll.u32 2131351028, %v1641
        %v1651 = vshrl.u32 2102212464, %v1642
        %v1652 = vor.u32 %v1650, %v1651
        %v1653 = vshll.u32 2102212464, %v1641
        %v1654 = vshrl.u32 920167782, %v1642
        %v1655 = vor.u32 %v1653, %v1654
        %v1656 = vshll.u32 920167782, %v1641
        %v1657 = vshrl.u32 1326507024, %v1642
        %v1658 = vor.u32 %v1656, %v1657
        %vm1659 = vcmp.lt.s32.totalorder %v1640, 1
        %vm1660 = vcmp.lt.s32.totalorder %v1640, 2
        %vm1661 = vcmp.lt.s32.totalorder %v1640, 3
        %vm1662 = vcmp.lt.s32.totalorder %v1640, 4
        %v1663 = vsel %vm1659, %v1643, %v1646
        %v1664 = vsel %vm1662, %v1652, 2102212464
        %v1665 = vsel %vm1661, %v1649, %v1664
        %v1666 = vsel %vm1660, %v1663, %v1665
        %v1667 = vsel %vm1659, %v1646, %v1649
        %v1668 = vsel %vm1662, %v1655, 920167782
        %v1669 = vsel %vm1661, %v1652, %v1668
        %v1670 = vsel %vm1660, %v1667, %v1669
        %v1671 = vsel %vm1659, %v1649, %v1652
        %v1672 = vsel %vm1662, %v1658, 1326507024
        %v1673 = vsel %vm1661, %v1655, %v1672
        %v1674 = vsel %vm1660, %v1671, %v1673
        %v1675 = vshll.u32 %v1635, 8
        %v1676 = vmul.u32.u64.compose %v1675, %v1674
        %v1677 = vextract.low.u32 %v1676
        %v1678 = vextract.high.u32 %v1676
        %v1679 = vmul.u32.u64.compose %v1675, %v1670
        %v1680 = vextract.low.u32 %v1679
        %v1681 = vextract.high.u32 %v1679
        %v1682 = vmul.u32 %v1675, %v1666
        %v1683 = vadd.s32 %v1678, %v1680
        %vm1684 = vc.u32 %v1678, %v1680
        %v1685 = vadd.s32 %v1681, 1
        %v1686 = vsel %vm1684, %v1685, %v1681
        %v1687 = vadd.s32 %v1682, %v1686
        %v1688 = vadd.s32 %v1687, 536870912
        %v1689 = vshrl.u32 %v1688, 30
        %v1690 = vshll.u32 %v1689, 30
        %v1691 = vsub.s32 %v1687, %v1690
        %vm1692 = vcmp.lt.s32.totalorder %v1691, 0
        %v1693 = vsub.s32 0, %v1691
        %v1694 = vsel %vm1692, %v1693, %v1691
        %v1695 = vclz %v1694
        %v1696 = vsub.s32 %v1695, 2
        %vm1697 = vcmp.gt.s32.totalorder 0, %v1696
        %v1698 = vsel %vm1697, 0, %v1696
        %v1699 = vsub.s32 32, %v1698
        %v1700 = vshll.u32 %v1691, %v1698
        %v1701 = vshrl.u32 %v1683, %v1699
        %v1702 = vor.u32 %v1700, %v1701
        %v1703 = vsub.s32 4294967266, %v1698
        %v1704 = vadd.s32 %v1703, 127
        %v1705 = vshll.u32 %v1704, 23
        %v1706 = vor.u32 4788187, %v1705
        %v1707 = vand.u32 2147483647, %v1706
        %v1709 = vcvt.s32.f32 %v1702
        %v1710 = vmul.f32 %v1709, %v1707
        %v1711 = vxor.u32 %v1710, 2147483648
        %v1712 = vsel %vm1629, %v1711, %v1710
        %v1713 = vsub.s32 4, %v1689
        %v1714 = vsel %vm1629, %v1713, %v1689
        %v1715 = vsel %vm1628, %v684, %v1712
        %v1716 = vsel %vm1628, 0, %v1714
        %v1717 = vcosq.f32.pop %v1715
        %v1718 = vsinq.f32.pop %v1715
        %vm1719 = vweird.f32 %v684
        %v1720 = vadd.s32 %v1716, 3
        %v1721 = vand.u32 %v1720, 3
        %vm1722 = vcmp.lt.s32.totalorder %v1721, 2
        %vm1723 = vcmp.eq.s32.totalorder %v1721, 0
        %v1724 = vxor.u32 %v1718, 2147483648
        %v1725 = vsel %vm1723, %v1717, %v1724
        %vm1726 = vcmp.eq.s32.totalorder %v1721, 2
        %v1727 = vxor.u32 %v1717, 2147483648
        %v1728 = vsel %vm1726, %v1727, %v1718
        %v1729 = vsel %vm1722, %v1725, %v1728
        %v1730 = vsel %vm1719, nan, %v1729
        %v1731 = vand.u32 2147483647, %v685
        %vm1732 = vcmp.le.f32.partialorder %v1731, 0.7853982
        %vm1733 = vcmp.lt.s32.totalorder %v685, 0
        %v1734 = vand.u32 %v685, 2139095040
        %v1735 = vshrl.u32 %v1734, 23
        %v1736 = vsub.s32 %v1735, 127
        %v1737 = vand.u32 2147483647, %v685
        %v1738 = vand.u32 %v1737, 8388607
        %v1739 = vor.u32 %v1738, 8388608
        %v1740 = vsub.s32 0, %v1739
        %v1741 = vadd.s32 %v1736, 1
        %vm1742 = vcmp.gt.s32.totalorder %v1741, 0
        %v1743 = vsel %vm1742, %v1741, 0
        %v1744 = vshrl.u32 %v1743, 5
        %v1745 = vand.u32 %v1743, 31
        %v1746 = vsub.s32 32, %v1745
        %v1747 = vshrl.u32 683565275, %v1746
        %v1748 = vshll.u32 683565275, %v1745
        %v1749 = vshrl.u32 2475754826, %v1746
        %v1750 = vor.u32 %v1748, %v1749
        %v1751 = vshll.u32 2475754826, %v1745
        %v1752 = vshrl.u32 2131351028, %v1746
        %v1753 = vor.u32 %v1751, %v1752
        %v1754 = vshll.u32 2131351028, %v1745
        %v1755 = vshrl.u32 2102212464, %v1746
        %v1756 = vor.u32 %v1754, %v1755
        %v1757 = vshll.u32 2102212464, %v1745
        %v1758 = vshrl.u32 920167782, %v1746
        %v1759 = vor.u32 %v1757, %v1758
        %v1760 = vshll.u32 920167782, %v1745
        %v1761 = vshrl.u32 1326507024, %v1746
        %v1762 = vor.u32 %v1760, %v1761
        %vm1763 = vcmp.lt.s32.totalorder %v1744, 1
        %vm1764 = vcmp.lt.s32.totalorder %v1744, 2
        %vm1765 = vcmp.lt.s32.totalorder %v1744, 3
        %vm1766 = vcmp.lt.s32.totalorder %v1744, 4
        %v1767 = vsel %vm1763, %v1747, %v1750
        %v1768 = vsel %vm1766, %v1756, 2102212464
        %v1769 = vsel %vm1765, %v1753, %v1768
        %v1770 = vsel %vm1764, %v1767, %v1769
        %v1771 = vsel %vm1763, %v1750, %v1753
        %v1772 = vsel %vm1766, %v1759, 920167782
        %v1773 = vsel %vm1765, %v1756, %v1772
        %v1774 = vsel %vm1764, %v1771, %v1773
        %v1775 = vsel %vm1763, %v1753, %v1756
        %v1776 = vsel %vm1766, %v1762, 1326507024
        %v1777 = vsel %vm1765, %v1759, %v1776
        %v1778 = vsel %vm1764, %v1775, %v1777
        %v1779 = vshll.u32 %v1739, 8
        %v1780 = vmul.u32.u64.compose %v1779, %v1778
        %v1781 = vextract.low.u32 %v1780
        %v1782 = vextract.high.u32 %v1780
        %v1783 = vmul.u32.u64.compose %v1779, %v1774
        %v1784 = vextract.low.u32 %v1783
        %v1785 = vextract.high.u32 %v1783
        %v1786 = vmul.u32 %v1779, %v1770
        %v1787 = vadd.s32 %v1782, %v1784
        %vm1788 = vc.u32 %v1782, %v1784
        %v1789 = vadd.s32 %v1785, 1
        %v1790 = vsel %vm1788, %v1789, %v1785
        %v1791 = vadd.s32 %v1786, %v1790
        %v1792 = vadd.s32 %v1791, 536870912
        %v1793 = vshrl.u32 %v1792, 30
        %v1794 = vshll.u32 %v1793, 30
        %v1795 = vsub.s32 %v1791, %v1794
        %vm1796 = vcmp.lt.s32.totalorder %v1795, 0
        %v1797 = vsub.s32 0, %v1795
        %v1798 = vsel %vm1796, %v1797, %v1795
        %v1799 = vclz %v1798
        %v1800 = vsub.s32 %v1799, 2
        %vm1801 = vcmp.gt.s32.totalorder 0, %v1800
        %v1802 = vsel %vm1801, 0, %v1800
        %v1803 = vsub.s32 32, %v1802
        %v1804 = vshll.u32 %v1795, %v1802
        %v1805 = vshrl.u32 %v1787, %v1803
        %v1806 = vor.u32 %v1804, %v1805
        %v1807 = vsub.s32 4294967266, %v1802
        %v1808 = vadd.s32 %v1807, 127
        %v1809 = vshll.u32 %v1808, 23
        %v1810 = vor.u32 4788187, %v1809
        %v1811 = vand.u32 2147483647, %v1810
        %v1813 = vcvt.s32.f32 %v1806
        %v1814 = vmul.f32 %v1813, %v1811
        %v1815 = vxor.u32 %v1814, 2147483648
        %v1816 = vsel %vm1733, %v1815, %v1814
        %v1817 = vsub.s32 4, %v1793
        %v1818 = vsel %vm1733, %v1817, %v1793
        %v1819 = vsel %vm1732, %v685, %v1816
        %v1820 = vsel %vm1732, 0, %v1818
        %v1821 = vcosq.f32.pop %v1819
        %v1822 = vsinq.f32.pop %v1819
        %vm1823 = vweird.f32 %v685
        %v1824 = vadd.s32 %v1820, 3
        %v1825 = vand.u32 %v1824, 3
        %vm1826 = vcmp.lt.s32.totalorder %v1825, 2
        %vm1827 = vcmp.eq.s32.totalorder %v1825, 0
        %v1828 = vxor.u32 %v1822, 2147483648
        %v1829 = vsel %vm1827, %v1821, %v1828
        %vm1830 = vcmp.eq.s32.totalorder %v1825, 2
        %v1831 = vxor.u32 %v1821, 2147483648
        %v1832 = vsel %vm1830, %v1831, %v1822
        %v1833 = vsel %vm1826, %v1829, %v1832
        %v1834 = vsel %vm1823, nan, %v1833
        %v1835 = vand.u32 2147483647, %v686
        %vm1836 = vcmp.le.f32.partialorder %v1835, 0.7853982
        %vm1837 = vcmp.lt.s32.totalorder %v686, 0
        %v1838 = vand.u32 %v686, 2139095040
        %v1839 = vshrl.u32 %v1838, 23
        %v1840 = vsub.s32 %v1839, 127
        %v1841 = vand.u32 2147483647, %v686
        %v1842 = vand.u32 %v1841, 8388607
        %v1843 = vor.u32 %v1842, 8388608
        %v1844 = vsub.s32 0, %v1843
        %v1845 = vadd.s32 %v1840, 1
        %vm1846 = vcmp.gt.s32.totalorder %v1845, 0
        %v1847 = vsel %vm1846, %v1845, 0
        %v1848 = vshrl.u32 %v1847, 5
        %v1849 = vand.u32 %v1847, 31
        %v1850 = vsub.s32 32, %v1849
        %v1851 = vshrl.u32 683565275, %v1850
        %v1852 = vshll.u32 683565275, %v1849
        %v1853 = vshrl.u32 2475754826, %v1850
        %v1854 = vor.u32 %v1852, %v1853
        %v1855 = vshll.u32 2475754826, %v1849
        %v1856 = vshrl.u32 2131351028, %v1850
        %v1857 = vor.u32 %v1855, %v1856
        %v1858 = vshll.u32 2131351028, %v1849
        %v1859 = vshrl.u32 2102212464, %v1850
        %v1860 = vor.u32 %v1858, %v1859
        %v1861 = vshll.u32 2102212464, %v1849
        %v1862 = vshrl.u32 920167782, %v1850
        %v1863 = vor.u32 %v1861, %v1862
        %v1864 = vshll.u32 920167782, %v1849
        %v1865 = vshrl.u32 1326507024, %v1850
        %v1866 = vor.u32 %v1864, %v1865
        %vm1867 = vcmp.lt.s32.totalorder %v1848, 1
        %vm1868 = vcmp.lt.s32.totalorder %v1848, 2
        %vm1869 = vcmp.lt.s32.totalorder %v1848, 3
        %vm1870 = vcmp.lt.s32.totalorder %v1848, 4
        %v1871 = vsel %vm1867, %v1851, %v1854
        %v1872 = vsel %vm1870, %v1860, 2102212464
        %v1873 = vsel %vm1869, %v1857, %v1872
        %v1874 = vsel %vm1868, %v1871, %v1873
        %v1875 = vsel %vm1867, %v1854, %v1857
        %v1876 = vsel %vm1870, %v1863, 920167782
        %v1877 = vsel %vm1869, %v1860, %v1876
        %v1878 = vsel %vm1868, %v1875, %v1877
        %v1879 = vsel %vm1867, %v1857, %v1860
        %v1880 = vsel %vm1870, %v1866, 1326507024
        %v1881 = vsel %vm1869, %v1863, %v1880
        %v1882 = vsel %vm1868, %v1879, %v1881
        %v1883 = vshll.u32 %v1843, 8
        %v1884 = vmul.u32.u64.compose %v1883, %v1882
        %v1885 = vextract.low.u32 %v1884
        %v1886 = vextract.high.u32 %v1884
        %v1887 = vmul.u32.u64.compose %v1883, %v1878
        %v1888 = vextract.low.u32 %v1887
        %v1889 = vextract.high.u32 %v1887
        %v1890 = vmul.u32 %v1883, %v1874
        %v1891 = vadd.s32 %v1886, %v1888
        %vm1892 = vc.u32 %v1886, %v1888
        %v1893 = vadd.s32 %v1889, 1
        %v1894 = vsel %vm1892, %v1893, %v1889
        %v1895 = vadd.s32 %v1890, %v1894
        %v1896 = vadd.s32 %v1895, 536870912
        %v1897 = vshrl.u32 %v1896, 30
        %v1898 = vshll.u32 %v1897, 30
        %v1899 = vsub.s32 %v1895, %v1898
        %vm1900 = vcmp.lt.s32.totalorder %v1899, 0
        %v1901 = vsub.s32 0, %v1899
        %v1902 = vsel %vm1900, %v1901, %v1899
        %v1903 = vclz %v1902
        %v1904 = vsub.s32 %v1903, 2
        %vm1905 = vcmp.gt.s32.totalorder 0, %v1904
        %v1906 = vsel %vm1905, 0, %v1904
        %v1907 = vsub.s32 32, %v1906
        %v1908 = vshll.u32 %v1899, %v1906
        %v1909 = vshrl.u32 %v1891, %v1907
        %v1910 = vor.u32 %v1908, %v1909
        %v1911 = vsub.s32 4294967266, %v1906
        %v1912 = vadd.s32 %v1911, 127
        %v1913 = vshll.u32 %v1912, 23
        %v1914 = vor.u32 4788187, %v1913
        %v1915 = vand.u32 2147483647, %v1914
        %v1917 = vcvt.s32.f32 %v1910
        %v1918 = vmul.f32 %v1917, %v1915
        %v1919 = vxor.u32 %v1918, 2147483648
        %v1920 = vsel %vm1837, %v1919, %v1918
        %v1921 = vsub.s32 4, %v1897
        %v1922 = vsel %vm1837, %v1921, %v1897
        %v1923 = vsel %vm1836, %v686, %v1920
        %v1924 = vsel %vm1836, 0, %v1922
        %v1925 = vcosq.f32.pop %v1923
        %v1926 = vsinq.f32.pop %v1923
        %vm1927 = vweird.f32 %v686
        %v1928 = vadd.s32 %v1924, 3
        %v1929 = vand.u32 %v1928, 3
        %vm1930 = vcmp.lt.s32.totalorder %v1929, 2
        %vm1931 = vcmp.eq.s32.totalorder %v1929, 0
        %v1932 = vxor.u32 %v1926, 2147483648
        %v1933 = vsel %vm1931, %v1925, %v1932
        %vm1934 = vcmp.eq.s32.totalorder %v1929, 2
        %v1935 = vxor.u32 %v1925, 2147483648
        %v1936 = vsel %vm1934, %v1935, %v1926
        %v1937 = vsel %vm1930, %v1933, %v1936
        %v1938 = vsel %vm1927, nan, %v1937
        %v1939 = vand.u32 2147483647, %v687
        %vm1940 = vcmp.le.f32.partialorder %v1939, 0.7853982
        %vm1941 = vcmp.lt.s32.totalorder %v687, 0
        %v1942 = vand.u32 %v687, 2139095040
        %v1943 = vshrl.u32 %v1942, 23
        %v1944 = vsub.s32 %v1943, 127
        %v1945 = vand.u32 2147483647, %v687
        %v1946 = vand.u32 %v1945, 8388607
        %v1947 = vor.u32 %v1946, 8388608
        %v1948 = vsub.s32 0, %v1947
        %v1949 = vadd.s32 %v1944, 1
        %vm1950 = vcmp.gt.s32.totalorder %v1949, 0
        %v1951 = vsel %vm1950, %v1949, 0
        %v1952 = vshrl.u32 %v1951, 5
        %v1953 = vand.u32 %v1951, 31
        %v1954 = vsub.s32 32, %v1953
        %v1955 = vshrl.u32 683565275, %v1954
        %v1956 = vshll.u32 683565275, %v1953
        %v1957 = vshrl.u32 2475754826, %v1954
        %v1958 = vor.u32 %v1956, %v1957
        %v1959 = vshll.u32 2475754826, %v1953
        %v1960 = vshrl.u32 2131351028, %v1954
        %v1961 = vor.u32 %v1959, %v1960
        %v1962 = vshll.u32 2131351028, %v1953
        %v1963 = vshrl.u32 2102212464, %v1954
        %v1964 = vor.u32 %v1962, %v1963
        %v1965 = vshll.u32 2102212464, %v1953
        %v1966 = vshrl.u32 920167782, %v1954
        %v1967 = vor.u32 %v1965, %v1966
        %v1968 = vshll.u32 920167782, %v1953
        %v1969 = vshrl.u32 1326507024, %v1954
        %v1970 = vor.u32 %v1968, %v1969
        %vm1971 = vcmp.lt.s32.totalorder %v1952, 1
        %vm1972 = vcmp.lt.s32.totalorder %v1952, 2
        %vm1973 = vcmp.lt.s32.totalorder %v1952, 3
        %vm1974 = vcmp.lt.s32.totalorder %v1952, 4
        %v1975 = vsel %vm1971, %v1955, %v1958
        %v1976 = vsel %vm1974, %v1964, 2102212464
        %v1977 = vsel %vm1973, %v1961, %v1976
        %v1978 = vsel %vm1972, %v1975, %v1977
        %v1979 = vsel %vm1971, %v1958, %v1961
        %v1980 = vsel %vm1974, %v1967, 920167782
        %v1981 = vsel %vm1973, %v1964, %v1980
        %v1982 = vsel %vm1972, %v1979, %v1981
        %v1983 = vsel %vm1971, %v1961, %v1964
        %v1984 = vsel %vm1974, %v1970, 1326507024
        %v1985 = vsel %vm1973, %v1967, %v1984
        %v1986 = vsel %vm1972, %v1983, %v1985
        %v1987 = vshll.u32 %v1947, 8
        %v1988 = vmul.u32.u64.compose %v1987, %v1986
        %v1989 = vextract.low.u32 %v1988
        %v1990 = vextract.high.u32 %v1988
        %v1991 = vmul.u32.u64.compose %v1987, %v1982
        %v1992 = vextract.low.u32 %v1991
        %v1993 = vextract.high.u32 %v1991
        %v1994 = vmul.u32 %v1987, %v1978
        %v1995 = vadd.s32 %v1990, %v1992
        %vm1996 = vc.u32 %v1990, %v1992
        %v1997 = vadd.s32 %v1993, 1
        %v1998 = vsel %vm1996, %v1997, %v1993
        %v1999 = vadd.s32 %v1994, %v1998
        %v2000 = vadd.s32 %v1999, 536870912
        %v2001 = vshrl.u32 %v2000, 30
        %v2002 = vshll.u32 %v2001, 30
        %v2003 = vsub.s32 %v1999, %v2002
        %vm2004 = vcmp.lt.s32.totalorder %v2003, 0
        %v2005 = vsub.s32 0, %v2003
        %v2006 = vsel %vm2004, %v2005, %v2003
        %v2007 = vclz %v2006
        %v2008 = vsub.s32 %v2007, 2
        %vm2009 = vcmp.gt.s32.totalorder 0, %v2008
        %v2010 = vsel %vm2009, 0, %v2008
        %v2011 = vsub.s32 32, %v2010
        %v2012 = vshll.u32 %v2003, %v2010
        %v2013 = vshrl.u32 %v1995, %v2011
        %v2014 = vor.u32 %v2012, %v2013
        %v2015 = vsub.s32 4294967266, %v2010
        %v2016 = vadd.s32 %v2015, 127
        %v2017 = vshll.u32 %v2016, 23
        %v2018 = vor.u32 4788187, %v2017
        %v2019 = vand.u32 2147483647, %v2018
        %v2021 = vcvt.s32.f32 %v2014
        %v2022 = vmul.f32 %v2021, %v2019
        %v2023 = vxor.u32 %v2022, 2147483648
        %v2024 = vsel %vm1941, %v2023, %v2022
        %v2025 = vsub.s32 4, %v2001
        %v2026 = vsel %vm1941, %v2025, %v2001
        %v2027 = vsel %vm1940, %v687, %v2024
        %v2028 = vsel %vm1940, 0, %v2026
        %v2029 = vcosq.f32.pop %v2027
        %v2030 = vsinq.f32.pop %v2027
        %vm2031 = vweird.f32 %v687
        %v2032 = vadd.s32 %v2028, 3
        %v2033 = vand.u32 %v2032, 3
        %vm2034 = vcmp.lt.s32.totalorder %v2033, 2
        %vm2035 = vcmp.eq.s32.totalorder %v2033, 0
        %v2036 = vxor.u32 %v2030, 2147483648
        %v2037 = vsel %vm2035, %v2029, %v2036
        %vm2038 = vcmp.eq.s32.totalorder %v2033, 2
        %v2039 = vxor.u32 %v2029, 2147483648
        %v2040 = vsel %vm2038, %v2039, %v2030
        %v2041 = vsel %vm2034, %v2037, %v2040
        %v2042 = vsel %vm2031, nan, %v2041
        %v2043 = vand.u32 2147483647, %v688
        %vm2044 = vcmp.le.f32.partialorder %v2043, 0.7853982
        %vm2045 = vcmp.lt.s32.totalorder %v688, 0
        %v2046 = vand.u32 %v688, 2139095040
        %v2047 = vshrl.u32 %v2046, 23
        %v2048 = vsub.s32 %v2047, 127
        %v2049 = vand.u32 2147483647, %v688
        %v2050 = vand.u32 %v2049, 8388607
        %v2051 = vor.u32 %v2050, 8388608
        %v2052 = vsub.s32 0, %v2051
        %v2053 = vadd.s32 %v2048, 1
        %vm2054 = vcmp.gt.s32.totalorder %v2053, 0
        %v2055 = vsel %vm2054, %v2053, 0
        %v2056 = vshrl.u32 %v2055, 5
        %v2057 = vand.u32 %v2055, 31
        %v2058 = vsub.s32 32, %v2057
        %v2059 = vshrl.u32 683565275, %v2058
        %v2060 = vshll.u32 683565275, %v2057
        %v2061 = vshrl.u32 2475754826, %v2058
        %v2062 = vor.u32 %v2060, %v2061
        %v2063 = vshll.u32 2475754826, %v2057
        %v2064 = vshrl.u32 2131351028, %v2058
        %v2065 = vor.u32 %v2063, %v2064
        %v2066 = vshll.u32 2131351028, %v2057
        %v2067 = vshrl.u32 2102212464, %v2058
        %v2068 = vor.u32 %v2066, %v2067
        %v2069 = vshll.u32 2102212464, %v2057
        %v2070 = vshrl.u32 920167782, %v2058
        %v2071 = vor.u32 %v2069, %v2070
        %v2072 = vshll.u32 920167782, %v2057
        %v2073 = vshrl.u32 1326507024, %v2058
        %v2074 = vor.u32 %v2072, %v2073
        %vm2075 = vcmp.lt.s32.totalorder %v2056, 1
        %vm2076 = vcmp.lt.s32.totalorder %v2056, 2
        %vm2077 = vcmp.lt.s32.totalorder %v2056, 3
        %vm2078 = vcmp.lt.s32.totalorder %v2056, 4
        %v2079 = vsel %vm2075, %v2059, %v2062
        %v2080 = vsel %vm2078, %v2068, 2102212464
        %v2081 = vsel %vm2077, %v2065, %v2080
        %v2082 = vsel %vm2076, %v2079, %v2081
        %v2083 = vsel %vm2075, %v2062, %v2065
        %v2084 = vsel %vm2078, %v2071, 920167782
        %v2085 = vsel %vm2077, %v2068, %v2084
        %v2086 = vsel %vm2076, %v2083, %v2085
        %v2087 = vsel %vm2075, %v2065, %v2068
        %v2088 = vsel %vm2078, %v2074, 1326507024
        %v2089 = vsel %vm2077, %v2071, %v2088
        %v2090 = vsel %vm2076, %v2087, %v2089
        %v2091 = vshll.u32 %v2051, 8
        %v2092 = vmul.u32.u64.compose %v2091, %v2090
        %v2093 = vextract.low.u32 %v2092
        %v2094 = vextract.high.u32 %v2092
        %v2095 = vmul.u32.u64.compose %v2091, %v2086
        %v2096 = vextract.low.u32 %v2095
        %v2097 = vextract.high.u32 %v2095
        %v2098 = vmul.u32 %v2091, %v2082
        %v2099 = vadd.s32 %v2094, %v2096
        %vm2100 = vc.u32 %v2094, %v2096
        %v2101 = vadd.s32 %v2097, 1
        %v2102 = vsel %vm2100, %v2101, %v2097
        %v2103 = vadd.s32 %v2098, %v2102
        %v2104 = vadd.s32 %v2103, 536870912
        %v2105 = vshrl.u32 %v2104, 30
        %v2106 = vshll.u32 %v2105, 30
        %v2107 = vsub.s32 %v2103, %v2106
        %vm2108 = vcmp.lt.s32.totalorder %v2107, 0
        %v2109 = vsub.s32 0, %v2107
        %v2110 = vsel %vm2108, %v2109, %v2107
        %v2111 = vclz %v2110
        %v2112 = vsub.s32 %v2111, 2
        %vm2113 = vcmp.gt.s32.totalorder 0, %v2112
        %v2114 = vsel %vm2113, 0, %v2112
        %v2115 = vsub.s32 32, %v2114
        %v2116 = vshll.u32 %v2107, %v2114
        %v2117 = vshrl.u32 %v2099, %v2115
        %v2118 = vor.u32 %v2116, %v2117
        %v2119 = vsub.s32 4294967266, %v2114
        %v2120 = vadd.s32 %v2119, 127
        %v2121 = vshll.u32 %v2120, 23
        %v2122 = vor.u32 4788187, %v2121
        %v2123 = vand.u32 2147483647, %v2122
        %v2125 = vcvt.s32.f32 %v2118
        %v2126 = vmul.f32 %v2125, %v2123
        %v2127 = vxor.u32 %v2126, 2147483648
        %v2128 = vsel %vm2045, %v2127, %v2126
        %v2129 = vsub.s32 4, %v2105
        %v2130 = vsel %vm2045, %v2129, %v2105
        %v2131 = vsel %vm2044, %v688, %v2128
        %v2132 = vsel %vm2044, 0, %v2130
        %v2133 = vcosq.f32.pop %v2131
        %v2134 = vsinq.f32.pop %v2131
        %vm2135 = vweird.f32 %v688
        %v2136 = vadd.s32 %v2132, 3
        %v2137 = vand.u32 %v2136, 3
        %vm2138 = vcmp.lt.s32.totalorder %v2137, 2
        %vm2139 = vcmp.eq.s32.totalorder %v2137, 0
        %v2140 = vxor.u32 %v2134, 2147483648
        %v2141 = vsel %vm2139, %v2133, %v2140
        %vm2142 = vcmp.eq.s32.totalorder %v2137, 2
        %v2143 = vxor.u32 %v2133, 2147483648
        %v2144 = vsel %vm2142, %v2143, %v2134
        %v2145 = vsel %vm2138, %v2141, %v2144
        %v2146 = vsel %vm2135, nan, %v2145
        %v2147 = vand.u32 2147483647, %v689
        %vm2148 = vcmp.le.f32.partialorder %v2147, 0.7853982
        %vm2149 = vcmp.lt.s32.totalorder %v689, 0
        %v2150 = vand.u32 %v689, 2139095040
        %v2151 = vshrl.u32 %v2150, 23
        %v2152 = vsub.s32 %v2151, 127
        %v2153 = vand.u32 2147483647, %v689
        %v2154 = vand.u32 %v2153, 8388607
        %v2155 = vor.u32 %v2154, 8388608
        %v2156 = vsub.s32 0, %v2155
        %v2157 = vadd.s32 %v2152, 1
        %vm2158 = vcmp.gt.s32.totalorder %v2157, 0
        %v2159 = vsel %vm2158, %v2157, 0
        %v2160 = vshrl.u32 %v2159, 5
        %v2161 = vand.u32 %v2159, 31
        %v2162 = vsub.s32 32, %v2161
        %v2163 = vshrl.u32 683565275, %v2162
        %v2164 = vshll.u32 683565275, %v2161
        %v2165 = vshrl.u32 2475754826, %v2162
        %v2166 = vor.u32 %v2164, %v2165
        %v2167 = vshll.u32 2475754826, %v2161
        %v2168 = vshrl.u32 2131351028, %v2162
        %v2169 = vor.u32 %v2167, %v2168
        %v2170 = vshll.u32 2131351028, %v2161
        %v2171 = vshrl.u32 2102212464, %v2162
        %v2172 = vor.u32 %v2170, %v2171
        %v2173 = vshll.u32 2102212464, %v2161
        %v2174 = vshrl.u32 920167782, %v2162
        %v2175 = vor.u32 %v2173, %v2174
        %v2176 = vshll.u32 920167782, %v2161
        %v2177 = vshrl.u32 1326507024, %v2162
        %v2178 = vor.u32 %v2176, %v2177
        %vm2179 = vcmp.lt.s32.totalorder %v2160, 1
        %vm2180 = vcmp.lt.s32.totalorder %v2160, 2
        %vm2181 = vcmp.lt.s32.totalorder %v2160, 3
        %vm2182 = vcmp.lt.s32.totalorder %v2160, 4
        %v2183 = vsel %vm2179, %v2163, %v2166
        %v2184 = vsel %vm2182, %v2172, 2102212464
        %v2185 = vsel %vm2181, %v2169, %v2184
        %v2186 = vsel %vm2180, %v2183, %v2185
        %v2187 = vsel %vm2179, %v2166, %v2169
        %v2188 = vsel %vm2182, %v2175, 920167782
        %v2189 = vsel %vm2181, %v2172, %v2188
        %v2190 = vsel %vm2180, %v2187, %v2189
        %v2191 = vsel %vm2179, %v2169, %v2172
        %v2192 = vsel %vm2182, %v2178, 1326507024
        %v2193 = vsel %vm2181, %v2175, %v2192
        %v2194 = vsel %vm2180, %v2191, %v2193
        %v2195 = vshll.u32 %v2155, 8
        %v2196 = vmul.u32.u64.compose %v2195, %v2194
        %v2197 = vextract.low.u32 %v2196
        %v2198 = vextract.high.u32 %v2196
        %v2199 = vmul.u32.u64.compose %v2195, %v2190
        %v2200 = vextract.low.u32 %v2199
        %v2201 = vextract.high.u32 %v2199
        %v2202 = vmul.u32 %v2195, %v2186
        %v2203 = vadd.s32 %v2198, %v2200
        %vm2204 = vc.u32 %v2198, %v2200
        %v2205 = vadd.s32 %v2201, 1
        %v2206 = vsel %vm2204, %v2205, %v2201
        %v2207 = vadd.s32 %v2202, %v2206
        %v2208 = vadd.s32 %v2207, 536870912
        %v2209 = vshrl.u32 %v2208, 30
        %v2210 = vshll.u32 %v2209, 30
        %v2211 = vsub.s32 %v2207, %v2210
        %vm2212 = vcmp.lt.s32.totalorder %v2211, 0
        %v2213 = vsub.s32 0, %v2211
        %v2214 = vsel %vm2212, %v2213, %v2211
        %v2215 = vclz %v2214
        %v2216 = vsub.s32 %v2215, 2
        %vm2217 = vcmp.gt.s32.totalorder 0, %v2216
        %v2218 = vsel %vm2217, 0, %v2216
        %v2219 = vsub.s32 32, %v2218
        %v2220 = vshll.u32 %v2211, %v2218
        %v2221 = vshrl.u32 %v2203, %v2219
        %v2222 = vor.u32 %v2220, %v2221
        %v2223 = vsub.s32 4294967266, %v2218
        %v2224 = vadd.s32 %v2223, 127
        %v2225 = vshll.u32 %v2224, 23
        %v2226 = vor.u32 4788187, %v2225
        %v2227 = vand.u32 2147483647, %v2226
        %v2229 = vcvt.s32.f32 %v2222
        %v2230 = vmul.f32 %v2229, %v2227
        %v2231 = vxor.u32 %v2230, 2147483648
        %v2232 = vsel %vm2149, %v2231, %v2230
        %v2233 = vsub.s32 4, %v2209
        %v2234 = vsel %vm2149, %v2233, %v2209
        %v2235 = vsel %vm2148, %v689, %v2232
        %v2236 = vsel %vm2148, 0, %v2234
        %v2237 = vcosq.f32.pop %v2235
        %v2238 = vsinq.f32.pop %v2235
        %vm2239 = vweird.f32 %v689
        %v2240 = vadd.s32 %v2236, 3
        %v2241 = vand.u32 %v2240, 3
        %vm2242 = vcmp.lt.s32.totalorder %v2241, 2
        %vm2243 = vcmp.eq.s32.totalorder %v2241, 0
        %v2244 = vxor.u32 %v2238, 2147483648
        %v2245 = vsel %vm2243, %v2237, %v2244
        %vm2246 = vcmp.eq.s32.totalorder %v2241, 2
        %v2247 = vxor.u32 %v2237, 2147483648
        %v2248 = vsel %vm2246, %v2247, %v2238
        %v2249 = vsel %vm2242, %v2245, %v2248
        %v2250 = vsel %vm2239, nan, %v2249
        %v2251 = vand.u32 2147483647, %v690
        %vm2252 = vcmp.le.f32.partialorder %v2251, 0.7853982
        %vm2253 = vcmp.lt.s32.totalorder %v690, 0
        %v2254 = vand.u32 %v690, 2139095040
        %v2255 = vshrl.u32 %v2254, 23
        %v2256 = vsub.s32 %v2255, 127
        %v2257 = vand.u32 2147483647, %v690
        %v2258 = vand.u32 %v2257, 8388607
        %v2259 = vor.u32 %v2258, 8388608
        %v2260 = vsub.s32 0, %v2259
        %v2261 = vadd.s32 %v2256, 1
        %vm2262 = vcmp.gt.s32.totalorder %v2261, 0
        %v2263 = vsel %vm2262, %v2261, 0
        %v2264 = vshrl.u32 %v2263, 5
        %v2265 = vand.u32 %v2263, 31
        %v2266 = vsub.s32 32, %v2265
        %v2267 = vshrl.u32 683565275, %v2266
        %v2268 = vshll.u32 683565275, %v2265
        %v2269 = vshrl.u32 2475754826, %v2266
        %v2270 = vor.u32 %v2268, %v2269
        %v2271 = vshll.u32 2475754826, %v2265
        %v2272 = vshrl.u32 2131351028, %v2266
        %v2273 = vor.u32 %v2271, %v2272
        %v2274 = vshll.u32 2131351028, %v2265
        %v2275 = vshrl.u32 2102212464, %v2266
        %v2276 = vor.u32 %v2274, %v2275
        %v2277 = vshll.u32 2102212464, %v2265
        %v2278 = vshrl.u32 920167782, %v2266
        %v2279 = vor.u32 %v2277, %v2278
        %v2280 = vshll.u32 920167782, %v2265
        %v2281 = vshrl.u32 1326507024, %v2266
        %v2282 = vor.u32 %v2280, %v2281
        %vm2283 = vcmp.lt.s32.totalorder %v2264, 1
        %vm2284 = vcmp.lt.s32.totalorder %v2264, 2
        %vm2285 = vcmp.lt.s32.totalorder %v2264, 3
        %vm2286 = vcmp.lt.s32.totalorder %v2264, 4
        %v2287 = vsel %vm2283, %v2267, %v2270
        %v2288 = vsel %vm2286, %v2276, 2102212464
        %v2289 = vsel %vm2285, %v2273, %v2288
        %v2290 = vsel %vm2284, %v2287, %v2289
        %v2291 = vsel %vm2283, %v2270, %v2273
        %v2292 = vsel %vm2286, %v2279, 920167782
        %v2293 = vsel %vm2285, %v2276, %v2292
        %v2294 = vsel %vm2284, %v2291, %v2293
        %v2295 = vsel %vm2283, %v2273, %v2276
        %v2296 = vsel %vm2286, %v2282, 1326507024
        %v2297 = vsel %vm2285, %v2279, %v2296
        %v2298 = vsel %vm2284, %v2295, %v2297
        %v2299 = vshll.u32 %v2259, 8
        %v2300 = vmul.u32.u64.compose %v2299, %v2298
        %v2301 = vextract.low.u32 %v2300
        %v2302 = vextract.high.u32 %v2300
        %v2303 = vmul.u32.u64.compose %v2299, %v2294
        %v2304 = vextract.low.u32 %v2303
        %v2305 = vextract.high.u32 %v2303
        %v2306 = vmul.u32 %v2299, %v2290
        %v2307 = vadd.s32 %v2302, %v2304
        %vm2308 = vc.u32 %v2302, %v2304
        %v2309 = vadd.s32 %v2305, 1
        %v2310 = vsel %vm2308, %v2309, %v2305
        %v2311 = vadd.s32 %v2306, %v2310
        %v2312 = vadd.s32 %v2311, 536870912
        %v2313 = vshrl.u32 %v2312, 30
        %v2314 = vshll.u32 %v2313, 30
        %v2315 = vsub.s32 %v2311, %v2314
        %vm2316 = vcmp.lt.s32.totalorder %v2315, 0
        %v2317 = vsub.s32 0, %v2315
        %v2318 = vsel %vm2316, %v2317, %v2315
        %v2319 = vclz %v2318
        %v2320 = vsub.s32 %v2319, 2
        %vm2321 = vcmp.gt.s32.totalorder 0, %v2320
        %v2322 = vsel %vm2321, 0, %v2320
        %v2323 = vsub.s32 32, %v2322
        %v2324 = vshll.u32 %v2315, %v2322
        %v2325 = vshrl.u32 %v2307, %v2323
        %v2326 = vor.u32 %v2324, %v2325
        %v2327 = vsub.s32 4294967266, %v2322
        %v2328 = vadd.s32 %v2327, 127
        %v2329 = vshll.u32 %v2328, 23
        %v2330 = vor.u32 4788187, %v2329
        %v2331 = vand.u32 2147483647, %v2330
        %v2333 = vcvt.s32.f32 %v2326
        %v2334 = vmul.f32 %v2333, %v2331
        %v2335 = vxor.u32 %v2334, 2147483648
        %v2336 = vsel %vm2253, %v2335, %v2334
        %v2337 = vsub.s32 4, %v2313
        %v2338 = vsel %vm2253, %v2337, %v2313
        %v2339 = vsel %vm2252, %v690, %v2336
        %v2340 = vsel %vm2252, 0, %v2338
        %v2341 = vcosq.f32.pop %v2339
        %v2342 = vsinq.f32.pop %v2339
        %vm2343 = vweird.f32 %v690
        %v2344 = vadd.s32 %v2340, 3
        %v2345 = vand.u32 %v2344, 3
        %vm2346 = vcmp.lt.s32.totalorder %v2345, 2
        %vm2347 = vcmp.eq.s32.totalorder %v2345, 0
        %v2348 = vxor.u32 %v2342, 2147483648
        %v2349 = vsel %vm2347, %v2341, %v2348
        %vm2350 = vcmp.eq.s32.totalorder %v2345, 2
        %v2351 = vxor.u32 %v2341, 2147483648
        %v2352 = vsel %vm2350, %v2351, %v2342
        %v2353 = vsel %vm2346, %v2349, %v2352
        %v2354 = vsel %vm2343, nan, %v2353
        %2355 = vst [vmem:[#allocation3] sm:$0xff] %v1626
        %2356 = vst [vmem:[#allocation3 + $0x8] sm:$0xff] %v1730
        %2357 = vst [vmem:[#allocation3 + $0x10] sm:$0xff] %v1834
        %2358 = vst [vmem:[#allocation3 + $0x18] sm:$0xff] %v1938
        %2359 = vst [vmem:[#allocation3 + $0x20] sm:$0xff] %v2042
        %2360 = vst [vmem:[#allocation3 + $0x28] sm:$0xff] %v2146
        %2361 = vst [vmem:[#allocation3 + $0x30] sm:$0xff] %v2250
        %2362 = vst [vmem:[#allocation3 + $0x38] sm:$0xff] %v2354
        %vm2363 = vcmp.eq.s32.totalorder %v618, 0
        %v2364 = vsel %vm2363, 1, 0
        %v2365 = vcvt.s32.f32 %v2364
        loop: start=0, step=1, limit=22
        $region33: #{generator_forward.1} parent=27 // loop_pre_header
          _
        $region34: #{generator_forward.1} parent=27 // loop_header
          %s2367 = sphi 0, %s2371
          %p2368 = scmp.ge.s32.totalorder %s2367, 22
          %v2372 = vphi %v2365, %v4535
          %v2373 = vphi 0.0, %v4536
          %v2374 = vphi 0.0, %v4537
          %v2375 = vphi 0.0, %v4538
          %v2376 = vphi 0.0, %v4539
          %v2377 = vphi 0.0, %v4540
          %v2378 = vphi 0.0, %v4541
          %v2379 = vphi 0.0, %v4542
          %v2380 = vphi 0.0, %v4599
          %v2381 = vphi 0.0, %v4600
          %v2382 = vphi 0.0, %v4601
          %v2383 = vphi 0.0, %v4602
          %v2384 = vphi 0.0, %v4603
          %v2385 = vphi 0.0, %v4604
          %v2386 = vphi 0.0, %v4605
          %v2387 = vphi 0.0, %v4606
        $region35: #{generator_forward.1} parent=27 // loop_header_branch
          %2370 = sbr.rel (%p2368) target = $region39
        $region36: #{generator_forward.1} parent=27 // loop_body
          %v2388 = vld [vmem:[#allocation2] sm:$0xff]
          %v2389 = vld [vmem:[#allocation2 + $0x8] sm:$0xff]
          %v2390 = vld [vmem:[#allocation2 + $0x10] sm:$0xff]
          %v2391 = vld [vmem:[#allocation2 + $0x18] sm:$0xff]
          %v2392 = vld [vmem:[#allocation2 + $0x20] sm:$0xff]
          %v2393 = vld [vmem:[#allocation2 + $0x28] sm:$0xff]
          %v2394 = vld [vmem:[#allocation2 + $0x30] sm:$0xff]
          %v2395 = vld [vmem:[#allocation2 + $0x38] sm:$0xff]
          %v2396 = vld [vmem:[#allocation3] sm:$0xff]
          %v2397 = vld [vmem:[#allocation3 + $0x8] sm:$0xff]
          %v2398 = vld [vmem:[#allocation3 + $0x10] sm:$0xff]
          %v2399 = vld [vmem:[#allocation3 + $0x18] sm:$0xff]
          %v2400 = vld [vmem:[#allocation3 + $0x20] sm:$0xff]
          %v2401 = vld [vmem:[#allocation3 + $0x28] sm:$0xff]
          %v2402 = vld [vmem:[#allocation3 + $0x30] sm:$0xff]
          %v2403 = vld [vmem:[#allocation3 + $0x38] sm:$0xff]
          %v2404 = vmul.f32 %v2372, %v2388
          %v2405 = vmul.f32 %v2373, %v2389
          %v2406 = vmul.f32 %v2374, %v2390
          %v2407 = vmul.f32 %v2375, %v2391
          %v2408 = vmul.f32 %v2376, %v2392
          %v2409 = vmul.f32 %v2377, %v2393
          %v2410 = vmul.f32 %v2378, %v2394
          %v2411 = vmul.f32 %v2379, %v2395
          %v2412 = vmul.f32 %v2380, %v2396
          %v2413 = vmul.f32 %v2381, %v2397
          %v2414 = vmul.f32 %v2382, %v2398
          %v2415 = vmul.f32 %v2383, %v2399
          %v2416 = vmul.f32 %v2384, %v2400
          %v2417 = vmul.f32 %v2385, %v2401
          %v2418 = vmul.f32 %v2386, %v2402
          %v2419 = vmul.f32 %v2387, %v2403
          %v2420 = vsub.f32 %v2404, %v2412
          %v2421 = vsub.f32 %v2405, %v2413
          %v2422 = vsub.f32 %v2406, %v2414
          %v2423 = vsub.f32 %v2407, %v2415
          %v2424 = vsub.f32 %v2408, %v2416
          %v2425 = vsub.f32 %v2409, %v2417
          %v2426 = vsub.f32 %v2410, %v2418
          %v2427 = vsub.f32 %v2411, %v2419
          %v2428 = vmul.f32 %v2380, %v2388
          %v2429 = vmul.f32 %v2381, %v2389
          %v2430 = vmul.f32 %v2382, %v2390
          %v2431 = vmul.f32 %v2383, %v2391
          %v2432 = vmul.f32 %v2384, %v2392
          %v2433 = vmul.f32 %v2385, %v2393
          %v2434 = vmul.f32 %v2386, %v2394
          %v2435 = vmul.f32 %v2387, %v2395
          %v2436 = vmul.f32 %v2372, %v2396
          %v2437 = vmul.f32 %v2373, %v2397
          %v2438 = vmul.f32 %v2374, %v2398
          %v2439 = vmul.f32 %v2375, %v2399
          %v2440 = vmul.f32 %v2376, %v2400
          %v2441 = vmul.f32 %v2377, %v2401
          %v2442 = vmul.f32 %v2378, %v2402
          %v2443 = vmul.f32 %v2379, %v2403
          %v2444 = vadd.f32 %v2428, %v2436
          %v2445 = vadd.f32 %v2429, %v2437
          %v2446 = vadd.f32 %v2430, %v2438
          %v2447 = vadd.f32 %v2431, %v2439
          %v2448 = vadd.f32 %v2432, %v2440
          %v2449 = vadd.f32 %v2433, %v2441
          %v2450 = vadd.f32 %v2434, %v2442
          %v2451 = vadd.f32 %v2435, %v2443
          %s2452 = smul.u32 %s2367, 36
          %s2453 = sld [smem:[#allocation4 + %s2452]]
          %s2454 = sadd.s32 %s2452, 1
          %s2455 = sld [smem:[#allocation4 + %s2454]]
          %s2456 = sadd.s32 %s2452, 2
          %s2457 = sld [smem:[#allocation4 + %s2456]]
          %s2458 = sadd.s32 %s2452, 3
          %s2459 = sld [smem:[#allocation4 + %s2458]]
          %v2460 = vstv %s2453
          %v2461 = vmul.f32 %v2460, %v2420
          %v2462 = vmul.f32 %v2460, %v2421
          %v2463 = vmul.f32 %v2460, %v2422
          %v2464 = vmul.f32 %v2460, %v2423
          %v2465 = vstv %s2455
          %v2466 = vmul.f32 %v2465, %v2444
          %v2467 = vmul.f32 %v2465, %v2445
          %v2468 = vmul.f32 %v2465, %v2446
          %v2469 = vmul.f32 %v2465, %v2447
          %v2470 = vsub.f32 %v2461, %v2466
          %v2471 = vsub.f32 %v2462, %v2467
          %v2472 = vsub.f32 %v2463, %v2468
          %v2473 = vsub.f32 %v2464, %v2469
          %v2474 = vstv %s2457
          %v2475 = vmul.f32 %v2474, %v2424
          %v2476 = vmul.f32 %v2474, %v2425
          %v2477 = vmul.f32 %v2474, %v2426
          %v2478 = vmul.f32 %v2474, %v2427
          %v2479 = vsub.f32 %v2470, %v2475
          %v2480 = vsub.f32 %v2471, %v2476
          %v2481 = vsub.f32 %v2472, %v2477
          %v2482 = vsub.f32 %v2473, %v2478
          %v2483 = vstv %s2459
          %v2484 = vmul.f32 %v2483, %v2448
          %v2485 = vmul.f32 %v2483, %v2449
          %v2486 = vmul.f32 %v2483, %v2450
          %v2487 = vmul.f32 %v2483, %v2451
          %v2488 = vsub.f32 %v2479, %v2484
          %v2489 = vsub.f32 %v2480, %v2485
          %v2490 = vsub.f32 %v2481, %v2486
          %v2491 = vsub.f32 %v2482, %v2487
          %v2492 = vmul.f32 %v2460, %v2444
          %v2493 = vmul.f32 %v2460, %v2445
          %v2494 = vmul.f32 %v2460, %v2446
          %v2495 = vmul.f32 %v2460, %v2447
          %v2496 = vmul.f32 %v2465, %v2420
          %v2497 = vmul.f32 %v2465, %v2421
          %v2498 = vmul.f32 %v2465, %v2422
          %v2499 = vmul.f32 %v2465, %v2423
          %v2500 = vadd.f32 %v2492, %v2496
          %v2501 = vadd.f32 %v2493, %v2497
          %v2502 = vadd.f32 %v2494, %v2498
          %v2503 = vadd.f32 %v2495, %v2499
          %v2504 = vmul.f32 %v2474, %v2448
          %v2505 = vmul.f32 %v2474, %v2449
          %v2506 = vmul.f32 %v2474, %v2450
          %v2507 = vmul.f32 %v2474, %v2451
          %v2508 = vsub.f32 %v2500, %v2504
          %v2509 = vsub.f32 %v2501, %v2505
          %v2510 = vsub.f32 %v2502, %v2506
          %v2511 = vsub.f32 %v2503, %v2507
          %v2512 = vmul.f32 %v2483, %v2424
          %v2513 = vmul.f32 %v2483, %v2425
          %v2514 = vmul.f32 %v2483, %v2426
          %v2515 = vmul.f32 %v2483, %v2427
          %v2516 = vadd.f32 %v2508, %v2512
          %v2517 = vadd.f32 %v2509, %v2513
          %v2518 = vadd.f32 %v2510, %v2514
          %v2519 = vadd.f32 %v2511, %v2515
          %v2520 = vmul.f32 %v2474, %v2420
          %v2521 = vmul.f32 %v2474, %v2421
          %v2522 = vmul.f32 %v2474, %v2422
          %v2523 = vmul.f32 %v2474, %v2423
          %v2524 = vmul.f32 %v2483, %v2444
          %v2525 = vmul.f32 %v2483, %v2445
          %v2526 = vmul.f32 %v2483, %v2446
          %v2527 = vmul.f32 %v2483, %v2447
          %v2528 = vsub.f32 %v2520, %v2524
          %v2529 = vsub.f32 %v2521, %v2525
          %v2530 = vsub.f32 %v2522, %v2526
          %v2531 = vsub.f32 %v2523, %v2527
          %v2532 = vmul.f32 %v2460, %v2424
          %v2533 = vmul.f32 %v2460, %v2425
          %v2534 = vmul.f32 %v2460, %v2426
          %v2535 = vmul.f32 %v2460, %v2427
          %v2536 = vadd.f32 %v2528, %v2532
          %v2537 = vadd.f32 %v2529, %v2533
          %v2538 = vadd.f32 %v2530, %v2534
          %v2539 = vadd.f32 %v2531, %v2535
          %v2540 = vmul.f32 %v2465, %v2448
          %v2541 = vmul.f32 %v2465, %v2449
          %v2542 = vmul.f32 %v2465, %v2450
          %v2543 = vmul.f32 %v2465, %v2451
          %v2544 = vadd.f32 %v2536, %v2540
          %v2545 = vadd.f32 %v2537, %v2541
          %v2546 = vadd.f32 %v2538, %v2542
          %v2547 = vadd.f32 %v2539, %v2543
          %v2548 = vmul.f32 %v2474, %v2444
          %v2549 = vmul.f32 %v2474, %v2445
          %v2550 = vmul.f32 %v2474, %v2446
          %v2551 = vmul.f32 %v2474, %v2447
          %v2552 = vmul.f32 %v2483, %v2420
          %v2553 = vmul.f32 %v2483, %v2421
          %v2554 = vmul.f32 %v2483, %v2422
          %v2555 = vmul.f32 %v2483, %v2423
          %v2556 = vadd.f32 %v2548, %v2552
          %v2557 = vadd.f32 %v2549, %v2553
          %v2558 = vadd.f32 %v2550, %v2554
          %v2559 = vadd.f32 %v2551, %v2555
          %v2560 = vmul.f32 %v2460, %v2448
          %v2561 = vmul.f32 %v2460, %v2449
          %v2562 = vmul.f32 %v2460, %v2450
          %v2563 = vmul.f32 %v2460, %v2451
          %v2564 = vadd.f32 %v2556, %v2560
          %v2565 = vadd.f32 %v2557, %v2561
          %v2566 = vadd.f32 %v2558, %v2562
          %v2567 = vadd.f32 %v2559, %v2563
          %v2568 = vmul.f32 %v2465, %v2424
          %v2569 = vmul.f32 %v2465, %v2425
          %v2570 = vmul.f32 %v2465, %v2426
          %v2571 = vmul.f32 %v2465, %v2427
          %v2572 = vsub.f32 %v2564, %v2568
          %v2573 = vsub.f32 %v2565, %v2569
          %v2574 = vsub.f32 %v2566, %v2570
          %v2575 = vsub.f32 %v2567, %v2571
          %s2576 = smul.u32 %s2367, 6
          %s2577 = sadd.s32 %s2576, 1
          %s2578 = smul.u32 %s2577, 6
          %s2579 = sld [smem:[#allocation4 + %s2578]]
          %s2580 = sadd.s32 %s2578, 1
          %s2581 = sld [smem:[#allocation4 + %s2580]]
          %s2582 = sadd.s32 %s2578, 2
          %s2583 = sld [smem:[#allocation4 + %s2582]]
          %s2584 = sadd.s32 %s2578, 3
          %s2585 = sld [smem:[#allocation4 + %s2584]]
          %v2586 = vstv %s2579
          %v2587 = vmul.f32 %v2586, %v2488
          %v2588 = vmul.f32 %v2586, %v2489
          %v2589 = vstv %s2581
          %v2590 = vmul.f32 %v2589, %v2516
          %v2591 = vmul.f32 %v2589, %v2517
          %v2592 = vsub.f32 %v2587, %v2590
          %v2593 = vsub.f32 %v2588, %v2591
          %v2594 = vstv %s2583
          %v2595 = vmul.f32 %v2594, %v2490
          %v2596 = vmul.f32 %v2594, %v2491
          %v2597 = vsub.f32 %v2592, %v2595
          %v2598 = vsub.f32 %v2593, %v2596
          %v2599 = vstv %s2585
          %v2600 = vmul.f32 %v2599, %v2518
          %v2601 = vmul.f32 %v2599, %v2519
          %v2602 = vsub.f32 %v2597, %v2600
          %v2603 = vsub.f32 %v2598, %v2601
          %v2604 = vmul.f32 %v2586, %v2516
          %v2605 = vmul.f32 %v2586, %v2517
          %v2606 = vmul.f32 %v2589, %v2488
          %v2607 = vmul.f32 %v2589, %v2489
          %v2608 = vadd.f32 %v2604, %v2606
          %v2609 = vadd.f32 %v2605, %v2607
          %v2610 = vmul.f32 %v2594, %v2518
          %v2611 = vmul.f32 %v2594, %v2519
          %v2612 = vsub.f32 %v2608, %v2610
          %v2613 = vsub.f32 %v2609, %v2611
          %v2614 = vmul.f32 %v2599, %v2490
          %v2615 = vmul.f32 %v2599, %v2491
          %v2616 = vadd.f32 %v2612, %v2614
          %v2617 = vadd.f32 %v2613, %v2615
          %v2618 = vmul.f32 %v2594, %v2488
          %v2619 = vmul.f32 %v2594, %v2489
          %v2620 = vmul.f32 %v2599, %v2516
          %v2621 = vmul.f32 %v2599, %v2517
          %v2622 = vsub.f32 %v2618, %v2620
          %v2623 = vsub.f32 %v2619, %v2621
          %v2624 = vmul.f32 %v2586, %v2490
          %v2625 = vmul.f32 %v2586, %v2491
          %v2626 = vadd.f32 %v2622, %v2624
          %v2627 = vadd.f32 %v2623, %v2625
          %v2628 = vmul.f32 %v2589, %v2518
          %v2629 = vmul.f32 %v2589, %v2519
          %v2630 = vadd.f32 %v2626, %v2628
          %v2631 = vadd.f32 %v2627, %v2629
          %v2632 = vmul.f32 %v2594, %v2516
          %v2633 = vmul.f32 %v2594, %v2517
          %v2634 = vmul.f32 %v2599, %v2488
          %v2635 = vmul.f32 %v2599, %v2489
          %v2636 = vadd.f32 %v2632, %v2634
          %v2637 = vadd.f32 %v2633, %v2635
          %v2638 = vmul.f32 %v2586, %v2518
          %v2639 = vmul.f32 %v2586, %v2519
          %v2640 = vadd.f32 %v2636, %v2638
          %v2641 = vadd.f32 %v2637, %v2639
          %v2642 = vmul.f32 %v2589, %v2490
          %v2643 = vmul.f32 %v2589, %v2491
          %v2644 = vsub.f32 %v2640, %v2642
          %v2645 = vsub.f32 %v2641, %v2643
          %v2646 = vmul.f32 %v2586, %v2544
          %v2647 = vmul.f32 %v2586, %v2545
          %v2648 = vmul.f32 %v2589, %v2572
          %v2649 = vmul.f32 %v2589, %v2573
          %v2650 = vsub.f32 %v2646, %v2648
          %v2651 = vsub.f32 %v2647, %v2649
          %v2652 = vmul.f32 %v2594, %v2546
          %v2653 = vmul.f32 %v2594, %v2547
          %v2654 = vsub.f32 %v2650, %v2652
          %v2655 = vsub.f32 %v2651, %v2653
          %v2656 = vmul.f32 %v2599, %v2574
          %v2657 = vmul.f32 %v2599, %v2575
          %v2658 = vsub.f32 %v2654, %v2656
          %v2659 = vsub.f32 %v2655, %v2657
          %v2660 = vmul.f32 %v2586, %v2572
          %v2661 = vmul.f32 %v2586, %v2573
          %v2662 = vmul.f32 %v2589, %v2544
          %v2663 = vmul.f32 %v2589, %v2545
          %v2664 = vadd.f32 %v2660, %v2662
          %v2665 = vadd.f32 %v2661, %v2663
          %v2666 = vmul.f32 %v2594, %v2574
          %v2667 = vmul.f32 %v2594, %v2575
          %v2668 = vsub.f32 %v2664, %v2666
          %v2669 = vsub.f32 %v2665, %v2667
          %v2670 = vmul.f32 %v2599, %v2546
          %v2671 = vmul.f32 %v2599, %v2547
          %v2672 = vadd.f32 %v2668, %v2670
          %v2673 = vadd.f32 %v2669, %v2671
          %v2674 = vmul.f32 %v2594, %v2544
          %v2675 = vmul.f32 %v2594, %v2545
          %v2676 = vmul.f32 %v2599, %v2572
          %v2677 = vmul.f32 %v2599, %v2573
          %v2678 = vsub.f32 %v2674, %v2676
          %v2679 = vsub.f32 %v2675, %v2677
          %v2680 = vmul.f32 %v2586, %v2546
          %v2681 = vmul.f32 %v2586, %v2547
          %v2682 = vadd.f32 %v2678, %v2680
          %v2683 = vadd.f32 %v2679, %v2681
          %v2684 = vmul.f32 %v2589, %v2574
          %v2685 = vmul.f32 %v2589, %v2575
          %v2686 = vadd.f32 %v2682, %v2684
          %v2687 = vadd.f32 %v2683, %v2685
          %v2688 = vmul.f32 %v2594, %v2572
          %v2689 = vmul.f32 %v2594, %v2573
          %v2690 = vmul.f32 %v2599, %v2544
          %v2691 = vmul.f32 %v2599, %v2545
          %v2692 = vadd.f32 %v2688, %v2690
          %v2693 = vadd.f32 %v2689, %v2691
          %v2694 = vmul.f32 %v2586, %v2574
          %v2695 = vmul.f32 %v2586, %v2575
          %v2696 = vadd.f32 %v2692, %v2694
          %v2697 = vadd.f32 %v2693, %v2695
          %v2698 = vmul.f32 %v2589, %v2546
          %v2699 = vmul.f32 %v2589, %v2547
          %v2700 = vsub.f32 %v2696, %v2698
          %v2701 = vsub.f32 %v2697, %v2699
          %s2702 = sadd.s32 %s2576, 2
          %s2703 = smul.u32 %s2702, 6
          %s2704 = sld [smem:[#allocation4 + %s2703]]
          %s2705 = sadd.s32 %s2703, 1
          %s2706 = sld [smem:[#allocation4 + %s2705]]
          %s2707 = sadd.s32 %s2703, 2
          %s2708 = sld [smem:[#allocation4 + %s2707]]
          %s2709 = sadd.s32 %s2703, 3
          %s2710 = sld [smem:[#allocation4 + %s2709]]
          %v2711 = vstv %s2704
          %v2712 = vmul.f32 %v2711, %v2602
          %v2713 = vstv %s2706
          %v2714 = vmul.f32 %v2713, %v2616
          %v2715 = vsub.f32 %v2712, %v2714
          %v2716 = vstv %s2708
          %v2717 = vmul.f32 %v2716, %v2603
          %v2718 = vsub.f32 %v2715, %v2717
          %v2719 = vstv %s2710
          %v2720 = vmul.f32 %v2719, %v2617
          %v2721 = vsub.f32 %v2718, %v2720
          %v2722 = vmul.f32 %v2711, %v2616
          %v2723 = vmul.f32 %v2713, %v2602
          %v2724 = vadd.f32 %v2722, %v2723
          %v2725 = vmul.f32 %v2716, %v2617
          %v2726 = vsub.f32 %v2724, %v2725
          %v2727 = vmul.f32 %v2719, %v2603
          %v2728 = vadd.f32 %v2726, %v2727
          %v2729 = vmul.f32 %v2716, %v2602
          %v2730 = vmul.f32 %v2719, %v2616
          %v2731 = vsub.f32 %v2729, %v2730
          %v2732 = vmul.f32 %v2711, %v2603
          %v2733 = vadd.f32 %v2731, %v2732
          %v2734 = vmul.f32 %v2713, %v2617
          %v2735 = vadd.f32 %v2733, %v2734
          %v2736 = vmul.f32 %v2716, %v2616
          %v2737 = vmul.f32 %v2719, %v2602
          %v2738 = vadd.f32 %v2736, %v2737
          %v2739 = vmul.f32 %v2711, %v2617
          %v2740 = vadd.f32 %v2738, %v2739
          %v2741 = vmul.f32 %v2713, %v2603
          %v2742 = vsub.f32 %v2740, %v2741
          %v2743 = vmul.f32 %v2711, %v2630
          %v2744 = vmul.f32 %v2713, %v2644
          %v2745 = vsub.f32 %v2743, %v2744
          %v2746 = vmul.f32 %v2716, %v2631
          %v2747 = vsub.f32 %v2745, %v2746
          %v2748 = vmul.f32 %v2719, %v2645
          %v2749 = vsub.f32 %v2747, %v2748
          %v2750 = vmul.f32 %v2711, %v2644
          %v2751 = vmul.f32 %v2713, %v2630
          %v2752 = vadd.f32 %v2750, %v2751
          %v2753 = vmul.f32 %v2716, %v2645
          %v2754 = vsub.f32 %v2752, %v2753
          %v2755 = vmul.f32 %v2719, %v2631
          %v2756 = vadd.f32 %v2754, %v2755
          %v2757 = vmul.f32 %v2716, %v2630
          %v2758 = vmul.f32 %v2719, %v2644
          %v2759 = vsub.f32 %v2757, %v2758
          %v2760 = vmul.f32 %v2711, %v2631
          %v2761 = vadd.f32 %v2759, %v2760
          %v2762 = vmul.f32 %v2713, %v2645
          %v2763 = vadd.f32 %v2761, %v2762
          %v2764 = vmul.f32 %v2716, %v2644
          %v2765 = vmul.f32 %v2719, %v2630
          %v2766 = vadd.f32 %v2764, %v2765
          %v2767 = vmul.f32 %v2711, %v2645
          %v2768 = vadd.f32 %v2766, %v2767
          %v2769 = vmul.f32 %v2713, %v2631
          %v2770 = vsub.f32 %v2768, %v2769
          %v2771 = vmul.f32 %v2711, %v2658
          %v2772 = vmul.f32 %v2713, %v2672
          %v2773 = vsub.f32 %v2771, %v2772
          %v2774 = vmul.f32 %v2716, %v2659
          %v2775 = vsub.f32 %v2773, %v2774
          %v2776 = vmul.f32 %v2719, %v2673
          %v2777 = vsub.f32 %v2775, %v2776
          %v2778 = vmul.f32 %v2711, %v2672
          %v2779 = vmul.f32 %v2713, %v2658
          %v2780 = vadd.f32 %v2778, %v2779
          %v2781 = vmul.f32 %v2716, %v2673
          %v2782 = vsub.f32 %v2780, %v2781
          %v2783 = vmul.f32 %v2719, %v2659
          %v2784 = vadd.f32 %v2782, %v2783
          %v2785 = vmul.f32 %v2716, %v2658
          %v2786 = vmul.f32 %v2719, %v2672
          %v2787 = vsub.f32 %v2785, %v2786
          %v2788 = vmul.f32 %v2711, %v2659
          %v2789 = vadd.f32 %v2787, %v2788
          %v2790 = vmul.f32 %v2713, %v2673
          %v2791 = vadd.f32 %v2789, %v2790
          %v2792 = vmul.f32 %v2716, %v2672
          %v2793 = vmul.f32 %v2719, %v2658
          %v2794 = vadd.f32 %v2792, %v2793
          %v2795 = vmul.f32 %v2711, %v2673
          %v2796 = vadd.f32 %v2794, %v2795
          %v2797 = vmul.f32 %v2713, %v2659
          %v2798 = vsub.f32 %v2796, %v2797
          %v2799 = vmul.f32 %v2711, %v2686
          %v2800 = vmul.f32 %v2713, %v2700
          %v2801 = vsub.f32 %v2799, %v2800
          %v2802 = vmul.f32 %v2716, %v2687
          %v2803 = vsub.f32 %v2801, %v2802
          %v2804 = vmul.f32 %v2719, %v2701
          %v2805 = vsub.f32 %v2803, %v2804
          %v2806 = vmul.f32 %v2711, %v2700
          %v2807 = vmul.f32 %v2713, %v2686
          %v2808 = vadd.f32 %v2806, %v2807
          %v2809 = vmul.f32 %v2716, %v2701
          %v2810 = vsub.f32 %v2808, %v2809
          %v2811 = vmul.f32 %v2719, %v2687
          %v2812 = vadd.f32 %v2810, %v2811
          %v2813 = vmul.f32 %v2716, %v2686
          %v2814 = vmul.f32 %v2719, %v2700
          %v2815 = vsub.f32 %v2813, %v2814
          %v2816 = vmul.f32 %v2711, %v2687
          %v2817 = vadd.f32 %v2815, %v2816
          %v2818 = vmul.f32 %v2713, %v2701
          %v2819 = vadd.f32 %v2817, %v2818
          %v2820 = vmul.f32 %v2716, %v2700
          %v2821 = vmul.f32 %v2719, %v2686
          %v2822 = vadd.f32 %v2820, %v2821
          %v2823 = vmul.f32 %v2711, %v2701
          %v2824 = vadd.f32 %v2822, %v2823
          %v2825 = vmul.f32 %v2713, %v2687
          %v2826 = vsub.f32 %v2824, %v2825
          %s2827 = sadd.s32 %s2576, 3
          %s2828 = smul.u32 %s2827, 6
          %s2829 = sld [smem:[#allocation4 + %s2828]]
          %s2830 = sadd.s32 %s2828, 1
          %s2831 = sld [smem:[#allocation4 + %s2830]]
          %s2832 = sadd.s32 %s2828, 2
          %s2833 = sld [smem:[#allocation4 + %s2832]]
          %s2834 = sadd.s32 %s2828, 3
          %s2835 = sld [smem:[#allocation4 + %s2834]]
          %v2836 = vrot.slane %v2721, 4
          %v2837 = vrot.slane %v2735, 4
          %v2838 = vrot.slane %v2749, 4
          %v2839 = vrot.slane %v2763, 4
          %v2840 = vrot.slane %v2777, 4
          %v2841 = vrot.slane %v2791, 4
          %v2842 = vrot.slane %v2805, 4
          %v2843 = vrot.slane %v2819, 4
          %v2844 = vrot.slane %v2728, 4
          %v2845 = vrot.slane %v2742, 4
          %v2846 = vrot.slane %v2756, 4
          %v2847 = vrot.slane %v2770, 4
          %v2848 = vrot.slane %v2784, 4
          %v2849 = vrot.slane %v2798, 4
          %v2850 = vrot.slane %v2812, 4
          %v2851 = vrot.slane %v2826, 4
          %v2852 = vstv %s2829
          %v2853 = vmul.f32 %v2852, %v2721
          %v2854 = vmul.f32 %v2852, %v2735
          %v2855 = vmul.f32 %v2852, %v2749
          %v2856 = vmul.f32 %v2852, %v2763
          %v2857 = vmul.f32 %v2852, %v2777
          %v2858 = vmul.f32 %v2852, %v2791
          %v2859 = vmul.f32 %v2852, %v2805
          %v2860 = vmul.f32 %v2852, %v2819
          %v2861 = vstv %s2835
          %v2862 = vmul.f32 %v2861, %v2844
          %v2863 = vmul.f32 %v2861, %v2845
          %v2864 = vmul.f32 %v2861, %v2846
          %v2865 = vmul.f32 %v2861, %v2847
          %v2866 = vmul.f32 %v2861, %v2848
          %v2867 = vmul.f32 %v2861, %v2849
          %v2868 = vmul.f32 %v2861, %v2850
          %v2869 = vmul.f32 %v2861, %v2851
          %v2870 = vsub.f32 %v2853, %v2862
          %v2871 = vsub.f32 %v2854, %v2863
          %v2872 = vsub.f32 %v2855, %v2864
          %v2873 = vsub.f32 %v2856, %v2865
          %v2874 = vsub.f32 %v2857, %v2866
          %v2875 = vsub.f32 %v2858, %v2867
          %v2876 = vsub.f32 %v2859, %v2868
          %v2877 = vsub.f32 %v2860, %v2869
          %v2878 = vstv %s2831
          %v2879 = vmul.f32 %v2878, %v2728
          %v2880 = vmul.f32 %v2878, %v2742
          %v2881 = vmul.f32 %v2878, %v2756
          %v2882 = vmul.f32 %v2878, %v2770
          %v2883 = vmul.f32 %v2878, %v2784
          %v2884 = vmul.f32 %v2878, %v2798
          %v2885 = vmul.f32 %v2878, %v2812
          %v2886 = vmul.f32 %v2878, %v2826
          %v2887 = vstv %s2833
          %v2888 = vmul.f32 %v2887, %v2836
          %v2889 = vmul.f32 %v2887, %v2837
          %v2890 = vmul.f32 %v2887, %v2838
          %v2891 = vmul.f32 %v2887, %v2839
          %v2892 = vmul.f32 %v2887, %v2840
          %v2893 = vmul.f32 %v2887, %v2841
          %v2894 = vmul.f32 %v2887, %v2842
          %v2895 = vmul.f32 %v2887, %v2843
          %v2896 = vadd.f32 %v2879, %v2888
          %v2897 = vadd.f32 %v2880, %v2889
          %v2898 = vadd.f32 %v2881, %v2890
          %v2899 = vadd.f32 %v2882, %v2891
          %v2900 = vadd.f32 %v2883, %v2892
          %v2901 = vadd.f32 %v2884, %v2893
          %v2902 = vadd.f32 %v2885, %v2894
          %v2903 = vadd.f32 %v2886, %v2895
          %v2904 = vmul.f32 %v623, %v2896
          %v2905 = vmul.f32 %v623, %v2897
          %v2906 = vmul.f32 %v623, %v2898
          %v2907 = vmul.f32 %v623, %v2899
          %v2908 = vmul.f32 %v623, %v2900
          %v2909 = vmul.f32 %v623, %v2901
          %v2910 = vmul.f32 %v623, %v2902
          %v2911 = vmul.f32 %v623, %v2903
          %v2912 = vadd.f32 %v2870, %v2904
          %v2913 = vadd.f32 %v2871, %v2905
          %v2914 = vadd.f32 %v2872, %v2906
          %v2915 = vadd.f32 %v2873, %v2907
          %v2916 = vadd.f32 %v2874, %v2908
          %v2917 = vadd.f32 %v2875, %v2909
          %v2918 = vadd.f32 %v2876, %v2910
          %v2919 = vadd.f32 %v2877, %v2911
          %v2920 = vmul.f32 %v2852, %v2728
          %v2921 = vmul.f32 %v2852, %v2742
          %v2922 = vmul.f32 %v2852, %v2756
          %v2923 = vmul.f32 %v2852, %v2770
          %v2924 = vmul.f32 %v2852, %v2784
          %v2925 = vmul.f32 %v2852, %v2798
          %v2926 = vmul.f32 %v2852, %v2812
          %v2927 = vmul.f32 %v2852, %v2826
          %v2928 = vmul.f32 %v2861, %v2836
          %v2929 = vmul.f32 %v2861, %v2837
          %v2930 = vmul.f32 %v2861, %v2838
          %v2931 = vmul.f32 %v2861, %v2839
          %v2932 = vmul.f32 %v2861, %v2840
          %v2933 = vmul.f32 %v2861, %v2841
          %v2934 = vmul.f32 %v2861, %v2842
          %v2935 = vmul.f32 %v2861, %v2843
          %v2936 = vadd.f32 %v2920, %v2928
          %v2937 = vadd.f32 %v2921, %v2929
          %v2938 = vadd.f32 %v2922, %v2930
          %v2939 = vadd.f32 %v2923, %v2931
          %v2940 = vadd.f32 %v2924, %v2932
          %v2941 = vadd.f32 %v2925, %v2933
          %v2942 = vadd.f32 %v2926, %v2934
          %v2943 = vadd.f32 %v2927, %v2935
          %v2944 = vmul.f32 %v2887, %v2844
          %v2945 = vmul.f32 %v2887, %v2845
          %v2946 = vmul.f32 %v2887, %v2846
          %v2947 = vmul.f32 %v2887, %v2847
          %v2948 = vmul.f32 %v2887, %v2848
          %v2949 = vmul.f32 %v2887, %v2849
          %v2950 = vmul.f32 %v2887, %v2850
          %v2951 = vmul.f32 %v2887, %v2851
          %v2952 = vmul.f32 %v2878, %v2721
          %v2953 = vmul.f32 %v2878, %v2735
          %v2954 = vmul.f32 %v2878, %v2749
          %v2955 = vmul.f32 %v2878, %v2763
          %v2956 = vmul.f32 %v2878, %v2777
          %v2957 = vmul.f32 %v2878, %v2791
          %v2958 = vmul.f32 %v2878, %v2805
          %v2959 = vmul.f32 %v2878, %v2819
          %v2960 = vsub.f32 %v2944, %v2952
          %v2961 = vsub.f32 %v2945, %v2953
          %v2962 = vsub.f32 %v2946, %v2954
          %v2963 = vsub.f32 %v2947, %v2955
          %v2964 = vsub.f32 %v2948, %v2956
          %v2965 = vsub.f32 %v2949, %v2957
          %v2966 = vsub.f32 %v2950, %v2958
          %v2967 = vsub.f32 %v2951, %v2959
          %v2968 = vmul.f32 %v623, %v2960
          %v2969 = vmul.f32 %v623, %v2961
          %v2970 = vmul.f32 %v623, %v2962
          %v2971 = vmul.f32 %v623, %v2963
          %v2972 = vmul.f32 %v623, %v2964
          %v2973 = vmul.f32 %v623, %v2965
          %v2974 = vmul.f32 %v623, %v2966
          %v2975 = vmul.f32 %v623, %v2967
          %v2976 = vadd.f32 %v2936, %v2968
          %v2977 = vadd.f32 %v2937, %v2969
          %v2978 = vadd.f32 %v2938, %v2970
          %v2979 = vadd.f32 %v2939, %v2971
          %v2980 = vadd.f32 %v2940, %v2972
          %v2981 = vadd.f32 %v2941, %v2973
          %v2982 = vadd.f32 %v2942, %v2974
          %v2983 = vadd.f32 %v2943, %v2975
          %s2984 = sadd.s32 %s2576, 4
          %s2985 = smul.u32 %s2984, 6
          %s2986 = sld [smem:[#allocation4 + %s2985]]
          %s2987 = sadd.s32 %s2985, 1
          %s2988 = sld [smem:[#allocation4 + %s2987]]
          %s2989 = sadd.s32 %s2985, 2
          %s2990 = sld [smem:[#allocation4 + %s2989]]
          %s2991 = sadd.s32 %s2985, 3
          %s2992 = sld [smem:[#allocation4 + %s2991]]
          %v2993 = vrot.slane %v2912, 6
          %v2994 = vrot.slane %v2913, 6
          %v2995 = vrot.slane %v2914, 6
          %v2996 = vrot.slane %v2915, 6
          %v2997 = vrot.slane %v2916, 6
          %v2998 = vrot.slane %v2917, 6
          %v2999 = vrot.slane %v2918, 6
          %v3000 = vrot.slane %v2919, 6
          %v3001 = vrot.slane %v2912, 2
          %v3002 = vrot.slane %v2913, 2
          %v3003 = vrot.slane %v2914, 2
          %v3004 = vrot.slane %v2915, 2
          %v3005 = vrot.slane %v2916, 2
          %v3006 = vrot.slane %v2917, 2
          %v3007 = vrot.slane %v2918, 2
          %v3008 = vrot.slane %v2919, 2
          %vm3009 = vcmp.eq.s32.totalorder %v631, 1
          %v3010 = vsel %vm3009, 1, 0
          %vm3011 = vcmp.eq.s32.totalorder %v3010, 1
          %v3012 = vsel %vm3011, %v2993, %v3001
          %v3013 = vsel %vm3011, %v2994, %v3002
          %v3014 = vsel %vm3011, %v2995, %v3003
          %v3015 = vsel %vm3011, %v2996, %v3004
          %v3016 = vsel %vm3011, %v2997, %v3005
          %v3017 = vsel %vm3011, %v2998, %v3006
          %v3018 = vsel %vm3011, %v2999, %v3007
          %v3019 = vsel %vm3011, %v3000, %v3008
          %v3020 = vrot.slane %v2976, 6
          %v3021 = vrot.slane %v2977, 6
          %v3022 = vrot.slane %v2978, 6
          %v3023 = vrot.slane %v2979, 6
          %v3024 = vrot.slane %v2980, 6
          %v3025 = vrot.slane %v2981, 6
          %v3026 = vrot.slane %v2982, 6
          %v3027 = vrot.slane %v2983, 6
          %v3028 = vrot.slane %v2976, 2
          %v3029 = vrot.slane %v2977, 2
          %v3030 = vrot.slane %v2978, 2
          %v3031 = vrot.slane %v2979, 2
          %v3032 = vrot.slane %v2980, 2
          %v3033 = vrot.slane %v2981, 2
          %v3034 = vrot.slane %v2982, 2
          %v3035 = vrot.slane %v2983, 2
          %v3036 = vsel %vm3011, %v3020, %v3028
          %v3037 = vsel %vm3011, %v3021, %v3029
          %v3038 = vsel %vm3011, %v3022, %v3030
          %v3039 = vsel %vm3011, %v3023, %v3031
          %v3040 = vsel %vm3011, %v3024, %v3032
          %v3041 = vsel %vm3011, %v3025, %v3033
          %v3042 = vsel %vm3011, %v3026, %v3034
          %v3043 = vsel %vm3011, %v3027, %v3035
          %v3044 = vstv %s2986
          %v3045 = vmul.f32 %v3044, %v2912
          %v3046 = vmul.f32 %v3044, %v2913
          %v3047 = vmul.f32 %v3044, %v2914
          %v3048 = vmul.f32 %v3044, %v2915
          %v3049 = vmul.f32 %v3044, %v2916
          %v3050 = vmul.f32 %v3044, %v2917
          %v3051 = vmul.f32 %v3044, %v2918
          %v3052 = vmul.f32 %v3044, %v2919
          %v3053 = vstv %s2992
          %v3054 = vmul.f32 %v3053, %v3036
          %v3055 = vmul.f32 %v3053, %v3037
          %v3056 = vmul.f32 %v3053, %v3038
          %v3057 = vmul.f32 %v3053, %v3039
          %v3058 = vmul.f32 %v3053, %v3040
          %v3059 = vmul.f32 %v3053, %v3041
          %v3060 = vmul.f32 %v3053, %v3042
          %v3061 = vmul.f32 %v3053, %v3043
          %v3062 = vsub.f32 %v3045, %v3054
          %v3063 = vsub.f32 %v3046, %v3055
          %v3064 = vsub.f32 %v3047, %v3056
          %v3065 = vsub.f32 %v3048, %v3057
          %v3066 = vsub.f32 %v3049, %v3058
          %v3067 = vsub.f32 %v3050, %v3059
          %v3068 = vsub.f32 %v3051, %v3060
          %v3069 = vsub.f32 %v3052, %v3061
          %v3070 = vstv %s2988
          %v3071 = vmul.f32 %v3070, %v2976
          %v3072 = vmul.f32 %v3070, %v2977
          %v3073 = vmul.f32 %v3070, %v2978
          %v3074 = vmul.f32 %v3070, %v2979
          %v3075 = vmul.f32 %v3070, %v2980
          %v3076 = vmul.f32 %v3070, %v2981
          %v3077 = vmul.f32 %v3070, %v2982
          %v3078 = vmul.f32 %v3070, %v2983
          %v3079 = vstv %s2990
          %v3080 = vmul.f32 %v3079, %v3012
          %v3081 = vmul.f32 %v3079, %v3013
          %v3082 = vmul.f32 %v3079, %v3014
          %v3083 = vmul.f32 %v3079, %v3015
          %v3084 = vmul.f32 %v3079, %v3016
          %v3085 = vmul.f32 %v3079, %v3017
          %v3086 = vmul.f32 %v3079, %v3018
          %v3087 = vmul.f32 %v3079, %v3019
          %v3088 = vadd.f32 %v3071, %v3080
          %v3089 = vadd.f32 %v3072, %v3081
          %v3090 = vadd.f32 %v3073, %v3082
          %v3091 = vadd.f32 %v3074, %v3083
          %v3092 = vadd.f32 %v3075, %v3084
          %v3093 = vadd.f32 %v3076, %v3085
          %v3094 = vadd.f32 %v3077, %v3086
          %v3095 = vadd.f32 %v3078, %v3087
          %v3096 = vmul.f32 %v634, %v3088
          %v3097 = vmul.f32 %v634, %v3089
          %v3098 = vmul.f32 %v634, %v3090
          %v3099 = vmul.f32 %v634, %v3091
          %v3100 = vmul.f32 %v634, %v3092
          %v3101 = vmul.f32 %v634, %v3093
          %v3102 = vmul.f32 %v634, %v3094
          %v3103 = vmul.f32 %v634, %v3095
          %v3104 = vadd.f32 %v3062, %v3096
          %v3105 = vadd.f32 %v3063, %v3097
          %v3106 = vadd.f32 %v3064, %v3098
          %v3107 = vadd.f32 %v3065, %v3099
          %v3108 = vadd.f32 %v3066, %v3100
          %v3109 = vadd.f32 %v3067, %v3101
          %v3110 = vadd.f32 %v3068, %v3102
          %v3111 = vadd.f32 %v3069, %v3103
          %v3112 = vmul.f32 %v3044, %v2976
          %v3113 = vmul.f32 %v3044, %v2977
          %v3114 = vmul.f32 %v3044, %v2978
          %v3115 = vmul.f32 %v3044, %v2979
          %v3116 = vmul.f32 %v3044, %v2980
          %v3117 = vmul.f32 %v3044, %v2981
          %v3118 = vmul.f32 %v3044, %v2982
          %v3119 = vmul.f32 %v3044, %v2983
          %v3120 = vmul.f32 %v3053, %v3012
          %v3121 = vmul.f32 %v3053, %v3013
          %v3122 = vmul.f32 %v3053, %v3014
          %v3123 = vmul.f32 %v3053, %v3015
          %v3124 = vmul.f32 %v3053, %v3016
          %v3125 = vmul.f32 %v3053, %v3017
          %v3126 = vmul.f32 %v3053, %v3018
          %v3127 = vmul.f32 %v3053, %v3019
          %v3128 = vadd.f32 %v3112, %v3120
          %v3129 = vadd.f32 %v3113, %v3121
          %v3130 = vadd.f32 %v3114, %v3122
          %v3131 = vadd.f32 %v3115, %v3123
          %v3132 = vadd.f32 %v3116, %v3124
          %v3133 = vadd.f32 %v3117, %v3125
          %v3134 = vadd.f32 %v3118, %v3126
          %v3135 = vadd.f32 %v3119, %v3127
          %v3136 = vmul.f32 %v3079, %v3036
          %v3137 = vmul.f32 %v3079, %v3037
          %v3138 = vmul.f32 %v3079, %v3038
          %v3139 = vmul.f32 %v3079, %v3039
          %v3140 = vmul.f32 %v3079, %v3040
          %v3141 = vmul.f32 %v3079, %v3041
          %v3142 = vmul.f32 %v3079, %v3042
          %v3143 = vmul.f32 %v3079, %v3043
          %v3144 = vmul.f32 %v3070, %v2912
          %v3145 = vmul.f32 %v3070, %v2913
          %v3146 = vmul.f32 %v3070, %v2914
          %v3147 = vmul.f32 %v3070, %v2915
          %v3148 = vmul.f32 %v3070, %v2916
          %v3149 = vmul.f32 %v3070, %v2917
          %v3150 = vmul.f32 %v3070, %v2918
          %v3151 = vmul.f32 %v3070, %v2919
          %v3152 = vsub.f32 %v3136, %v3144
          %v3153 = vsub.f32 %v3137, %v3145
          %v3154 = vsub.f32 %v3138, %v3146
          %v3155 = vsub.f32 %v3139, %v3147
          %v3156 = vsub.f32 %v3140, %v3148
          %v3157 = vsub.f32 %v3141, %v3149
          %v3158 = vsub.f32 %v3142, %v3150
          %v3159 = vsub.f32 %v3143, %v3151
          %v3160 = vmul.f32 %v634, %v3152
          %v3161 = vmul.f32 %v634, %v3153
          %v3162 = vmul.f32 %v634, %v3154
          %v3163 = vmul.f32 %v634, %v3155
          %v3164 = vmul.f32 %v634, %v3156
          %v3165 = vmul.f32 %v634, %v3157
          %v3166 = vmul.f32 %v634, %v3158
          %v3167 = vmul.f32 %v634, %v3159
          %v3168 = vadd.f32 %v3128, %v3160
          %v3169 = vadd.f32 %v3129, %v3161
          %v3170 = vadd.f32 %v3130, %v3162
          %v3171 = vadd.f32 %v3131, %v3163
          %v3172 = vadd.f32 %v3132, %v3164
          %v3173 = vadd.f32 %v3133, %v3165
          %v3174 = vadd.f32 %v3134, %v3166
          %v3175 = vadd.f32 %v3135, %v3167
          %s3176 = sadd.s32 %s2576, 5
          %s3177 = smul.u32 %s3176, 6
          %s3178 = sld [smem:[#allocation4 + %s3177]]
          %s3179 = sadd.s32 %s3177, 1
          %s3180 = sld [smem:[#allocation4 + %s3179]]
          %s3181 = sadd.s32 %s3177, 2
          %s3182 = sld [smem:[#allocation4 + %s3181]]
          %s3183 = sadd.s32 %s3177, 3
          %s3184 = sld [smem:[#allocation4 + %s3183]]
          %v3185 = vrot.slane %v3104, 7
          %v3186 = vrot.slane %v3105, 7
          %v3187 = vrot.slane %v3106, 7
          %v3188 = vrot.slane %v3107, 7
          %v3189 = vrot.slane %v3108, 7
          %v3190 = vrot.slane %v3109, 7
          %v3191 = vrot.slane %v3110, 7
          %v3192 = vrot.slane %v3111, 7
          %v3193 = vrot.slane %v3104, 1
          %v3194 = vrot.slane %v3105, 1
          %v3195 = vrot.slane %v3106, 1
          %v3196 = vrot.slane %v3107, 1
          %v3197 = vrot.slane %v3108, 1
          %v3198 = vrot.slane %v3109, 1
          %v3199 = vrot.slane %v3110, 1
          %v3200 = vrot.slane %v3111, 1
          %vm3201 = vcmp.eq.s32.totalorder %v641, 1
          %v3202 = vsel %vm3201, 1, 0
          %vm3203 = vcmp.eq.s32.totalorder %v3202, 1
          %v3204 = vsel %vm3203, %v3185, %v3193
          %v3205 = vsel %vm3203, %v3186, %v3194
          %v3206 = vsel %vm3203, %v3187, %v3195
          %v3207 = vsel %vm3203, %v3188, %v3196
          %v3208 = vsel %vm3203, %v3189, %v3197
          %v3209 = vsel %vm3203, %v3190, %v3198
          %v3210 = vsel %vm3203, %v3191, %v3199
          %v3211 = vsel %vm3203, %v3192, %v3200
          %v3212 = vrot.slane %v3168, 7
          %v3213 = vrot.slane %v3169, 7
          %v3214 = vrot.slane %v3170, 7
          %v3215 = vrot.slane %v3171, 7
          %v3216 = vrot.slane %v3172, 7
          %v3217 = vrot.slane %v3173, 7
          %v3218 = vrot.slane %v3174, 7
          %v3219 = vrot.slane %v3175, 7
          %v3220 = vrot.slane %v3168, 1
          %v3221 = vrot.slane %v3169, 1
          %v3222 = vrot.slane %v3170, 1
          %v3223 = vrot.slane %v3171, 1
          %v3224 = vrot.slane %v3172, 1
          %v3225 = vrot.slane %v3173, 1
          %v3226 = vrot.slane %v3174, 1
          %v3227 = vrot.slane %v3175, 1
          %v3228 = vsel %vm3203, %v3212, %v3220
          %v3229 = vsel %vm3203, %v3213, %v3221
          %v3230 = vsel %vm3203, %v3214, %v3222
          %v3231 = vsel %vm3203, %v3215, %v3223
          %v3232 = vsel %vm3203, %v3216, %v3224
          %v3233 = vsel %vm3203, %v3217, %v3225
          %v3234 = vsel %vm3203, %v3218, %v3226
          %v3235 = vsel %vm3203, %v3219, %v3227
          %v3236 = vstv %s3178
          %v3237 = vmul.f32 %v3236, %v3104
          %v3238 = vmul.f32 %v3236, %v3105
          %v3239 = vmul.f32 %v3236, %v3106
          %v3240 = vmul.f32 %v3236, %v3107
          %v3241 = vmul.f32 %v3236, %v3108
          %v3242 = vmul.f32 %v3236, %v3109
          %v3243 = vmul.f32 %v3236, %v3110
          %v3244 = vmul.f32 %v3236, %v3111
          %v3245 = vstv %s3184
          %v3246 = vmul.f32 %v3245, %v3228
          %v3247 = vmul.f32 %v3245, %v3229
          %v3248 = vmul.f32 %v3245, %v3230
          %v3249 = vmul.f32 %v3245, %v3231
          %v3250 = vmul.f32 %v3245, %v3232
          %v3251 = vmul.f32 %v3245, %v3233
          %v3252 = vmul.f32 %v3245, %v3234
          %v3253 = vmul.f32 %v3245, %v3235
          %v3254 = vsub.f32 %v3237, %v3246
          %v3255 = vsub.f32 %v3238, %v3247
          %v3256 = vsub.f32 %v3239, %v3248
          %v3257 = vsub.f32 %v3240, %v3249
          %v3258 = vsub.f32 %v3241, %v3250
          %v3259 = vsub.f32 %v3242, %v3251
          %v3260 = vsub.f32 %v3243, %v3252
          %v3261 = vsub.f32 %v3244, %v3253
          %v3262 = vstv %s3180
          %v3263 = vmul.f32 %v3262, %v3168
          %v3264 = vmul.f32 %v3262, %v3169
          %v3265 = vmul.f32 %v3262, %v3170
          %v3266 = vmul.f32 %v3262, %v3171
          %v3267 = vmul.f32 %v3262, %v3172
          %v3268 = vmul.f32 %v3262, %v3173
          %v3269 = vmul.f32 %v3262, %v3174
          %v3270 = vmul.f32 %v3262, %v3175
          %v3271 = vstv %s3182
          %v3272 = vmul.f32 %v3271, %v3204
          %v3273 = vmul.f32 %v3271, %v3205
          %v3274 = vmul.f32 %v3271, %v3206
          %v3275 = vmul.f32 %v3271, %v3207
          %v3276 = vmul.f32 %v3271, %v3208
          %v3277 = vmul.f32 %v3271, %v3209
          %v3278 = vmul.f32 %v3271, %v3210
          %v3279 = vmul.f32 %v3271, %v3211
          %v3280 = vadd.f32 %v3263, %v3272
          %v3281 = vadd.f32 %v3264, %v3273
          %v3282 = vadd.f32 %v3265, %v3274
          %v3283 = vadd.f32 %v3266, %v3275
          %v3284 = vadd.f32 %v3267, %v3276
          %v3285 = vadd.f32 %v3268, %v3277
          %v3286 = vadd.f32 %v3269, %v3278
          %v3287 = vadd.f32 %v3270, %v3279
          %v3288 = vmul.f32 %v644, %v3280
          %v3289 = vmul.f32 %v644, %v3281
          %v3290 = vmul.f32 %v644, %v3282
          %v3291 = vmul.f32 %v644, %v3283
          %v3292 = vmul.f32 %v644, %v3284
          %v3293 = vmul.f32 %v644, %v3285
          %v3294 = vmul.f32 %v644, %v3286
          %v3295 = vmul.f32 %v644, %v3287
          %v3296 = vadd.f32 %v3254, %v3288
          %v3297 = vadd.f32 %v3255, %v3289
          %v3298 = vadd.f32 %v3256, %v3290
          %v3299 = vadd.f32 %v3257, %v3291
          %v3300 = vadd.f32 %v3258, %v3292
          %v3301 = vadd.f32 %v3259, %v3293
          %v3302 = vadd.f32 %v3260, %v3294
          %v3303 = vadd.f32 %v3261, %v3295
          %v3304 = vmul.f32 %v3236, %v3168
          %v3305 = vmul.f32 %v3236, %v3169
          %v3306 = vmul.f32 %v3236, %v3170
          %v3307 = vmul.f32 %v3236, %v3171
          %v3308 = vmul.f32 %v3236, %v3172
          %v3309 = vmul.f32 %v3236, %v3173
          %v3310 = vmul.f32 %v3236, %v3174
          %v3311 = vmul.f32 %v3236, %v3175
          %v3312 = vmul.f32 %v3245, %v3204
          %v3313 = vmul.f32 %v3245, %v3205
          %v3314 = vmul.f32 %v3245, %v3206
          %v3315 = vmul.f32 %v3245, %v3207
          %v3316 = vmul.f32 %v3245, %v3208
          %v3317 = vmul.f32 %v3245, %v3209
          %v3318 = vmul.f32 %v3245, %v3210
          %v3319 = vmul.f32 %v3245, %v3211
          %v3320 = vadd.f32 %v3304, %v3312
          %v3321 = vadd.f32 %v3305, %v3313
          %v3322 = vadd.f32 %v3306, %v3314
          %v3323 = vadd.f32 %v3307, %v3315
          %v3324 = vadd.f32 %v3308, %v3316
          %v3325 = vadd.f32 %v3309, %v3317
          %v3326 = vadd.f32 %v3310, %v3318
          %v3327 = vadd.f32 %v3311, %v3319
          %v3328 = vmul.f32 %v3271, %v3228
          %v3329 = vmul.f32 %v3271, %v3229
          %v3330 = vmul.f32 %v3271, %v3230
          %v3331 = vmul.f32 %v3271, %v3231
          %v3332 = vmul.f32 %v3271, %v3232
          %v3333 = vmul.f32 %v3271, %v3233
          %v3334 = vmul.f32 %v3271, %v3234
          %v3335 = vmul.f32 %v3271, %v3235
          %v3336 = vmul.f32 %v3262, %v3104
          %v3337 = vmul.f32 %v3262, %v3105
          %v3338 = vmul.f32 %v3262, %v3106
          %v3339 = vmul.f32 %v3262, %v3107
          %v3340 = vmul.f32 %v3262, %v3108
          %v3341 = vmul.f32 %v3262, %v3109
          %v3342 = vmul.f32 %v3262, %v3110
          %v3343 = vmul.f32 %v3262, %v3111
          %v3344 = vsub.f32 %v3328, %v3336
          %v3345 = vsub.f32 %v3329, %v3337
          %v3346 = vsub.f32 %v3330, %v3338
          %v3347 = vsub.f32 %v3331, %v3339
          %v3348 = vsub.f32 %v3332, %v3340
          %v3349 = vsub.f32 %v3333, %v3341
          %v3350 = vsub.f32 %v3334, %v3342
          %v3351 = vsub.f32 %v3335, %v3343
          %v3352 = vmul.f32 %v644, %v3344
          %v3353 = vmul.f32 %v644, %v3345
          %v3354 = vmul.f32 %v644, %v3346
          %v3355 = vmul.f32 %v644, %v3347
          %v3356 = vmul.f32 %v644, %v3348
          %v3357 = vmul.f32 %v644, %v3349
          %v3358 = vmul.f32 %v644, %v3350
          %v3359 = vmul.f32 %v644, %v3351
          %v3360 = vadd.f32 %v3320, %v3352
          %v3361 = vadd.f32 %v3321, %v3353
          %v3362 = vadd.f32 %v3322, %v3354
          %v3363 = vadd.f32 %v3323, %v3355
          %v3364 = vadd.f32 %v3324, %v3356
          %v3365 = vadd.f32 %v3325, %v3357
          %v3366 = vadd.f32 %v3326, %v3358
          %v3367 = vadd.f32 %v3327, %v3359
          %s3368 = sadd.s32 %s2452, 4
          %s3369 = sld [smem:[#allocation4 + %s3368]]
          %s3370 = sadd.s32 %s2452, 5
          %s3371 = sld [smem:[#allocation4 + %s3370]]
          %v3372 = vstv %s3369
          %v3373 = vmul.f32 %v3372, %v3296
          %v3374 = vmul.f32 %v3372, %v3297
          %v3375 = vmul.f32 %v3372, %v3298
          %v3376 = vmul.f32 %v3372, %v3299
          %v3377 = vstv %s3371
          %v3378 = vmul.f32 %v3377, %v3364
          %v3379 = vmul.f32 %v3377, %v3365
          %v3380 = vmul.f32 %v3377, %v3366
          %v3381 = vmul.f32 %v3377, %v3367
          %v3382 = vadd.f32 %v3373, %v3378
          %v3383 = vadd.f32 %v3374, %v3379
          %v3384 = vadd.f32 %v3375, %v3380
          %v3385 = vadd.f32 %v3376, %v3381
          %v3386 = vmul.f32 %v3372, %v3360
          %v3387 = vmul.f32 %v3372, %v3361
          %v3388 = vmul.f32 %v3372, %v3362
          %v3389 = vmul.f32 %v3372, %v3363
          %v3390 = vmul.f32 %v3377, %v3300
          %v3391 = vmul.f32 %v3377, %v3301
          %v3392 = vmul.f32 %v3377, %v3302
          %v3393 = vmul.f32 %v3377, %v3303
          %v3394 = vsub.f32 %v3386, %v3390
          %v3395 = vsub.f32 %v3387, %v3391
          %v3396 = vsub.f32 %v3388, %v3392
          %v3397 = vsub.f32 %v3389, %v3393
          %v3398 = vmul.f32 %v3372, %v3300
          %v3399 = vmul.f32 %v3372, %v3301
          %v3400 = vmul.f32 %v3372, %v3302
          %v3401 = vmul.f32 %v3372, %v3303
          %v3402 = vmul.f32 %v3377, %v3360
          %v3403 = vmul.f32 %v3377, %v3361
          %v3404 = vmul.f32 %v3377, %v3362
          %v3405 = vmul.f32 %v3377, %v3363
          %v3406 = vadd.f32 %v3398, %v3402
          %v3407 = vadd.f32 %v3399, %v3403
          %v3408 = vadd.f32 %v3400, %v3404
          %v3409 = vadd.f32 %v3401, %v3405
          %v3410 = vmul.f32 %v3372, %v3364
          %v3411 = vmul.f32 %v3372, %v3365
          %v3412 = vmul.f32 %v3372, %v3366
          %v3413 = vmul.f32 %v3372, %v3367
          %v3414 = vmul.f32 %v3377, %v3296
          %v3415 = vmul.f32 %v3377, %v3297
          %v3416 = vmul.f32 %v3377, %v3298
          %v3417 = vmul.f32 %v3377, %v3299
          %v3418 = vsub.f32 %v3410, %v3414
          %v3419 = vsub.f32 %v3411, %v3415
          %v3420 = vsub.f32 %v3412, %v3416
          %v3421 = vsub.f32 %v3413, %v3417
          %v3422 = vsel %vm3203, %v3382, %v3296
          %v3423 = vsel %vm3203, %v3383, %v3297
          %v3424 = vsel %vm3203, %v3384, %v3298
          %v3425 = vsel %vm3203, %v3385, %v3299
          %v3426 = vsel %vm3203, %v3406, %v3300
          %v3427 = vsel %vm3203, %v3407, %v3301
          %v3428 = vsel %vm3203, %v3408, %v3302
          %v3429 = vsel %vm3203, %v3409, %v3303
          %v3430 = vsel %vm3203, %v3394, %v3360
          %v3431 = vsel %vm3203, %v3395, %v3361
          %v3432 = vsel %vm3203, %v3396, %v3362
          %v3433 = vsel %vm3203, %v3397, %v3363
          %v3434 = vsel %vm3203, %v3418, %v3364
          %v3435 = vsel %vm3203, %v3419, %v3365
          %v3436 = vsel %vm3203, %v3420, %v3366
          %v3437 = vsel %vm3203, %v3421, %v3367
          %s3438 = sadd.s32 %s2578, 4
          %s3439 = sld [smem:[#allocation4 + %s3438]]
          %s3440 = sadd.s32 %s2578, 5
          %s3441 = sld [smem:[#allocation4 + %s3440]]
          %v3442 = vrot.slane %v3422, 7
          %v3443 = vrot.slane %v3423, 7
          %v3444 = vrot.slane %v3424, 7
          %v3445 = vrot.slane %v3425, 7
          %v3446 = vrot.slane %v3426, 7
          %v3447 = vrot.slane %v3427, 7
          %v3448 = vrot.slane %v3428, 7
          %v3449 = vrot.slane %v3429, 7
          %v3450 = vrot.slane %v3422, 1
          %v3451 = vrot.slane %v3423, 1
          %v3452 = vrot.slane %v3424, 1
          %v3453 = vrot.slane %v3425, 1
          %v3454 = vrot.slane %v3426, 1
          %v3455 = vrot.slane %v3427, 1
          %v3456 = vrot.slane %v3428, 1
          %v3457 = vrot.slane %v3429, 1
          %v3458 = vsel %vm3203, %v3442, %v3450
          %v3459 = vsel %vm3203, %v3443, %v3451
          %v3460 = vsel %vm3203, %v3444, %v3452
          %v3461 = vsel %vm3203, %v3445, %v3453
          %v3462 = vsel %vm3203, %v3446, %v3454
          %v3463 = vsel %vm3203, %v3447, %v3455
          %v3464 = vsel %vm3203, %v3448, %v3456
          %v3465 = vsel %vm3203, %v3449, %v3457
          %v3466 = vrot.slane %v3430, 7
          %v3467 = vrot.slane %v3431, 7
          %v3468 = vrot.slane %v3432, 7
          %v3469 = vrot.slane %v3433, 7
          %v3470 = vrot.slane %v3434, 7
          %v3471 = vrot.slane %v3435, 7
          %v3472 = vrot.slane %v3436, 7
          %v3473 = vrot.slane %v3437, 7
          %v3474 = vrot.slane %v3430, 1
          %v3475 = vrot.slane %v3431, 1
          %v3476 = vrot.slane %v3432, 1
          %v3477 = vrot.slane %v3433, 1
          %v3478 = vrot.slane %v3434, 1
          %v3479 = vrot.slane %v3435, 1
          %v3480 = vrot.slane %v3436, 1
          %v3481 = vrot.slane %v3437, 1
          %v3482 = vsel %vm3203, %v3466, %v3474
          %v3483 = vsel %vm3203, %v3467, %v3475
          %v3484 = vsel %vm3203, %v3468, %v3476
          %v3485 = vsel %vm3203, %v3469, %v3477
          %v3486 = vsel %vm3203, %v3470, %v3478
          %v3487 = vsel %vm3203, %v3471, %v3479
          %v3488 = vsel %vm3203, %v3472, %v3480
          %v3489 = vsel %vm3203, %v3473, %v3481
          %v3490 = vstv %s3439
          %v3491 = vmul.f32 %v3490, %v3422
          %v3492 = vmul.f32 %v3490, %v3423
          %v3493 = vmul.f32 %v3490, %v3424
          %v3494 = vmul.f32 %v3490, %v3425
          %v3495 = vmul.f32 %v3490, %v3426
          %v3496 = vmul.f32 %v3490, %v3427
          %v3497 = vmul.f32 %v3490, %v3428
          %v3498 = vmul.f32 %v3490, %v3429
          %v3499 = vstv %s3441
          %v3500 = vmul.f32 %v3499, %v3482
          %v3501 = vmul.f32 %v3499, %v3483
          %v3502 = vmul.f32 %v3499, %v3484
          %v3503 = vmul.f32 %v3499, %v3485
          %v3504 = vmul.f32 %v3499, %v3486
          %v3505 = vmul.f32 %v3499, %v3487
          %v3506 = vmul.f32 %v3499, %v3488
          %v3507 = vmul.f32 %v3499, %v3489
          %v3508 = vadd.f32 %v3491, %v3500
          %v3509 = vadd.f32 %v3492, %v3501
          %v3510 = vadd.f32 %v3493, %v3502
          %v3511 = vadd.f32 %v3494, %v3503
          %v3512 = vadd.f32 %v3495, %v3504
          %v3513 = vadd.f32 %v3496, %v3505
          %v3514 = vadd.f32 %v3497, %v3506
          %v3515 = vadd.f32 %v3498, %v3507
          %v3516 = vmul.f32 %v3490, %v3430
          %v3517 = vmul.f32 %v3490, %v3431
          %v3518 = vmul.f32 %v3490, %v3432
          %v3519 = vmul.f32 %v3490, %v3433
          %v3520 = vmul.f32 %v3490, %v3434
          %v3521 = vmul.f32 %v3490, %v3435
          %v3522 = vmul.f32 %v3490, %v3436
          %v3523 = vmul.f32 %v3490, %v3437
          %v3524 = vmul.f32 %v3499, %v3458
          %v3525 = vmul.f32 %v3499, %v3459
          %v3526 = vmul.f32 %v3499, %v3460
          %v3527 = vmul.f32 %v3499, %v3461
          %v3528 = vmul.f32 %v3499, %v3462
          %v3529 = vmul.f32 %v3499, %v3463
          %v3530 = vmul.f32 %v3499, %v3464
          %v3531 = vmul.f32 %v3499, %v3465
          %v3532 = vsub.f32 %v3516, %v3524
          %v3533 = vsub.f32 %v3517, %v3525
          %v3534 = vsub.f32 %v3518, %v3526
          %v3535 = vsub.f32 %v3519, %v3527
          %v3536 = vsub.f32 %v3520, %v3528
          %v3537 = vsub.f32 %v3521, %v3529
          %v3538 = vsub.f32 %v3522, %v3530
          %v3539 = vsub.f32 %v3523, %v3531
          %v3540 = vsel %vm3011, %v3508, %v3422
          %v3541 = vsel %vm3011, %v3509, %v3423
          %v3542 = vsel %vm3011, %v3510, %v3424
          %v3543 = vsel %vm3011, %v3511, %v3425
          %v3544 = vsel %vm3011, %v3512, %v3426
          %v3545 = vsel %vm3011, %v3513, %v3427
          %v3546 = vsel %vm3011, %v3514, %v3428
          %v3547 = vsel %vm3011, %v3515, %v3429
          %v3548 = vsel %vm3011, %v3532, %v3430
          %v3549 = vsel %vm3011, %v3533, %v3431
          %v3550 = vsel %vm3011, %v3534, %v3432
          %v3551 = vsel %vm3011, %v3535, %v3433
          %v3552 = vsel %vm3011, %v3536, %v3434
          %v3553 = vsel %vm3011, %v3537, %v3435
          %v3554 = vsel %vm3011, %v3538, %v3436
          %v3555 = vsel %vm3011, %v3539, %v3437
          %s3556 = sadd.s32 %s2703, 4
          %s3557 = sld [smem:[#allocation4 + %s3556]]
          %s3558 = sadd.s32 %s2703, 5
          %s3559 = sld [smem:[#allocation4 + %s3558]]
          %v3560 = vrot.slane %v3540, 6
          %v3561 = vrot.slane %v3541, 6
          %v3562 = vrot.slane %v3542, 6
          %v3563 = vrot.slane %v3543, 6
          %v3564 = vrot.slane %v3544, 6
          %v3565 = vrot.slane %v3545, 6
          %v3566 = vrot.slane %v3546, 6
          %v3567 = vrot.slane %v3547, 6
          %v3568 = vrot.slane %v3540, 2
          %v3569 = vrot.slane %v3541, 2
          %v3570 = vrot.slane %v3542, 2
          %v3571 = vrot.slane %v3543, 2
          %v3572 = vrot.slane %v3544, 2
          %v3573 = vrot.slane %v3545, 2
          %v3574 = vrot.slane %v3546, 2
          %v3575 = vrot.slane %v3547, 2
          %v3576 = vsel %vm3011, %v3560, %v3568
          %v3577 = vsel %vm3011, %v3561, %v3569
          %v3578 = vsel %vm3011, %v3562, %v3570
          %v3579 = vsel %vm3011, %v3563, %v3571
          %v3580 = vsel %vm3011, %v3564, %v3572
          %v3581 = vsel %vm3011, %v3565, %v3573
          %v3582 = vsel %vm3011, %v3566, %v3574
          %v3583 = vsel %vm3011, %v3567, %v3575
          %v3584 = vrot.slane %v3548, 6
          %v3585 = vrot.slane %v3549, 6
          %v3586 = vrot.slane %v3550, 6
          %v3587 = vrot.slane %v3551, 6
          %v3588 = vrot.slane %v3552, 6
          %v3589 = vrot.slane %v3553, 6
          %v3590 = vrot.slane %v3554, 6
          %v3591 = vrot.slane %v3555, 6
          %v3592 = vrot.slane %v3548, 2
          %v3593 = vrot.slane %v3549, 2
          %v3594 = vrot.slane %v3550, 2
          %v3595 = vrot.slane %v3551, 2
          %v3596 = vrot.slane %v3552, 2
          %v3597 = vrot.slane %v3553, 2
          %v3598 = vrot.slane %v3554, 2
          %v3599 = vrot.slane %v3555, 2
          %v3600 = vsel %vm3011, %v3584, %v3592
          %v3601 = vsel %vm3011, %v3585, %v3593
          %v3602 = vsel %vm3011, %v3586, %v3594
          %v3603 = vsel %vm3011, %v3587, %v3595
          %v3604 = vsel %vm3011, %v3588, %v3596
          %v3605 = vsel %vm3011, %v3589, %v3597
          %v3606 = vsel %vm3011, %v3590, %v3598
          %v3607 = vsel %vm3011, %v3591, %v3599
          %v3608 = vstv %s3557
          %v3609 = vmul.f32 %v3608, %v3540
          %v3610 = vmul.f32 %v3608, %v3541
          %v3611 = vmul.f32 %v3608, %v3542
          %v3612 = vmul.f32 %v3608, %v3543
          %v3613 = vmul.f32 %v3608, %v3544
          %v3614 = vmul.f32 %v3608, %v3545
          %v3615 = vmul.f32 %v3608, %v3546
          %v3616 = vmul.f32 %v3608, %v3547
          %v3617 = vstv %s3559
          %v3618 = vmul.f32 %v3617, %v3600
          %v3619 = vmul.f32 %v3617, %v3601
          %v3620 = vmul.f32 %v3617, %v3602
          %v3621 = vmul.f32 %v3617, %v3603
          %v3622 = vmul.f32 %v3617, %v3604
          %v3623 = vmul.f32 %v3617, %v3605
          %v3624 = vmul.f32 %v3617, %v3606
          %v3625 = vmul.f32 %v3617, %v3607
          %v3626 = vadd.f32 %v3609, %v3618
          %v3627 = vadd.f32 %v3610, %v3619
          %v3628 = vadd.f32 %v3611, %v3620
          %v3629 = vadd.f32 %v3612, %v3621
          %v3630 = vadd.f32 %v3613, %v3622
          %v3631 = vadd.f32 %v3614, %v3623
          %v3632 = vadd.f32 %v3615, %v3624
          %v3633 = vadd.f32 %v3616, %v3625
          %v3634 = vmul.f32 %v3608, %v3548
          %v3635 = vmul.f32 %v3608, %v3549
          %v3636 = vmul.f32 %v3608, %v3550
          %v3637 = vmul.f32 %v3608, %v3551
          %v3638 = vmul.f32 %v3608, %v3552
          %v3639 = vmul.f32 %v3608, %v3553
          %v3640 = vmul.f32 %v3608, %v3554
          %v3641 = vmul.f32 %v3608, %v3555
          %v3642 = vmul.f32 %v3617, %v3576
          %v3643 = vmul.f32 %v3617, %v3577
          %v3644 = vmul.f32 %v3617, %v3578
          %v3645 = vmul.f32 %v3617, %v3579
          %v3646 = vmul.f32 %v3617, %v3580
          %v3647 = vmul.f32 %v3617, %v3581
          %v3648 = vmul.f32 %v3617, %v3582
          %v3649 = vmul.f32 %v3617, %v3583
          %v3650 = vsub.f32 %v3634, %v3642
          %v3651 = vsub.f32 %v3635, %v3643
          %v3652 = vsub.f32 %v3636, %v3644
          %v3653 = vsub.f32 %v3637, %v3645
          %v3654 = vsub.f32 %v3638, %v3646
          %v3655 = vsub.f32 %v3639, %v3647
          %v3656 = vsub.f32 %v3640, %v3648
          %v3657 = vsub.f32 %v3641, %v3649
          %vm3658 = vcmp.eq.s32.totalorder %v620, 1
          %v3659 = vsel %vm3658, 1, 0
          %vm3660 = vcmp.eq.s32.totalorder %v3659, 1
          %v3661 = vsel %vm3660, %v3626, %v3540
          %v3662 = vsel %vm3660, %v3627, %v3541
          %v3663 = vsel %vm3660, %v3628, %v3542
          %v3664 = vsel %vm3660, %v3629, %v3543
          %v3665 = vsel %vm3660, %v3630, %v3544
          %v3666 = vsel %vm3660, %v3631, %v3545
          %v3667 = vsel %vm3660, %v3632, %v3546
          %v3668 = vsel %vm3660, %v3633, %v3547
          %v3669 = vsel %vm3660, %v3650, %v3548
          %v3670 = vsel %vm3660, %v3651, %v3549
          %v3671 = vsel %vm3660, %v3652, %v3550
          %v3672 = vsel %vm3660, %v3653, %v3551
          %v3673 = vsel %vm3660, %v3654, %v3552
          %v3674 = vsel %vm3660, %v3655, %v3553
          %v3675 = vsel %vm3660, %v3656, %v3554
          %v3676 = vsel %vm3660, %v3657, %v3555
          %s3677 = sadd.s32 %s2828, 4
          %s3678 = sld [smem:[#allocation4 + %s3677]]
          %s3679 = sadd.s32 %s2828, 5
          %s3680 = sld [smem:[#allocation4 + %s3679]]
          %v3681 = vrot.slane %v3662, 4
          %v3682 = vrot.slane %v3664, 4
          %v3683 = vrot.slane %v3666, 4
          %v3684 = vrot.slane %v3668, 4
          %v3685 = vrot.slane %v3670, 4
          %v3686 = vrot.slane %v3672, 4
          %v3687 = vrot.slane %v3674, 4
          %v3688 = vrot.slane %v3676, 4
          %v3689 = vstv %s3678
          %v3690 = vmul.f32 %v3689, %v3662
          %v3691 = vmul.f32 %v3689, %v3664
          %v3692 = vmul.f32 %v3689, %v3666
          %v3693 = vmul.f32 %v3689, %v3668
          %v3694 = vstv %s3680
          %v3695 = vmul.f32 %v3694, %v3685
          %v3696 = vmul.f32 %v3694, %v3686
          %v3697 = vmul.f32 %v3694, %v3687
          %v3698 = vmul.f32 %v3694, %v3688
          %v3699 = vadd.f32 %v3690, %v3695
          %v3700 = vadd.f32 %v3691, %v3696
          %v3701 = vadd.f32 %v3692, %v3697
          %v3702 = vadd.f32 %v3693, %v3698
          %v3703 = vmul.f32 %v3689, %v3670
          %v3704 = vmul.f32 %v3689, %v3672
          %v3705 = vmul.f32 %v3689, %v3674
          %v3706 = vmul.f32 %v3689, %v3676
          %v3707 = vmul.f32 %v3694, %v3681
          %v3708 = vmul.f32 %v3694, %v3682
          %v3709 = vmul.f32 %v3694, %v3683
          %v3710 = vmul.f32 %v3694, %v3684
          %v3711 = vsub.f32 %v3703, %v3707
          %v3712 = vsub.f32 %v3704, %v3708
          %v3713 = vsub.f32 %v3705, %v3709
          %v3714 = vsub.f32 %v3706, %v3710
          %s3715 = sadd.s32 %s2985, 4
          %s3716 = sld [smem:[#allocation4 + %s3715]]
          %s3717 = sadd.s32 %s2985, 5
          %s3718 = sld [smem:[#allocation4 + %s3717]]
          %v3719 = vstv %s3716
          %v3720 = vstv %s3718
          %v3721 = vmul.f32 %v3719, %v3663
          %v3722 = vmul.f32 %v3720, %v3712
          %v3723 = vadd.f32 %v3721, %v3722
          %v3724 = vmul.f32 %v3719, %v3671
          %v3725 = vmul.f32 %v3720, %v3700
          %v3726 = vsub.f32 %v3724, %v3725
          %v3727 = vmul.f32 %v3719, %v3700
          %v3728 = vmul.f32 %v3720, %v3671
          %v3729 = vadd.f32 %v3727, %v3728
          %v3730 = vmul.f32 %v3719, %v3712
          %v3731 = vmul.f32 %v3720, %v3663
          %v3732 = vsub.f32 %v3730, %v3731
          %v3733 = vmul.f32 %v3719, %v3667
          %v3734 = vmul.f32 %v3720, %v3714
          %v3735 = vadd.f32 %v3733, %v3734
          %v3736 = vmul.f32 %v3719, %v3675
          %v3737 = vmul.f32 %v3720, %v3702
          %v3738 = vsub.f32 %v3736, %v3737
          %v3739 = vmul.f32 %v3719, %v3702
          %v3740 = vmul.f32 %v3720, %v3675
          %v3741 = vadd.f32 %v3739, %v3740
          %v3742 = vmul.f32 %v3719, %v3714
          %v3743 = vmul.f32 %v3720, %v3667
          %v3744 = vsub.f32 %v3742, %v3743
          %s3745 = sadd.s32 %s3177, 4
          %s3746 = sld [smem:[#allocation4 + %s3745]]
          %s3747 = sadd.s32 %s3177, 5
          %s3748 = sld [smem:[#allocation4 + %s3747]]
          %v3749 = vstv %s3746
          %v3750 = vstv %s3748
          %v3751 = vmul.f32 %v3749, %v3665
          %v3752 = vmul.f32 %v3749, %v3701
          %v3753 = vmul.f32 %v3750, %v3738
          %v3754 = vmul.f32 %v3750, %v3744
          %v3755 = vadd.f32 %v3751, %v3753
          %v3756 = vadd.f32 %v3752, %v3754
          %v3757 = vmul.f32 %v3749, %v3673
          %v3758 = vmul.f32 %v3749, %v3713
          %v3759 = vmul.f32 %v3750, %v3735
          %v3760 = vmul.f32 %v3750, %v3741
          %v3761 = vsub.f32 %v3757, %v3759
          %v3762 = vsub.f32 %v3758, %v3760
          %v3763 = vmul.f32 %v3749, %v3735
          %v3764 = vmul.f32 %v3749, %v3741
          %v3765 = vmul.f32 %v3750, %v3673
          %v3766 = vmul.f32 %v3750, %v3713
          %v3767 = vadd.f32 %v3763, %v3765
          %v3768 = vadd.f32 %v3764, %v3766
          %v3769 = vmul.f32 %v3749, %v3738
          %v3770 = vmul.f32 %v3749, %v3744
          %v3771 = vmul.f32 %v3750, %v3665
          %v3772 = vmul.f32 %v3750, %v3701
          %v3773 = vsub.f32 %v3769, %v3771
          %v3774 = vsub.f32 %v3770, %v3772
          %v3775 = vmul.f32 %v573, %v3661
          %v3776 = vmul.f32 %v573, %v3699
          %v3777 = vmul.f32 %v573, %v3723
          %v3778 = vmul.f32 %v573, %v3729
          %v3779 = vmul.f32 %v578, %v3669
          %v3780 = vmul.f32 %v578, %v3711
          %v3781 = vmul.f32 %v578, %v3726
          %v3782 = vmul.f32 %v578, %v3732
          %v3783 = vsub.f32 %v3775, %v3779
          %v3784 = vsub.f32 %v3776, %v3780
          %v3785 = vsub.f32 %v3777, %v3781
          %v3786 = vsub.f32 %v3778, %v3782
          %v3787 = vmul.f32 %v583, %v3755
          %v3788 = vmul.f32 %v583, %v3756
          %v3789 = vmul.f32 %v583, %v3767
          %v3790 = vmul.f32 %v583, %v3768
          %v3791 = vsub.f32 %v3783, %v3787
          %v3792 = vsub.f32 %v3784, %v3788
          %v3793 = vsub.f32 %v3785, %v3789
          %v3794 = vsub.f32 %v3786, %v3790
          %v3795 = vmul.f32 %v589, %v3761
          %v3796 = vmul.f32 %v589, %v3762
          %v3797 = vmul.f32 %v589, %v3773
          %v3798 = vmul.f32 %v589, %v3774
          %v3799 = vsub.f32 %v3791, %v3795
          %v3800 = vsub.f32 %v3792, %v3796
          %v3801 = vsub.f32 %v3793, %v3797
          %v3802 = vsub.f32 %v3794, %v3798
          %v3803 = vmul.f32 %v573, %v3669
          %v3804 = vmul.f32 %v573, %v3711
          %v3805 = vmul.f32 %v573, %v3726
          %v3806 = vmul.f32 %v573, %v3732
          %v3807 = vmul.f32 %v578, %v3661
          %v3808 = vmul.f32 %v578, %v3699
          %v3809 = vmul.f32 %v578, %v3723
          %v3810 = vmul.f32 %v578, %v3729
          %v3811 = vadd.f32 %v3803, %v3807
          %v3812 = vadd.f32 %v3804, %v3808
          %v3813 = vadd.f32 %v3805, %v3809
          %v3814 = vadd.f32 %v3806, %v3810
          %v3815 = vmul.f32 %v583, %v3761
          %v3816 = vmul.f32 %v583, %v3762
          %v3817 = vmul.f32 %v583, %v3773
          %v3818 = vmul.f32 %v583, %v3774
          %v3819 = vsub.f32 %v3811, %v3815
          %v3820 = vsub.f32 %v3812, %v3816
          %v3821 = vsub.f32 %v3813, %v3817
          %v3822 = vsub.f32 %v3814, %v3818
          %v3823 = vmul.f32 %v589, %v3755
          %v3824 = vmul.f32 %v589, %v3756
          %v3825 = vmul.f32 %v589, %v3767
          %v3826 = vmul.f32 %v589, %v3768
          %v3827 = vadd.f32 %v3819, %v3823
          %v3828 = vadd.f32 %v3820, %v3824
          %v3829 = vadd.f32 %v3821, %v3825
          %v3830 = vadd.f32 %v3822, %v3826
          %v3831 = vmul.f32 %v583, %v3661
          %v3832 = vmul.f32 %v583, %v3699
          %v3833 = vmul.f32 %v583, %v3723
          %v3834 = vmul.f32 %v583, %v3729
          %v3835 = vmul.f32 %v589, %v3669
          %v3836 = vmul.f32 %v589, %v3711
          %v3837 = vmul.f32 %v589, %v3726
          %v3838 = vmul.f32 %v589, %v3732
          %v3839 = vsub.f32 %v3831, %v3835
          %v3840 = vsub.f32 %v3832, %v3836
          %v3841 = vsub.f32 %v3833, %v3837
          %v3842 = vsub.f32 %v3834, %v3838
          %v3843 = vmul.f32 %v573, %v3755
          %v3844 = vmul.f32 %v573, %v3756
          %v3845 = vmul.f32 %v573, %v3767
          %v3846 = vmul.f32 %v573, %v3768
          %v3847 = vadd.f32 %v3839, %v3843
          %v3848 = vadd.f32 %v3840, %v3844
          %v3849 = vadd.f32 %v3841, %v3845
          %v3850 = vadd.f32 %v3842, %v3846
          %v3851 = vmul.f32 %v578, %v3761
          %v3852 = vmul.f32 %v578, %v3762
          %v3853 = vmul.f32 %v578, %v3773
          %v3854 = vmul.f32 %v578, %v3774
          %v3855 = vadd.f32 %v3847, %v3851
          %v3856 = vadd.f32 %v3848, %v3852
          %v3857 = vadd.f32 %v3849, %v3853
          %v3858 = vadd.f32 %v3850, %v3854
          %v3859 = vmul.f32 %v583, %v3669
          %v3860 = vmul.f32 %v583, %v3711
          %v3861 = vmul.f32 %v583, %v3726
          %v3862 = vmul.f32 %v583, %v3732
          %v3863 = vmul.f32 %v589, %v3661
          %v3864 = vmul.f32 %v589, %v3699
          %v3865 = vmul.f32 %v589, %v3723
          %v3866 = vmul.f32 %v589, %v3729
          %v3867 = vadd.f32 %v3859, %v3863
          %v3868 = vadd.f32 %v3860, %v3864
          %v3869 = vadd.f32 %v3861, %v3865
          %v3870 = vadd.f32 %v3862, %v3866
          %v3871 = vmul.f32 %v573, %v3761
          %v3872 = vmul.f32 %v573, %v3762
          %v3873 = vmul.f32 %v573, %v3773
          %v3874 = vmul.f32 %v573, %v3774
          %v3875 = vadd.f32 %v3867, %v3871
          %v3876 = vadd.f32 %v3868, %v3872
          %v3877 = vadd.f32 %v3869, %v3873
          %v3878 = vadd.f32 %v3870, %v3874
          %v3879 = vmul.f32 %v578, %v3755
          %v3880 = vmul.f32 %v578, %v3756
          %v3881 = vmul.f32 %v578, %v3767
          %v3882 = vmul.f32 %v578, %v3768
          %v3883 = vsub.f32 %v3875, %v3879
          %v3884 = vsub.f32 %v3876, %v3880
          %v3885 = vsub.f32 %v3877, %v3881
          %v3886 = vsub.f32 %v3878, %v3882
          %v3887 = vmul.f32 %v573, %v3799
          %v3888 = vmul.f32 %v573, %v3800
          %v3889 = vmul.f32 %v578, %v3827
          %v3890 = vmul.f32 %v578, %v3828
          %v3891 = vsub.f32 %v3887, %v3889
          %v3892 = vsub.f32 %v3888, %v3890
          %v3893 = vmul.f32 %v583, %v3801
          %v3894 = vmul.f32 %v583, %v3802
          %v3895 = vsub.f32 %v3891, %v3893
          %v3896 = vsub.f32 %v3892, %v3894
          %v3897 = vmul.f32 %v589, %v3829
          %v3898 = vmul.f32 %v589, %v3830
          %v3899 = vsub.f32 %v3895, %v3897
          %v3900 = vsub.f32 %v3896, %v3898
          %v3901 = vmul.f32 %v573, %v3827
          %v3902 = vmul.f32 %v573, %v3828
          %v3903 = vmul.f32 %v578, %v3799
          %v3904 = vmul.f32 %v578, %v3800
          %v3905 = vadd.f32 %v3901, %v3903
          %v3906 = vadd.f32 %v3902, %v3904
          %v3907 = vmul.f32 %v583, %v3829
          %v3908 = vmul.f32 %v583, %v3830
          %v3909 = vsub.f32 %v3905, %v3907
          %v3910 = vsub.f32 %v3906, %v3908
          %v3911 = vmul.f32 %v589, %v3801
          %v3912 = vmul.f32 %v589, %v3802
          %v3913 = vadd.f32 %v3909, %v3911
          %v3914 = vadd.f32 %v3910, %v3912
          %v3915 = vmul.f32 %v583, %v3799
          %v3916 = vmul.f32 %v583, %v3800
          %v3917 = vmul.f32 %v589, %v3827
          %v3918 = vmul.f32 %v589, %v3828
          %v3919 = vsub.f32 %v3915, %v3917
          %v3920 = vsub.f32 %v3916, %v3918
          %v3921 = vmul.f32 %v573, %v3801
          %v3922 = vmul.f32 %v573, %v3802
          %v3923 = vadd.f32 %v3919, %v3921
          %v3924 = vadd.f32 %v3920, %v3922
          %v3925 = vmul.f32 %v578, %v3829
          %v3926 = vmul.f32 %v578, %v3830
          %v3927 = vadd.f32 %v3923, %v3925
          %v3928 = vadd.f32 %v3924, %v3926
          %v3929 = vmul.f32 %v583, %v3827
          %v3930 = vmul.f32 %v583, %v3828
          %v3931 = vmul.f32 %v589, %v3799
          %v3932 = vmul.f32 %v589, %v3800
          %v3933 = vadd.f32 %v3929, %v3931
          %v3934 = vadd.f32 %v3930, %v3932
          %v3935 = vmul.f32 %v573, %v3829
          %v3936 = vmul.f32 %v573, %v3830
          %v3937 = vadd.f32 %v3933, %v3935
          %v3938 = vadd.f32 %v3934, %v3936
          %v3939 = vmul.f32 %v578, %v3801
          %v3940 = vmul.f32 %v578, %v3802
          %v3941 = vsub.f32 %v3937, %v3939
          %v3942 = vsub.f32 %v3938, %v3940
          %v3943 = vmul.f32 %v573, %v3855
          %v3944 = vmul.f32 %v573, %v3856
          %v3945 = vmul.f32 %v578, %v3883
          %v3946 = vmul.f32 %v578, %v3884
          %v3947 = vsub.f32 %v3943, %v3945
          %v3948 = vsub.f32 %v3944, %v3946
          %v3949 = vmul.f32 %v583, %v3857
          %v3950 = vmul.f32 %v583, %v3858
          %v3951 = vsub.f32 %v3947, %v3949
          %v3952 = vsub.f32 %v3948, %v3950
          %v3953 = vmul.f32 %v589, %v3885
          %v3954 = vmul.f32 %v589, %v3886
          %v3955 = vsub.f32 %v3951, %v3953
          %v3956 = vsub.f32 %v3952, %v3954
          %v3957 = vmul.f32 %v573, %v3883
          %v3958 = vmul.f32 %v573, %v3884
          %v3959 = vmul.f32 %v578, %v3855
          %v3960 = vmul.f32 %v578, %v3856
          %v3961 = vadd.f32 %v3957, %v3959
          %v3962 = vadd.f32 %v3958, %v3960
          %v3963 = vmul.f32 %v583, %v3885
          %v3964 = vmul.f32 %v583, %v3886
          %v3965 = vsub.f32 %v3961, %v3963
          %v3966 = vsub.f32 %v3962, %v3964
          %v3967 = vmul.f32 %v589, %v3857
          %v3968 = vmul.f32 %v589, %v3858
          %v3969 = vadd.f32 %v3965, %v3967
          %v3970 = vadd.f32 %v3966, %v3968
          %v3971 = vmul.f32 %v583, %v3855
          %v3972 = vmul.f32 %v583, %v3856
          %v3973 = vmul.f32 %v589, %v3883
          %v3974 = vmul.f32 %v589, %v3884
          %v3975 = vsub.f32 %v3971, %v3973
          %v3976 = vsub.f32 %v3972, %v3974
          %v3977 = vmul.f32 %v573, %v3857
          %v3978 = vmul.f32 %v573, %v3858
          %v3979 = vadd.f32 %v3975, %v3977
          %v3980 = vadd.f32 %v3976, %v3978
          %v3981 = vmul.f32 %v578, %v3885
          %v3982 = vmul.f32 %v578, %v3886
          %v3983 = vadd.f32 %v3979, %v3981
          %v3984 = vadd.f32 %v3980, %v3982
          %v3985 = vmul.f32 %v583, %v3883
          %v3986 = vmul.f32 %v583, %v3884
          %v3987 = vmul.f32 %v589, %v3855
          %v3988 = vmul.f32 %v589, %v3856
          %v3989 = vadd.f32 %v3985, %v3987
          %v3990 = vadd.f32 %v3986, %v3988
          %v3991 = vmul.f32 %v573, %v3885
          %v3992 = vmul.f32 %v573, %v3886
          %v3993 = vadd.f32 %v3989, %v3991
          %v3994 = vadd.f32 %v3990, %v3992
          %v3995 = vmul.f32 %v578, %v3857
          %v3996 = vmul.f32 %v578, %v3858
          %v3997 = vsub.f32 %v3993, %v3995
          %v3998 = vsub.f32 %v3994, %v3996
          %v3999 = vmul.f32 %v573, %v3899
          %v4000 = vmul.f32 %v578, %v3913
          %v4001 = vsub.f32 %v3999, %v4000
          %v4002 = vmul.f32 %v583, %v3900
          %v4003 = vsub.f32 %v4001, %v4002
          %v4004 = vmul.f32 %v589, %v3914
          %v4005 = vsub.f32 %v4003, %v4004
          %v4006 = vmul.f32 %v573, %v3913
          %v4007 = vmul.f32 %v578, %v3899
          %v4008 = vadd.f32 %v4006, %v4007
          %v4009 = vmul.f32 %v583, %v3914
          %v4010 = vsub.f32 %v4008, %v4009
          %v4011 = vmul.f32 %v589, %v3900
          %v4012 = vadd.f32 %v4010, %v4011
          %v4013 = vmul.f32 %v583, %v3899
          %v4014 = vmul.f32 %v589, %v3913
          %v4015 = vsub.f32 %v4013, %v4014
          %v4016 = vmul.f32 %v573, %v3900
          %v4017 = vadd.f32 %v4015, %v4016
          %v4018 = vmul.f32 %v578, %v3914
          %v4019 = vadd.f32 %v4017, %v4018
          %v4020 = vmul.f32 %v583, %v3913
          %v4021 = vmul.f32 %v589, %v3899
          %v4022 = vadd.f32 %v4020, %v4021
          %v4023 = vmul.f32 %v573, %v3914
          %v4024 = vadd.f32 %v4022, %v4023
          %v4025 = vmul.f32 %v578, %v3900
          %v4026 = vsub.f32 %v4024, %v4025
          %v4027 = vmul.f32 %v573, %v3927
          %v4028 = vmul.f32 %v578, %v3941
          %v4029 = vsub.f32 %v4027, %v4028
          %v4030 = vmul.f32 %v583, %v3928
          %v4031 = vsub.f32 %v4029, %v4030
          %v4032 = vmul.f32 %v589, %v3942
          %v4033 = vsub.f32 %v4031, %v4032
          %v4034 = vmul.f32 %v573, %v3941
          %v4035 = vmul.f32 %v578, %v3927
          %v4036 = vadd.f32 %v4034, %v4035
          %v4037 = vmul.f32 %v583, %v3942
          %v4038 = vsub.f32 %v4036, %v4037
          %v4039 = vmul.f32 %v589, %v3928
          %v4040 = vadd.f32 %v4038, %v4039
          %v4041 = vmul.f32 %v583, %v3927
          %v4042 = vmul.f32 %v589, %v3941
          %v4043 = vsub.f32 %v4041, %v4042
          %v4044 = vmul.f32 %v573, %v3928
          %v4045 = vadd.f32 %v4043, %v4044
          %v4046 = vmul.f32 %v578, %v3942
          %v4047 = vadd.f32 %v4045, %v4046
          %v4048 = vmul.f32 %v583, %v3941
          %v4049 = vmul.f32 %v589, %v3927
          %v4050 = vadd.f32 %v4048, %v4049
          %v4051 = vmul.f32 %v573, %v3942
          %v4052 = vadd.f32 %v4050, %v4051
          %v4053 = vmul.f32 %v578, %v3928
          %v4054 = vsub.f32 %v4052, %v4053
          %v4055 = vmul.f32 %v573, %v3955
          %v4056 = vmul.f32 %v578, %v3969
          %v4057 = vsub.f32 %v4055, %v4056
          %v4058 = vmul.f32 %v583, %v3956
          %v4059 = vsub.f32 %v4057, %v4058
          %v4060 = vmul.f32 %v589, %v3970
          %v4061 = vsub.f32 %v4059, %v4060
          %v4062 = vmul.f32 %v573, %v3969
          %v4063 = vmul.f32 %v578, %v3955
          %v4064 = vadd.f32 %v4062, %v4063
          %v4065 = vmul.f32 %v583, %v3970
          %v4066 = vsub.f32 %v4064, %v4065
          %v4067 = vmul.f32 %v589, %v3956
          %v4068 = vadd.f32 %v4066, %v4067
          %v4069 = vmul.f32 %v583, %v3955
          %v4070 = vmul.f32 %v589, %v3969
          %v4071 = vsub.f32 %v4069, %v4070
          %v4072 = vmul.f32 %v573, %v3956
          %v4073 = vadd.f32 %v4071, %v4072
          %v4074 = vmul.f32 %v578, %v3970
          %v4075 = vadd.f32 %v4073, %v4074
          %v4076 = vmul.f32 %v583, %v3969
          %v4077 = vmul.f32 %v589, %v3955
          %v4078 = vadd.f32 %v4076, %v4077
          %v4079 = vmul.f32 %v573, %v3970
          %v4080 = vadd.f32 %v4078, %v4079
          %v4081 = vmul.f32 %v578, %v3956
          %v4082 = vsub.f32 %v4080, %v4081
          %v4083 = vmul.f32 %v573, %v3983
          %v4084 = vmul.f32 %v578, %v3997
          %v4085 = vsub.f32 %v4083, %v4084
          %v4086 = vmul.f32 %v583, %v3984
          %v4087 = vsub.f32 %v4085, %v4086
          %v4088 = vmul.f32 %v589, %v3998
          %v4089 = vsub.f32 %v4087, %v4088
          %v4090 = vmul.f32 %v573, %v3997
          %v4091 = vmul.f32 %v578, %v3983
          %v4092 = vadd.f32 %v4090, %v4091
          %v4093 = vmul.f32 %v583, %v3998
          %v4094 = vsub.f32 %v4092, %v4093
          %v4095 = vmul.f32 %v589, %v3984
          %v4096 = vadd.f32 %v4094, %v4095
          %v4097 = vmul.f32 %v583, %v3983
          %v4098 = vmul.f32 %v589, %v3997
          %v4099 = vsub.f32 %v4097, %v4098
          %v4100 = vmul.f32 %v573, %v3984
          %v4101 = vadd.f32 %v4099, %v4100
          %v4102 = vmul.f32 %v578, %v3998
          %v4103 = vadd.f32 %v4101, %v4102
          %v4104 = vmul.f32 %v583, %v3997
          %v4105 = vmul.f32 %v589, %v3983
          %v4106 = vadd.f32 %v4104, %v4105
          %v4107 = vmul.f32 %v573, %v3998
          %v4108 = vadd.f32 %v4106, %v4107
          %v4109 = vmul.f32 %v578, %v3984
          %v4110 = vsub.f32 %v4108, %v4109
          %v4111 = vrot.slane %v4005, 4
          %v4112 = vrot.slane %v4019, 4
          %v4113 = vrot.slane %v4033, 4
          %v4114 = vrot.slane %v4047, 4
          %v4115 = vrot.slane %v4061, 4
          %v4116 = vrot.slane %v4075, 4
          %v4117 = vrot.slane %v4089, 4
          %v4118 = vrot.slane %v4103, 4
          %v4119 = vrot.slane %v4012, 4
          %v4120 = vrot.slane %v4026, 4
          %v4121 = vrot.slane %v4040, 4
          %v4122 = vrot.slane %v4054, 4
          %v4123 = vrot.slane %v4068, 4
          %v4124 = vrot.slane %v4082, 4
          %v4125 = vrot.slane %v4096, 4
          %v4126 = vrot.slane %v4110, 4
          %v4127 = vmul.f32 %v573, %v4005
          %v4128 = vmul.f32 %v573, %v4019
          %v4129 = vmul.f32 %v573, %v4033
          %v4130 = vmul.f32 %v573, %v4047
          %v4131 = vmul.f32 %v573, %v4061
          %v4132 = vmul.f32 %v573, %v4075
          %v4133 = vmul.f32 %v573, %v4089
          %v4134 = vmul.f32 %v573, %v4103
          %v4135 = vmul.f32 %v589, %v4119
          %v4136 = vmul.f32 %v589, %v4120
          %v4137 = vmul.f32 %v589, %v4121
          %v4138 = vmul.f32 %v589, %v4122
          %v4139 = vmul.f32 %v589, %v4123
          %v4140 = vmul.f32 %v589, %v4124
          %v4141 = vmul.f32 %v589, %v4125
          %v4142 = vmul.f32 %v589, %v4126
          %v4143 = vsub.f32 %v4127, %v4135
          %v4144 = vsub.f32 %v4128, %v4136
          %v4145 = vsub.f32 %v4129, %v4137
          %v4146 = vsub.f32 %v4130, %v4138
          %v4147 = vsub.f32 %v4131, %v4139
          %v4148 = vsub.f32 %v4132, %v4140
          %v4149 = vsub.f32 %v4133, %v4141
          %v4150 = vsub.f32 %v4134, %v4142
          %v4151 = vmul.f32 %v578, %v4012
          %v4152 = vmul.f32 %v578, %v4026
          %v4153 = vmul.f32 %v578, %v4040
          %v4154 = vmul.f32 %v578, %v4054
          %v4155 = vmul.f32 %v578, %v4068
          %v4156 = vmul.f32 %v578, %v4082
          %v4157 = vmul.f32 %v578, %v4096
          %v4158 = vmul.f32 %v578, %v4110
          %v4159 = vmul.f32 %v583, %v4111
          %v4160 = vmul.f32 %v583, %v4112
          %v4161 = vmul.f32 %v583, %v4113
          %v4162 = vmul.f32 %v583, %v4114
          %v4163 = vmul.f32 %v583, %v4115
          %v4164 = vmul.f32 %v583, %v4116
          %v4165 = vmul.f32 %v583, %v4117
          %v4166 = vmul.f32 %v583, %v4118
          %v4167 = vadd.f32 %v4151, %v4159
          %v4168 = vadd.f32 %v4152, %v4160
          %v4169 = vadd.f32 %v4153, %v4161
          %v4170 = vadd.f32 %v4154, %v4162
          %v4171 = vadd.f32 %v4155, %v4163
          %v4172 = vadd.f32 %v4156, %v4164
          %v4173 = vadd.f32 %v4157, %v4165
          %v4174 = vadd.f32 %v4158, %v4166
          %v4175 = vmul.f32 %v623, %v4167
          %v4176 = vmul.f32 %v623, %v4168
          %v4177 = vmul.f32 %v623, %v4169
          %v4178 = vmul.f32 %v623, %v4170
          %v4179 = vmul.f32 %v623, %v4171
          %v4180 = vmul.f32 %v623, %v4172
          %v4181 = vmul.f32 %v623, %v4173
          %v4182 = vmul.f32 %v623, %v4174
          %v4183 = vadd.f32 %v4143, %v4175
          %v4184 = vadd.f32 %v4144, %v4176
          %v4185 = vadd.f32 %v4145, %v4177
          %v4186 = vadd.f32 %v4146, %v4178
          %v4187 = vadd.f32 %v4147, %v4179
          %v4188 = vadd.f32 %v4148, %v4180
          %v4189 = vadd.f32 %v4149, %v4181
          %v4190 = vadd.f32 %v4150, %v4182
          %v4191 = vmul.f32 %v573, %v4012
          %v4192 = vmul.f32 %v573, %v4026
          %v4193 = vmul.f32 %v573, %v4040
          %v4194 = vmul.f32 %v573, %v4054
          %v4195 = vmul.f32 %v573, %v4068
          %v4196 = vmul.f32 %v573, %v4082
          %v4197 = vmul.f32 %v573, %v4096
          %v4198 = vmul.f32 %v573, %v4110
          %v4199 = vmul.f32 %v589, %v4111
          %v4200 = vmul.f32 %v589, %v4112
          %v4201 = vmul.f32 %v589, %v4113
          %v4202 = vmul.f32 %v589, %v4114
          %v4203 = vmul.f32 %v589, %v4115
          %v4204 = vmul.f32 %v589, %v4116
          %v4205 = vmul.f32 %v589, %v4117
          %v4206 = vmul.f32 %v589, %v4118
          %v4207 = vadd.f32 %v4191, %v4199
          %v4208 = vadd.f32 %v4192, %v4200
          %v4209 = vadd.f32 %v4193, %v4201
          %v4210 = vadd.f32 %v4194, %v4202
          %v4211 = vadd.f32 %v4195, %v4203
          %v4212 = vadd.f32 %v4196, %v4204
          %v4213 = vadd.f32 %v4197, %v4205
          %v4214 = vadd.f32 %v4198, %v4206
          %v4215 = vmul.f32 %v583, %v4119
          %v4216 = vmul.f32 %v583, %v4120
          %v4217 = vmul.f32 %v583, %v4121
          %v4218 = vmul.f32 %v583, %v4122
          %v4219 = vmul.f32 %v583, %v4123
          %v4220 = vmul.f32 %v583, %v4124
          %v4221 = vmul.f32 %v583, %v4125
          %v4222 = vmul.f32 %v583, %v4126
          %v4223 = vmul.f32 %v578, %v4005
          %v4224 = vmul.f32 %v578, %v4019
          %v4225 = vmul.f32 %v578, %v4033
          %v4226 = vmul.f32 %v578, %v4047
          %v4227 = vmul.f32 %v578, %v4061
          %v4228 = vmul.f32 %v578, %v4075
          %v4229 = vmul.f32 %v578, %v4089
          %v4230 = vmul.f32 %v578, %v4103
          %v4231 = vsub.f32 %v4215, %v4223
          %v4232 = vsub.f32 %v4216, %v4224
          %v4233 = vsub.f32 %v4217, %v4225
          %v4234 = vsub.f32 %v4218, %v4226
          %v4235 = vsub.f32 %v4219, %v4227
          %v4236 = vsub.f32 %v4220, %v4228
          %v4237 = vsub.f32 %v4221, %v4229
          %v4238 = vsub.f32 %v4222, %v4230
          %v4239 = vmul.f32 %v623, %v4231
          %v4240 = vmul.f32 %v623, %v4232
          %v4241 = vmul.f32 %v623, %v4233
          %v4242 = vmul.f32 %v623, %v4234
          %v4243 = vmul.f32 %v623, %v4235
          %v4244 = vmul.f32 %v623, %v4236
          %v4245 = vmul.f32 %v623, %v4237
          %v4246 = vmul.f32 %v623, %v4238
          %v4247 = vadd.f32 %v4207, %v4239
          %v4248 = vadd.f32 %v4208, %v4240
          %v4249 = vadd.f32 %v4209, %v4241
          %v4250 = vadd.f32 %v4210, %v4242
          %v4251 = vadd.f32 %v4211, %v4243
          %v4252 = vadd.f32 %v4212, %v4244
          %v4253 = vadd.f32 %v4213, %v4245
          %v4254 = vadd.f32 %v4214, %v4246
          %v4255 = vrot.slane %v4183, 6
          %v4256 = vrot.slane %v4184, 6
          %v4257 = vrot.slane %v4185, 6
          %v4258 = vrot.slane %v4186, 6
          %v4259 = vrot.slane %v4187, 6
          %v4260 = vrot.slane %v4188, 6
          %v4261 = vrot.slane %v4189, 6
          %v4262 = vrot.slane %v4190, 6
          %v4263 = vrot.slane %v4183, 2
          %v4264 = vrot.slane %v4184, 2
          %v4265 = vrot.slane %v4185, 2
          %v4266 = vrot.slane %v4186, 2
          %v4267 = vrot.slane %v4187, 2
          %v4268 = vrot.slane %v4188, 2
          %v4269 = vrot.slane %v4189, 2
          %v4270 = vrot.slane %v4190, 2
          %v4271 = vsel %vm3011, %v4255, %v4263
          %v4272 = vsel %vm3011, %v4256, %v4264
          %v4273 = vsel %vm3011, %v4257, %v4265
          %v4274 = vsel %vm3011, %v4258, %v4266
          %v4275 = vsel %vm3011, %v4259, %v4267
          %v4276 = vsel %vm3011, %v4260, %v4268
          %v4277 = vsel %vm3011, %v4261, %v4269
          %v4278 = vsel %vm3011, %v4262, %v4270
          %v4279 = vrot.slane %v4247, 6
          %v4280 = vrot.slane %v4248, 6
          %v4281 = vrot.slane %v4249, 6
          %v4282 = vrot.slane %v4250, 6
          %v4283 = vrot.slane %v4251, 6
          %v4284 = vrot.slane %v4252, 6
          %v4285 = vrot.slane %v4253, 6
          %v4286 = vrot.slane %v4254, 6
          %v4287 = vrot.slane %v4247, 2
          %v4288 = vrot.slane %v4248, 2
          %v4289 = vrot.slane %v4249, 2
          %v4290 = vrot.slane %v4250, 2
          %v4291 = vrot.slane %v4251, 2
          %v4292 = vrot.slane %v4252, 2
          %v4293 = vrot.slane %v4253, 2
          %v4294 = vrot.slane %v4254, 2
          %v4295 = vsel %vm3011, %v4279, %v4287
          %v4296 = vsel %vm3011, %v4280, %v4288
          %v4297 = vsel %vm3011, %v4281, %v4289
          %v4298 = vsel %vm3011, %v4282, %v4290
          %v4299 = vsel %vm3011, %v4283, %v4291
          %v4300 = vsel %vm3011, %v4284, %v4292
          %v4301 = vsel %vm3011, %v4285, %v4293
          %v4302 = vsel %vm3011, %v4286, %v4294
          %v4303 = vmul.f32 %v573, %v4183
          %v4304 = vmul.f32 %v573, %v4184
          %v4305 = vmul.f32 %v573, %v4185
          %v4306 = vmul.f32 %v573, %v4186
          %v4307 = vmul.f32 %v573, %v4187
          %v4308 = vmul.f32 %v573, %v4188
          %v4309 = vmul.f32 %v573, %v4189
          %v4310 = vmul.f32 %v573, %v4190
          %v4311 = vmul.f32 %v589, %v4295
          %v4312 = vmul.f32 %v589, %v4296
          %v4313 = vmul.f32 %v589, %v4297
          %v4314 = vmul.f32 %v589, %v4298
          %v4315 = vmul.f32 %v589, %v4299
          %v4316 = vmul.f32 %v589, %v4300
          %v4317 = vmul.f32 %v589, %v4301
          %v4318 = vmul.f32 %v589, %v4302
          %v4319 = vsub.f32 %v4303, %v4311
          %v4320 = vsub.f32 %v4304, %v4312
          %v4321 = vsub.f32 %v4305, %v4313
          %v4322 = vsub.f32 %v4306, %v4314
          %v4323 = vsub.f32 %v4307, %v4315
          %v4324 = vsub.f32 %v4308, %v4316
          %v4325 = vsub.f32 %v4309, %v4317
          %v4326 = vsub.f32 %v4310, %v4318
          %v4327 = vmul.f32 %v578, %v4247
          %v4328 = vmul.f32 %v578, %v4248
          %v4329 = vmul.f32 %v578, %v4249
          %v4330 = vmul.f32 %v578, %v4250
          %v4331 = vmul.f32 %v578, %v4251
          %v4332 = vmul.f32 %v578, %v4252
          %v4333 = vmul.f32 %v578, %v4253
          %v4334 = vmul.f32 %v578, %v4254
          %v4335 = vmul.f32 %v583, %v4271
          %v4336 = vmul.f32 %v583, %v4272
          %v4337 = vmul.f32 %v583, %v4273
          %v4338 = vmul.f32 %v583, %v4274
          %v4339 = vmul.f32 %v583, %v4275
          %v4340 = vmul.f32 %v583, %v4276
          %v4341 = vmul.f32 %v583, %v4277
          %v4342 = vmul.f32 %v583, %v4278
          %v4343 = vadd.f32 %v4327, %v4335
          %v4344 = vadd.f32 %v4328, %v4336
          %v4345 = vadd.f32 %v4329, %v4337
          %v4346 = vadd.f32 %v4330, %v4338
          %v4347 = vadd.f32 %v4331, %v4339
          %v4348 = vadd.f32 %v4332, %v4340
          %v4349 = vadd.f32 %v4333, %v4341
          %v4350 = vadd.f32 %v4334, %v4342
          %v4351 = vmul.f32 %v634, %v4343
          %v4352 = vmul.f32 %v634, %v4344
          %v4353 = vmul.f32 %v634, %v4345
          %v4354 = vmul.f32 %v634, %v4346
          %v4355 = vmul.f32 %v634, %v4347
          %v4356 = vmul.f32 %v634, %v4348
          %v4357 = vmul.f32 %v634, %v4349
          %v4358 = vmul.f32 %v634, %v4350
          %v4359 = vadd.f32 %v4319, %v4351
          %v4360 = vadd.f32 %v4320, %v4352
          %v4361 = vadd.f32 %v4321, %v4353
          %v4362 = vadd.f32 %v4322, %v4354
          %v4363 = vadd.f32 %v4323, %v4355
          %v4364 = vadd.f32 %v4324, %v4356
          %v4365 = vadd.f32 %v4325, %v4357
          %v4366 = vadd.f32 %v4326, %v4358
          %v4367 = vmul.f32 %v573, %v4247
          %v4368 = vmul.f32 %v573, %v4248
          %v4369 = vmul.f32 %v573, %v4249
          %v4370 = vmul.f32 %v573, %v4250
          %v4371 = vmul.f32 %v573, %v4251
          %v4372 = vmul.f32 %v573, %v4252
          %v4373 = vmul.f32 %v573, %v4253
          %v4374 = vmul.f32 %v573, %v4254
          %v4375 = vmul.f32 %v589, %v4271
          %v4376 = vmul.f32 %v589, %v4272
          %v4377 = vmul.f32 %v589, %v4273
          %v4378 = vmul.f32 %v589, %v4274
          %v4379 = vmul.f32 %v589, %v4275
          %v4380 = vmul.f32 %v589, %v4276
          %v4381 = vmul.f32 %v589, %v4277
          %v4382 = vmul.f32 %v589, %v4278
          %v4383 = vadd.f32 %v4367, %v4375
          %v4384 = vadd.f32 %v4368, %v4376
          %v4385 = vadd.f32 %v4369, %v4377
          %v4386 = vadd.f32 %v4370, %v4378
          %v4387 = vadd.f32 %v4371, %v4379
          %v4388 = vadd.f32 %v4372, %v4380
          %v4389 = vadd.f32 %v4373, %v4381
          %v4390 = vadd.f32 %v4374, %v4382
          %v4391 = vmul.f32 %v583, %v4295
          %v4392 = vmul.f32 %v583, %v4296
          %v4393 = vmul.f32 %v583, %v4297
          %v4394 = vmul.f32 %v583, %v4298
          %v4395 = vmul.f32 %v583, %v4299
          %v4396 = vmul.f32 %v583, %v4300
          %v4397 = vmul.f32 %v583, %v4301
          %v4398 = vmul.f32 %v583, %v4302
          %v4399 = vmul.f32 %v578, %v4183
          %v4400 = vmul.f32 %v578, %v4184
          %v4401 = vmul.f32 %v578, %v4185
          %v4402 = vmul.f32 %v578, %v4186
          %v4403 = vmul.f32 %v578, %v4187
          %v4404 = vmul.f32 %v578, %v4188
          %v4405 = vmul.f32 %v578, %v4189
          %v4406 = vmul.f32 %v578, %v4190
          %v4407 = vsub.f32 %v4391, %v4399
          %v4408 = vsub.f32 %v4392, %v4400
          %v4409 = vsub.f32 %v4393, %v4401
          %v4410 = vsub.f32 %v4394, %v4402
          %v4411 = vsub.f32 %v4395, %v4403
          %v4412 = vsub.f32 %v4396, %v4404
          %v4413 = vsub.f32 %v4397, %v4405
          %v4414 = vsub.f32 %v4398, %v4406
          %v4415 = vmul.f32 %v634, %v4407
          %v4416 = vmul.f32 %v634, %v4408
          %v4417 = vmul.f32 %v634, %v4409
          %v4418 = vmul.f32 %v634, %v4410
          %v4419 = vmul.f32 %v634, %v4411
          %v4420 = vmul.f32 %v634, %v4412
          %v4421 = vmul.f32 %v634, %v4413
          %v4422 = vmul.f32 %v634, %v4414
          %v4423 = vadd.f32 %v4383, %v4415
          %v4424 = vadd.f32 %v4384, %v4416
          %v4425 = vadd.f32 %v4385, %v4417
          %v4426 = vadd.f32 %v4386, %v4418
          %v4427 = vadd.f32 %v4387, %v4419
          %v4428 = vadd.f32 %v4388, %v4420
          %v4429 = vadd.f32 %v4389, %v4421
          %v4430 = vadd.f32 %v4390, %v4422
          %v4431 = vrot.slane %v4359, 7
          %v4432 = vrot.slane %v4360, 7
          %v4433 = vrot.slane %v4361, 7
          %v4434 = vrot.slane %v4362, 7
          %v4435 = vrot.slane %v4363, 7
          %v4436 = vrot.slane %v4364, 7
          %v4437 = vrot.slane %v4365, 7
          %v4438 = vrot.slane %v4366, 7
          %v4439 = vrot.slane %v4359, 1
          %v4440 = vrot.slane %v4360, 1
          %v4441 = vrot.slane %v4361, 1
          %v4442 = vrot.slane %v4362, 1
          %v4443 = vrot.slane %v4363, 1
          %v4444 = vrot.slane %v4364, 1
          %v4445 = vrot.slane %v4365, 1
          %v4446 = vrot.slane %v4366, 1
          %v4447 = vsel %vm3203, %v4431, %v4439
          %v4448 = vsel %vm3203, %v4432, %v4440
          %v4449 = vsel %vm3203, %v4433, %v4441
          %v4450 = vsel %vm3203, %v4434, %v4442
          %v4451 = vsel %vm3203, %v4435, %v4443
          %v4452 = vsel %vm3203, %v4436, %v4444
          %v4453 = vsel %vm3203, %v4437, %v4445
          %v4454 = vsel %vm3203, %v4438, %v4446
          %v4455 = vrot.slane %v4423, 7
          %v4456 = vrot.slane %v4424, 7
          %v4457 = vrot.slane %v4425, 7
          %v4458 = vrot.slane %v4426, 7
          %v4459 = vrot.slane %v4427, 7
          %v4460 = vrot.slane %v4428, 7
          %v4461 = vrot.slane %v4429, 7
          %v4462 = vrot.slane %v4430, 7
          %v4463 = vrot.slane %v4423, 1
          %v4464 = vrot.slane %v4424, 1
          %v4465 = vrot.slane %v4425, 1
          %v4466 = vrot.slane %v4426, 1
          %v4467 = vrot.slane %v4427, 1
          %v4468 = vrot.slane %v4428, 1
          %v4469 = vrot.slane %v4429, 1
          %v4470 = vrot.slane %v4430, 1
          %v4471 = vsel %vm3203, %v4455, %v4463
          %v4472 = vsel %vm3203, %v4456, %v4464
          %v4473 = vsel %vm3203, %v4457, %v4465
          %v4474 = vsel %vm3203, %v4458, %v4466
          %v4475 = vsel %vm3203, %v4459, %v4467
          %v4476 = vsel %vm3203, %v4460, %v4468
          %v4477 = vsel %vm3203, %v4461, %v4469
          %v4478 = vsel %vm3203, %v4462, %v4470
          %v4479 = vmul.f32 %v573, %v4359
          %v4480 = vmul.f32 %v573, %v4360
          %v4481 = vmul.f32 %v573, %v4361
          %v4482 = vmul.f32 %v573, %v4362
          %v4483 = vmul.f32 %v573, %v4363
          %v4484 = vmul.f32 %v573, %v4364
          %v4485 = vmul.f32 %v573, %v4365
          %v4486 = vmul.f32 %v573, %v4366
          %v4487 = vmul.f32 %v589, %v4471
          %v4488 = vmul.f32 %v589, %v4472
          %v4489 = vmul.f32 %v589, %v4473
          %v4490 = vmul.f32 %v589, %v4474
          %v4491 = vmul.f32 %v589, %v4475
          %v4492 = vmul.f32 %v589, %v4476
          %v4493 = vmul.f32 %v589, %v4477
          %v4494 = vmul.f32 %v589, %v4478
          %v4495 = vsub.f32 %v4479, %v4487
          %v4496 = vsub.f32 %v4480, %v4488
          %v4497 = vsub.f32 %v4481, %v4489
          %v4498 = vsub.f32 %v4482, %v4490
          %v4499 = vsub.f32 %v4483, %v4491
          %v4500 = vsub.f32 %v4484, %v4492
          %v4501 = vsub.f32 %v4485, %v4493
          %v4502 = vsub.f32 %v4486, %v4494
          %v4503 = vmul.f32 %v578, %v4423
          %v4504 = vmul.f32 %v578, %v4424
          %v4505 = vmul.f32 %v578, %v4425
          %v4506 = vmul.f32 %v578, %v4426
          %v4507 = vmul.f32 %v578, %v4427
          %v4508 = vmul.f32 %v578, %v4428
          %v4509 = vmul.f32 %v578, %v4429
          %v4510 = vmul.f32 %v578, %v4430
          %v4511 = vmul.f32 %v583, %v4447
          %v4512 = vmul.f32 %v583, %v4448
          %v4513 = vmul.f32 %v583, %v4449
          %v4514 = vmul.f32 %v583, %v4450
          %v4515 = vmul.f32 %v583, %v4451
          %v4516 = vmul.f32 %v583, %v4452
          %v4517 = vmul.f32 %v583, %v4453
          %v4518 = vmul.f32 %v583, %v4454
          %v4519 = vadd.f32 %v4503, %v4511
          %v4520 = vadd.f32 %v4504, %v4512
          %v4521 = vadd.f32 %v4505, %v4513
          %v4522 = vadd.f32 %v4506, %v4514
          %v4523 = vadd.f32 %v4507, %v4515
          %v4524 = vadd.f32 %v4508, %v4516
          %v4525 = vadd.f32 %v4509, %v4517
          %v4526 = vadd.f32 %v4510, %v4518
          %v4527 = vmul.f32 %v644, %v4519
          %v4528 = vmul.f32 %v644, %v4520
          %v4529 = vmul.f32 %v644, %v4521
          %v4530 = vmul.f32 %v644, %v4522
          %v4531 = vmul.f32 %v644, %v4523
          %v4532 = vmul.f32 %v644, %v4524
          %v4533 = vmul.f32 %v644, %v4525
          %v4534 = vmul.f32 %v644, %v4526
          %v4535 = vadd.f32 %v4495, %v4527
          %v4536 = vadd.f32 %v4496, %v4528
          %v4537 = vadd.f32 %v4497, %v4529
          %v4538 = vadd.f32 %v4498, %v4530
          %v4539 = vadd.f32 %v4499, %v4531
          %v4540 = vadd.f32 %v4500, %v4532
          %v4541 = vadd.f32 %v4501, %v4533
          %v4542 = vadd.f32 %v4502, %v4534
          %v4543 = vmul.f32 %v573, %v4423
          %v4544 = vmul.f32 %v573, %v4424
          %v4545 = vmul.f32 %v573, %v4425
          %v4546 = vmul.f32 %v573, %v4426
          %v4547 = vmul.f32 %v573, %v4427
          %v4548 = vmul.f32 %v573, %v4428
          %v4549 = vmul.f32 %v573, %v4429
          %v4550 = vmul.f32 %v573, %v4430
          %v4551 = vmul.f32 %v589, %v4447
          %v4552 = vmul.f32 %v589, %v4448
          %v4553 = vmul.f32 %v589, %v4449
          %v4554 = vmul.f32 %v589, %v4450
          %v4555 = vmul.f32 %v589, %v4451
          %v4556 = vmul.f32 %v589, %v4452
          %v4557 = vmul.f32 %v589, %v4453
          %v4558 = vmul.f32 %v589, %v4454
          %v4559 = vadd.f32 %v4543, %v4551
          %v4560 = vadd.f32 %v4544, %v4552
          %v4561 = vadd.f32 %v4545, %v4553
          %v4562 = vadd.f32 %v4546, %v4554
          %v4563 = vadd.f32 %v4547, %v4555
          %v4564 = vadd.f32 %v4548, %v4556
          %v4565 = vadd.f32 %v4549, %v4557
          %v4566 = vadd.f32 %v4550, %v4558
          %v4567 = vmul.f32 %v583, %v4471
          %v4568 = vmul.f32 %v583, %v4472
          %v4569 = vmul.f32 %v583, %v4473
          %v4570 = vmul.f32 %v583, %v4474
          %v4571 = vmul.f32 %v583, %v4475
          %v4572 = vmul.f32 %v583, %v4476
          %v4573 = vmul.f32 %v583, %v4477
          %v4574 = vmul.f32 %v583, %v4478
          %v4575 = vmul.f32 %v578, %v4359
          %v4576 = vmul.f32 %v578, %v4360
          %v4577 = vmul.f32 %v578, %v4361
          %v4578 = vmul.f32 %v578, %v4362
          %v4579 = vmul.f32 %v578, %v4363
          %v4580 = vmul.f32 %v578, %v4364
          %v4581 = vmul.f32 %v578, %v4365
          %v4582 = vmul.f32 %v578, %v4366
          %v4583 = vsub.f32 %v4567, %v4575
          %v4584 = vsub.f32 %v4568, %v4576
          %v4585 = vsub.f32 %v4569, %v4577
          %v4586 = vsub.f32 %v4570, %v4578
          %v4587 = vsub.f32 %v4571, %v4579
          %v4588 = vsub.f32 %v4572, %v4580
          %v4589 = vsub.f32 %v4573, %v4581
          %v4590 = vsub.f32 %v4574, %v4582
          %v4591 = vmul.f32 %v644, %v4583
          %v4592 = vmul.f32 %v644, %v4584
          %v4593 = vmul.f32 %v644, %v4585
          %v4594 = vmul.f32 %v644, %v4586
          %v4595 = vmul.f32 %v644, %v4587
          %v4596 = vmul.f32 %v644, %v4588
          %v4597 = vmul.f32 %v644, %v4589
          %v4598 = vmul.f32 %v644, %v4590
          %v4599 = vadd.f32 %v4559, %v4591
          %v4600 = vadd.f32 %v4560, %v4592
          %v4601 = vadd.f32 %v4561, %v4593
          %v4602 = vadd.f32 %v4562, %v4594
          %v4603 = vadd.f32 %v4563, %v4595
          %v4604 = vadd.f32 %v4564, %v4596
          %v4605 = vadd.f32 %v4565, %v4597
          %v4606 = vadd.f32 %v4566, %v4598
        $region37: #{generator_forward.1} parent=27 // loop_footer
          %s2371 = sadd.s32 1, %s2367
        $region38: #{generator_forward.1} parent=27 // loop_footer_branch
          %2366 = sbr.rel target = $region34
        $region39: #{generator_forward.1} parent=27 // loop_exit
          _
        %s4607 = sld [smem:[#allocation4 + $0x318]]
        %s4608 = sld [smem:[#allocation4 + $0x319]]
        %s4609 = sld [smem:[#allocation4 + $0x31a]]
        %s4610 = sld [smem:[#allocation4 + $0x31b]]
        %v4611 = vstv %s4607
        %v4612 = vmul.f32 %v4611, %v2372
        %v4613 = vmul.f32 %v4611, %v2373
        %v4614 = vmul.f32 %v4611, %v2374
        %v4615 = vmul.f32 %v4611, %v2375
        %v4616 = vstv %s4608
        %v4617 = vmul.f32 %v4616, %v2380
        %v4618 = vmul.f32 %v4616, %v2381
        %v4619 = vmul.f32 %v4616, %v2382
        %v4620 = vmul.f32 %v4616, %v2383
        %v4621 = vsub.f32 %v4612, %v4617
        %v4622 = vsub.f32 %v4613, %v4618
        %v4623 = vsub.f32 %v4614, %v4619
        %v4624 = vsub.f32 %v4615, %v4620
        %v4625 = vstv %s4609
        %v4626 = vmul.f32 %v4625, %v2376
        %v4627 = vmul.f32 %v4625, %v2377
        %v4628 = vmul.f32 %v4625, %v2378
        %v4629 = vmul.f32 %v4625, %v2379
        %v4630 = vsub.f32 %v4621, %v4626
        %v4631 = vsub.f32 %v4622, %v4627
        %v4632 = vsub.f32 %v4623, %v4628
        %v4633 = vsub.f32 %v4624, %v4629
        %v4634 = vstv %s4610
        %v4635 = vmul.f32 %v4634, %v2384
        %v4636 = vmul.f32 %v4634, %v2385
        %v4637 = vmul.f32 %v4634, %v2386
        %v4638 = vmul.f32 %v4634, %v2387
        %v4639 = vsub.f32 %v4630, %v4635
        %v4640 = vsub.f32 %v4631, %v4636
        %v4641 = vsub.f32 %v4632, %v4637
        %v4642 = vsub.f32 %v4633, %v4638
        %v4643 = vmul.f32 %v4611, %v2380
        %v4644 = vmul.f32 %v4611, %v2381
        %v4645 = vmul.f32 %v4611, %v2382
        %v4646 = vmul.f32 %v4611, %v2383
        %v4647 = vmul.f32 %v4616, %v2372
        %v4648 = vmul.f32 %v4616, %v2373
        %v4649 = vmul.f32 %v4616, %v2374
        %v4650 = vmul.f32 %v4616, %v2375
        %v4651 = vadd.f32 %v4643, %v4647
        %v4652 = vadd.f32 %v4644, %v4648
        %v4653 = vadd.f32 %v4645, %v4649
        %v4654 = vadd.f32 %v4646, %v4650
        %v4655 = vmul.f32 %v4625, %v2384
        %v4656 = vmul.f32 %v4625, %v2385
        %v4657 = vmul.f32 %v4625, %v2386
        %v4658 = vmul.f32 %v4625, %v2387
        %v4659 = vsub.f32 %v4651, %v4655
        %v4660 = vsub.f32 %v4652, %v4656
        %v4661 = vsub.f32 %v4653, %v4657
        %v4662 = vsub.f32 %v4654, %v4658
        %v4663 = vmul.f32 %v4634, %v2376
        %v4664 = vmul.f32 %v4634, %v2377
        %v4665 = vmul.f32 %v4634, %v2378
        %v4666 = vmul.f32 %v4634, %v2379
        %v4667 = vadd.f32 %v4659, %v4663
        %v4668 = vadd.f32 %v4660, %v4664
        %v4669 = vadd.f32 %v4661, %v4665
        %v4670 = vadd.f32 %v4662, %v4666
        %v4671 = vmul.f32 %v4625, %v2372
        %v4672 = vmul.f32 %v4625, %v2373
        %v4673 = vmul.f32 %v4625, %v2374
        %v4674 = vmul.f32 %v4625, %v2375
        %v4675 = vmul.f32 %v4634, %v2380
        %v4676 = vmul.f32 %v4634, %v2381
        %v4677 = vmul.f32 %v4634, %v2382
        %v4678 = vmul.f32 %v4634, %v2383
        %v4679 = vsub.f32 %v4671, %v4675
        %v4680 = vsub.f32 %v4672, %v4676
        %v4681 = vsub.f32 %v4673, %v4677
        %v4682 = vsub.f32 %v4674, %v4678
        %v4683 = vmul.f32 %v4611, %v2376
        %v4684 = vmul.f32 %v4611, %v2377
        %v4685 = vmul.f32 %v4611, %v2378
        %v4686 = vmul.f32 %v4611, %v2379
        %v4687 = vadd.f32 %v4679, %v4683
        %v4688 = vadd.f32 %v4680, %v4684
        %v4689 = vadd.f32 %v4681, %v4685
        %v4690 = vadd.f32 %v4682, %v4686
        %v4691 = vmul.f32 %v4616, %v2384
        %v4692 = vmul.f32 %v4616, %v2385
        %v4693 = vmul.f32 %v4616, %v2386
        %v4694 = vmul.f32 %v4616, %v2387
        %v4695 = vadd.f32 %v4687, %v4691
        %v4696 = vadd.f32 %v4688, %v4692
        %v4697 = vadd.f32 %v4689, %v4693
        %v4698 = vadd.f32 %v4690, %v4694
        %v4699 = vmul.f32 %v4625, %v2380
        %v4700 = vmul.f32 %v4625, %v2381
        %v4701 = vmul.f32 %v4625, %v2382
        %v4702 = vmul.f32 %v4625, %v2383
        %v4703 = vmul.f32 %v4634, %v2372
        %v4704 = vmul.f32 %v4634, %v2373
        %v4705 = vmul.f32 %v4634, %v2374
        %v4706 = vmul.f32 %v4634, %v2375
        %v4707 = vadd.f32 %v4699, %v4703
        %v4708 = vadd.f32 %v4700, %v4704
        %v4709 = vadd.f32 %v4701, %v4705
        %v4710 = vadd.f32 %v4702, %v4706
        %v4711 = vmul.f32 %v4611, %v2384
        %v4712 = vmul.f32 %v4611, %v2385
        %v4713 = vmul.f32 %v4611, %v2386
        %v4714 = vmul.f32 %v4611, %v2387
        %v4715 = vadd.f32 %v4707, %v4711
        %v4716 = vadd.f32 %v4708, %v4712
        %v4717 = vadd.f32 %v4709, %v4713
        %v4718 = vadd.f32 %v4710, %v4714
        %v4719 = vmul.f32 %v4616, %v2376
        %v4720 = vmul.f32 %v4616, %v2377
        %v4721 = vmul.f32 %v4616, %v2378
        %v4722 = vmul.f32 %v4616, %v2379
        %v4723 = vsub.f32 %v4715, %v4719
        %v4724 = vsub.f32 %v4716, %v4720
        %v4725 = vsub.f32 %v4717, %v4721
        %v4726 = vsub.f32 %v4718, %v4722
        %s4727 = sld [smem:[#allocation4 + $0x31e]]
        %s4728 = sld [smem:[#allocation4 + $0x31f]]
        %s4729 = sld [smem:[#allocation4 + $0x320]]
        %s4730 = sld [smem:[#allocation4 + $0x321]]
        %v4731 = vstv %s4727
        %v4732 = vmul.f32 %v4731, %v4639
        %v4733 = vmul.f32 %v4731, %v4640
        %v4734 = vstv %s4728
        %v4735 = vmul.f32 %v4734, %v4667
        %v4736 = vmul.f32 %v4734, %v4668
        %v4737 = vsub.f32 %v4732, %v4735
        %v4738 = vsub.f32 %v4733, %v4736
        %v4739 = vstv %s4729
        %v4740 = vmul.f32 %v4739, %v4641
        %v4741 = vmul.f32 %v4739, %v4642
        %v4742 = vsub.f32 %v4737, %v4740
        %v4743 = vsub.f32 %v4738, %v4741
        %v4744 = vstv %s4730
        %v4745 = vmul.f32 %v4744, %v4669
        %v4746 = vmul.f32 %v4744, %v4670
        %v4747 = vsub.f32 %v4742, %v4745
        %v4748 = vsub.f32 %v4743, %v4746
        %v4749 = vmul.f32 %v4731, %v4667
        %v4750 = vmul.f32 %v4731, %v4668
        %v4751 = vmul.f32 %v4734, %v4639
        %v4752 = vmul.f32 %v4734, %v4640
        %v4753 = vadd.f32 %v4749, %v4751
        %v4754 = vadd.f32 %v4750, %v4752
        %v4755 = vmul.f32 %v4739, %v4669
        %v4756 = vmul.f32 %v4739, %v4670
        %v4757 = vsub.f32 %v4753, %v4755
        %v4758 = vsub.f32 %v4754, %v4756
        %v4759 = vmul.f32 %v4744, %v4641
        %v4760 = vmul.f32 %v4744, %v4642
        %v4761 = vadd.f32 %v4757, %v4759
        %v4762 = vadd.f32 %v4758, %v4760
        %v4763 = vmul.f32 %v4739, %v4639
        %v4764 = vmul.f32 %v4739, %v4640
        %v4765 = vmul.f32 %v4744, %v4667
        %v4766 = vmul.f32 %v4744, %v4668
        %v4767 = vsub.f32 %v4763, %v4765
        %v4768 = vsub.f32 %v4764, %v4766
        %v4769 = vmul.f32 %v4731, %v4641
        %v4770 = vmul.f32 %v4731, %v4642
        %v4771 = vadd.f32 %v4767, %v4769
        %v4772 = vadd.f32 %v4768, %v4770
        %v4773 = vmul.f32 %v4734, %v4669
        %v4774 = vmul.f32 %v4734, %v4670
        %v4775 = vadd.f32 %v4771, %v4773
        %v4776 = vadd.f32 %v4772, %v4774
        %v4777 = vmul.f32 %v4739, %v4667
        %v4778 = vmul.f32 %v4739, %v4668
        %v4779 = vmul.f32 %v4744, %v4639
        %v4780 = vmul.f32 %v4744, %v4640
        %v4781 = vadd.f32 %v4777, %v4779
        %v4782 = vadd.f32 %v4778, %v4780
        %v4783 = vmul.f32 %v4731, %v4669
        %v4784 = vmul.f32 %v4731, %v4670
        %v4785 = vadd.f32 %v4781, %v4783
        %v4786 = vadd.f32 %v4782, %v4784
        %v4787 = vmul.f32 %v4734, %v4641
        %v4788 = vmul.f32 %v4734, %v4642
        %v4789 = vsub.f32 %v4785, %v4787
        %v4790 = vsub.f32 %v4786, %v4788
        %v4791 = vmul.f32 %v4731, %v4695
        %v4792 = vmul.f32 %v4731, %v4696
        %v4793 = vmul.f32 %v4734, %v4723
        %v4794 = vmul.f32 %v4734, %v4724
        %v4795 = vsub.f32 %v4791, %v4793
        %v4796 = vsub.f32 %v4792, %v4794
        %v4797 = vmul.f32 %v4739, %v4697
        %v4798 = vmul.f32 %v4739, %v4698
        %v4799 = vsub.f32 %v4795, %v4797
        %v4800 = vsub.f32 %v4796, %v4798
        %v4801 = vmul.f32 %v4744, %v4725
        %v4802 = vmul.f32 %v4744, %v4726
        %v4803 = vsub.f32 %v4799, %v4801
        %v4804 = vsub.f32 %v4800, %v4802
        %v4805 = vmul.f32 %v4731, %v4723
        %v4806 = vmul.f32 %v4731, %v4724
        %v4807 = vmul.f32 %v4734, %v4695
        %v4808 = vmul.f32 %v4734, %v4696
        %v4809 = vadd.f32 %v4805, %v4807
        %v4810 = vadd.f32 %v4806, %v4808
        %v4811 = vmul.f32 %v4739, %v4725
        %v4812 = vmul.f32 %v4739, %v4726
        %v4813 = vsub.f32 %v4809, %v4811
        %v4814 = vsub.f32 %v4810, %v4812
        %v4815 = vmul.f32 %v4744, %v4697
        %v4816 = vmul.f32 %v4744, %v4698
        %v4817 = vadd.f32 %v4813, %v4815
        %v4818 = vadd.f32 %v4814, %v4816
        %v4819 = vmul.f32 %v4739, %v4695
        %v4820 = vmul.f32 %v4739, %v4696
        %v4821 = vmul.f32 %v4744, %v4723
        %v4822 = vmul.f32 %v4744, %v4724
        %v4823 = vsub.f32 %v4819, %v4821
        %v4824 = vsub.f32 %v4820, %v4822
        %v4825 = vmul.f32 %v4731, %v4697
        %v4826 = vmul.f32 %v4731, %v4698
        %v4827 = vadd.f32 %v4823, %v4825
        %v4828 = vadd.f32 %v4824, %v4826
        %v4829 = vmul.f32 %v4734, %v4725
        %v4830 = vmul.f32 %v4734, %v4726
        %v4831 = vadd.f32 %v4827, %v4829
        %v4832 = vadd.f32 %v4828, %v4830
        %v4833 = vmul.f32 %v4739, %v4723
        %v4834 = vmul.f32 %v4739, %v4724
        %v4835 = vmul.f32 %v4744, %v4695
        %v4836 = vmul.f32 %v4744, %v4696
        %v4837 = vadd.f32 %v4833, %v4835
        %v4838 = vadd.f32 %v4834, %v4836
        %v4839 = vmul.f32 %v4731, %v4725
        %v4840 = vmul.f32 %v4731, %v4726
        %v4841 = vadd.f32 %v4837, %v4839
        %v4842 = vadd.f32 %v4838, %v4840
        %v4843 = vmul.f32 %v4734, %v4697
        %v4844 = vmul.f32 %v4734, %v4698
        %v4845 = vsub.f32 %v4841, %v4843
        %v4846 = vsub.f32 %v4842, %v4844
        %s4847 = sld [smem:[#allocation4 + $0x324]]
        %s4848 = sld [smem:[#allocation4 + $0x325]]
        %s4849 = sld [smem:[#allocation4 + $0x326]]
        %s4850 = sld [smem:[#allocation4 + $0x327]]
        %v4851 = vstv %s4847
        %v4852 = vmul.f32 %v4851, %v4747
        %v4853 = vstv %s4848
        %v4854 = vmul.f32 %v4853, %v4761
        %v4855 = vsub.f32 %v4852, %v4854
        %v4856 = vstv %s4849
        %v4857 = vmul.f32 %v4856, %v4748
        %v4858 = vsub.f32 %v4855, %v4857
        %v4859 = vstv %s4850
        %v4860 = vmul.f32 %v4859, %v4762
        %v4861 = vsub.f32 %v4858, %v4860
        %v4862 = vmul.f32 %v4851, %v4761
        %v4863 = vmul.f32 %v4853, %v4747
        %v4864 = vadd.f32 %v4862, %v4863
        %v4865 = vmul.f32 %v4856, %v4762
        %v4866 = vsub.f32 %v4864, %v4865
        %v4867 = vmul.f32 %v4859, %v4748
        %v4868 = vadd.f32 %v4866, %v4867
        %v4869 = vmul.f32 %v4856, %v4747
        %v4870 = vmul.f32 %v4859, %v4761
        %v4871 = vsub.f32 %v4869, %v4870
        %v4872 = vmul.f32 %v4851, %v4748
        %v4873 = vadd.f32 %v4871, %v4872
        %v4874 = vmul.f32 %v4853, %v4762
        %v4875 = vadd.f32 %v4873, %v4874
        %v4876 = vmul.f32 %v4856, %v4761
        %v4877 = vmul.f32 %v4859, %v4747
        %v4878 = vadd.f32 %v4876, %v4877
        %v4879 = vmul.f32 %v4851, %v4762
        %v4880 = vadd.f32 %v4878, %v4879
        %v4881 = vmul.f32 %v4853, %v4748
        %v4882 = vsub.f32 %v4880, %v4881
        %v4883 = vmul.f32 %v4851, %v4775
        %v4884 = vmul.f32 %v4853, %v4789
        %v4885 = vsub.f32 %v4883, %v4884
        %v4886 = vmul.f32 %v4856, %v4776
        %v4887 = vsub.f32 %v4885, %v4886
        %v4888 = vmul.f32 %v4859, %v4790
        %v4889 = vsub.f32 %v4887, %v4888
        %v4890 = vmul.f32 %v4851, %v4789
        %v4891 = vmul.f32 %v4853, %v4775
        %v4892 = vadd.f32 %v4890, %v4891
        %v4893 = vmul.f32 %v4856, %v4790
        %v4894 = vsub.f32 %v4892, %v4893
        %v4895 = vmul.f32 %v4859, %v4776
        %v4896 = vadd.f32 %v4894, %v4895
        %v4897 = vmul.f32 %v4856, %v4775
        %v4898 = vmul.f32 %v4859, %v4789
        %v4899 = vsub.f32 %v4897, %v4898
        %v4900 = vmul.f32 %v4851, %v4776
        %v4901 = vadd.f32 %v4899, %v4900
        %v4902 = vmul.f32 %v4853, %v4790
        %v4903 = vadd.f32 %v4901, %v4902
        %v4904 = vmul.f32 %v4856, %v4789
        %v4905 = vmul.f32 %v4859, %v4775
        %v4906 = vadd.f32 %v4904, %v4905
        %v4907 = vmul.f32 %v4851, %v4790
        %v4908 = vadd.f32 %v4906, %v4907
        %v4909 = vmul.f32 %v4853, %v4776
        %v4910 = vsub.f32 %v4908, %v4909
        %v4911 = vmul.f32 %v4851, %v4803
        %v4912 = vmul.f32 %v4853, %v4817
        %v4913 = vsub.f32 %v4911, %v4912
        %v4914 = vmul.f32 %v4856, %v4804
        %v4915 = vsub.f32 %v4913, %v4914
        %v4916 = vmul.f32 %v4859, %v4818
        %v4917 = vsub.f32 %v4915, %v4916
        %v4918 = vmul.f32 %v4851, %v4817
        %v4919 = vmul.f32 %v4853, %v4803
        %v4920 = vadd.f32 %v4918, %v4919
        %v4921 = vmul.f32 %v4856, %v4818
        %v4922 = vsub.f32 %v4920, %v4921
        %v4923 = vmul.f32 %v4859, %v4804
        %v4924 = vadd.f32 %v4922, %v4923
        %v4925 = vmul.f32 %v4856, %v4803
        %v4926 = vmul.f32 %v4859, %v4817
        %v4927 = vsub.f32 %v4925, %v4926
        %v4928 = vmul.f32 %v4851, %v4804
        %v4929 = vadd.f32 %v4927, %v4928
        %v4930 = vmul.f32 %v4853, %v4818
        %v4931 = vadd.f32 %v4929, %v4930
        %v4932 = vmul.f32 %v4856, %v4817
        %v4933 = vmul.f32 %v4859, %v4803
        %v4934 = vadd.f32 %v4932, %v4933
        %v4935 = vmul.f32 %v4851, %v4818
        %v4936 = vadd.f32 %v4934, %v4935
        %v4937 = vmul.f32 %v4853, %v4804
        %v4938 = vsub.f32 %v4936, %v4937
        %v4939 = vmul.f32 %v4851, %v4831
        %v4940 = vmul.f32 %v4853, %v4845
        %v4941 = vsub.f32 %v4939, %v4940
        %v4942 = vmul.f32 %v4856, %v4832
        %v4943 = vsub.f32 %v4941, %v4942
        %v4944 = vmul.f32 %v4859, %v4846
        %v4945 = vsub.f32 %v4943, %v4944
        %v4946 = vmul.f32 %v4851, %v4845
        %v4947 = vmul.f32 %v4853, %v4831
        %v4948 = vadd.f32 %v4946, %v4947
        %v4949 = vmul.f32 %v4856, %v4846
        %v4950 = vsub.f32 %v4948, %v4949
        %v4951 = vmul.f32 %v4859, %v4832
        %v4952 = vadd.f32 %v4950, %v4951
        %v4953 = vmul.f32 %v4856, %v4831
        %v4954 = vmul.f32 %v4859, %v4845
        %v4955 = vsub.f32 %v4953, %v4954
        %v4956 = vmul.f32 %v4851, %v4832
        %v4957 = vadd.f32 %v4955, %v4956
        %v4958 = vmul.f32 %v4853, %v4846
        %v4959 = vadd.f32 %v4957, %v4958
        %v4960 = vmul.f32 %v4856, %v4845
        %v4961 = vmul.f32 %v4859, %v4831
        %v4962 = vadd.f32 %v4960, %v4961
        %v4963 = vmul.f32 %v4851, %v4846
        %v4964 = vadd.f32 %v4962, %v4963
        %v4965 = vmul.f32 %v4853, %v4832
        %v4966 = vsub.f32 %v4964, %v4965
        %s4967 = sld [smem:[#allocation4 + $0x32a]]
        %s4968 = sld [smem:[#allocation4 + $0x32b]]
        %s4969 = sld [smem:[#allocation4 + $0x32c]]
        %s4970 = sld [smem:[#allocation4 + $0x32d]]
        %v4971 = vrot.slane %v4861, 4
        %v4972 = vrot.slane %v4875, 4
        %v4973 = vrot.slane %v4889, 4
        %v4974 = vrot.slane %v4903, 4
        %v4975 = vrot.slane %v4917, 4
        %v4976 = vrot.slane %v4931, 4
        %v4977 = vrot.slane %v4945, 4
        %v4978 = vrot.slane %v4959, 4
        %v4979 = vrot.slane %v4868, 4
        %v4980 = vrot.slane %v4882, 4
        %v4981 = vrot.slane %v4896, 4
        %v4982 = vrot.slane %v4910, 4
        %v4983 = vrot.slane %v4924, 4
        %v4984 = vrot.slane %v4938, 4
        %v4985 = vrot.slane %v4952, 4
        %v4986 = vrot.slane %v4966, 4
        %v4987 = vstv %s4967
        %v4988 = vmul.f32 %v4987, %v4861
        %v4989 = vmul.f32 %v4987, %v4875
        %v4990 = vmul.f32 %v4987, %v4889
        %v4991 = vmul.f32 %v4987, %v4903
        %v4992 = vmul.f32 %v4987, %v4917
        %v4993 = vmul.f32 %v4987, %v4931
        %v4994 = vmul.f32 %v4987, %v4945
        %v4995 = vmul.f32 %v4987, %v4959
        %v4996 = vstv %s4970
        %v4997 = vmul.f32 %v4996, %v4979
        %v4998 = vmul.f32 %v4996, %v4980
        %v4999 = vmul.f32 %v4996, %v4981
        %v5000 = vmul.f32 %v4996, %v4982
        %v5001 = vmul.f32 %v4996, %v4983
        %v5002 = vmul.f32 %v4996, %v4984
        %v5003 = vmul.f32 %v4996, %v4985
        %v5004 = vmul.f32 %v4996, %v4986
        %v5005 = vsub.f32 %v4988, %v4997
        %v5006 = vsub.f32 %v4989, %v4998
        %v5007 = vsub.f32 %v4990, %v4999
        %v5008 = vsub.f32 %v4991, %v5000
        %v5009 = vsub.f32 %v4992, %v5001
        %v5010 = vsub.f32 %v4993, %v5002
        %v5011 = vsub.f32 %v4994, %v5003
        %v5012 = vsub.f32 %v4995, %v5004
        %v5013 = vstv %s4968
        %v5014 = vmul.f32 %v5013, %v4868
        %v5015 = vmul.f32 %v5013, %v4882
        %v5016 = vmul.f32 %v5013, %v4896
        %v5017 = vmul.f32 %v5013, %v4910
        %v5018 = vmul.f32 %v5013, %v4924
        %v5019 = vmul.f32 %v5013, %v4938
        %v5020 = vmul.f32 %v5013, %v4952
        %v5021 = vmul.f32 %v5013, %v4966
        %v5022 = vstv %s4969
        %v5023 = vmul.f32 %v5022, %v4971
        %v5024 = vmul.f32 %v5022, %v4972
        %v5025 = vmul.f32 %v5022, %v4973
        %v5026 = vmul.f32 %v5022, %v4974
        %v5027 = vmul.f32 %v5022, %v4975
        %v5028 = vmul.f32 %v5022, %v4976
        %v5029 = vmul.f32 %v5022, %v4977
        %v5030 = vmul.f32 %v5022, %v4978
        %v5031 = vadd.f32 %v5014, %v5023
        %v5032 = vadd.f32 %v5015, %v5024
        %v5033 = vadd.f32 %v5016, %v5025
        %v5034 = vadd.f32 %v5017, %v5026
        %v5035 = vadd.f32 %v5018, %v5027
        %v5036 = vadd.f32 %v5019, %v5028
        %v5037 = vadd.f32 %v5020, %v5029
        %v5038 = vadd.f32 %v5021, %v5030
        %v5039 = vmul.f32 %v623, %v5031
        %v5040 = vmul.f32 %v623, %v5032
        %v5041 = vmul.f32 %v623, %v5033
        %v5042 = vmul.f32 %v623, %v5034
        %v5043 = vmul.f32 %v623, %v5035
        %v5044 = vmul.f32 %v623, %v5036
        %v5045 = vmul.f32 %v623, %v5037
        %v5046 = vmul.f32 %v623, %v5038
        %v5047 = vadd.f32 %v5005, %v5039
        %v5048 = vadd.f32 %v5006, %v5040
        %v5049 = vadd.f32 %v5007, %v5041
        %v5050 = vadd.f32 %v5008, %v5042
        %v5051 = vadd.f32 %v5009, %v5043
        %v5052 = vadd.f32 %v5010, %v5044
        %v5053 = vadd.f32 %v5011, %v5045
        %v5054 = vadd.f32 %v5012, %v5046
        %v5055 = vmul.f32 %v4987, %v4868
        %v5056 = vmul.f32 %v4987, %v4882
        %v5057 = vmul.f32 %v4987, %v4896
        %v5058 = vmul.f32 %v4987, %v4910
        %v5059 = vmul.f32 %v4987, %v4924
        %v5060 = vmul.f32 %v4987, %v4938
        %v5061 = vmul.f32 %v4987, %v4952
        %v5062 = vmul.f32 %v4987, %v4966
        %v5063 = vmul.f32 %v4996, %v4971
        %v5064 = vmul.f32 %v4996, %v4972
        %v5065 = vmul.f32 %v4996, %v4973
        %v5066 = vmul.f32 %v4996, %v4974
        %v5067 = vmul.f32 %v4996, %v4975
        %v5068 = vmul.f32 %v4996, %v4976
        %v5069 = vmul.f32 %v4996, %v4977
        %v5070 = vmul.f32 %v4996, %v4978
        %v5071 = vadd.f32 %v5055, %v5063
        %v5072 = vadd.f32 %v5056, %v5064
        %v5073 = vadd.f32 %v5057, %v5065
        %v5074 = vadd.f32 %v5058, %v5066
        %v5075 = vadd.f32 %v5059, %v5067
        %v5076 = vadd.f32 %v5060, %v5068
        %v5077 = vadd.f32 %v5061, %v5069
        %v5078 = vadd.f32 %v5062, %v5070
        %v5079 = vmul.f32 %v5022, %v4979
        %v5080 = vmul.f32 %v5022, %v4980
        %v5081 = vmul.f32 %v5022, %v4981
        %v5082 = vmul.f32 %v5022, %v4982
        %v5083 = vmul.f32 %v5022, %v4983
        %v5084 = vmul.f32 %v5022, %v4984
        %v5085 = vmul.f32 %v5022, %v4985
        %v5086 = vmul.f32 %v5022, %v4986
        %v5087 = vmul.f32 %v5013, %v4861
        %v5088 = vmul.f32 %v5013, %v4875
        %v5089 = vmul.f32 %v5013, %v4889
        %v5090 = vmul.f32 %v5013, %v4903
        %v5091 = vmul.f32 %v5013, %v4917
        %v5092 = vmul.f32 %v5013, %v4931
        %v5093 = vmul.f32 %v5013, %v4945
        %v5094 = vmul.f32 %v5013, %v4959
        %v5095 = vsub.f32 %v5079, %v5087
        %v5096 = vsub.f32 %v5080, %v5088
        %v5097 = vsub.f32 %v5081, %v5089
        %v5098 = vsub.f32 %v5082, %v5090
        %v5099 = vsub.f32 %v5083, %v5091
        %v5100 = vsub.f32 %v5084, %v5092
        %v5101 = vsub.f32 %v5085, %v5093
        %v5102 = vsub.f32 %v5086, %v5094
        %v5103 = vmul.f32 %v623, %v5095
        %v5104 = vmul.f32 %v623, %v5096
        %v5105 = vmul.f32 %v623, %v5097
        %v5106 = vmul.f32 %v623, %v5098
        %v5107 = vmul.f32 %v623, %v5099
        %v5108 = vmul.f32 %v623, %v5100
        %v5109 = vmul.f32 %v623, %v5101
        %v5110 = vmul.f32 %v623, %v5102
        %v5111 = vadd.f32 %v5071, %v5103
        %v5112 = vadd.f32 %v5072, %v5104
        %v5113 = vadd.f32 %v5073, %v5105
        %v5114 = vadd.f32 %v5074, %v5106
        %v5115 = vadd.f32 %v5075, %v5107
        %v5116 = vadd.f32 %v5076, %v5108
        %v5117 = vadd.f32 %v5077, %v5109
        %v5118 = vadd.f32 %v5078, %v5110
        %s5119 = sld [smem:[#allocation4 + $0x330]]
        %s5120 = sld [smem:[#allocation4 + $0x331]]
        %s5121 = sld [smem:[#allocation4 + $0x332]]
        %s5122 = sld [smem:[#allocation4 + $0x333]]
        %v5123 = vrot.slane %v5047, 6
        %v5124 = vrot.slane %v5048, 6
        %v5125 = vrot.slane %v5049, 6
        %v5126 = vrot.slane %v5050, 6
        %v5127 = vrot.slane %v5051, 6
        %v5128 = vrot.slane %v5052, 6
        %v5129 = vrot.slane %v5053, 6
        %v5130 = vrot.slane %v5054, 6
        %v5131 = vrot.slane %v5047, 2
        %v5132 = vrot.slane %v5048, 2
        %v5133 = vrot.slane %v5049, 2
        %v5134 = vrot.slane %v5050, 2
        %v5135 = vrot.slane %v5051, 2
        %v5136 = vrot.slane %v5052, 2
        %v5137 = vrot.slane %v5053, 2
        %v5138 = vrot.slane %v5054, 2
        %vm5139 = vcmp.eq.s32.totalorder %v631, 1
        %v5140 = vsel %vm5139, 1, 0
        %vm5141 = vcmp.eq.s32.totalorder %v5140, 1
        %v5142 = vsel %vm5141, %v5123, %v5131
        %v5143 = vsel %vm5141, %v5124, %v5132
        %v5144 = vsel %vm5141, %v5125, %v5133
        %v5145 = vsel %vm5141, %v5126, %v5134
        %v5146 = vsel %vm5141, %v5127, %v5135
        %v5147 = vsel %vm5141, %v5128, %v5136
        %v5148 = vsel %vm5141, %v5129, %v5137
        %v5149 = vsel %vm5141, %v5130, %v5138
        %v5150 = vrot.slane %v5111, 6
        %v5151 = vrot.slane %v5112, 6
        %v5152 = vrot.slane %v5113, 6
        %v5153 = vrot.slane %v5114, 6
        %v5154 = vrot.slane %v5115, 6
        %v5155 = vrot.slane %v5116, 6
        %v5156 = vrot.slane %v5117, 6
        %v5157 = vrot.slane %v5118, 6
        %v5158 = vrot.slane %v5111, 2
        %v5159 = vrot.slane %v5112, 2
        %v5160 = vrot.slane %v5113, 2
        %v5161 = vrot.slane %v5114, 2
        %v5162 = vrot.slane %v5115, 2
        %v5163 = vrot.slane %v5116, 2
        %v5164 = vrot.slane %v5117, 2
        %v5165 = vrot.slane %v5118, 2
        %v5166 = vsel %vm5141, %v5150, %v5158
        %v5167 = vsel %vm5141, %v5151, %v5159
        %v5168 = vsel %vm5141, %v5152, %v5160
        %v5169 = vsel %vm5141, %v5153, %v5161
        %v5170 = vsel %vm5141, %v5154, %v5162
        %v5171 = vsel %vm5141, %v5155, %v5163
        %v5172 = vsel %vm5141, %v5156, %v5164
        %v5173 = vsel %vm5141, %v5157, %v5165
        %v5174 = vstv %s5119
        %v5175 = vmul.f32 %v5174, %v5047
        %v5176 = vmul.f32 %v5174, %v5048
        %v5177 = vmul.f32 %v5174, %v5049
        %v5178 = vmul.f32 %v5174, %v5050
        %v5179 = vmul.f32 %v5174, %v5051
        %v5180 = vmul.f32 %v5174, %v5052
        %v5181 = vmul.f32 %v5174, %v5053
        %v5182 = vmul.f32 %v5174, %v5054
        %v5183 = vstv %s5122
        %v5184 = vmul.f32 %v5183, %v5166
        %v5185 = vmul.f32 %v5183, %v5167
        %v5186 = vmul.f32 %v5183, %v5168
        %v5187 = vmul.f32 %v5183, %v5169
        %v5188 = vmul.f32 %v5183, %v5170
        %v5189 = vmul.f32 %v5183, %v5171
        %v5190 = vmul.f32 %v5183, %v5172
        %v5191 = vmul.f32 %v5183, %v5173
        %v5192 = vsub.f32 %v5175, %v5184
        %v5193 = vsub.f32 %v5176, %v5185
        %v5194 = vsub.f32 %v5177, %v5186
        %v5195 = vsub.f32 %v5178, %v5187
        %v5196 = vsub.f32 %v5179, %v5188
        %v5197 = vsub.f32 %v5180, %v5189
        %v5198 = vsub.f32 %v5181, %v5190
        %v5199 = vsub.f32 %v5182, %v5191
        %v5200 = vstv %s5120
        %v5201 = vmul.f32 %v5200, %v5111
        %v5202 = vmul.f32 %v5200, %v5112
        %v5203 = vmul.f32 %v5200, %v5113
        %v5204 = vmul.f32 %v5200, %v5114
        %v5205 = vmul.f32 %v5200, %v5115
        %v5206 = vmul.f32 %v5200, %v5116
        %v5207 = vmul.f32 %v5200, %v5117
        %v5208 = vmul.f32 %v5200, %v5118
        %v5209 = vstv %s5121
        %v5210 = vmul.f32 %v5209, %v5142
        %v5211 = vmul.f32 %v5209, %v5143
        %v5212 = vmul.f32 %v5209, %v5144
        %v5213 = vmul.f32 %v5209, %v5145
        %v5214 = vmul.f32 %v5209, %v5146
        %v5215 = vmul.f32 %v5209, %v5147
        %v5216 = vmul.f32 %v5209, %v5148
        %v5217 = vmul.f32 %v5209, %v5149
        %v5218 = vadd.f32 %v5201, %v5210
        %v5219 = vadd.f32 %v5202, %v5211
        %v5220 = vadd.f32 %v5203, %v5212
        %v5221 = vadd.f32 %v5204, %v5213
        %v5222 = vadd.f32 %v5205, %v5214
        %v5223 = vadd.f32 %v5206, %v5215
        %v5224 = vadd.f32 %v5207, %v5216
        %v5225 = vadd.f32 %v5208, %v5217
        %v5226 = vmul.f32 %v634, %v5218
        %v5227 = vmul.f32 %v634, %v5219
        %v5228 = vmul.f32 %v634, %v5220
        %v5229 = vmul.f32 %v634, %v5221
        %v5230 = vmul.f32 %v634, %v5222
        %v5231 = vmul.f32 %v634, %v5223
        %v5232 = vmul.f32 %v634, %v5224
        %v5233 = vmul.f32 %v634, %v5225
        %v5234 = vadd.f32 %v5192, %v5226
        %v5235 = vadd.f32 %v5193, %v5227
        %v5236 = vadd.f32 %v5194, %v5228
        %v5237 = vadd.f32 %v5195, %v5229
        %v5238 = vadd.f32 %v5196, %v5230
        %v5239 = vadd.f32 %v5197, %v5231
        %v5240 = vadd.f32 %v5198, %v5232
        %v5241 = vadd.f32 %v5199, %v5233
        %v5242 = vmul.f32 %v5174, %v5111
        %v5243 = vmul.f32 %v5174, %v5112
        %v5244 = vmul.f32 %v5174, %v5113
        %v5245 = vmul.f32 %v5174, %v5114
        %v5246 = vmul.f32 %v5174, %v5115
        %v5247 = vmul.f32 %v5174, %v5116
        %v5248 = vmul.f32 %v5174, %v5117
        %v5249 = vmul.f32 %v5174, %v5118
        %v5250 = vmul.f32 %v5183, %v5142
        %v5251 = vmul.f32 %v5183, %v5143
        %v5252 = vmul.f32 %v5183, %v5144
        %v5253 = vmul.f32 %v5183, %v5145
        %v5254 = vmul.f32 %v5183, %v5146
        %v5255 = vmul.f32 %v5183, %v5147
        %v5256 = vmul.f32 %v5183, %v5148
        %v5257 = vmul.f32 %v5183, %v5149
        %v5258 = vadd.f32 %v5242, %v5250
        %v5259 = vadd.f32 %v5243, %v5251
        %v5260 = vadd.f32 %v5244, %v5252
        %v5261 = vadd.f32 %v5245, %v5253
        %v5262 = vadd.f32 %v5246, %v5254
        %v5263 = vadd.f32 %v5247, %v5255
        %v5264 = vadd.f32 %v5248, %v5256
        %v5265 = vadd.f32 %v5249, %v5257
        %v5266 = vmul.f32 %v5209, %v5166
        %v5267 = vmul.f32 %v5209, %v5167
        %v5268 = vmul.f32 %v5209, %v5168
        %v5269 = vmul.f32 %v5209, %v5169
        %v5270 = vmul.f32 %v5209, %v5170
        %v5271 = vmul.f32 %v5209, %v5171
        %v5272 = vmul.f32 %v5209, %v5172
        %v5273 = vmul.f32 %v5209, %v5173
        %v5274 = vmul.f32 %v5200, %v5047
        %v5275 = vmul.f32 %v5200, %v5048
        %v5276 = vmul.f32 %v5200, %v5049
        %v5277 = vmul.f32 %v5200, %v5050
        %v5278 = vmul.f32 %v5200, %v5051
        %v5279 = vmul.f32 %v5200, %v5052
        %v5280 = vmul.f32 %v5200, %v5053
        %v5281 = vmul.f32 %v5200, %v5054
        %v5282 = vsub.f32 %v5266, %v5274
        %v5283 = vsub.f32 %v5267, %v5275
        %v5284 = vsub.f32 %v5268, %v5276
        %v5285 = vsub.f32 %v5269, %v5277
        %v5286 = vsub.f32 %v5270, %v5278
        %v5287 = vsub.f32 %v5271, %v5279
        %v5288 = vsub.f32 %v5272, %v5280
        %v5289 = vsub.f32 %v5273, %v5281
        %v5290 = vmul.f32 %v634, %v5282
        %v5291 = vmul.f32 %v634, %v5283
        %v5292 = vmul.f32 %v634, %v5284
        %v5293 = vmul.f32 %v634, %v5285
        %v5294 = vmul.f32 %v634, %v5286
        %v5295 = vmul.f32 %v634, %v5287
        %v5296 = vmul.f32 %v634, %v5288
        %v5297 = vmul.f32 %v634, %v5289
        %v5298 = vadd.f32 %v5258, %v5290
        %v5299 = vadd.f32 %v5259, %v5291
        %v5300 = vadd.f32 %v5260, %v5292
        %v5301 = vadd.f32 %v5261, %v5293
        %v5302 = vadd.f32 %v5262, %v5294
        %v5303 = vadd.f32 %v5263, %v5295
        %v5304 = vadd.f32 %v5264, %v5296
        %v5305 = vadd.f32 %v5265, %v5297
        %s5306 = sld [smem:[#allocation4 + $0x336]]
        %s5307 = sld [smem:[#allocation4 + $0x337]]
        %s5308 = sld [smem:[#allocation4 + $0x338]]
        %s5309 = sld [smem:[#allocation4 + $0x339]]
        %v5310 = vrot.slane %v5234, 7
        %v5311 = vrot.slane %v5235, 7
        %v5312 = vrot.slane %v5236, 7
        %v5313 = vrot.slane %v5237, 7
        %v5314 = vrot.slane %v5238, 7
        %v5315 = vrot.slane %v5239, 7
        %v5316 = vrot.slane %v5240, 7
        %v5317 = vrot.slane %v5241, 7
        %v5318 = vrot.slane %v5234, 1
        %v5319 = vrot.slane %v5235, 1
        %v5320 = vrot.slane %v5236, 1
        %v5321 = vrot.slane %v5237, 1
        %v5322 = vrot.slane %v5238, 1
        %v5323 = vrot.slane %v5239, 1
        %v5324 = vrot.slane %v5240, 1
        %v5325 = vrot.slane %v5241, 1
        %vm5326 = vcmp.eq.s32.totalorder %v641, 1
        %v5327 = vsel %vm5326, 1, 0
        %vm5328 = vcmp.eq.s32.totalorder %v5327, 1
        %v5329 = vsel %vm5328, %v5310, %v5318
        %v5330 = vsel %vm5328, %v5311, %v5319
        %v5331 = vsel %vm5328, %v5312, %v5320
        %v5332 = vsel %vm5328, %v5313, %v5321
        %v5333 = vsel %vm5328, %v5314, %v5322
        %v5334 = vsel %vm5328, %v5315, %v5323
        %v5335 = vsel %vm5328, %v5316, %v5324
        %v5336 = vsel %vm5328, %v5317, %v5325
        %v5337 = vrot.slane %v5298, 7
        %v5338 = vrot.slane %v5299, 7
        %v5339 = vrot.slane %v5300, 7
        %v5340 = vrot.slane %v5301, 7
        %v5341 = vrot.slane %v5302, 7
        %v5342 = vrot.slane %v5303, 7
        %v5343 = vrot.slane %v5304, 7
        %v5344 = vrot.slane %v5305, 7
        %v5345 = vrot.slane %v5298, 1
        %v5346 = vrot.slane %v5299, 1
        %v5347 = vrot.slane %v5300, 1
        %v5348 = vrot.slane %v5301, 1
        %v5349 = vrot.slane %v5302, 1
        %v5350 = vrot.slane %v5303, 1
        %v5351 = vrot.slane %v5304, 1
        %v5352 = vrot.slane %v5305, 1
        %v5353 = vsel %vm5328, %v5337, %v5345
        %v5354 = vsel %vm5328, %v5338, %v5346
        %v5355 = vsel %vm5328, %v5339, %v5347
        %v5356 = vsel %vm5328, %v5340, %v5348
        %v5357 = vsel %vm5328, %v5341, %v5349
        %v5358 = vsel %vm5328, %v5342, %v5350
        %v5359 = vsel %vm5328, %v5343, %v5351
        %v5360 = vsel %vm5328, %v5344, %v5352
        %v5361 = vstv %s5306
        %v5362 = vmul.f32 %v5361, %v5234
        %v5363 = vmul.f32 %v5361, %v5235
        %v5364 = vmul.f32 %v5361, %v5236
        %v5365 = vmul.f32 %v5361, %v5237
        %v5366 = vmul.f32 %v5361, %v5238
        %v5367 = vmul.f32 %v5361, %v5239
        %v5368 = vmul.f32 %v5361, %v5240
        %v5369 = vmul.f32 %v5361, %v5241
        %v5370 = vstv %s5309
        %v5371 = vmul.f32 %v5370, %v5353
        %v5372 = vmul.f32 %v5370, %v5354
        %v5373 = vmul.f32 %v5370, %v5355
        %v5374 = vmul.f32 %v5370, %v5356
        %v5375 = vmul.f32 %v5370, %v5357
        %v5376 = vmul.f32 %v5370, %v5358
        %v5377 = vmul.f32 %v5370, %v5359
        %v5378 = vmul.f32 %v5370, %v5360
        %v5379 = vsub.f32 %v5362, %v5371
        %v5380 = vsub.f32 %v5363, %v5372
        %v5381 = vsub.f32 %v5364, %v5373
        %v5382 = vsub.f32 %v5365, %v5374
        %v5383 = vsub.f32 %v5366, %v5375
        %v5384 = vsub.f32 %v5367, %v5376
        %v5385 = vsub.f32 %v5368, %v5377
        %v5386 = vsub.f32 %v5369, %v5378
        %v5387 = vstv %s5307
        %v5388 = vmul.f32 %v5387, %v5298
        %v5389 = vmul.f32 %v5387, %v5299
        %v5390 = vmul.f32 %v5387, %v5300
        %v5391 = vmul.f32 %v5387, %v5301
        %v5392 = vmul.f32 %v5387, %v5302
        %v5393 = vmul.f32 %v5387, %v5303
        %v5394 = vmul.f32 %v5387, %v5304
        %v5395 = vmul.f32 %v5387, %v5305
        %v5396 = vstv %s5308
        %v5397 = vmul.f32 %v5396, %v5329
        %v5398 = vmul.f32 %v5396, %v5330
        %v5399 = vmul.f32 %v5396, %v5331
        %v5400 = vmul.f32 %v5396, %v5332
        %v5401 = vmul.f32 %v5396, %v5333
        %v5402 = vmul.f32 %v5396, %v5334
        %v5403 = vmul.f32 %v5396, %v5335
        %v5404 = vmul.f32 %v5396, %v5336
        %v5405 = vadd.f32 %v5388, %v5397
        %v5406 = vadd.f32 %v5389, %v5398
        %v5407 = vadd.f32 %v5390, %v5399
        %v5408 = vadd.f32 %v5391, %v5400
        %v5409 = vadd.f32 %v5392, %v5401
        %v5410 = vadd.f32 %v5393, %v5402
        %v5411 = vadd.f32 %v5394, %v5403
        %v5412 = vadd.f32 %v5395, %v5404
        %v5413 = vmul.f32 %v644, %v5405
        %v5414 = vmul.f32 %v644, %v5406
        %v5415 = vmul.f32 %v644, %v5407
        %v5416 = vmul.f32 %v644, %v5408
        %v5417 = vmul.f32 %v644, %v5409
        %v5418 = vmul.f32 %v644, %v5410
        %v5419 = vmul.f32 %v644, %v5411
        %v5420 = vmul.f32 %v644, %v5412
        %v5421 = vadd.f32 %v5379, %v5413
        %v5422 = vadd.f32 %v5380, %v5414
        %v5423 = vadd.f32 %v5381, %v5415
        %v5424 = vadd.f32 %v5382, %v5416
        %v5425 = vadd.f32 %v5383, %v5417
        %v5426 = vadd.f32 %v5384, %v5418
        %v5427 = vadd.f32 %v5385, %v5419
        %v5428 = vadd.f32 %v5386, %v5420
        %v5429 = vmul.f32 %v5361, %v5298
        %v5430 = vmul.f32 %v5361, %v5299
        %v5431 = vmul.f32 %v5361, %v5300
        %v5432 = vmul.f32 %v5361, %v5301
        %v5433 = vmul.f32 %v5361, %v5302
        %v5434 = vmul.f32 %v5361, %v5303
        %v5435 = vmul.f32 %v5361, %v5304
        %v5436 = vmul.f32 %v5361, %v5305
        %v5437 = vmul.f32 %v5370, %v5329
        %v5438 = vmul.f32 %v5370, %v5330
        %v5439 = vmul.f32 %v5370, %v5331
        %v5440 = vmul.f32 %v5370, %v5332
        %v5441 = vmul.f32 %v5370, %v5333
        %v5442 = vmul.f32 %v5370, %v5334
        %v5443 = vmul.f32 %v5370, %v5335
        %v5444 = vmul.f32 %v5370, %v5336
        %v5445 = vadd.f32 %v5429, %v5437
        %v5446 = vadd.f32 %v5430, %v5438
        %v5447 = vadd.f32 %v5431, %v5439
        %v5448 = vadd.f32 %v5432, %v5440
        %v5449 = vadd.f32 %v5433, %v5441
        %v5450 = vadd.f32 %v5434, %v5442
        %v5451 = vadd.f32 %v5435, %v5443
        %v5452 = vadd.f32 %v5436, %v5444
        %v5453 = vmul.f32 %v5396, %v5353
        %v5454 = vmul.f32 %v5396, %v5354
        %v5455 = vmul.f32 %v5396, %v5355
        %v5456 = vmul.f32 %v5396, %v5356
        %v5457 = vmul.f32 %v5396, %v5357
        %v5458 = vmul.f32 %v5396, %v5358
        %v5459 = vmul.f32 %v5396, %v5359
        %v5460 = vmul.f32 %v5396, %v5360
        %v5461 = vmul.f32 %v5387, %v5234
        %v5462 = vmul.f32 %v5387, %v5235
        %v5463 = vmul.f32 %v5387, %v5236
        %v5464 = vmul.f32 %v5387, %v5237
        %v5465 = vmul.f32 %v5387, %v5238
        %v5466 = vmul.f32 %v5387, %v5239
        %v5467 = vmul.f32 %v5387, %v5240
        %v5468 = vmul.f32 %v5387, %v5241
        %v5469 = vsub.f32 %v5453, %v5461
        %v5470 = vsub.f32 %v5454, %v5462
        %v5471 = vsub.f32 %v5455, %v5463
        %v5472 = vsub.f32 %v5456, %v5464
        %v5473 = vsub.f32 %v5457, %v5465
        %v5474 = vsub.f32 %v5458, %v5466
        %v5475 = vsub.f32 %v5459, %v5467
        %v5476 = vsub.f32 %v5460, %v5468
        %v5477 = vmul.f32 %v644, %v5469
        %v5478 = vmul.f32 %v644, %v5470
        %v5479 = vmul.f32 %v644, %v5471
        %v5480 = vmul.f32 %v644, %v5472
        %v5481 = vmul.f32 %v644, %v5473
        %v5482 = vmul.f32 %v644, %v5474
        %v5483 = vmul.f32 %v644, %v5475
        %v5484 = vmul.f32 %v644, %v5476
        %v5485 = vadd.f32 %v5445, %v5477
        %v5486 = vadd.f32 %v5446, %v5478
        %v5487 = vadd.f32 %v5447, %v5479
        %v5488 = vadd.f32 %v5448, %v5480
        %v5489 = vadd.f32 %v5449, %v5481
        %v5490 = vadd.f32 %v5450, %v5482
        %v5491 = vadd.f32 %v5451, %v5483
        %v5492 = vadd.f32 %v5452, %v5484
        %s5493 = sld [smem:[#allocation4 + $0x31c]]
        %s5494 = sld [smem:[#allocation4 + $0x31d]]
        %v5495 = vstv %s5493
        %v5496 = vmul.f32 %v5495, %v5421
        %v5497 = vmul.f32 %v5495, %v5422
        %v5498 = vmul.f32 %v5495, %v5423
        %v5499 = vmul.f32 %v5495, %v5424
        %v5500 = vstv %s5494
        %v5501 = vmul.f32 %v5500, %v5489
        %v5502 = vmul.f32 %v5500, %v5490
        %v5503 = vmul.f32 %v5500, %v5491
        %v5504 = vmul.f32 %v5500, %v5492
        %v5505 = vadd.f32 %v5496, %v5501
        %v5506 = vadd.f32 %v5497, %v5502
        %v5507 = vadd.f32 %v5498, %v5503
        %v5508 = vadd.f32 %v5499, %v5504
        %v5509 = vmul.f32 %v5495, %v5485
        %v5510 = vmul.f32 %v5495, %v5486
        %v5511 = vmul.f32 %v5495, %v5487
        %v5512 = vmul.f32 %v5495, %v5488
        %v5513 = vmul.f32 %v5500, %v5425
        %v5514 = vmul.f32 %v5500, %v5426
        %v5515 = vmul.f32 %v5500, %v5427
        %v5516 = vmul.f32 %v5500, %v5428
        %v5517 = vsub.f32 %v5509, %v5513
        %v5518 = vsub.f32 %v5510, %v5514
        %v5519 = vsub.f32 %v5511, %v5515
        %v5520 = vsub.f32 %v5512, %v5516
        %v5521 = vmul.f32 %v5495, %v5425
        %v5522 = vmul.f32 %v5495, %v5426
        %v5523 = vmul.f32 %v5495, %v5427
        %v5524 = vmul.f32 %v5495, %v5428
        %v5525 = vmul.f32 %v5500, %v5485
        %v5526 = vmul.f32 %v5500, %v5486
        %v5527 = vmul.f32 %v5500, %v5487
        %v5528 = vmul.f32 %v5500, %v5488
        %v5529 = vadd.f32 %v5521, %v5525
        %v5530 = vadd.f32 %v5522, %v5526
        %v5531 = vadd.f32 %v5523, %v5527
        %v5532 = vadd.f32 %v5524, %v5528
        %v5533 = vmul.f32 %v5495, %v5489
        %v5534 = vmul.f32 %v5495, %v5490
        %v5535 = vmul.f32 %v5495, %v5491
        %v5536 = vmul.f32 %v5495, %v5492
        %v5537 = vmul.f32 %v5500, %v5421
        %v5538 = vmul.f32 %v5500, %v5422
        %v5539 = vmul.f32 %v5500, %v5423
        %v5540 = vmul.f32 %v5500, %v5424
        %v5541 = vsub.f32 %v5533, %v5537
        %v5542 = vsub.f32 %v5534, %v5538
        %v5543 = vsub.f32 %v5535, %v5539
        %v5544 = vsub.f32 %v5536, %v5540
        %v5545 = vsel %vm5328, %v5505, %v5421
        %v5546 = vsel %vm5328, %v5506, %v5422
        %v5547 = vsel %vm5328, %v5507, %v5423
        %v5548 = vsel %vm5328, %v5508, %v5424
        %v5549 = vsel %vm5328, %v5529, %v5425
        %v5550 = vsel %vm5328, %v5530, %v5426
        %v5551 = vsel %vm5328, %v5531, %v5427
        %v5552 = vsel %vm5328, %v5532, %v5428
        %v5553 = vsel %vm5328, %v5517, %v5485
        %v5554 = vsel %vm5328, %v5518, %v5486
        %v5555 = vsel %vm5328, %v5519, %v5487
        %v5556 = vsel %vm5328, %v5520, %v5488
        %v5557 = vsel %vm5328, %v5541, %v5489
        %v5558 = vsel %vm5328, %v5542, %v5490
        %v5559 = vsel %vm5328, %v5543, %v5491
        %v5560 = vsel %vm5328, %v5544, %v5492
        %s5561 = sld [smem:[#allocation4 + $0x322]]
        %s5562 = sld [smem:[#allocation4 + $0x323]]
        %v5563 = vrot.slane %v5545, 7
        %v5564 = vrot.slane %v5546, 7
        %v5565 = vrot.slane %v5547, 7
        %v5566 = vrot.slane %v5548, 7
        %v5567 = vrot.slane %v5549, 7
        %v5568 = vrot.slane %v5550, 7
        %v5569 = vrot.slane %v5551, 7
        %v5570 = vrot.slane %v5552, 7
        %v5571 = vrot.slane %v5545, 1
        %v5572 = vrot.slane %v5546, 1
        %v5573 = vrot.slane %v5547, 1
        %v5574 = vrot.slane %v5548, 1
        %v5575 = vrot.slane %v5549, 1
        %v5576 = vrot.slane %v5550, 1
        %v5577 = vrot.slane %v5551, 1
        %v5578 = vrot.slane %v5552, 1
        %v5579 = vsel %vm5328, %v5563, %v5571
        %v5580 = vsel %vm5328, %v5564, %v5572
        %v5581 = vsel %vm5328, %v5565, %v5573
        %v5582 = vsel %vm5328, %v5566, %v5574
        %v5583 = vsel %vm5328, %v5567, %v5575
        %v5584 = vsel %vm5328, %v5568, %v5576
        %v5585 = vsel %vm5328, %v5569, %v5577
        %v5586 = vsel %vm5328, %v5570, %v5578
        %v5587 = vrot.slane %v5553, 7
        %v5588 = vrot.slane %v5554, 7
        %v5589 = vrot.slane %v5555, 7
        %v5590 = vrot.slane %v5556, 7
        %v5591 = vrot.slane %v5557, 7
        %v5592 = vrot.slane %v5558, 7
        %v5593 = vrot.slane %v5559, 7
        %v5594 = vrot.slane %v5560, 7
        %v5595 = vrot.slane %v5553, 1
        %v5596 = vrot.slane %v5554, 1
        %v5597 = vrot.slane %v5555, 1
        %v5598 = vrot.slane %v5556, 1
        %v5599 = vrot.slane %v5557, 1
        %v5600 = vrot.slane %v5558, 1
        %v5601 = vrot.slane %v5559, 1
        %v5602 = vrot.slane %v5560, 1
        %v5603 = vsel %vm5328, %v5587, %v5595
        %v5604 = vsel %vm5328, %v5588, %v5596
        %v5605 = vsel %vm5328, %v5589, %v5597
        %v5606 = vsel %vm5328, %v5590, %v5598
        %v5607 = vsel %vm5328, %v5591, %v5599
        %v5608 = vsel %vm5328, %v5592, %v5600
        %v5609 = vsel %vm5328, %v5593, %v5601
        %v5610 = vsel %vm5328, %v5594, %v5602
        %v5611 = vstv %s5561
        %v5612 = vmul.f32 %v5611, %v5545
        %v5613 = vmul.f32 %v5611, %v5546
        %v5614 = vmul.f32 %v5611, %v5547
        %v5615 = vmul.f32 %v5611, %v5548
        %v5616 = vmul.f32 %v5611, %v5549
        %v5617 = vmul.f32 %v5611, %v5550
        %v5618 = vmul.f32 %v5611, %v5551
        %v5619 = vmul.f32 %v5611, %v5552
        %v5620 = vstv %s5562
        %v5621 = vmul.f32 %v5620, %v5603
        %v5622 = vmul.f32 %v5620, %v5604
        %v5623 = vmul.f32 %v5620, %v5605
        %v5624 = vmul.f32 %v5620, %v5606
        %v5625 = vmul.f32 %v5620, %v5607
        %v5626 = vmul.f32 %v5620, %v5608
        %v5627 = vmul.f32 %v5620, %v5609
        %v5628 = vmul.f32 %v5620, %v5610
        %v5629 = vadd.f32 %v5612, %v5621
        %v5630 = vadd.f32 %v5613, %v5622
        %v5631 = vadd.f32 %v5614, %v5623
        %v5632 = vadd.f32 %v5615, %v5624
        %v5633 = vadd.f32 %v5616, %v5625
        %v5634 = vadd.f32 %v5617, %v5626
        %v5635 = vadd.f32 %v5618, %v5627
        %v5636 = vadd.f32 %v5619, %v5628
        %v5637 = vmul.f32 %v5611, %v5553
        %v5638 = vmul.f32 %v5611, %v5554
        %v5639 = vmul.f32 %v5611, %v5555
        %v5640 = vmul.f32 %v5611, %v5556
        %v5641 = vmul.f32 %v5611, %v5557
        %v5642 = vmul.f32 %v5611, %v5558
        %v5643 = vmul.f32 %v5611, %v5559
        %v5644 = vmul.f32 %v5611, %v5560
        %v5645 = vmul.f32 %v5620, %v5579
        %v5646 = vmul.f32 %v5620, %v5580
        %v5647 = vmul.f32 %v5620, %v5581
        %v5648 = vmul.f32 %v5620, %v5582
        %v5649 = vmul.f32 %v5620, %v5583
        %v5650 = vmul.f32 %v5620, %v5584
        %v5651 = vmul.f32 %v5620, %v5585
        %v5652 = vmul.f32 %v5620, %v5586
        %v5653 = vsub.f32 %v5637, %v5645
        %v5654 = vsub.f32 %v5638, %v5646
        %v5655 = vsub.f32 %v5639, %v5647
        %v5656 = vsub.f32 %v5640, %v5648
        %v5657 = vsub.f32 %v5641, %v5649
        %v5658 = vsub.f32 %v5642, %v5650
        %v5659 = vsub.f32 %v5643, %v5651
        %v5660 = vsub.f32 %v5644, %v5652
        %v5661 = vsel %vm5141, %v5629, %v5545
        %v5662 = vsel %vm5141, %v5630, %v5546
        %v5663 = vsel %vm5141, %v5631, %v5547
        %v5664 = vsel %vm5141, %v5632, %v5548
        %v5665 = vsel %vm5141, %v5633, %v5549
        %v5666 = vsel %vm5141, %v5634, %v5550
        %v5667 = vsel %vm5141, %v5635, %v5551
        %v5668 = vsel %vm5141, %v5636, %v5552
        %v5669 = vsel %vm5141, %v5653, %v5553
        %v5670 = vsel %vm5141, %v5654, %v5554
        %v5671 = vsel %vm5141, %v5655, %v5555
        %v5672 = vsel %vm5141, %v5656, %v5556
        %v5673 = vsel %vm5141, %v5657, %v5557
        %v5674 = vsel %vm5141, %v5658, %v5558
        %v5675 = vsel %vm5141, %v5659, %v5559
        %v5676 = vsel %vm5141, %v5660, %v5560
        %s5677 = sld [smem:[#allocation4 + $0x328]]
        %s5678 = sld [smem:[#allocation4 + $0x329]]
        %v5679 = vrot.slane %v5661, 6
        %v5680 = vrot.slane %v5662, 6
        %v5681 = vrot.slane %v5663, 6
        %v5682 = vrot.slane %v5664, 6
        %v5683 = vrot.slane %v5665, 6
        %v5684 = vrot.slane %v5666, 6
        %v5685 = vrot.slane %v5667, 6
        %v5686 = vrot.slane %v5668, 6
        %v5687 = vrot.slane %v5661, 2
        %v5688 = vrot.slane %v5662, 2
        %v5689 = vrot.slane %v5663, 2
        %v5690 = vrot.slane %v5664, 2
        %v5691 = vrot.slane %v5665, 2
        %v5692 = vrot.slane %v5666, 2
        %v5693 = vrot.slane %v5667, 2
        %v5694 = vrot.slane %v5668, 2
        %v5695 = vsel %vm5141, %v5679, %v5687
        %v5696 = vsel %vm5141, %v5680, %v5688
        %v5697 = vsel %vm5141, %v5681, %v5689
        %v5698 = vsel %vm5141, %v5682, %v5690
        %v5699 = vsel %vm5141, %v5683, %v5691
        %v5700 = vsel %vm5141, %v5684, %v5692
        %v5701 = vsel %vm5141, %v5685, %v5693
        %v5702 = vsel %vm5141, %v5686, %v5694
        %v5703 = vrot.slane %v5669, 6
        %v5704 = vrot.slane %v5670, 6
        %v5705 = vrot.slane %v5671, 6
        %v5706 = vrot.slane %v5672, 6
        %v5707 = vrot.slane %v5673, 6
        %v5708 = vrot.slane %v5674, 6
        %v5709 = vrot.slane %v5675, 6
        %v5710 = vrot.slane %v5676, 6
        %v5711 = vrot.slane %v5669, 2
        %v5712 = vrot.slane %v5670, 2
        %v5713 = vrot.slane %v5671, 2
        %v5714 = vrot.slane %v5672, 2
        %v5715 = vrot.slane %v5673, 2
        %v5716 = vrot.slane %v5674, 2
        %v5717 = vrot.slane %v5675, 2
        %v5718 = vrot.slane %v5676, 2
        %v5719 = vsel %vm5141, %v5703, %v5711
        %v5720 = vsel %vm5141, %v5704, %v5712
        %v5721 = vsel %vm5141, %v5705, %v5713
        %v5722 = vsel %vm5141, %v5706, %v5714
        %v5723 = vsel %vm5141, %v5707, %v5715
        %v5724 = vsel %vm5141, %v5708, %v5716
        %v5725 = vsel %vm5141, %v5709, %v5717
        %v5726 = vsel %vm5141, %v5710, %v5718
        %v5727 = vstv %s5677
        %v5728 = vmul.f32 %v5727, %v5661
        %v5729 = vmul.f32 %v5727, %v5662
        %v5730 = vmul.f32 %v5727, %v5663
        %v5731 = vmul.f32 %v5727, %v5664
        %v5732 = vmul.f32 %v5727, %v5665
        %v5733 = vmul.f32 %v5727, %v5666
        %v5734 = vmul.f32 %v5727, %v5667
        %v5735 = vmul.f32 %v5727, %v5668
        %v5736 = vstv %s5678
        %v5737 = vmul.f32 %v5736, %v5719
        %v5738 = vmul.f32 %v5736, %v5720
        %v5739 = vmul.f32 %v5736, %v5721
        %v5740 = vmul.f32 %v5736, %v5722
        %v5741 = vmul.f32 %v5736, %v5723
        %v5742 = vmul.f32 %v5736, %v5724
        %v5743 = vmul.f32 %v5736, %v5725
        %v5744 = vmul.f32 %v5736, %v5726
        %v5745 = vadd.f32 %v5728, %v5737
        %v5746 = vadd.f32 %v5729, %v5738
        %v5747 = vadd.f32 %v5730, %v5739
        %v5748 = vadd.f32 %v5731, %v5740
        %v5749 = vadd.f32 %v5732, %v5741
        %v5750 = vadd.f32 %v5733, %v5742
        %v5751 = vadd.f32 %v5734, %v5743
        %v5752 = vadd.f32 %v5735, %v5744
        %v5753 = vmul.f32 %v5727, %v5669
        %v5754 = vmul.f32 %v5727, %v5670
        %v5755 = vmul.f32 %v5727, %v5671
        %v5756 = vmul.f32 %v5727, %v5672
        %v5757 = vmul.f32 %v5727, %v5673
        %v5758 = vmul.f32 %v5727, %v5674
        %v5759 = vmul.f32 %v5727, %v5675
        %v5760 = vmul.f32 %v5727, %v5676
        %v5761 = vmul.f32 %v5736, %v5695
        %v5762 = vmul.f32 %v5736, %v5696
        %v5763 = vmul.f32 %v5736, %v5697
        %v5764 = vmul.f32 %v5736, %v5698
        %v5765 = vmul.f32 %v5736, %v5699
        %v5766 = vmul.f32 %v5736, %v5700
        %v5767 = vmul.f32 %v5736, %v5701
        %v5768 = vmul.f32 %v5736, %v5702
        %v5769 = vsub.f32 %v5753, %v5761
        %v5770 = vsub.f32 %v5754, %v5762
        %v5771 = vsub.f32 %v5755, %v5763
        %v5772 = vsub.f32 %v5756, %v5764
        %v5773 = vsub.f32 %v5757, %v5765
        %v5774 = vsub.f32 %v5758, %v5766
        %v5775 = vsub.f32 %v5759, %v5767
        %v5776 = vsub.f32 %v5760, %v5768
        %vm5777 = vcmp.eq.s32.totalorder %v620, 1
        %v5778 = vsel %vm5777, 1, 0
        %vm5779 = vcmp.eq.s32.totalorder %v5778, 1
        %v5780 = vsel %vm5779, %v5745, %v5661
        %v5781 = vsel %vm5779, %v5746, %v5662
        %v5782 = vsel %vm5779, %v5747, %v5663
        %v5783 = vsel %vm5779, %v5748, %v5664
        %v5784 = vsel %vm5779, %v5749, %v5665
        %v5785 = vsel %vm5779, %v5750, %v5666
        %v5786 = vsel %vm5779, %v5751, %v5667
        %v5787 = vsel %vm5779, %v5752, %v5668
        %v5788 = vsel %vm5779, %v5769, %v5669
        %v5789 = vsel %vm5779, %v5770, %v5670
        %v5790 = vsel %vm5779, %v5771, %v5671
        %v5791 = vsel %vm5779, %v5772, %v5672
        %v5792 = vsel %vm5779, %v5773, %v5673
        %v5793 = vsel %vm5779, %v5774, %v5674
        %v5794 = vsel %vm5779, %v5775, %v5675
        %v5795 = vsel %vm5779, %v5776, %v5676
        %s5796 = sld [smem:[#allocation4 + $0x32e]]
        %s5797 = sld [smem:[#allocation4 + $0x32f]]
        %v5798 = vrot.slane %v5781, 4
        %v5799 = vrot.slane %v5783, 4
        %v5800 = vrot.slane %v5785, 4
        %v5801 = vrot.slane %v5787, 4
        %v5802 = vrot.slane %v5789, 4
        %v5803 = vrot.slane %v5791, 4
        %v5804 = vrot.slane %v5793, 4
        %v5805 = vrot.slane %v5795, 4
        %v5806 = vstv %s5796
        %v5807 = vmul.f32 %v5806, %v5781
        %v5808 = vmul.f32 %v5806, %v5783
        %v5809 = vmul.f32 %v5806, %v5785
        %v5810 = vmul.f32 %v5806, %v5787
        %v5811 = vstv %s5797
        %v5812 = vmul.f32 %v5811, %v5802
        %v5813 = vmul.f32 %v5811, %v5803
        %v5814 = vmul.f32 %v5811, %v5804
        %v5815 = vmul.f32 %v5811, %v5805
        %v5816 = vadd.f32 %v5807, %v5812
        %v5817 = vadd.f32 %v5808, %v5813
        %v5818 = vadd.f32 %v5809, %v5814
        %v5819 = vadd.f32 %v5810, %v5815
        %v5820 = vmul.f32 %v5806, %v5789
        %v5821 = vmul.f32 %v5806, %v5791
        %v5822 = vmul.f32 %v5806, %v5793
        %v5823 = vmul.f32 %v5806, %v5795
        %v5824 = vmul.f32 %v5811, %v5798
        %v5825 = vmul.f32 %v5811, %v5799
        %v5826 = vmul.f32 %v5811, %v5800
        %v5827 = vmul.f32 %v5811, %v5801
        %v5828 = vsub.f32 %v5820, %v5824
        %v5829 = vsub.f32 %v5821, %v5825
        %v5830 = vsub.f32 %v5822, %v5826
        %v5831 = vsub.f32 %v5823, %v5827
        %s5832 = sld [smem:[#allocation4 + $0x334]]
        %s5833 = sld [smem:[#allocation4 + $0x335]]
        %v5834 = vstv %s5832
        %v5835 = vstv %s5833
        %v5836 = vmul.f32 %v5834, %v5782
        %v5837 = vmul.f32 %v5835, %v5829
        %v5838 = vadd.f32 %v5836, %v5837
        %v5839 = vmul.f32 %v5834, %v5790
        %v5840 = vmul.f32 %v5835, %v5817
        %v5841 = vsub.f32 %v5839, %v5840
        %v5842 = vmul.f32 %v5834, %v5817
        %v5843 = vmul.f32 %v5835, %v5790
        %v5844 = vadd.f32 %v5842, %v5843
        %v5845 = vmul.f32 %v5834, %v5829
        %v5846 = vmul.f32 %v5835, %v5782
        %v5847 = vsub.f32 %v5845, %v5846
        %v5848 = vmul.f32 %v5834, %v5786
        %v5849 = vmul.f32 %v5835, %v5831
        %v5850 = vadd.f32 %v5848, %v5849
        %v5851 = vmul.f32 %v5834, %v5794
        %v5852 = vmul.f32 %v5835, %v5819
        %v5853 = vsub.f32 %v5851, %v5852
        %v5854 = vmul.f32 %v5834, %v5819
        %v5855 = vmul.f32 %v5835, %v5794
        %v5856 = vadd.f32 %v5854, %v5855
        %v5857 = vmul.f32 %v5834, %v5831
        %v5858 = vmul.f32 %v5835, %v5786
        %v5859 = vsub.f32 %v5857, %v5858
        %s5860 = sld [smem:[#allocation4 + $0x33a]]
        %s5861 = sld [smem:[#allocation4 + $0x33b]]
        %v5862 = vstv %s5860
        %v5863 = vstv %s5861
        %v5864 = vmul.f32 %v5862, %v5784
        %v5865 = vmul.f32 %v5862, %v5818
        %v5866 = vmul.f32 %v5863, %v5853
        %v5867 = vmul.f32 %v5863, %v5859
        %v5868 = vadd.f32 %v5864, %v5866
        %v5869 = vadd.f32 %v5865, %v5867
        %v5870 = vmul.f32 %v5862, %v5792
        %v5871 = vmul.f32 %v5862, %v5830
        %v5872 = vmul.f32 %v5863, %v5850
        %v5873 = vmul.f32 %v5863, %v5856
        %v5874 = vsub.f32 %v5870, %v5872
        %v5875 = vsub.f32 %v5871, %v5873
        %v5876 = vmul.f32 %v5862, %v5850
        %v5877 = vmul.f32 %v5862, %v5856
        %v5878 = vmul.f32 %v5863, %v5792
        %v5879 = vmul.f32 %v5863, %v5830
        %v5880 = vadd.f32 %v5876, %v5878
        %v5881 = vadd.f32 %v5877, %v5879
        %v5882 = vmul.f32 %v5862, %v5853
        %v5883 = vmul.f32 %v5862, %v5859
        %v5884 = vmul.f32 %v5863, %v5784
        %v5885 = vmul.f32 %v5863, %v5818
        %v5886 = vsub.f32 %v5882, %v5884
        %v5887 = vsub.f32 %v5883, %v5885
        %v5888 = vmul.f32 %v5780, %v5780
        %v5889 = vmul.f32 %v5816, %v5816
        %v5890 = vmul.f32 %v5838, %v5838
        %v5891 = vmul.f32 %v5844, %v5844
        %v5892 = vmul.f32 %v5868, %v5868
        %v5893 = vmul.f32 %v5869, %v5869
        %v5894 = vmul.f32 %v5880, %v5880
        %v5895 = vmul.f32 %v5881, %v5881
        %v5896 = vmul.f32 %v5788, %v5788
        %v5897 = vmul.f32 %v5828, %v5828
        %v5898 = vmul.f32 %v5841, %v5841
        %v5899 = vmul.f32 %v5847, %v5847
        %v5900 = vmul.f32 %v5874, %v5874
        %v5901 = vmul.f32 %v5875, %v5875
        %v5902 = vmul.f32 %v5886, %v5886
        %v5903 = vmul.f32 %v5887, %v5887
        %v5904 = vadd.f32 %v5888, %v5896
        %v5905 = vadd.f32 %v5889, %v5897
        %v5906 = vadd.f32 %v5890, %v5898
        %v5907 = vadd.f32 %v5891, %v5899
        %v5908 = vadd.f32 %v5892, %v5900
        %v5909 = vadd.f32 %v5893, %v5901
        %v5910 = vadd.f32 %v5894, %v5902
        %v5911 = vadd.f32 %v5895, %v5903
        %v5912 = vadd.f32 %v5904, %v5905
        %v5913 = vadd.f32 %v5912, %v5906
        %v5914 = vadd.f32 %v5913, %v5907
        %v5915 = vadd.f32 %v5908, %v5909
        %v5916 = vadd.f32 %v5915, %v5910
        %v5917 = vadd.f32 %v5916, %v5911
        %v5918 = vsub.f32 %v5914, %v5917
        %v5919 = vrot.slane %v5918, 4
        %v5920 = vadd.f32 %v5918, %v5919
        %v5921 = vrot.slane %v5920, 2
        %v5922 = vadd.f32 %v5920, %v5921
        %v5923 = vrot.slane %v5922, 1
        %v5924 = vadd.f32 %v5922, %v5923
        %v5925 = vadd.f32 %v5924, 1.0
        %v5926 = vmul.f32 %v5925, 0.5
        %5927 = vst [vmem:[%s150] sm:$0x1] %v5926
        %p5928 = scmp.lt.s32.totalorder %s14, 3
        %s5929 = scalar_select %p5928, %s14, 3
        %s5930 = scalar_lea.vmem %s2, %s5929
        // Predicated region
        $region40: #{generator_forward.1} parent=27 // pred_check
          %p5931 = pneg %p79
        $region41: #{generator_forward.1} parent=27 // pred_check_branch
          %5933 = sbr.rel (%p5931) target = $region43
        $region42: #{generator_forward.1} parent=27 // pred_region
          _
        $region43: #{generator_forward.1} parent=27 // pred_fallthru
          _
      $region28: #{generator_forward.1} parent=5 // pred_fallthru
        _
      %p5934 = scmp.le.s32.totalorder 2, %s9
      // Predicated region
      $region44: #{generator_forward.1} parent=5 // pred_check
        %p5935 = pneg %p5934
      $region45: #{generator_forward.1} parent=5 // pred_check_branch
        %5937 = sbr.rel (%p5935) target = $region47
      $region46: #{generator_forward.1} parent=5 // pred_region
        %s5938 = ssub.s32 %s9, 2
        // Predicated region
        $region48: #{generator_forward.1} parent=46 // pred_check
          %p5939 = pneg %p85
        $region49: #{generator_forward.1} parent=46 // pred_check_branch
          %5941 = sbr.rel (%p5939) target = $region51
        $region50: #{generator_forward.1} parent=46 // pred_region
          %p5942 = scmp.lt.s32.totalorder %s15, 3
          %s5943 = scalar_select %p5942, %s15, 3
          %s5944 = scalar_lea.vmem %s2, %s5943
        $region51: #{generator_forward.1} parent=46 // pred_fallthru
          _
      $region47: #{generator_forward.1} parent=5 // pred_fallthru
        _
    $region6: #{generator_forward.1} parent=1 // loop_footer
      %s13 = sadd.s32 1, %s9
    $region7: #{generator_forward.1} parent=1 // loop_footer_branch
      %8 = sbr.rel target = $region3
    $region8: #{generator_forward.1} parent=1 // loop_exit
      _
    %5945 = vsyncpa [#allocation5], 1
    %s5946 = scalar_lea.sflag [#allocation5], 1
    %5947 = vsyncpa %s5946, 1

</llo_original>
